<compile_context>
chip_gen: v6e
topology: v6e:2x2x1
jax: 0.10.0
libtpu: 0.0.40
codegen_flags: <defaults>
</compile_context>

<pallas_src>
import functools

import numpy as np
import jax
import jax.numpy as jnp
from jax.experimental import pallas as pl
from jax.experimental.pallas import tpu as pltpu

K = 5            # conv kernel size
H1 = W1 = 28     # conv1 spatial size
C1 = 16          # conv1 out channels
H2 = W2 = 14     # conv2 spatial size (after pool1)
C2 = 32          # conv2 out channels
NCLASS = 10


# ----------------------------------------------------------------------------
# Fused kernel: conv1+relu+pool -> conv2+relu+pool -> linear, one batch block.
# Activation layout inside the kernel: rows = (batch, image_row),
# lanes = (image_col, channel)  -> always lane-dense (224 .. 1568 lanes).
# ----------------------------------------------------------------------------
def cnn_kernel(x_ref, t1_ref, b1_ref, t2_ref, b2_ref, wfc_ref, bfc_ref, o_ref,
               *, Bb):
    f32, bf16 = jnp.float32, jnp.bfloat16

    # ---------------- conv1 (5x5, pad 2) + bias + ReLU ----------------------
    x = x_ref[...]                                           # (Bb, 28, 28)
    zh = jnp.zeros((Bb, 2, W1), f32)
    xp = jnp.concatenate([zh, x, zh], axis=1)                # (Bb, 32, 28)
    zw = jnp.zeros((Bb, H1 + 4, 2), f32)
    xp = jnp.concatenate([zw, xp, zw], axis=2)               # (Bb, 32, 32)

    # Single MXU matmul: lhs lanes = (dy, padded col), rhs is banded weights.
    lhs1 = jnp.concatenate(
        [xp[:, dy:dy + H1, :].reshape(Bb * H1, W1 + 4) for dy in range(K)],
        axis=1).astype(bf16)                                 # (Bb*28, 160)
    y1 = jnp.dot(lhs1, t1_ref[...], preferred_element_type=f32)   # (Bb*28, 448)
    y1 = jnp.maximum(y1 + b1_ref[...], 0.0)                  # lanes = (w, c)

    # ---------------- 2x2 max-pool (on the value) ---------------------------
    ev = jnp.concatenate([y1[:, (2 * w) * C1:(2 * w) * C1 + C1]
                          for w in range(W1 // 2)], axis=1)
    od = jnp.concatenate([y1[:, (2 * w + 1) * C1:(2 * w + 1) * C1 + C1]
                          for w in range(W1 // 2)], axis=1)
    pw = jnp.maximum(ev, od)                                 # (Bb*28, 224)
    p1 = jnp.max(pw.reshape(Bb, H1 // 2, 2, (W1 // 2) * C1), axis=2)  # (Bb,14,224)

    # ---------------- conv2 (5x5, pad 2) + bias + ReLU ----------------------
    zwp = jnp.zeros((Bb, H2, 2 * C1), f32)
    a = jnp.concatenate([zwp, p1, zwp], axis=2)              # (Bb, 14, 288)
    zhp = jnp.zeros((Bb, 2, (W2 + 4) * C1), f32)
    a = jnp.concatenate([zhp, a, zhp], axis=1)               # (Bb, 18, 288)

    lhs2 = jnp.concatenate(
        [a[:, dy:dy + H2, :].reshape(Bb * H2, (W2 + 4) * C1) for dy in range(K)],
        axis=1).astype(bf16)                                 # (Bb*14, 1440)
    y2 = jnp.dot(lhs2, t2_ref[...], preferred_element_type=f32)   # (Bb*14, 448)
    y2 = jnp.maximum(y2 + b2_ref[...], 0.0)                  # lanes = (w, c)

    # ---------------- 2x2 max-pool ------------------------------------------
    ev2 = jnp.concatenate([y2[:, (2 * w) * C2:(2 * w) * C2 + C2]
                           for w in range(W2 // 2)], axis=1)
    od2 = jnp.concatenate([y2[:, (2 * w + 1) * C2:(2 * w + 1) * C2 + C2]
                           for w in range(W2 // 2)], axis=1)
    pw2 = jnp.maximum(ev2, od2)                              # (Bb*14, 224)
    p2 = jnp.max(pw2.reshape(Bb, H2 // 2, 2, (W2 // 2) * C2), axis=2)  # (Bb,7,224)

    # ---------------- fused linear epilogue ----------------------------------
    feat = jnp.concatenate([p2[:, h, :] for h in range(H2 // 2)], axis=1)  # (Bb,1568)
    o_ref[...] = (jnp.dot(feat.astype(bf16), wfc_ref[...],
                          preferred_element_type=f32) + bfc_ref[...])


# ----------------------------------------------------------------------------
# Host-side parameter conversion (PyTorch layouts -> kernel layouts).
# ----------------------------------------------------------------------------
def conv_to_banded(w_oihw, *, wp, w_out, dtype=jnp.bfloat16):
    """(O, I, KH, KW) -> (KH*wp*I, w_out*O) banded (Toeplitz) matrix so that
    [padded-input rows, lanes=(dy, padded col, in_ch)] @ T gives the conv
    output row with lanes = (out col, out channel)."""
    o, i, kh, kw = w_oihw.shape
    w_np = np.asarray(w_oihw, dtype=np.float32)
    t = np.zeros((kh, wp, i, w_out, o), np.float32)
    for dy in range(kh):
        for dx in range(kw):
            for w in range(w_out):
                t[dy, w + dx, :, w, :] = w_np[:, :, dy, dx].T   # (in_ch, out_ch)
    return jnp.asarray(t.reshape(kh * wp * i, w_out * o), dtype=dtype)


def fc_w_to_kernel(w_oi, C, H, W, dtype=jnp.bfloat16):
    # PyTorch flattens NCHW -> (B, C*H*W); the kernel flattens as (h, w, c).
    o = w_oi.shape[0]
    w = w_oi.reshape(o, C, H, W)
    w = jnp.transpose(w, (0, 2, 3, 1)).reshape(o, H * W * C)
    return jnp.transpose(w).astype(dtype)                    # (H*W*C, O)


def prepare_params(p_torch):
    return {
        "t1": conv_to_banded(p_torch["w1"], wp=W1 + 4, w_out=W1),   # (160, 448) bf16
        "b1": jnp.tile(p_torch["b1"].astype(jnp.float32), W1).reshape(1, W1 * C1),
        "t2": conv_to_banded(p_torch["w2"], wp=W2 + 4, w_out=W2),   # (1440, 448) bf16
        "b2": jnp.tile(p_torch["b2"].astype(jnp.float32), W2).reshape(1, W2 * C2),
        "wfc": fc_w_to_kernel(p_torch["wfc"], C2, H2 // 2, W2 // 2),  # (1568, 10) bf16
        "bfc": p_torch["bfc"].astype(jnp.float32).reshape(1, NCLASS),
    }


def _pick_batch_block(batch, batch_block):
    bb = min(batch, batch_block)
    while batch % bb:
        bb -= 1
    return bb


# ----------------------------------------------------------------------------
# Single fused pallas_call over batch blocks.
# ----------------------------------------------------------------------------
@functools.partial(jax.jit, static_argnames=("batch_block",))
def cnn_forward(x_nchw, params, batch_block=8):
    B = x_nchw.shape[0]
    x = x_nchw.reshape(B, H1, W1)          # Cin == 1 -> free squeeze
    bb = _pick_batch_block(B, batch_block)
    kernel = functools.partial(cnn_kernel, Bb=bb)
    return pl.pallas_call(
        kernel,
        out_shape=jax.ShapeDtypeStruct((B, NCLASS), jnp.float32),
        grid=(B // bb,),
        in_specs=[
            pl.BlockSpec((bb, H1, W1), lambda i: (i, 0, 0)),
            pl.BlockSpec((K * (W1 + 4), W1 * C1), lambda i: (0, 0)),
            pl.BlockSpec((1, W1 * C1), lambda i: (0, 0)),
            pl.BlockSpec((K * (W2 + 4) * C1, W2 * C2), lambda i: (0, 0)),
            pl.BlockSpec((1, W2 * C2), lambda i: (0, 0)),
            pl.BlockSpec(((H2 // 2) * (W2 // 2) * C2, NCLASS), lambda i: (0, 0)),
            pl.BlockSpec((1, NCLASS), lambda i: (0, 0)),
        ],
        out_specs=pl.BlockSpec((bb, NCLASS), lambda i: (i, 0)),
        compiler_params=pltpu.CompilerParams(
            dimension_semantics=("parallel",)),
    )(x, params["t1"], params["b1"], params["t2"], params["b2"],
      params["wfc"], params["bfc"])


# ----------------------------------------------------------------------------
# Pure-JAX f32 reference with exact PyTorch (NCHW) semantics, for verification.
# ----------------------------------------------------------------------------
def torch_ref_forward(x_nchw, p):
    def conv2d(x, w, b):
        y = jax.lax.conv_general_dilated(
            x, w, (1, 1), ((2, 2), (2, 2)),
            dimension_numbers=("NCHW", "OIHW", "NCHW"))
        return y + b[None, :, None, None]

    def maxpool2(x):
        return jax.lax.reduce_window(x, -jnp.inf, jax.lax.max,
                                     (1, 1, 2, 2), (1, 1, 2, 2), "VALID")

    x = maxpool2(jnp.maximum(conv2d(x_nchw, p["w1"], p["b1"]), 0.0))
    x = maxpool2(jnp.maximum(conv2d(x, p["w2"], p["b2"]), 0.0))
    xf = x.reshape(x.shape[0], -1)                     # NCHW flatten
    return xf @ p["wfc"].T + p["bfc"]


if __name__ == "__main__":
    key = jax.random.PRNGKey(0)
    ks = jax.random.split(key, 7)

    # Deterministic parameters in PyTorch shapes (Conv OIHW, Linear (out,in)).
    p_torch = {
        "w1": jax.random.normal(ks[0], (16, 1, 5, 5), jnp.float32) * 0.1,
        "b1": jax.random.normal(ks[1], (16,), jnp.float32) * 0.1,
        "w2": jax.random.normal(ks[2], (32, 16, 5, 5), jnp.float32) * 0.05,
        "b2": jax.random.normal(ks[3], (32,), jnp.float32) * 0.05,
        "wfc": jax.random.normal(ks[4], (10, 32 * 7 * 7), jnp.float32) * 0.02,
        "bfc": jax.random.normal(ks[5], (10,), jnp.float32) * 0.02,
    }
    params = prepare_params(p_torch)

    # Input must be 28x28 so the flatten feeds Linear(32*7*7, 10).
    x = jax.random.normal(ks[6], (2, 1, 28, 28), jnp.float32)

    out = cnn_forward(x, params)
    jax.block_until_ready(out)
    assert out.shape == (2, 10) and out.dtype == jnp.float32

    ref = torch_ref_forward(x, p_torch)
    err = float(jnp.max(jnp.abs(out - ref)))
    assert bool(jnp.allclose(out, ref, rtol=2e-2, atol=2e-2)), f"max abs err {err}"

    print("KERNEL_OK")
</pallas_src>

<mosaic_0001>
module attributes {stable_mosaic.version = 11 : i64} {
  func.func @cnn_kernel(%arg0: i32, %arg1: memref<2x28x28xf32, #tpu.memory_space<vmem>>, %arg2: memref<160x448xbf16, #tpu.memory_space<vmem>>, %arg3: memref<1x448xf32, #tpu.memory_space<vmem>>, %arg4: memref<1440x448xbf16, #tpu.memory_space<vmem>>, %arg5: memref<1x448xf32, #tpu.memory_space<vmem>>, %arg6: memref<1568x10xbf16, #tpu.memory_space<vmem>>, %arg7: memref<1x10xf32, #tpu.memory_space<vmem>>, %arg8: memref<2x10xf32, #tpu.memory_space<vmem>>) attributes {dimension_semantics = [#tpu.dimension_semantics<parallel>], iteration_bounds = array<i64: 1>, scalar_prefetch = 0 : i64, scratch_operands = 0 : i64, tpu.core_type = #tpu.core_type<tc>, window_params = [{transform_indices = @transform_0, window_bounds = array<i64: 2, 28, 28>}, {pipeline_mode = #tpu.pipeline_mode<synchronous>, transform_indices = @transform_1, window_bounds = array<i64: 160, 448>}, {pipeline_mode = #tpu.pipeline_mode<synchronous>, transform_indices = @transform_2, window_bounds = array<i64: 1, 448>}, {pipeline_mode = #tpu.pipeline_mode<synchronous>, transform_indices = @transform_3, window_bounds = array<i64: 1440, 448>}, {pipeline_mode = #tpu.pipeline_mode<synchronous>, transform_indices = @transform_4, window_bounds = array<i64: 1, 448>}, {pipeline_mode = #tpu.pipeline_mode<synchronous>, transform_indices = @transform_5, window_bounds = array<i64: 1568, 10>}, {pipeline_mode = #tpu.pipeline_mode<synchronous>, transform_indices = @transform_6, window_bounds = array<i64: 1, 10>}, {transform_indices = @transform_7, window_bounds = array<i64: 2, 10>}]} {
    %c0 = arith.constant 0 : index
    %c0_0 = arith.constant 0 : index
    %c0_1 = arith.constant 0 : index
    %0 = vector.load %arg1[%c0, %c0_0, %c0_1] : memref<2x28x28xf32, #tpu.memory_space<vmem>>, vector<2x28x28xf32>
    %cst = arith.constant 0.000000e+00 : f32
    %1 = vector.broadcast %cst : f32 to vector<2x2x28xf32>
    %2 = tpu.concatenate %1, %0, %1 in 1 : vector<2x2x28xf32>, vector<2x28x28xf32>, vector<2x2x28xf32> -> vector<2x32x28xf32>
    %cst_2 = arith.constant 0.000000e+00 : f32
    %3 = vector.broadcast %cst_2 : f32 to vector<2x32x2xf32>
    %4 = tpu.concatenate %3, %2, %3 in 2 : vector<2x32x2xf32>, vector<2x32x28xf32>, vector<2x32x2xf32> -> vector<2x32x32xf32>
    %5 = vector.extract_strided_slice %4 {offsets = [0, 0, 0], sizes = [2, 28, 32], strides = [1, 1, 1]} : vector<2x32x32xf32> to vector<2x28x32xf32>
    %6 = vector.shape_cast %5 : vector<2x28x32xf32> to vector<56x32xf32>
    %7 = vector.extract_strided_slice %4 {offsets = [0, 1, 0], sizes = [2, 28, 32], strides = [1, 1, 1]} : vector<2x32x32xf32> to vector<2x28x32xf32>
    %8 = vector.shape_cast %7 : vector<2x28x32xf32> to vector<56x32xf32>
    %9 = vector.extract_strided_slice %4 {offsets = [0, 2, 0], sizes = [2, 28, 32], strides = [1, 1, 1]} : vector<2x32x32xf32> to vector<2x28x32xf32>
    %10 = vector.shape_cast %9 : vector<2x28x32xf32> to vector<56x32xf32>
    %11 = vector.extract_strided_slice %4 {offsets = [0, 3, 0], sizes = [2, 28, 32], strides = [1, 1, 1]} : vector<2x32x32xf32> to vector<2x28x32xf32>
    %12 = vector.shape_cast %11 : vector<2x28x32xf32> to vector<56x32xf32>
    %13 = vector.extract_strided_slice %4 {offsets = [0, 4, 0], sizes = [2, 28, 32], strides = [1, 1, 1]} : vector<2x32x32xf32> to vector<2x28x32xf32>
    %14 = vector.shape_cast %13 : vector<2x28x32xf32> to vector<56x32xf32>
    %15 = tpu.concatenate %6, %8, %10, %12, %14 in 1 : vector<56x32xf32>, vector<56x32xf32>, vector<56x32xf32>, vector<56x32xf32>, vector<56x32xf32> -> vector<56x160xf32>
    %16 = arith.truncf %15 : vector<56x160xf32> to vector<56x160xbf16>
    %c0_3 = arith.constant 0 : index
    %c0_4 = arith.constant 0 : index
    %17 = vector.load %arg2[%c0_3, %c0_4] : memref<160x448xbf16, #tpu.memory_space<vmem>>, vector<160x448xbf16>
    %cst_5 = arith.constant dense<0.000000e+00> : vector<56x448xf32>
    %18 = tpu.matmul %16, %17, %cst_5 {dimension_numbers = #tpu.dot_dimension_numbers<[1], [0], [0], [1], [0, 0, 1, 1], [], []>} : vector<56x160xbf16>, vector<160x448xbf16>, vector<56x448xf32> -> vector<56x448xf32>
    %c0_6 = arith.constant 0 : index
    %c0_7 = arith.constant 0 : index
    %19 = vector.load %arg3[%c0_6, %c0_7] : memref<1x448xf32, #tpu.memory_space<vmem>>, vector<1x448xf32>
    %20 = vector.broadcast %19 : vector<1x448xf32> to vector<56x448xf32>
    %21 = arith.addf %18, %20 : vector<56x448xf32>
    %cst_8 = arith.constant 0.000000e+00 : f32
    %22 = vector.broadcast %cst_8 : f32 to vector<56x448xf32>
    %23 = arith.maximumf %21, %22 : vector<56x448xf32>
    %24 = vector.extract_strided_slice %23 {offsets = [0, 0], sizes = [56, 16], strides = [1, 1]} : vector<56x448xf32> to vector<56x16xf32>
    %25 = vector.extract_strided_slice %23 {offsets = [0, 32], sizes = [56, 16], strides = [1, 1]} : vector<56x448xf32> to vector<56x16xf32>
    %26 = vector.extract_strided_slice %23 {offsets = [0, 64], sizes = [56, 16], strides = [1, 1]} : vector<56x448xf32> to vector<56x16xf32>
    %27 = vector.extract_strided_slice %23 {offsets = [0, 96], sizes = [56, 16], strides = [1, 1]} : vector<56x448xf32> to vector<56x16xf32>
    %28 = vector.extract_strided_slice %23 {offsets = [0, 128], sizes = [56, 16], strides = [1, 1]} : vector<56x448xf32> to vector<56x16xf32>
    %29 = vector.extract_strided_slice %23 {offsets = [0, 160], sizes = [56, 16], strides = [1, 1]} : vector<56x448xf32> to vector<56x16xf32>
    %30 = vector.extract_strided_slice %23 {offsets = [0, 192], sizes = [56, 16], strides = [1, 1]} : vector<56x448xf32> to vector<56x16xf32>
    %31 = vector.extract_strided_slice %23 {offsets = [0, 224], sizes = [56, 16], strides = [1, 1]} : vector<56x448xf32> to vector<56x16xf32>
    %32 = vector.extract_strided_slice %23 {offsets = [0, 256], sizes = [56, 16], strides = [1, 1]} : vector<56x448xf32> to vector<56x16xf32>
    %33 = vector.extract_strided_slice %23 {offsets = [0, 288], sizes = [56, 16], strides = [1, 1]} : vector<56x448xf32> to vector<56x16xf32>
    %34 = vector.extract_strided_slice %23 {offsets = [0, 320], sizes = [56, 16], strides = [1, 1]} : vector<56x448xf32> to vector<56x16xf32>
    %35 = vector.extract_strided_slice %23 {offsets = [0, 352], sizes = [56, 16], strides = [1, 1]} : vector<56x448xf32> to vector<56x16xf32>
    %36 = vector.extract_strided_slice %23 {offsets = [0, 384], sizes = [56, 16], strides = [1, 1]} : vector<56x448xf32> to vector<56x16xf32>
    %37 = vector.extract_strided_slice %23 {offsets = [0, 416], sizes = [56, 16], strides = [1, 1]} : vector<56x448xf32> to vector<56x16xf32>
    %38 = tpu.concatenate %24, %25, %26, %27, %28, %29, %30, %31, %32, %33, %34, %35, %36, %37 in 1 : vector<56x16xf32>, vector<56x16xf32>, vector<56x16xf32>, vector<56x16xf32>, vector<56x16xf32>, vector<56x16xf32>, vector<56x16xf32>, vector<56x16xf32>, vector<56x16xf32>, vector<56x16xf32>, vector<56x16xf32>, vector<56x16xf32>, vector<56x16xf32>, vector<56x16xf32> -> vector<56x224xf32>
    %39 = vector.extract_strided_slice %23 {offsets = [0, 16], sizes = [56, 16], strides = [1, 1]} : vector<56x448xf32> to vector<56x16xf32>
    %40 = vector.extract_strided_slice %23 {offsets = [0, 48], sizes = [56, 16], strides = [1, 1]} : vector<56x448xf32> to vector<56x16xf32>
    %41 = vector.extract_strided_slice %23 {offsets = [0, 80], sizes = [56, 16], strides = [1, 1]} : vector<56x448xf32> to vector<56x16xf32>
    %42 = vector.extract_strided_slice %23 {offsets = [0, 112], sizes = [56, 16], strides = [1, 1]} : vector<56x448xf32> to vector<56x16xf32>
    %43 = vector.extract_strided_slice %23 {offsets = [0, 144], sizes = [56, 16], strides = [1, 1]} : vector<56x448xf32> to vector<56x16xf32>
    %44 = vector.extract_strided_slice %23 {offsets = [0, 176], sizes = [56, 16], strides = [1, 1]} : vector<56x448xf32> to vector<56x16xf32>
    %45 = vector.extract_strided_slice %23 {offsets = [0, 208], sizes = [56, 16], strides = [1, 1]} : vector<56x448xf32> to vector<56x16xf32>
    %46 = vector.extract_strided_slice %23 {offsets = [0, 240], sizes = [56, 16], strides = [1, 1]} : vector<56x448xf32> to vector<56x16xf32>
    %47 = vector.extract_strided_slice %23 {offsets = [0, 272], sizes = [56, 16], strides = [1, 1]} : vector<56x448xf32> to vector<56x16xf32>
    %48 = vector.extract_strided_slice %23 {offsets = [0, 304], sizes = [56, 16], strides = [1, 1]} : vector<56x448xf32> to vector<56x16xf32>
    %49 = vector.extract_strided_slice %23 {offsets = [0, 336], sizes = [56, 16], strides = [1, 1]} : vector<56x448xf32> to vector<56x16xf32>
    %50 = vector.extract_strided_slice %23 {offsets = [0, 368], sizes = [56, 16], strides = [1, 1]} : vector<56x448xf32> to vector<56x16xf32>
    %51 = vector.extract_strided_slice %23 {offsets = [0, 400], sizes = [56, 16], strides = [1, 1]} : vector<56x448xf32> to vector<56x16xf32>
    %52 = vector.extract_strided_slice %23 {offsets = [0, 432], sizes = [56, 16], strides = [1, 1]} : vector<56x448xf32> to vector<56x16xf32>
    %53 = tpu.concatenate %39, %40, %41, %42, %43, %44, %45, %46, %47, %48, %49, %50, %51, %52 in 1 : vector<56x16xf32>, vector<56x16xf32>, vector<56x16xf32>, vector<56x16xf32>, vector<56x16xf32>, vector<56x16xf32>, vector<56x16xf32>, vector<56x16xf32>, vector<56x16xf32>, vector<56x16xf32>, vector<56x16xf32>, vector<56x16xf32>, vector<56x16xf32>, vector<56x16xf32> -> vector<56x224xf32>
    %54 = arith.maximumf %38, %53 : vector<56x224xf32>
    %55 = vector.shape_cast %54 : vector<56x224xf32> to vector<2x14x2x224xf32>
    %cst_9 = arith.constant dense<0xFF800000> : vector<2x14x224xf32>
    %56 = vector.multi_reduction <maximumf>, %55, %cst_9 [2] : vector<2x14x2x224xf32> to vector<2x14x224xf32>
    %cst_10 = arith.constant 0.000000e+00 : f32
    %57 = vector.broadcast %cst_10 : f32 to vector<2x14x32xf32>
    %58 = tpu.concatenate %57, %56, %57 in 2 : vector<2x14x32xf32>, vector<2x14x224xf32>, vector<2x14x32xf32> -> vector<2x14x288xf32>
    %cst_11 = arith.constant 0.000000e+00 : f32
    %59 = vector.broadcast %cst_11 : f32 to vector<2x2x288xf32>
    %60 = tpu.concatenate %59, %58, %59 in 1 : vector<2x2x288xf32>, vector<2x14x288xf32>, vector<2x2x288xf32> -> vector<2x18x288xf32>
    %61 = vector.extract_strided_slice %60 {offsets = [0, 0, 0], sizes = [2, 14, 288], strides = [1, 1, 1]} : vector<2x18x288xf32> to vector<2x14x288xf32>
    %62 = vector.shape_cast %61 : vector<2x14x288xf32> to vector<28x288xf32>
    %63 = vector.extract_strided_slice %60 {offsets = [0, 1, 0], sizes = [2, 14, 288], strides = [1, 1, 1]} : vector<2x18x288xf32> to vector<2x14x288xf32>
    %64 = vector.shape_cast %63 : vector<2x14x288xf32> to vector<28x288xf32>
    %65 = vector.extract_strided_slice %60 {offsets = [0, 2, 0], sizes = [2, 14, 288], strides = [1, 1, 1]} : vector<2x18x288xf32> to vector<2x14x288xf32>
    %66 = vector.shape_cast %65 : vector<2x14x288xf32> to vector<28x288xf32>
    %67 = vector.extract_strided_slice %60 {offsets = [0, 3, 0], sizes = [2, 14, 288], strides = [1, 1, 1]} : vector<2x18x288xf32> to vector<2x14x288xf32>
    %68 = vector.shape_cast %67 : vector<2x14x288xf32> to vector<28x288xf32>
    %69 = vector.extract_strided_slice %60 {offsets = [0, 4, 0], sizes = [2, 14, 288], strides = [1, 1, 1]} : vector<2x18x288xf32> to vector<2x14x288xf32>
    %70 = vector.shape_cast %69 : vector<2x14x288xf32> to vector<28x288xf32>
    %71 = tpu.concatenate %62, %64, %66, %68, %70 in 1 : vector<28x288xf32>, vector<28x288xf32>, vector<28x288xf32>, vector<28x288xf32>, vector<28x288xf32> -> vector<28x1440xf32>
    %72 = arith.truncf %71 : vector<28x1440xf32> to vector<28x1440xbf16>
    %c0_12 = arith.constant 0 : index
    %c0_13 = arith.constant 0 : index
    %73 = vector.load %arg4[%c0_12, %c0_13] : memref<1440x448xbf16, #tpu.memory_space<vmem>>, vector<1440x448xbf16>
    %cst_14 = arith.constant dense<0.000000e+00> : vector<28x448xf32>
    %74 = tpu.matmul %72, %73, %cst_14 {dimension_numbers = #tpu.dot_dimension_numbers<[1], [0], [0], [1], [0, 0, 1, 1], [], []>} : vector<28x1440xbf16>, vector<1440x448xbf16>, vector<28x448xf32> -> vector<28x448xf32>
    %c0_15 = arith.constant 0 : index
    %c0_16 = arith.constant 0 : index
    %75 = vector.load %arg5[%c0_15, %c0_16] : memref<1x448xf32, #tpu.memory_space<vmem>>, vector<1x448xf32>
    %76 = vector.broadcast %75 : vector<1x448xf32> to vector<28x448xf32>
    %77 = arith.addf %74, %76 : vector<28x448xf32>
    %cst_17 = arith.constant 0.000000e+00 : f32
    %78 = vector.broadcast %cst_17 : f32 to vector<28x448xf32>
    %79 = arith.maximumf %77, %78 : vector<28x448xf32>
    %80 = vector.extract_strided_slice %79 {offsets = [0, 0], sizes = [28, 32], strides = [1, 1]} : vector<28x448xf32> to vector<28x32xf32>
    %81 = vector.extract_strided_slice %79 {offsets = [0, 64], sizes = [28, 32], strides = [1, 1]} : vector<28x448xf32> to vector<28x32xf32>
    %82 = vector.extract_strided_slice %79 {offsets = [0, 128], sizes = [28, 32], strides = [1, 1]} : vector<28x448xf32> to vector<28x32xf32>
    %83 = vector.extract_strided_slice %79 {offsets = [0, 192], sizes = [28, 32], strides = [1, 1]} : vector<28x448xf32> to vector<28x32xf32>
    %84 = vector.extract_strided_slice %79 {offsets = [0, 256], sizes = [28, 32], strides = [1, 1]} : vector<28x448xf32> to vector<28x32xf32>
    %85 = vector.extract_strided_slice %79 {offsets = [0, 320], sizes = [28, 32], strides = [1, 1]} : vector<28x448xf32> to vector<28x32xf32>
    %86 = vector.extract_strided_slice %79 {offsets = [0, 384], sizes = [28, 32], strides = [1, 1]} : vector<28x448xf32> to vector<28x32xf32>
    %87 = tpu.concatenate %80, %81, %82, %83, %84, %85, %86 in 1 : vector<28x32xf32>, vector<28x32xf32>, vector<28x32xf32>, vector<28x32xf32>, vector<28x32xf32>, vector<28x32xf32>, vector<28x32xf32> -> vector<28x224xf32>
    %88 = vector.extract_strided_slice %79 {offsets = [0, 32], sizes = [28, 32], strides = [1, 1]} : vector<28x448xf32> to vector<28x32xf32>
    %89 = vector.extract_strided_slice %79 {offsets = [0, 96], sizes = [28, 32], strides = [1, 1]} : vector<28x448xf32> to vector<28x32xf32>
    %90 = vector.extract_strided_slice %79 {offsets = [0, 160], sizes = [28, 32], strides = [1, 1]} : vector<28x448xf32> to vector<28x32xf32>
    %91 = vector.extract_strided_slice %79 {offsets = [0, 224], sizes = [28, 32], strides = [1, 1]} : vector<28x448xf32> to vector<28x32xf32>
    %92 = vector.extract_strided_slice %79 {offsets = [0, 288], sizes = [28, 32], strides = [1, 1]} : vector<28x448xf32> to vector<28x32xf32>
    %93 = vector.extract_strided_slice %79 {offsets = [0, 352], sizes = [28, 32], strides = [1, 1]} : vector<28x448xf32> to vector<28x32xf32>
    %94 = vector.extract_strided_slice %79 {offsets = [0, 416], sizes = [28, 32], strides = [1, 1]} : vector<28x448xf32> to vector<28x32xf32>
    %95 = tpu.concatenate %88, %89, %90, %91, %92, %93, %94 in 1 : vector<28x32xf32>, vector<28x32xf32>, vector<28x32xf32>, vector<28x32xf32>, vector<28x32xf32>, vector<28x32xf32>, vector<28x32xf32> -> vector<28x224xf32>
    %96 = arith.maximumf %87, %95 : vector<28x224xf32>
    %97 = vector.shape_cast %96 : vector<28x224xf32> to vector<2x7x2x224xf32>
    %cst_18 = arith.constant dense<0xFF800000> : vector<2x7x224xf32>
    %98 = vector.multi_reduction <maximumf>, %97, %cst_18 [2] : vector<2x7x2x224xf32> to vector<2x7x224xf32>
    %99 = vector.extract_strided_slice %98 {offsets = [0, 0, 0], sizes = [2, 1, 224], strides = [1, 1, 1]} : vector<2x7x224xf32> to vector<2x1x224xf32>
    %100 = vector.shape_cast %99 : vector<2x1x224xf32> to vector<2x224xf32>
    %101 = vector.extract_strided_slice %98 {offsets = [0, 1, 0], sizes = [2, 1, 224], strides = [1, 1, 1]} : vector<2x7x224xf32> to vector<2x1x224xf32>
    %102 = vector.shape_cast %101 : vector<2x1x224xf32> to vector<2x224xf32>
    %103 = vector.extract_strided_slice %98 {offsets = [0, 2, 0], sizes = [2, 1, 224], strides = [1, 1, 1]} : vector<2x7x224xf32> to vector<2x1x224xf32>
    %104 = vector.shape_cast %103 : vector<2x1x224xf32> to vector<2x224xf32>
    %105 = vector.extract_strided_slice %98 {offsets = [0, 3, 0], sizes = [2, 1, 224], strides = [1, 1, 1]} : vector<2x7x224xf32> to vector<2x1x224xf32>
    %106 = vector.shape_cast %105 : vector<2x1x224xf32> to vector<2x224xf32>
    %107 = vector.extract_strided_slice %98 {offsets = [0, 4, 0], sizes = [2, 1, 224], strides = [1, 1, 1]} : vector<2x7x224xf32> to vector<2x1x224xf32>
    %108 = vector.shape_cast %107 : vector<2x1x224xf32> to vector<2x224xf32>
    %109 = vector.extract_strided_slice %98 {offsets = [0, 5, 0], sizes = [2, 1, 224], strides = [1, 1, 1]} : vector<2x7x224xf32> to vector<2x1x224xf32>
    %110 = vector.shape_cast %109 : vector<2x1x224xf32> to vector<2x224xf32>
    %111 = vector.extract_strided_slice %98 {offsets = [0, 6, 0], sizes = [2, 1, 224], strides = [1, 1, 1]} : vector<2x7x224xf32> to vector<2x1x224xf32>
    %112 = vector.shape_cast %111 : vector<2x1x224xf32> to vector<2x224xf32>
    %113 = tpu.concatenate %100, %102, %104, %106, %108, %110, %112 in 1 : vector<2x224xf32>, vector<2x224xf32>, vector<2x224xf32>, vector<2x224xf32>, vector<2x224xf32>, vector<2x224xf32>, vector<2x224xf32> -> vector<2x1568xf32>
    %114 = arith.truncf %113 : vector<2x1568xf32> to vector<2x1568xbf16>
    %c0_19 = arith.constant 0 : index
    %c0_20 = arith.constant 0 : index
    %115 = vector.load %arg6[%c0_19, %c0_20] : memref<1568x10xbf16, #tpu.memory_space<vmem>>, vector<1568x10xbf16>
    %cst_21 = arith.constant dense<0.000000e+00> : vector<2x10xf32>
    %116 = tpu.matmul %114, %115, %cst_21 {dimension_numbers = #tpu.dot_dimension_numbers<[1], [0], [0], [1], [0, 0, 1, 1], [], []>} : vector<2x1568xbf16>, vector<1568x10xbf16>, vector<2x10xf32> -> vector<2x10xf32>
    %c0_22 = arith.constant 0 : index
    %c0_23 = arith.constant 0 : index
    %117 = vector.load %arg7[%c0_22, %c0_23] : memref<1x10xf32, #tpu.memory_space<vmem>>, vector<1x10xf32>
    %118 = vector.broadcast %117 : vector<1x10xf32> to vector<2x10xf32>
    %119 = arith.addf %116, %118 : vector<2x10xf32>
    %c0_24 = arith.constant 0 : index
    %c0_25 = arith.constant 0 : index
    %120 = vector.load %arg8[%c0_24, %c0_25] : memref<2x10xf32, #tpu.memory_space<vmem>>, vector<2x10xf32>
    tpu.vector_store %arg8[%c0_24, %c0_25], %119 {strides = array<i32>} : memref<2x10xf32, #tpu.memory_space<vmem>>, vector<2x10xf32>,
    return
  }
  func.func @transform_0(%arg0: i32) -> (i32, i32, i32) {
    %c0_i32 = arith.constant 0 : i32
    %c0_i32_0 = arith.constant 0 : i32
    %c0_i32_1 = arith.constant 0 : i32
    return %arg0, %c0_i32, %c0_i32_0 : i32, i32, i32
  }
  func.func @transform_1(%arg0: i32) -> (i32, i32) {
    %c0_i32 = arith.constant 0 : i32
    %c0_i32_0 = arith.constant 0 : i32
    %c0_i32_1 = arith.constant 0 : i32
    return %c0_i32, %c0_i32_0 : i32, i32
  }
  func.func @transform_2(%arg0: i32) -> (i32, i32) {
    %c0_i32 = arith.constant 0 : i32
    %c0_i32_0 = arith.constant 0 : i32
    %c0_i32_1 = arith.constant 0 : i32
    return %c0_i32, %c0_i32_0 : i32, i32
  }
  func.func @transform_3(%arg0: i32) -> (i32, i32) {
    %c0_i32 = arith.constant 0 : i32
    %c0_i32_0 = arith.constant 0 : i32
    %c0_i32_1 = arith.constant 0 : i32
    return %c0_i32, %c0_i32_0 : i32, i32
  }
  func.func @transform_4(%arg0: i32) -> (i32, i32) {
    %c0_i32 = arith.constant 0 : i32
    %c0_i32_0 = arith.constant 0 : i32
    %c0_i32_1 = arith.constant 0 : i32
    return %c0_i32, %c0_i32_0 : i32, i32
  }
  func.func @transform_5(%arg0: i32) -> (i32, i32) {
    %c0_i32 = arith.constant 0 : i32
    %c0_i32_0 = arith.constant 0 : i32
    %c0_i32_1 = arith.constant 0 : i32
    return %c0_i32, %c0_i32_0 : i32, i32
  }
  func.func @transform_6(%arg0: i32) -> (i32, i32) {
    %c0_i32 = arith.constant 0 : i32
    %c0_i32_0 = arith.constant 0 : i32
    %c0_i32_1 = arith.constant 0 : i32
    return %c0_i32, %c0_i32_0 : i32, i32
  }
  func.func @transform_7(%arg0: i32) -> (i32, i32) {
    %c0_i32 = arith.constant 0 : i32
    %c0_i32_0 = arith.constant 0 : i32
    return %arg0, %c0_i32 : i32, i32
  }
}

</mosaic_0001>

<llo_original>
// kernel: cnn_forward.1
$region0: #{cnn_forward.1}
  #allocation0 [shape = 'u32[]', space=smem, size = 0x4, offset = 0x4, fixed_abs, tag = 'smem constant byte address 0x4 - core index']
  #allocation1 [shape = 'u32[144,128]{1,0:T(1,128)}', space=vmem, size = 0x12000, scoped, tag = 'internal scratch']
  %s0 = inlined_call_operand.vmem [shape: f32[2,28,28], index: 0, kind: input, shape index: {}]
  %s1 = inlined_call_operand.vmem [shape: bf16[160,448], index: 1, kind: input, shape index: {}]
  %s2 = inlined_call_operand.vmem [shape: f32[1,448], index: 2, kind: input, shape index: {}]
  %s3 = inlined_call_operand.vmem [shape: bf16[1440,448], index: 3, kind: input, shape index: {}]
  %s4 = inlined_call_operand.vmem [shape: f32[1,448], index: 4, kind: input, shape index: {}]
  %s5 = inlined_call_operand.vmem [shape: bf16[1568,10], index: 5, kind: input, shape index: {}]
  %s6 = inlined_call_operand.vmem [shape: f32[1,10], index: 6, kind: input, shape index: {}]
  %s7 = inlined_call_operand.hbm [shape: f32[2,10], index: 7, kind: output, shape index: {}]
  %s8 = sld [smem:[#allocation0]]
  $region38: #{cnn_forward.1} parent=0
    _
  %s10 = ssub.s32 1, %s8
  %s11 = scalar_select 0, %s10, %s8
  $region1: #{cnn_forward.1} parent=0
    #allocation2 [shape = 'u8[1024]{0}', space=vmem, size = 0x400, scoped, tag = 'output window, operand 0, single buffered']
    #allocation3 [shape = 's32[1]{0}', space=sflag, size = 0x4, scoped, tag = 'scoped memory for cnn_forward.1']
    %12 = vsyncpa [#allocation3], 0
    // Predicated region
    $region2: #{cnn_forward.1} parent=1 // pred_check
      _
    $region3: #{cnn_forward.1} parent=1 // pred_check_branch
      %14 = sbr.rel (0) target = $region5
    $region4: #{cnn_forward.1} parent=1 // pred_region
      _
    $region5: #{cnn_forward.1} parent=1 // pred_fallthru
      _
    // Predicated region
    $region6: #{cnn_forward.1} parent=1 // pred_check
      _
    $region7: #{cnn_forward.1} parent=1 // pred_check_branch
      %16 = sbr.rel (0) target = $region9
    $region8: #{cnn_forward.1} parent=1 // pred_region
      _
    $region9: #{cnn_forward.1} parent=1 // pred_fallthru
      _
    // Predicated region
    $region10: #{cnn_forward.1} parent=1 // pred_check
      _
    $region11: #{cnn_forward.1} parent=1 // pred_check_branch
      %18 = sbr.rel (0) target = $region13
    $region12: #{cnn_forward.1} parent=1 // pred_region
      _
    $region13: #{cnn_forward.1} parent=1 // pred_fallthru
      _
    // Predicated region
    $region14: #{cnn_forward.1} parent=1 // pred_check
      _
    $region15: #{cnn_forward.1} parent=1 // pred_check_branch
      %20 = sbr.rel (0) target = $region17
    $region16: #{cnn_forward.1} parent=1 // pred_region
      _
    $region17: #{cnn_forward.1} parent=1 // pred_fallthru
      _
    // Predicated region
    $region18: #{cnn_forward.1} parent=1 // pred_check
      _
    $region19: #{cnn_forward.1} parent=1 // pred_check_branch
      %22 = sbr.rel (0) target = $region21
    $region20: #{cnn_forward.1} parent=1 // pred_region
      _
    $region21: #{cnn_forward.1} parent=1 // pred_fallthru
      _
    // Predicated region
    $region22: #{cnn_forward.1} parent=1 // pred_check
      _
    $region23: #{cnn_forward.1} parent=1 // pred_check_branch
      %24 = sbr.rel (0) target = $region25
    $region24: #{cnn_forward.1} parent=1 // pred_region
      _
    $region25: #{cnn_forward.1} parent=1 // pred_fallthru
      _
    // Predicated region
    $region26: #{cnn_forward.1} parent=1 // pred_check
      _
    $region27: #{cnn_forward.1} parent=1 // pred_check_branch
      %26 = sbr.rel (0) target = $region29
    $region28: #{cnn_forward.1} parent=1 // pred_region
      _
    $region29: #{cnn_forward.1} parent=1 // pred_fallthru
      _
    %v28 = vld [vmem:[%s0] sm:$0xff]
    %v29 = vld [vmem:[%s0 + $0x8] sm:$0xff]
    %v30 = vld [vmem:[%s0 + $0x10] sm:$0xff]
    %v31 = vld [vmem:[%s0 + $0x18] sm:$0xf]
    %v32 = vld [vmem:[%s0 + $0x20] sm:$0xff]
    %v33 = vld [vmem:[%s0 + $0x28] sm:$0xff]
    %v34 = vld [vmem:[%s0 + $0x30] sm:$0xff]
    %v35 = vld [vmem:[%s0 + $0x38] sm:$0xf]
    %vm44 = vcmask 1041408
    %v45 = vrot.slane %v28, 6
    %v46 = vrot.slane %v29, 6
    %v47 = vsel %vm44, %v45, %v46
    %v48 = vrot.slane %v30, 6
    %v49 = vsel %vm44, %v46, %v48
    %v50 = vrot.slane %v31, 6
    %v51 = vsel %vm44, %v48, %v50
    %v52 = vrot.slane %v32, 6
    %v53 = vrot.slane %v33, 6
    %v54 = vsel %vm44, %v52, %v53
    %v55 = vrot.slane %v34, 6
    %v56 = vsel %vm44, %v53, %v55
    %v57 = vrot.slane %v35, 6
    %v58 = vsel %vm44, %v55, %v57
    %v63 = vsel %vm44, 0.0, %v45
    %v64 = vsel %vm44, 0.0, %v52
    %vm65 = vcmask 1045504
    %v66 = vsel %vm65, %v51, 0.0
    %v67 = vsel %vm65, %v58, 0.0
    %72 = vrot.lane.b32.xlu0 %v63, 2
    %v73 = vpop.permute.xlu0 %72
    %74 = vrot.lane.b32.xlu0 %v47, 2
    %v75 = vpop.permute.xlu0 %74
    %76 = vrot.lane.b32.xlu0 %v49, 2
    %v77 = vpop.permute.xlu0 %76
    %78 = vrot.lane.b32.xlu0 %v66, 2
    %v79 = vpop.permute.xlu0 %78
    %80 = vrot.lane.b32.xlu0 %v64, 2
    %v81 = vpop.permute.xlu0 %80
    %82 = vrot.lane.b32.xlu0 %v54, 2
    %v83 = vpop.permute.xlu0 %82
    %84 = vrot.lane.b32.xlu0 %v56, 2
    %v85 = vpop.permute.xlu0 %84
    %86 = vrot.lane.b32.xlu0 %v67, 2
    %v87 = vpop.permute.xlu0 %86
    %vm96 = vcmask 15360
    %v97 = vsel %vm96, 0.0, %v73
    %v98 = vsel %vm96, 0.0, %v75
    %v99 = vsel %vm96, 0.0, %v77
    %v100 = vsel %vm96, 0.0, %v79
    %v101 = vsel %vm96, 0.0, %v81
    %v102 = vsel %vm96, 0.0, %v83
    %v103 = vsel %vm96, 0.0, %v85
    %v104 = vsel %vm96, 0.0, %v87
    %vm105 = vcmask 244736
    %v106 = vsel %vm105, %v97, 0.0
    %v107 = vsel %vm105, %v98, 0.0
    %v108 = vsel %vm105, %v99, 0.0
    %v109 = vsel %vm105, %v100, 0.0
    %v110 = vsel %vm105, %v101, 0.0
    %v111 = vsel %vm105, %v102, 0.0
    %v112 = vsel %vm105, %v103, 0.0
    %v113 = vsel %vm105, %v104, 0.0
    %v122 = vcombine.high %v106, %v106
    %v123 = vcombine.high %v107, %v107
    %v124 = vcombine.high %v108, %v108
    %v125 = vcombine.high %v110, %v110
    %v126 = vcombine.high %v111, %v111
    %v127 = vcombine.high %v112, %v112
    %v128 = vcombine.high %v109, %v109
    %v129 = vcombine.high %v113, %v113
    %vm130 = vcmask 1042432
    %vm131 = vcmask 1046532
    %vm132 = vmor %vm130, %vm131
    %v133 = vrot.slane %v106, 5
    %v134 = vrot.slane %v133, 4
    %v135 = vrot.slane %v122, 5
    %v136 = vsel %vm132, %v134, %v135
    %v137 = vrot.slane %v135, 4
    %v138 = vrot.slane %v107, 5
    %v139 = vsel %vm132, %v137, %v138
    %v140 = vrot.slane %v138, 4
    %v141 = vrot.slane %v123, 5
    %v142 = vsel %vm132, %v140, %v141
    %v143 = vrot.slane %v141, 4
    %v144 = vrot.slane %v108, 5
    %v145 = vsel %vm132, %v143, %v144
    %v146 = vrot.slane %v144, 4
    %v147 = vrot.slane %v124, 5
    %v148 = vsel %vm132, %v146, %v147
    %v149 = vrot.slane %v147, 4
    %v150 = vrot.slane %v109, 5
    %v151 = vsel %vm132, %v149, %v150
    %v152 = vrot.slane %v150, 4
    %v153 = vrot.slane %v128, 5
    %v154 = vsel %vm132, %v152, %v153
    %v155 = vrot.slane %v110, 5
    %v156 = vrot.slane %v155, 4
    %v157 = vrot.slane %v125, 5
    %v158 = vsel %vm132, %v156, %v157
    %v159 = vrot.slane %v157, 4
    %v160 = vrot.slane %v111, 5
    %v161 = vsel %vm132, %v159, %v160
    %v162 = vrot.slane %v160, 4
    %v163 = vrot.slane %v126, 5
    %v164 = vsel %vm132, %v162, %v163
    %v165 = vrot.slane %v163, 4
    %v166 = vrot.slane %v112, 5
    %v167 = vsel %vm132, %v165, %v166
    %v168 = vrot.slane %v166, 4
    %v169 = vrot.slane %v127, 5
    %v170 = vsel %vm132, %v168, %v169
    %v171 = vrot.slane %v169, 4
    %v172 = vrot.slane %v113, 5
    %v173 = vsel %vm132, %v171, %v172
    %v174 = vrot.slane %v172, 4
    %v175 = vrot.slane %v129, 5
    %v176 = vsel %vm132, %v174, %v175
    %vm177 = vcmask 1045508
    %vm178 = vmor %vm44, %vm177
    %v179 = vrot.slane %v106, 6
    %v180 = vrot.slane %v179, 4
    %v181 = vrot.slane %v122, 6
    %v182 = vsel %vm178, %v180, %v181
    %v183 = vrot.slane %v181, 4
    %v184 = vrot.slane %v107, 6
    %v185 = vsel %vm178, %v183, %v184
    %v186 = vrot.slane %v184, 4
    %v187 = vrot.slane %v123, 6
    %v188 = vsel %vm178, %v186, %v187
    %v189 = vrot.slane %v187, 4
    %v190 = vrot.slane %v108, 6
    %v191 = vsel %vm178, %v189, %v190
    %v192 = vrot.slane %v190, 4
    %v193 = vrot.slane %v124, 6
    %v194 = vsel %vm178, %v192, %v193
    %v195 = vrot.slane %v193, 4
    %v196 = vrot.slane %v109, 6
    %v197 = vsel %vm178, %v195, %v196
    %v198 = vrot.slane %v196, 4
    %v199 = vrot.slane %v128, 6
    %v200 = vsel %vm178, %v198, %v199
    %v201 = vrot.slane %v110, 6
    %v202 = vrot.slane %v201, 4
    %v203 = vrot.slane %v125, 6
    %v204 = vsel %vm178, %v202, %v203
    %v205 = vrot.slane %v203, 4
    %v206 = vrot.slane %v111, 6
    %v207 = vsel %vm178, %v205, %v206
    %v208 = vrot.slane %v206, 4
    %v209 = vrot.slane %v126, 6
    %v210 = vsel %vm178, %v208, %v209
    %v211 = vrot.slane %v209, 4
    %v212 = vrot.slane %v112, 6
    %v213 = vsel %vm178, %v211, %v212
    %v214 = vrot.slane %v212, 4
    %v215 = vrot.slane %v127, 6
    %v216 = vsel %vm178, %v214, %v215
    %v217 = vrot.slane %v215, 4
    %v218 = vrot.slane %v113, 6
    %v219 = vsel %vm178, %v217, %v218
    %v220 = vrot.slane %v218, 4
    %v221 = vrot.slane %v129, 6
    %v222 = vsel %vm178, %v220, %v221
    %vm223 = vcmask 1040384
    %vm224 = vcmask 1044484
    %vm225 = vmor %vm223, %vm224
    %v226 = vrot.slane %v106, 7
    %v227 = vrot.slane %v226, 4
    %v228 = vrot.slane %v122, 7
    %v229 = vsel %vm225, %v227, %v228
    %v230 = vrot.slane %v228, 4
    %v231 = vrot.slane %v107, 7
    %v232 = vsel %vm225, %v230, %v231
    %v233 = vrot.slane %v231, 4
    %v234 = vrot.slane %v123, 7
    %v235 = vsel %vm225, %v233, %v234
    %v236 = vrot.slane %v234, 4
    %v237 = vrot.slane %v108, 7
    %v238 = vsel %vm225, %v236, %v237
    %v239 = vrot.slane %v237, 4
    %v240 = vrot.slane %v124, 7
    %v241 = vsel %vm225, %v239, %v240
    %v242 = vrot.slane %v240, 4
    %v243 = vrot.slane %v109, 7
    %v244 = vsel %vm225, %v242, %v243
    %v245 = vrot.slane %v243, 4
    %v246 = vrot.slane %v128, 7
    %v247 = vsel %vm225, %v245, %v246
    %v248 = vrot.slane %v110, 7
    %v249 = vrot.slane %v248, 4
    %v250 = vrot.slane %v125, 7
    %v251 = vsel %vm225, %v249, %v250
    %v252 = vrot.slane %v250, 4
    %v253 = vrot.slane %v111, 7
    %v254 = vsel %vm225, %v252, %v253
    %v255 = vrot.slane %v253, 4
    %v256 = vrot.slane %v126, 7
    %v257 = vsel %vm225, %v255, %v256
    %v258 = vrot.slane %v256, 4
    %v259 = vrot.slane %v112, 7
    %v260 = vsel %vm225, %v258, %v259
    %v261 = vrot.slane %v259, 4
    %v262 = vrot.slane %v127, 7
    %v263 = vsel %vm225, %v261, %v262
    %v264 = vrot.slane %v262, 4
    %v265 = vrot.slane %v113, 7
    %v266 = vsel %vm225, %v264, %v265
    %v267 = vrot.slane %v265, 4
    %v268 = vrot.slane %v129, 7
    %v269 = vsel %vm225, %v267, %v268
    %v270 = vcombine.low %v106, %v122
    %v271 = vcombine.low %v107, %v123
    %v272 = vcombine.low %v108, %v124
    %v273 = vcombine.low %v109, %v110
    %v274 = vcombine.low %v125, %v111
    %v275 = vcombine.low %v126, %v112
    %v276 = vcombine.low %v127, %v113
    %v284 = vcombine.low %v136, %v139
    %v285 = vcombine.low %v142, %v145
    %v286 = vcombine.low %v148, %v151
    %v287 = vcombine.low %v154, %v158
    %v288 = vcombine.low %v161, %v164
    %v289 = vcombine.low %v167, %v170
    %v290 = vcombine.low %v173, %v176
    %291 = vrot.lane.b32.xlu0 %v284, 32
    %v292 = vpop.permute.xlu0 %291
    %293 = vrot.lane.b32.xlu0 %v285, 32
    %v294 = vpop.permute.xlu0 %293
    %295 = vrot.lane.b32.xlu0 %v286, 32
    %v296 = vpop.permute.xlu0 %295
    %297 = vrot.lane.b32.xlu0 %v287, 32
    %v298 = vpop.permute.xlu0 %297
    %299 = vrot.lane.b32.xlu0 %v288, 32
    %v300 = vpop.permute.xlu0 %299
    %301 = vrot.lane.b32.xlu0 %v289, 32
    %v302 = vpop.permute.xlu0 %301
    %303 = vrot.lane.b32.xlu0 %v290, 32
    %v304 = vpop.permute.xlu0 %303
    %v312 = vcombine.low %v182, %v185
    %v313 = vcombine.low %v188, %v191
    %v314 = vcombine.low %v194, %v197
    %v315 = vcombine.low %v200, %v204
    %v316 = vcombine.low %v207, %v210
    %v317 = vcombine.low %v213, %v216
    %v318 = vcombine.low %v219, %v222
    %319 = vrot.lane.b32.xlu0 %v312, 64
    %v320 = vpop.permute.xlu0 %319
    %321 = vrot.lane.b32.xlu0 %v313, 64
    %v322 = vpop.permute.xlu0 %321
    %323 = vrot.lane.b32.xlu0 %v314, 64
    %v324 = vpop.permute.xlu0 %323
    %325 = vrot.lane.b32.xlu0 %v315, 64
    %v326 = vpop.permute.xlu0 %325
    %327 = vrot.lane.b32.xlu0 %v316, 64
    %v328 = vpop.permute.xlu0 %327
    %329 = vrot.lane.b32.xlu0 %v317, 64
    %v330 = vpop.permute.xlu0 %329
    %331 = vrot.lane.b32.xlu0 %v318, 64
    %v332 = vpop.permute.xlu0 %331
    %v340 = vcombine.low %v229, %v232
    %v341 = vcombine.low %v235, %v238
    %v342 = vcombine.low %v241, %v244
    %v343 = vcombine.low %v247, %v251
    %v344 = vcombine.low %v254, %v257
    %v345 = vcombine.low %v260, %v263
    %v346 = vcombine.low %v266, %v269
    %347 = vrot.lane.b32.xlu0 %v340, 96
    %v348 = vpop.permute.xlu0 %347
    %349 = vrot.lane.b32.xlu0 %v341, 96
    %v350 = vpop.permute.xlu0 %349
    %351 = vrot.lane.b32.xlu0 %v342, 96
    %v352 = vpop.permute.xlu0 %351
    %353 = vrot.lane.b32.xlu0 %v343, 96
    %v354 = vpop.permute.xlu0 %353
    %355 = vrot.lane.b32.xlu0 %v344, 96
    %v356 = vpop.permute.xlu0 %355
    %357 = vrot.lane.b32.xlu0 %v345, 96
    %v358 = vpop.permute.xlu0 %357
    %359 = vrot.lane.b32.xlu0 %v346, 96
    %v360 = vpop.permute.xlu0 %359
    %v368 = vcombine.low %v122, %v107
    %v369 = vcombine.low %v123, %v108
    %v370 = vcombine.low %v124, %v109
    %v371 = vcombine.low %v128, %v125
    %v372 = vcombine.low %v111, %v126
    %v373 = vcombine.low %v112, %v127
    %v374 = vcombine.low %v113, %v129
    %vm382 = vcmask 261120
    %v383 = vsel %vm382, %v270, %v292
    %v384 = vsel %vm382, %v271, %v294
    %v385 = vsel %vm382, %v272, %v296
    %v386 = vsel %vm382, %v273, %v298
    %v387 = vsel %vm382, %v274, %v300
    %v388 = vsel %vm382, %v275, %v302
    %v389 = vsel %vm382, %v276, %v304
    %vm390 = vcmask 523264
    %v391 = vsel %vm390, %v383, %v320
    %v392 = vsel %vm390, %v384, %v322
    %v393 = vsel %vm390, %v385, %v324
    %v394 = vsel %vm390, %v386, %v326
    %v395 = vsel %vm390, %v387, %v328
    %v396 = vsel %vm390, %v388, %v330
    %v397 = vsel %vm390, %v389, %v332
    %vm398 = vcmask 785408
    %v399 = vsel %vm398, %v391, %v348
    %v400 = vsel %vm398, %v392, %v350
    %v401 = vsel %vm398, %v393, %v352
    %v402 = vsel %vm398, %v394, %v354
    %v403 = vsel %vm398, %v395, %v356
    %v404 = vsel %vm398, %v396, %v358
    %v405 = vsel %vm398, %v397, %v360
    %v406 = vpack.c.bf16 %v400, %v399
    %v407 = vpack.c.bf16 %v369, %v368
    %v408 = vpack.c.bf16 %v402, %v401
    %v409 = vpack.c.bf16 %v371, %v370
    %v410 = vpack.c.bf16 %v404, %v403
    %v411 = vpack.c.bf16 %v373, %v372
    %v412 = vpack.c.bf16 %v405, %v405
    %v413 = vpack.c.bf16 %v374, %v374
    %v414 = vld [vmem:[%s1] sm:$0xff]
    %v415 = vld [vmem:[%s1 + $0x8] sm:$0xff]
    %v416 = vld [vmem:[%s1 + $0x10] sm:$0xff]
    %v417 = vld [vmem:[%s1 + $0x18] sm:$0xff]
    %v418 = vld [vmem:[%s1 + $0x20] sm:$0xff]
    %v419 = vld [vmem:[%s1 + $0x28] sm:$0xff]
    %v420 = vld [vmem:[%s1 + $0x30] sm:$0xff]
    %v421 = vld [vmem:[%s1 + $0x38] sm:$0xff]
    %v422 = vld [vmem:[%s1 + $0x40] sm:$0xff]
    %v423 = vld [vmem:[%s1 + $0x48] sm:$0xff]
    %v424 = vld [vmem:[%s1 + $0x50] sm:$0xff]
    %v425 = vld [vmem:[%s1 + $0x58] sm:$0xff]
    %v426 = vld [vmem:[%s1 + $0x60] sm:$0xff]
    %v427 = vld [vmem:[%s1 + $0x68] sm:$0xff]
    %v428 = vld [vmem:[%s1 + $0x70] sm:$0xff]
    %v429 = vld [vmem:[%s1 + $0x78] sm:$0xff]
    %v430 = vld [vmem:[%s1 + $0x80] sm:$0xff]
    %v431 = vld [vmem:[%s1 + $0x88] sm:$0xff]
    %v432 = vld [vmem:[%s1 + $0x90] sm:$0xff]
    %v433 = vld [vmem:[%s1 + $0x98] sm:$0xff]
    %v434 = vld [vmem:[%s1 + $0xa0] sm:$0xff]
    %v435 = vld [vmem:[%s1 + $0xa8] sm:$0xff]
    %v436 = vld [vmem:[%s1 + $0xb0] sm:$0xff]
    %v437 = vld [vmem:[%s1 + $0xb8] sm:$0xff]
    %v438 = vld [vmem:[%s1 + $0xc0] sm:$0xff]
    %v439 = vld [vmem:[%s1 + $0xc8] sm:$0xff]
    %v440 = vld [vmem:[%s1 + $0xd0] sm:$0xff]
    %v441 = vld [vmem:[%s1 + $0xd8] sm:$0xff]
    %v442 = vld [vmem:[%s1 + $0xe0] sm:$0xff]
    %v443 = vld [vmem:[%s1 + $0xe8] sm:$0xff]
    %v444 = vld [vmem:[%s1 + $0xf0] sm:$0xff]
    %v445 = vld [vmem:[%s1 + $0xf8] sm:$0xff]
    %v446 = vld [vmem:[%s1 + $0x100] sm:$0xff]
    %v447 = vld [vmem:[%s1 + $0x108] sm:$0xff]
    %v448 = vld [vmem:[%s1 + $0x110] sm:$0xff]
    %v449 = vld [vmem:[%s1 + $0x118] sm:$0xff]
    %v450 = vld [vmem:[%s1 + $0x120] sm:$0xff]
    %v451 = vld [vmem:[%s1 + $0x128] sm:$0xff]
    %v452 = vld [vmem:[%s1 + $0x130] sm:$0xff]
    %v453 = vld [vmem:[%s1 + $0x138] sm:$0xff]
    %v454 = vld [vmem:[%s2] sm:$0xf]
    %v456 = vlaneseq
    %v457 = vshrl.u32 %v456, 7
    %v458 = vsub.s32 0, %v457
    %v459 = vrot.slane %v454, %v458
    %v460 = vlaneseq
    %v461 = vshrl.u32 %v460, 7
    %v462 = vsub.s32 1, %v461
    %v463 = vrot.slane %v454, %v462
    %v464 = vlaneseq
    %v465 = vshrl.u32 %v464, 7
    %v466 = vsub.s32 2, %v465
    %v467 = vrot.slane %v454, %v466
    %v468 = vlaneseq
    %v469 = vshrl.u32 %v468, 7
    %v470 = vsub.s32 3, %v469
    %v471 = vrot.slane %v454, %v470
    %v516 = vunpack.c.l.b16 %v414
    %v517 = vunpack.c.h.b16 %v414
    %v518 = vunpack.c.l.b16 %v415
    %v519 = vunpack.c.h.b16 %v415
    %v520 = vunpack.c.l.b16 %v416
    %v521 = vunpack.c.h.b16 %v416
    %v522 = vunpack.c.l.b16 %v417
    %v523 = vunpack.c.h.b16 %v417
    %v524 = vunpack.c.l.b16 %v418
    %v525 = vunpack.c.h.b16 %v418
    %v526 = vunpack.c.l.b16 %v419
    %v527 = vunpack.c.h.b16 %v419
    %v528 = vunpack.c.l.b16 %v420
    %v529 = vunpack.c.h.b16 %v420
    %v530 = vunpack.c.l.b16 %v421
    %v531 = vunpack.c.h.b16 %v421
    %v532 = vunpack.c.l.b16 %v422
    %v533 = vunpack.c.h.b16 %v422
    %v534 = vunpack.c.l.b16 %v423
    %v535 = vunpack.c.h.b16 %v423
    %v536 = vunpack.c.l.b16 %v424
    %v537 = vunpack.c.h.b16 %v424
    %v538 = vunpack.c.l.b16 %v425
    %v539 = vunpack.c.h.b16 %v425
    %v540 = vunpack.c.l.b16 %v426
    %v541 = vunpack.c.h.b16 %v426
    %v542 = vunpack.c.l.b16 %v427
    %v543 = vunpack.c.h.b16 %v427
    %v544 = vunpack.c.l.b16 %v428
    %v545 = vunpack.c.h.b16 %v428
    %v546 = vunpack.c.l.b16 %v429
    %v547 = vunpack.c.h.b16 %v429
    %v548 = vunpack.c.l.b16 %v430
    %v549 = vunpack.c.h.b16 %v430
    %v550 = vunpack.c.l.b16 %v431
    %v551 = vunpack.c.h.b16 %v431
    %v552 = vunpack.c.l.b16 %v432
    %v553 = vunpack.c.h.b16 %v432
    %v554 = vunpack.c.l.b16 %v433
    %v555 = vunpack.c.h.b16 %v433
    %v556 = vunpack.c.l.b16 %v434
    %v557 = vunpack.c.h.b16 %v434
    %v558 = vunpack.c.l.b16 %v435
    %v559 = vunpack.c.h.b16 %v435
    %v560 = vunpack.c.l.b16 %v436
    %v561 = vunpack.c.h.b16 %v436
    %v562 = vunpack.c.l.b16 %v437
    %v563 = vunpack.c.h.b16 %v437
    %v564 = vunpack.c.l.b16 %v438
    %v565 = vunpack.c.h.b16 %v438
    %v566 = vunpack.c.l.b16 %v439
    %v567 = vunpack.c.h.b16 %v439
    %v568 = vunpack.c.l.b16 %v440
    %v569 = vunpack.c.h.b16 %v440
    %v570 = vunpack.c.l.b16 %v441
    %v571 = vunpack.c.h.b16 %v441
    %v572 = vunpack.c.l.b16 %v442
    %v573 = vunpack.c.h.b16 %v442
    %v574 = vunpack.c.l.b16 %v443
    %v575 = vunpack.c.h.b16 %v443
    %v576 = vunpack.c.l.b16 %v444
    %v577 = vunpack.c.h.b16 %v444
    %v578 = vunpack.c.l.b16 %v445
    %v579 = vunpack.c.h.b16 %v445
    %v580 = vunpack.c.l.b16 %v446
    %v581 = vunpack.c.h.b16 %v446
    %v582 = vunpack.c.l.b16 %v447
    %v583 = vunpack.c.h.b16 %v447
    %v584 = vunpack.c.l.b16 %v448
    %v585 = vunpack.c.h.b16 %v448
    %v586 = vunpack.c.l.b16 %v449
    %v587 = vunpack.c.h.b16 %v449
    %v588 = vunpack.c.l.b16 %v450
    %v589 = vunpack.c.h.b16 %v450
    %v590 = vunpack.c.l.b16 %v451
    %v591 = vunpack.c.h.b16 %v451
    %v592 = vunpack.c.l.b16 %v452
    %v593 = vunpack.c.h.b16 %v452
    %v594 = vunpack.c.l.b16 %v453
    %v595 = vunpack.c.h.b16 %v453
    %v596 = vpack.c.b16 %v520, %v516
    %v597 = vpack.c.b16 %v521, %v517
    %v598 = vpack.c.b16 %v522, %v518
    %v599 = vpack.c.b16 %v523, %v519
    %v600 = vpack.c.b16 %v528, %v524
    %v601 = vpack.c.b16 %v529, %v525
    %v602 = vpack.c.b16 %v530, %v526
    %v603 = vpack.c.b16 %v531, %v527
    %v604 = vpack.c.b16 %v536, %v532
    %v605 = vpack.c.b16 %v537, %v533
    %v606 = vpack.c.b16 %v538, %v534
    %v607 = vpack.c.b16 %v539, %v535
    %v608 = vpack.c.b16 %v544, %v540
    %v609 = vpack.c.b16 %v545, %v541
    %v610 = vpack.c.b16 %v546, %v542
    %v611 = vpack.c.b16 %v547, %v543
    %v612 = vpack.c.b16 %v552, %v548
    %v613 = vpack.c.b16 %v553, %v549
    %v614 = vpack.c.b16 %v554, %v550
    %v615 = vpack.c.b16 %v555, %v551
    %v616 = vpack.c.b16 %v560, %v556
    %v617 = vpack.c.b16 %v561, %v557
    %v618 = vpack.c.b16 %v562, %v558
    %v619 = vpack.c.b16 %v563, %v559
    %v620 = vpack.c.b16 %v568, %v564
    %v621 = vpack.c.b16 %v569, %v565
    %v622 = vpack.c.b16 %v570, %v566
    %v623 = vpack.c.b16 %v571, %v567
    %v624 = vpack.c.b16 %v576, %v572
    %v625 = vpack.c.b16 %v577, %v573
    %v626 = vpack.c.b16 %v578, %v574
    %v627 = vpack.c.b16 %v579, %v575
    %v628 = vpack.c.b16 %v584, %v580
    %v629 = vpack.c.b16 %v585, %v581
    %v630 = vpack.c.b16 %v586, %v582
    %v631 = vpack.c.b16 %v587, %v583
    %v632 = vpack.c.b16 %v592, %v588
    %v633 = vpack.c.b16 %v593, %v589
    %v634 = vpack.c.b16 %v594, %v590
    %v635 = vpack.c.b16 %v595, %v591
    %v677 = vsel %vm382, %v407, 0
    %v680 = vsel %vm382, %v409, 0
    %v683 = vsel %vm382, %v411, 0
    %v686 = vsel %vm382, %v413, 0
    %688 = vmatprep.subr.bf16.mxu0 %v625
    %689 = vmatpush1.bf16.msra.mxu0 %v624
    %690 = vmatprep.subr.bf16.mxu0 %v621
    %691 = vmatpush1.bf16.msra.mxu0 %v620
    %692 = vmatprep.subr.bf16.mxu0 %v617
    %693 = vmatpush1.bf16.msra.mxu0 %v616
    %694 = vmatprep.subr.bf16.mxu0 %v613
    %695 = vmatpush1.bf16.msra.mxu0 %v612
    %696 = vmatprep.subr.bf16.mxu0 %v609
    %697 = vmatpush1.bf16.msra.mxu0 %v608
    %698 = vmatprep.subr.bf16.mxu0 %v605
    %699 = vmatpush1.bf16.msra.mxu0 %v604
    %700 = vmatprep.subr.bf16.mxu0 %v601
    %701 = vmatpush1.bf16.msra.mxu0 %v600
    %702 = vmatprep.subr.bf16.mxu0 %v597
    %703 = vmatpush1.bf16.msra.mxu0 %v596
    %704 = vmatprep.subr.bf16.mxu0 0
    %705 = vmatpush2.bf16.msra.mxu0 0
    %706 = vmatprep.subr.bf16.mxu0 0
    %707 = vmatpush2.bf16.msra.mxu0 0
    %708 = vmatprep.subr.bf16.mxu0 0
    %709 = vmatpush2.bf16.msra.mxu0 0
    %710 = vmatprep.subr.bf16.mxu0 0
    %711 = vmatpush2.bf16.msra.mxu0 0
    %712 = vmatprep.subr.bf16.mxu0 0
    %713 = vmatpush2.bf16.msra.mxu0 0
    %714 = vmatprep.subr.bf16.mxu0 0
    %715 = vmatpush2.bf16.msra.mxu0 0
    %716 = vmatprep.subr.bf16.mxu0 %v633
    %717 = vmatpush2.bf16.msra.mxu0 %v632
    %718 = vmatprep.subr.bf16.mxu0 %v629
    %719 = vmatpush2.bf16.msra.mxu0 %v628
    %720 = vmatprep.mubr.bf16.mxu0 %v677
    %721 = vmatmul.mubr.bf16.gmra.mxu0 %v406
    %v722 = vpop.f32.mrf.mxu0
    %v723 = vadd.f32 %v459, %v722
    %v724 = vpop.f32.mrf.mxu0
    %v725 = vadd.f32 %v463, %v724
    %v726 = vpop.f32.mrf.mxu0
    %v727 = vadd.f32 %v459, %v726
    %v728 = vpop.f32.mrf.mxu0
    %v729 = vadd.f32 %v463, %v728
    %730 = vmatprep.mubr.bf16.mxu0 %v680
    %731 = vmatmul.mubr.bf16.gmra.mxu0 %v408
    %v732 = vpop.f32.mrf.mxu0
    %v733 = vadd.f32 %v459, %v732
    %v734 = vpop.f32.mrf.mxu0
    %v735 = vadd.f32 %v463, %v734
    %v736 = vpop.f32.mrf.mxu0
    %v737 = vadd.f32 %v459, %v736
    %v738 = vpop.f32.mrf.mxu0
    %v739 = vadd.f32 %v463, %v738
    %740 = vmatprep.mubr.bf16.mxu0 %v683
    %741 = vmatmul.mubr.bf16.gmra.mxu0 %v410
    %v742 = vpop.f32.mrf.mxu0
    %v743 = vadd.f32 %v459, %v742
    %v744 = vpop.f32.mrf.mxu0
    %v745 = vadd.f32 %v463, %v744
    %v746 = vpop.f32.mrf.mxu0
    %v747 = vadd.f32 %v459, %v746
    %v748 = vpop.f32.mrf.mxu0
    %v749 = vadd.f32 %v463, %v748
    %750 = vmatprep.mubr.bf16.mxu0 %v686
    %751 = vmatmul.mubr.bf16.gmra.mxu0 %v412
    %v752 = vpop.f32.mrf.mxu0
    %v753 = vadd.f32 %v459, %v752
    %v754 = vpop.f32.mrf.mxu0
    %v755 = vadd.f32 %v463, %v754
    %v756 = vpop.f32.mrf.mxu0
    %v757 = vpop.f32.mrf.mxu0
    %758 = vdwg.mxu0
    %759 = vmatprep.subr.bf16.mxu0 %v627
    %760 = vmatpush1.bf16.msra.mxu0 %v626
    %761 = vmatprep.subr.bf16.mxu0 %v623
    %762 = vmatpush1.bf16.msra.mxu0 %v622
    %763 = vmatprep.subr.bf16.mxu0 %v619
    %764 = vmatpush1.bf16.msra.mxu0 %v618
    %765 = vmatprep.subr.bf16.mxu0 %v615
    %766 = vmatpush1.bf16.msra.mxu0 %v614
    %767 = vmatprep.subr.bf16.mxu0 %v611
    %768 = vmatpush1.bf16.msra.mxu0 %v610
    %769 = vmatprep.subr.bf16.mxu0 %v607
    %770 = vmatpush1.bf16.msra.mxu0 %v606
    %771 = vmatprep.subr.bf16.mxu0 %v603
    %772 = vmatpush1.bf16.msra.mxu0 %v602
    %773 = vmatprep.subr.bf16.mxu0 %v599
    %774 = vmatpush1.bf16.msra.mxu0 %v598
    %775 = vmatprep.subr.bf16.mxu0 0
    %776 = vmatpush2.bf16.msra.mxu0 0
    %777 = vmatprep.subr.bf16.mxu0 0
    %778 = vmatpush2.bf16.msra.mxu0 0
    %779 = vmatprep.subr.bf16.mxu0 0
    %780 = vmatpush2.bf16.msra.mxu0 0
    %781 = vmatprep.subr.bf16.mxu0 0
    %782 = vmatpush2.bf16.msra.mxu0 0
    %783 = vmatprep.subr.bf16.mxu0 0
    %784 = vmatpush2.bf16.msra.mxu0 0
    %785 = vmatprep.subr.bf16.mxu0 0
    %786 = vmatpush2.bf16.msra.mxu0 0
    %787 = vmatprep.subr.bf16.mxu0 %v635
    %788 = vmatpush2.bf16.msra.mxu0 %v634
    %789 = vmatprep.subr.bf16.mxu0 %v631
    %790 = vmatpush2.bf16.msra.mxu0 %v630
    %791 = vmatprep.mubr.bf16.mxu0 %v677
    %792 = vmatmul.mubr.bf16.gmra.mxu0 %v406
    %v793 = vpop.f32.mrf.mxu0
    %v794 = vadd.f32 %v467, %v793
    %v795 = vpop.f32.mrf.mxu0
    %v796 = vadd.f32 %v471, %v795
    %v797 = vpop.f32.mrf.mxu0
    %v798 = vadd.f32 %v467, %v797
    %v799 = vpop.f32.mrf.mxu0
    %v800 = vadd.f32 %v471, %v799
    %801 = vmatprep.mubr.bf16.mxu0 %v680
    %802 = vmatmul.mubr.bf16.gmra.mxu0 %v408
    %v803 = vpop.f32.mrf.mxu0
    %v804 = vadd.f32 %v467, %v803
    %v805 = vpop.f32.mrf.mxu0
    %v806 = vadd.f32 %v471, %v805
    %v807 = vpop.f32.mrf.mxu0
    %v808 = vadd.f32 %v467, %v807
    %v809 = vpop.f32.mrf.mxu0
    %v810 = vadd.f32 %v471, %v809
    %811 = vmatprep.mubr.bf16.mxu0 %v683
    %812 = vmatmul.mubr.bf16.gmra.mxu0 %v410
    %v813 = vpop.f32.mrf.mxu0
    %v814 = vadd.f32 %v467, %v813
    %v815 = vpop.f32.mrf.mxu0
    %v816 = vadd.f32 %v471, %v815
    %v817 = vpop.f32.mrf.mxu0
    %v818 = vadd.f32 %v467, %v817
    %v819 = vpop.f32.mrf.mxu0
    %v820 = vadd.f32 %v471, %v819
    %821 = vmatprep.mubr.bf16.mxu0 %v686
    %822 = vmatmul.mubr.bf16.gmra.mxu0 %v412
    %v823 = vpop.f32.mrf.mxu0
    %v824 = vadd.f32 %v467, %v823
    %v825 = vpop.f32.mrf.mxu0
    %v826 = vadd.f32 %v471, %v825
    %v827 = vpop.f32.mrf.mxu0
    %v828 = vpop.f32.mrf.mxu0
    %829 = vdwg.mxu0
    %v830 = vmax.f32 %v723, 0.0
    %v831 = vmax.f32 %v725, 0.0
    %v832 = vmax.f32 %v794, 0.0
    %v833 = vmax.f32 %v796, 0.0
    %v834 = vmax.f32 %v727, 0.0
    %v835 = vmax.f32 %v729, 0.0
    %v836 = vmax.f32 %v798, 0.0
    %v837 = vmax.f32 %v800, 0.0
    %v838 = vmax.f32 %v733, 0.0
    %v839 = vmax.f32 %v735, 0.0
    %v840 = vmax.f32 %v804, 0.0
    %v841 = vmax.f32 %v806, 0.0
    %v842 = vmax.f32 %v737, 0.0
    %v843 = vmax.f32 %v739, 0.0
    %v844 = vmax.f32 %v808, 0.0
    %v845 = vmax.f32 %v810, 0.0
    %v846 = vmax.f32 %v743, 0.0
    %v847 = vmax.f32 %v745, 0.0
    %v848 = vmax.f32 %v814, 0.0
    %v849 = vmax.f32 %v816, 0.0
    %v850 = vmax.f32 %v747, 0.0
    %v851 = vmax.f32 %v749, 0.0
    %v852 = vmax.f32 %v818, 0.0
    %v853 = vmax.f32 %v820, 0.0
    %v854 = vmax.f32 %v753, 0.0
    %v855 = vmax.f32 %v755, 0.0
    %v856 = vmax.f32 %v824, 0.0
    %v857 = vmax.f32 %v826, 0.0
    %865 = vrot.lane.b32.xlu0 %v830, 112
    %v866 = vpop.permute.xlu0 %865
    %867 = vrot.lane.b32.xlu0 %v834, 112
    %v868 = vpop.permute.xlu0 %867
    %869 = vrot.lane.b32.xlu0 %v838, 112
    %v870 = vpop.permute.xlu0 %869
    %871 = vrot.lane.b32.xlu0 %v842, 112
    %v872 = vpop.permute.xlu0 %871
    %873 = vrot.lane.b32.xlu0 %v846, 112
    %v874 = vpop.permute.xlu0 %873
    %875 = vrot.lane.b32.xlu0 %v850, 112
    %v876 = vpop.permute.xlu0 %875
    %877 = vrot.lane.b32.xlu0 %v854, 112
    %v878 = vpop.permute.xlu0 %877
    %886 = vrot.lane.b32.xlu0 %v830, 96
    %v887 = vpop.permute.xlu0 %886
    %888 = vrot.lane.b32.xlu0 %v834, 96
    %v889 = vpop.permute.xlu0 %888
    %890 = vrot.lane.b32.xlu0 %v838, 96
    %v891 = vpop.permute.xlu0 %890
    %892 = vrot.lane.b32.xlu0 %v842, 96
    %v893 = vpop.permute.xlu0 %892
    %894 = vrot.lane.b32.xlu0 %v846, 96
    %v895 = vpop.permute.xlu0 %894
    %896 = vrot.lane.b32.xlu0 %v850, 96
    %v897 = vpop.permute.xlu0 %896
    %898 = vrot.lane.b32.xlu0 %v854, 96
    %v899 = vpop.permute.xlu0 %898
    %907 = vrot.lane.b32.xlu0 %v830, 80
    %v908 = vpop.permute.xlu0 %907
    %909 = vrot.lane.b32.xlu0 %v834, 80
    %v910 = vpop.permute.xlu0 %909
    %911 = vrot.lane.b32.xlu0 %v838, 80
    %v912 = vpop.permute.xlu0 %911
    %913 = vrot.lane.b32.xlu0 %v842, 80
    %v914 = vpop.permute.xlu0 %913
    %915 = vrot.lane.b32.xlu0 %v846, 80
    %v916 = vpop.permute.xlu0 %915
    %917 = vrot.lane.b32.xlu0 %v850, 80
    %v918 = vpop.permute.xlu0 %917
    %919 = vrot.lane.b32.xlu0 %v854, 80
    %v920 = vpop.permute.xlu0 %919
    %935 = vrot.lane.b32.xlu0 %v831, 64
    %v936 = vpop.permute.xlu0 %935
    %937 = vrot.lane.b32.xlu0 %v835, 64
    %v938 = vpop.permute.xlu0 %937
    %939 = vrot.lane.b32.xlu0 %v839, 64
    %v940 = vpop.permute.xlu0 %939
    %941 = vrot.lane.b32.xlu0 %v843, 64
    %v942 = vpop.permute.xlu0 %941
    %943 = vrot.lane.b32.xlu0 %v847, 64
    %v944 = vpop.permute.xlu0 %943
    %945 = vrot.lane.b32.xlu0 %v851, 64
    %v946 = vpop.permute.xlu0 %945
    %947 = vrot.lane.b32.xlu0 %v855, 64
    %v948 = vpop.permute.xlu0 %947
    %956 = vrot.lane.b32.xlu0 %v831, 48
    %v957 = vpop.permute.xlu0 %956
    %958 = vrot.lane.b32.xlu0 %v835, 48
    %v959 = vpop.permute.xlu0 %958
    %960 = vrot.lane.b32.xlu0 %v839, 48
    %v961 = vpop.permute.xlu0 %960
    %962 = vrot.lane.b32.xlu0 %v843, 48
    %v963 = vpop.permute.xlu0 %962
    %964 = vrot.lane.b32.xlu0 %v847, 48
    %v965 = vpop.permute.xlu0 %964
    %966 = vrot.lane.b32.xlu0 %v851, 48
    %v967 = vpop.permute.xlu0 %966
    %968 = vrot.lane.b32.xlu0 %v855, 48
    %v969 = vpop.permute.xlu0 %968
    %977 = vrot.lane.b32.xlu0 %v831, 32
    %v978 = vpop.permute.xlu0 %977
    %979 = vrot.lane.b32.xlu0 %v835, 32
    %v980 = vpop.permute.xlu0 %979
    %981 = vrot.lane.b32.xlu0 %v839, 32
    %v982 = vpop.permute.xlu0 %981
    %983 = vrot.lane.b32.xlu0 %v843, 32
    %v984 = vpop.permute.xlu0 %983
    %985 = vrot.lane.b32.xlu0 %v847, 32
    %v986 = vpop.permute.xlu0 %985
    %987 = vrot.lane.b32.xlu0 %v851, 32
    %v988 = vpop.permute.xlu0 %987
    %989 = vrot.lane.b32.xlu0 %v855, 32
    %v990 = vpop.permute.xlu0 %989
    %998 = vrot.lane.b32.xlu0 %v831, 16
    %v999 = vpop.permute.xlu0 %998
    %1000 = vrot.lane.b32.xlu0 %v835, 16
    %v1001 = vpop.permute.xlu0 %1000
    %1002 = vrot.lane.b32.xlu0 %v839, 16
    %v1003 = vpop.permute.xlu0 %1002
    %1004 = vrot.lane.b32.xlu0 %v843, 16
    %v1005 = vpop.permute.xlu0 %1004
    %1006 = vrot.lane.b32.xlu0 %v847, 16
    %v1007 = vpop.permute.xlu0 %1006
    %1008 = vrot.lane.b32.xlu0 %v851, 16
    %v1009 = vpop.permute.xlu0 %1008
    %1010 = vrot.lane.b32.xlu0 %v855, 16
    %v1011 = vpop.permute.xlu0 %1010
    %1026 = vrot.lane.b32.xlu0 %v832, 112
    %v1027 = vpop.permute.xlu0 %1026
    %1028 = vrot.lane.b32.xlu0 %v836, 112
    %v1029 = vpop.permute.xlu0 %1028
    %1030 = vrot.lane.b32.xlu0 %v840, 112
    %v1031 = vpop.permute.xlu0 %1030
    %1032 = vrot.lane.b32.xlu0 %v844, 112
    %v1033 = vpop.permute.xlu0 %1032
    %1034 = vrot.lane.b32.xlu0 %v848, 112
    %v1035 = vpop.permute.xlu0 %1034
    %1036 = vrot.lane.b32.xlu0 %v852, 112
    %v1037 = vpop.permute.xlu0 %1036
    %1038 = vrot.lane.b32.xlu0 %v856, 112
    %v1039 = vpop.permute.xlu0 %1038
    %1047 = vrot.lane.b32.xlu0 %v832, 96
    %v1048 = vpop.permute.xlu0 %1047
    %1049 = vrot.lane.b32.xlu0 %v836, 96
    %v1050 = vpop.permute.xlu0 %1049
    %1051 = vrot.lane.b32.xlu0 %v840, 96
    %v1052 = vpop.permute.xlu0 %1051
    %1053 = vrot.lane.b32.xlu0 %v844, 96
    %v1054 = vpop.permute.xlu0 %1053
    %1055 = vrot.lane.b32.xlu0 %v848, 96
    %v1056 = vpop.permute.xlu0 %1055
    %1057 = vrot.lane.b32.xlu0 %v852, 96
    %v1058 = vpop.permute.xlu0 %1057
    %1059 = vrot.lane.b32.xlu0 %v856, 96
    %v1060 = vpop.permute.xlu0 %1059
    %1068 = vrot.lane.b32.xlu0 %v832, 80
    %v1069 = vpop.permute.xlu0 %1068
    %1070 = vrot.lane.b32.xlu0 %v836, 80
    %v1071 = vpop.permute.xlu0 %1070
    %1072 = vrot.lane.b32.xlu0 %v840, 80
    %v1073 = vpop.permute.xlu0 %1072
    %1074 = vrot.lane.b32.xlu0 %v844, 80
    %v1075 = vpop.permute.xlu0 %1074
    %1076 = vrot.lane.b32.xlu0 %v848, 80
    %v1077 = vpop.permute.xlu0 %1076
    %1078 = vrot.lane.b32.xlu0 %v852, 80
    %v1079 = vpop.permute.xlu0 %1078
    %1080 = vrot.lane.b32.xlu0 %v856, 80
    %v1081 = vpop.permute.xlu0 %1080
    %1096 = vrot.lane.b32.xlu0 %v833, 64
    %v1097 = vpop.permute.xlu0 %1096
    %1098 = vrot.lane.b32.xlu0 %v837, 64
    %v1099 = vpop.permute.xlu0 %1098
    %1100 = vrot.lane.b32.xlu0 %v841, 64
    %v1101 = vpop.permute.xlu0 %1100
    %1102 = vrot.lane.b32.xlu0 %v845, 64
    %v1103 = vpop.permute.xlu0 %1102
    %1104 = vrot.lane.b32.xlu0 %v849, 64
    %v1105 = vpop.permute.xlu0 %1104
    %1106 = vrot.lane.b32.xlu0 %v853, 64
    %v1107 = vpop.permute.xlu0 %1106
    %1108 = vrot.lane.b32.xlu0 %v857, 64
    %v1109 = vpop.permute.xlu0 %1108
    %1117 = vrot.lane.b32.xlu0 %v833, 48
    %v1118 = vpop.permute.xlu0 %1117
    %1119 = vrot.lane.b32.xlu0 %v837, 48
    %v1120 = vpop.permute.xlu0 %1119
    %1121 = vrot.lane.b32.xlu0 %v841, 48
    %v1122 = vpop.permute.xlu0 %1121
    %1123 = vrot.lane.b32.xlu0 %v845, 48
    %v1124 = vpop.permute.xlu0 %1123
    %1125 = vrot.lane.b32.xlu0 %v849, 48
    %v1126 = vpop.permute.xlu0 %1125
    %1127 = vrot.lane.b32.xlu0 %v853, 48
    %v1128 = vpop.permute.xlu0 %1127
    %1129 = vrot.lane.b32.xlu0 %v857, 48
    %v1130 = vpop.permute.xlu0 %1129
    %vm1138 = vcmask 130048
    %v1139 = vsel %vm1138, %v830, %v866
    %v1140 = vsel %vm1138, %v834, %v868
    %v1141 = vsel %vm1138, %v838, %v870
    %v1142 = vsel %vm1138, %v842, %v872
    %v1143 = vsel %vm1138, %v846, %v874
    %v1144 = vsel %vm1138, %v850, %v876
    %v1145 = vsel %vm1138, %v854, %v878
    %v1146 = vsel %vm382, %v1139, %v887
    %v1147 = vsel %vm382, %v1140, %v889
    %v1148 = vsel %vm382, %v1141, %v891
    %v1149 = vsel %vm382, %v1142, %v893
    %v1150 = vsel %vm382, %v1143, %v895
    %v1151 = vsel %vm382, %v1144, %v897
    %v1152 = vsel %vm382, %v1145, %v899
    %vm1153 = vcmask 392192
    %v1154 = vsel %vm1153, %v1146, %v908
    %v1155 = vsel %vm1153, %v1147, %v910
    %v1156 = vsel %vm1153, %v1148, %v912
    %v1157 = vsel %vm1153, %v1149, %v914
    %v1158 = vsel %vm1153, %v1150, %v916
    %v1159 = vsel %vm1153, %v1151, %v918
    %v1160 = vsel %vm1153, %v1152, %v920
    %v1161 = vsel %vm390, %v1154, %v936
    %v1162 = vsel %vm390, %v1155, %v938
    %v1163 = vsel %vm390, %v1156, %v940
    %v1164 = vsel %vm390, %v1157, %v942
    %v1165 = vsel %vm390, %v1158, %v944
    %v1166 = vsel %vm390, %v1159, %v946
    %v1167 = vsel %vm390, %v1160, %v948
    %vm1168 = vcmask 654336
    %v1169 = vsel %vm1168, %v1161, %v957
    %v1170 = vsel %vm1168, %v1162, %v959
    %v1171 = vsel %vm1168, %v1163, %v961
    %v1172 = vsel %vm1168, %v1164, %v963
    %v1173 = vsel %vm1168, %v1165, %v965
    %v1174 = vsel %vm1168, %v1166, %v967
    %v1175 = vsel %vm1168, %v1167, %v969
    %v1176 = vsel %vm398, %v1169, %v978
    %v1177 = vsel %vm398, %v1170, %v980
    %v1178 = vsel %vm398, %v1171, %v982
    %v1179 = vsel %vm398, %v1172, %v984
    %v1180 = vsel %vm398, %v1173, %v986
    %v1181 = vsel %vm398, %v1174, %v988
    %v1182 = vsel %vm398, %v1175, %v990
    %vm1183 = vcmask 916480
    %v1184 = vsel %vm1183, %v1176, %v999
    %v1185 = vsel %vm1183, %v1177, %v1001
    %v1186 = vsel %vm1183, %v1178, %v1003
    %v1187 = vsel %vm1183, %v1179, %v1005
    %v1188 = vsel %vm1183, %v1180, %v1007
    %v1189 = vsel %vm1183, %v1181, %v1009
    %v1190 = vsel %vm1183, %v1182, %v1011
    %v1191 = vsel %vm1138, %v832, %v1027
    %v1192 = vsel %vm1138, %v836, %v1029
    %v1193 = vsel %vm1138, %v840, %v1031
    %v1194 = vsel %vm1138, %v844, %v1033
    %v1195 = vsel %vm1138, %v848, %v1035
    %v1196 = vsel %vm1138, %v852, %v1037
    %v1197 = vsel %vm1138, %v856, %v1039
    %v1198 = vsel %vm382, %v1191, %v1048
    %v1199 = vsel %vm382, %v1192, %v1050
    %v1200 = vsel %vm382, %v1193, %v1052
    %v1201 = vsel %vm382, %v1194, %v1054
    %v1202 = vsel %vm382, %v1195, %v1056
    %v1203 = vsel %vm382, %v1196, %v1058
    %v1204 = vsel %vm382, %v1197, %v1060
    %v1205 = vsel %vm1153, %v1198, %v1069
    %v1206 = vsel %vm1153, %v1199, %v1071
    %v1207 = vsel %vm1153, %v1200, %v1073
    %v1208 = vsel %vm1153, %v1201, %v1075
    %v1209 = vsel %vm1153, %v1202, %v1077
    %v1210 = vsel %vm1153, %v1203, %v1079
    %v1211 = vsel %vm1153, %v1204, %v1081
    %v1212 = vsel %vm390, %v1205, %v1097
    %v1213 = vsel %vm390, %v1206, %v1099
    %v1214 = vsel %vm390, %v1207, %v1101
    %v1215 = vsel %vm390, %v1208, %v1103
    %v1216 = vsel %vm390, %v1209, %v1105
    %v1217 = vsel %vm390, %v1210, %v1107
    %v1218 = vsel %vm390, %v1211, %v1109
    %v1219 = vsel %vm1168, %v1212, %v1118
    %v1220 = vsel %vm1168, %v1213, %v1120
    %v1221 = vsel %vm1168, %v1214, %v1122
    %v1222 = vsel %vm1168, %v1215, %v1124
    %v1223 = vsel %vm1168, %v1216, %v1126
    %v1224 = vsel %vm1168, %v1217, %v1128
    %v1225 = vsel %vm1168, %v1218, %v1130
    %1226 = vrot.lane.b32.xlu0 %v830, 64
    %v1227 = vpop.permute.xlu0 %1226
    %1228 = vrot.lane.b32.xlu0 %v834, 64
    %v1229 = vpop.permute.xlu0 %1228
    %1230 = vrot.lane.b32.xlu0 %v838, 64
    %v1231 = vpop.permute.xlu0 %1230
    %1232 = vrot.lane.b32.xlu0 %v842, 64
    %v1233 = vpop.permute.xlu0 %1232
    %1234 = vrot.lane.b32.xlu0 %v846, 64
    %v1235 = vpop.permute.xlu0 %1234
    %1236 = vrot.lane.b32.xlu0 %v850, 64
    %v1237 = vpop.permute.xlu0 %1236
    %1238 = vrot.lane.b32.xlu0 %v854, 64
    %v1239 = vpop.permute.xlu0 %1238
    %1247 = vrot.lane.b32.xlu0 %v832, 64
    %v1248 = vpop.permute.xlu0 %1247
    %1249 = vrot.lane.b32.xlu0 %v836, 64
    %v1250 = vpop.permute.xlu0 %1249
    %1251 = vrot.lane.b32.xlu0 %v840, 64
    %v1252 = vpop.permute.xlu0 %1251
    %1253 = vrot.lane.b32.xlu0 %v844, 64
    %v1254 = vpop.permute.xlu0 %1253
    %1255 = vrot.lane.b32.xlu0 %v848, 64
    %v1256 = vpop.permute.xlu0 %1255
    %1257 = vrot.lane.b32.xlu0 %v852, 64
    %v1258 = vpop.permute.xlu0 %1257
    %1259 = vrot.lane.b32.xlu0 %v856, 64
    %v1260 = vpop.permute.xlu0 %1259
    %1268 = vrot.lane.b32.xlu0 %v833, 32
    %v1269 = vpop.permute.xlu0 %1268
    %1270 = vrot.lane.b32.xlu0 %v837, 32
    %v1271 = vpop.permute.xlu0 %1270
    %1272 = vrot.lane.b32.xlu0 %v841, 32
    %v1273 = vpop.permute.xlu0 %1272
    %1274 = vrot.lane.b32.xlu0 %v845, 32
    %v1275 = vpop.permute.xlu0 %1274
    %1276 = vrot.lane.b32.xlu0 %v849, 32
    %v1277 = vpop.permute.xlu0 %1276
    %1278 = vrot.lane.b32.xlu0 %v853, 32
    %v1279 = vpop.permute.xlu0 %1278
    %1280 = vrot.lane.b32.xlu0 %v857, 32
    %v1281 = vpop.permute.xlu0 %1280
    %v1289 = vsel %vm1138, %v866, %v887
    %v1290 = vsel %vm1138, %v868, %v889
    %v1291 = vsel %vm1138, %v870, %v891
    %v1292 = vsel %vm1138, %v872, %v893
    %v1293 = vsel %vm1138, %v874, %v895
    %v1294 = vsel %vm1138, %v876, %v897
    %v1295 = vsel %vm1138, %v878, %v899
    %v1296 = vsel %vm382, %v1289, %v908
    %v1297 = vsel %vm382, %v1290, %v910
    %v1298 = vsel %vm382, %v1291, %v912
    %v1299 = vsel %vm382, %v1292, %v914
    %v1300 = vsel %vm382, %v1293, %v916
    %v1301 = vsel %vm382, %v1294, %v918
    %v1302 = vsel %vm382, %v1295, %v920
    %v1303 = vsel %vm1153, %v1296, %v1227
    %v1304 = vsel %vm1153, %v1297, %v1229
    %v1305 = vsel %vm1153, %v1298, %v1231
    %v1306 = vsel %vm1153, %v1299, %v1233
    %v1307 = vsel %vm1153, %v1300, %v1235
    %v1308 = vsel %vm1153, %v1301, %v1237
    %v1309 = vsel %vm1153, %v1302, %v1239
    %v1310 = vsel %vm390, %v1303, %v957
    %v1311 = vsel %vm390, %v1304, %v959
    %v1312 = vsel %vm390, %v1305, %v961
    %v1313 = vsel %vm390, %v1306, %v963
    %v1314 = vsel %vm390, %v1307, %v965
    %v1315 = vsel %vm390, %v1308, %v967
    %v1316 = vsel %vm390, %v1309, %v969
    %v1317 = vsel %vm1168, %v1310, %v978
    %v1318 = vsel %vm1168, %v1311, %v980
    %v1319 = vsel %vm1168, %v1312, %v982
    %v1320 = vsel %vm1168, %v1313, %v984
    %v1321 = vsel %vm1168, %v1314, %v986
    %v1322 = vsel %vm1168, %v1315, %v988
    %v1323 = vsel %vm1168, %v1316, %v990
    %v1324 = vsel %vm398, %v1317, %v999
    %v1325 = vsel %vm398, %v1318, %v1001
    %v1326 = vsel %vm398, %v1319, %v1003
    %v1327 = vsel %vm398, %v1320, %v1005
    %v1328 = vsel %vm398, %v1321, %v1007
    %v1329 = vsel %vm398, %v1322, %v1009
    %v1330 = vsel %vm398, %v1323, %v1011
    %v1331 = vsel %vm1183, %v1324, %v831
    %v1332 = vsel %vm1183, %v1325, %v835
    %v1333 = vsel %vm1183, %v1326, %v839
    %v1334 = vsel %vm1183, %v1327, %v843
    %v1335 = vsel %vm1183, %v1328, %v847
    %v1336 = vsel %vm1183, %v1329, %v851
    %v1337 = vsel %vm1183, %v1330, %v855
    %v1338 = vsel %vm1138, %v1027, %v1048
    %v1339 = vsel %vm1138, %v1029, %v1050
    %v1340 = vsel %vm1138, %v1031, %v1052
    %v1341 = vsel %vm1138, %v1033, %v1054
    %v1342 = vsel %vm1138, %v1035, %v1056
    %v1343 = vsel %vm1138, %v1037, %v1058
    %v1344 = vsel %vm1138, %v1039, %v1060
    %v1345 = vsel %vm382, %v1338, %v1069
    %v1346 = vsel %vm382, %v1339, %v1071
    %v1347 = vsel %vm382, %v1340, %v1073
    %v1348 = vsel %vm382, %v1341, %v1075
    %v1349 = vsel %vm382, %v1342, %v1077
    %v1350 = vsel %vm382, %v1343, %v1079
    %v1351 = vsel %vm382, %v1344, %v1081
    %v1352 = vsel %vm1153, %v1345, %v1248
    %v1353 = vsel %vm1153, %v1346, %v1250
    %v1354 = vsel %vm1153, %v1347, %v1252
    %v1355 = vsel %vm1153, %v1348, %v1254
    %v1356 = vsel %vm1153, %v1349, %v1256
    %v1357 = vsel %vm1153, %v1350, %v1258
    %v1358 = vsel %vm1153, %v1351, %v1260
    %v1359 = vsel %vm390, %v1352, %v1118
    %v1360 = vsel %vm390, %v1353, %v1120
    %v1361 = vsel %vm390, %v1354, %v1122
    %v1362 = vsel %vm390, %v1355, %v1124
    %v1363 = vsel %vm390, %v1356, %v1126
    %v1364 = vsel %vm390, %v1357, %v1128
    %v1365 = vsel %vm390, %v1358, %v1130
    %v1366 = vsel %vm1168, %v1359, %v1269
    %v1367 = vsel %vm1168, %v1360, %v1271
    %v1368 = vsel %vm1168, %v1361, %v1273
    %v1369 = vsel %vm1168, %v1362, %v1275
    %v1370 = vsel %vm1168, %v1363, %v1277
    %v1371 = vsel %vm1168, %v1364, %v1279
    %v1372 = vsel %vm1168, %v1365, %v1281
    %v1373 = vmax.f32 %v1184, %v1331
    %v1374 = vmax.f32 %v1219, %v1366
    %v1375 = vmax.f32 %v1185, %v1332
    %v1376 = vmax.f32 %v1220, %v1367
    %v1377 = vmax.f32 %v1186, %v1333
    %v1378 = vmax.f32 %v1221, %v1368
    %v1379 = vmax.f32 %v1187, %v1334
    %v1380 = vmax.f32 %v1222, %v1369
    %v1381 = vmax.f32 %v1188, %v1335
    %v1382 = vmax.f32 %v1223, %v1370
    %v1383 = vmax.f32 %v1189, %v1336
    %v1384 = vmax.f32 %v1224, %v1371
    %v1385 = vmax.f32 %v1190, %v1337
    %v1386 = vmax.f32 %v1225, %v1372
    %v1401 = vcombine.low %v1373, %v1374
    %v1402 = vcombine.high %v1373, %v1374
    %v1404 = vunpack.c.l.s4 1983009808
    %v1405 = vunpack.c.0.s8 %v1404
    %v1406 = vlaneseq
    %v1407 = vshrl.u32 %v1406, 7
    %v1408 = vsub.s32 %v1405, %v1407
    %v1409 = vrot.slane %v1401, %v1408
    %v1411 = vunpack.c.l.s4 1983009808
    %v1412 = vunpack.c.0.s8 %v1411
    %v1413 = vlaneseq
    %v1414 = vshrl.u32 %v1413, 7
    %v1415 = vsub.s32 %v1412, %v1414
    %v1416 = vrot.slane %v1402, %v1415
    %v1417 = vcombine.high %v1409, %v1409
    %v1418 = vcombine.high %v1416, %v1416
    %v1419 = vcombine.low %v1375, %v1376
    %v1420 = vcombine.high %v1375, %v1376
    %v1422 = vunpack.c.l.s4 1983009808
    %v1423 = vunpack.c.0.s8 %v1422
    %v1424 = vlaneseq
    %v1425 = vshrl.u32 %v1424, 7
    %v1426 = vsub.s32 %v1423, %v1425
    %v1427 = vrot.slane %v1419, %v1426
    %v1429 = vunpack.c.l.s4 1983009808
    %v1430 = vunpack.c.0.s8 %v1429
    %v1431 = vlaneseq
    %v1432 = vshrl.u32 %v1431, 7
    %v1433 = vsub.s32 %v1430, %v1432
    %v1434 = vrot.slane %v1420, %v1433
    %v1435 = vcombine.high %v1427, %v1427
    %v1436 = vcombine.high %v1434, %v1434
    %v1437 = vcombine.low %v1377, %v1378
    %v1438 = vcombine.high %v1377, %v1378
    %v1440 = vunpack.c.l.s4 1983009808
    %v1441 = vunpack.c.0.s8 %v1440
    %v1442 = vlaneseq
    %v1443 = vshrl.u32 %v1442, 7
    %v1444 = vsub.s32 %v1441, %v1443
    %v1445 = vrot.slane %v1437, %v1444
    %v1447 = vunpack.c.l.s4 1983009808
    %v1448 = vunpack.c.0.s8 %v1447
    %v1449 = vlaneseq
    %v1450 = vshrl.u32 %v1449, 7
    %v1451 = vsub.s32 %v1448, %v1450
    %v1452 = vrot.slane %v1438, %v1451
    %v1453 = vcombine.high %v1445, %v1445
    %v1454 = vcombine.high %v1452, %v1452
    %v1455 = vcombine.low %v1379, %v1380
    %v1456 = vcombine.high %v1379, %v1380
    %v1458 = vunpack.c.l.s4 1983009808
    %v1459 = vunpack.c.0.s8 %v1458
    %v1460 = vlaneseq
    %v1461 = vshrl.u32 %v1460, 7
    %v1462 = vsub.s32 %v1459, %v1461
    %v1463 = vrot.slane %v1455, %v1462
    %v1465 = vunpack.c.l.s4 1983009808
    %v1466 = vunpack.c.0.s8 %v1465
    %v1467 = vlaneseq
    %v1468 = vshrl.u32 %v1467, 7
    %v1469 = vsub.s32 %v1466, %v1468
    %v1470 = vrot.slane %v1456, %v1469
    %v1471 = vcombine.high %v1463, %v1463
    %v1472 = vcombine.high %v1470, %v1470
    %v1473 = vcombine.low %v1381, %v1382
    %v1474 = vcombine.high %v1381, %v1382
    %v1476 = vunpack.c.l.s4 1983009808
    %v1477 = vunpack.c.0.s8 %v1476
    %v1478 = vlaneseq
    %v1479 = vshrl.u32 %v1478, 7
    %v1480 = vsub.s32 %v1477, %v1479
    %v1481 = vrot.slane %v1473, %v1480
    %v1483 = vunpack.c.l.s4 1983009808
    %v1484 = vunpack.c.0.s8 %v1483
    %v1485 = vlaneseq
    %v1486 = vshrl.u32 %v1485, 7
    %v1487 = vsub.s32 %v1484, %v1486
    %v1488 = vrot.slane %v1474, %v1487
    %v1489 = vcombine.high %v1481, %v1481
    %v1490 = vcombine.high %v1488, %v1488
    %v1491 = vcombine.low %v1383, %v1384
    %v1492 = vcombine.high %v1383, %v1384
    %v1494 = vunpack.c.l.s4 1983009808
    %v1495 = vunpack.c.0.s8 %v1494
    %v1496 = vlaneseq
    %v1497 = vshrl.u32 %v1496, 7
    %v1498 = vsub.s32 %v1495, %v1497
    %v1499 = vrot.slane %v1491, %v1498
    %v1501 = vunpack.c.l.s4 1983009808
    %v1502 = vunpack.c.0.s8 %v1501
    %v1503 = vlaneseq
    %v1504 = vshrl.u32 %v1503, 7
    %v1505 = vsub.s32 %v1502, %v1504
    %v1506 = vrot.slane %v1492, %v1505
    %v1507 = vcombine.high %v1499, %v1499
    %v1508 = vcombine.high %v1506, %v1506
    %v1509 = vcombine.low %v1385, %v1386
    %v1510 = vcombine.high %v1385, %v1386
    %v1512 = vunpack.c.l.s4 1983009808
    %v1513 = vunpack.c.0.s8 %v1512
    %v1514 = vlaneseq
    %v1515 = vshrl.u32 %v1514, 7
    %v1516 = vsub.s32 %v1513, %v1515
    %v1517 = vrot.slane %v1509, %v1516
    %v1519 = vunpack.c.l.s4 1983009808
    %v1520 = vunpack.c.0.s8 %v1519
    %v1521 = vlaneseq
    %v1522 = vshrl.u32 %v1521, 7
    %v1523 = vsub.s32 %v1520, %v1522
    %v1524 = vrot.slane %v1510, %v1523
    %v1525 = vcombine.high %v1517, %v1517
    %v1526 = vcombine.high %v1524, %v1524
    %v1528 = vunpack.c.l.s4 1983009808
    %v1529 = vunpack.c.0.s8 %v1528
    %v1530 = vlaneseq
    %v1531 = vshrl.u32 %v1530, 7
    %v1532 = vsub.s32 %v1529, %v1531
    %v1533 = vrot.slane %v1409, %v1532
    %v1534 = vcombine.high %v1533, %v1533
    %v1536 = vunpack.c.l.s4 1983009808
    %v1537 = vunpack.c.0.s8 %v1536
    %v1538 = vlaneseq
    %v1539 = vshrl.u32 %v1538, 7
    %v1540 = vsub.s32 %v1537, %v1539
    %v1541 = vrot.slane %v1417, %v1540
    %v1542 = vcombine.high %v1541, %v1541
    %v1544 = vunpack.c.l.s4 1983009808
    %v1545 = vunpack.c.0.s8 %v1544
    %v1546 = vlaneseq
    %v1547 = vshrl.u32 %v1546, 7
    %v1548 = vsub.s32 %v1545, %v1547
    %v1549 = vrot.slane %v1416, %v1548
    %v1550 = vcombine.high %v1549, %v1549
    %v1552 = vunpack.c.l.s4 1983009808
    %v1553 = vunpack.c.0.s8 %v1552
    %v1554 = vlaneseq
    %v1555 = vshrl.u32 %v1554, 7
    %v1556 = vsub.s32 %v1553, %v1555
    %v1557 = vrot.slane %v1418, %v1556
    %v1558 = vcombine.high %v1557, %v1557
    %v1560 = vunpack.c.l.s4 1983009808
    %v1561 = vunpack.c.0.s8 %v1560
    %v1562 = vlaneseq
    %v1563 = vshrl.u32 %v1562, 7
    %v1564 = vsub.s32 %v1561, %v1563
    %v1565 = vrot.slane %v1427, %v1564
    %v1566 = vcombine.high %v1565, %v1565
    %v1568 = vunpack.c.l.s4 1983009808
    %v1569 = vunpack.c.0.s8 %v1568
    %v1570 = vlaneseq
    %v1571 = vshrl.u32 %v1570, 7
    %v1572 = vsub.s32 %v1569, %v1571
    %v1573 = vrot.slane %v1435, %v1572
    %v1574 = vcombine.high %v1573, %v1573
    %v1576 = vunpack.c.l.s4 1983009808
    %v1577 = vunpack.c.0.s8 %v1576
    %v1578 = vlaneseq
    %v1579 = vshrl.u32 %v1578, 7
    %v1580 = vsub.s32 %v1577, %v1579
    %v1581 = vrot.slane %v1434, %v1580
    %v1582 = vcombine.high %v1581, %v1581
    %v1584 = vunpack.c.l.s4 1983009808
    %v1585 = vunpack.c.0.s8 %v1584
    %v1586 = vlaneseq
    %v1587 = vshrl.u32 %v1586, 7
    %v1588 = vsub.s32 %v1585, %v1587
    %v1589 = vrot.slane %v1436, %v1588
    %v1590 = vcombine.high %v1589, %v1589
    %v1592 = vunpack.c.l.s4 1983009808
    %v1593 = vunpack.c.0.s8 %v1592
    %v1594 = vlaneseq
    %v1595 = vshrl.u32 %v1594, 7
    %v1596 = vsub.s32 %v1593, %v1595
    %v1597 = vrot.slane %v1445, %v1596
    %v1598 = vcombine.high %v1597, %v1597
    %v1600 = vunpack.c.l.s4 1983009808
    %v1601 = vunpack.c.0.s8 %v1600
    %v1602 = vlaneseq
    %v1603 = vshrl.u32 %v1602, 7
    %v1604 = vsub.s32 %v1601, %v1603
    %v1605 = vrot.slane %v1453, %v1604
    %v1606 = vcombine.high %v1605, %v1605
    %v1608 = vunpack.c.l.s4 1983009808
    %v1609 = vunpack.c.0.s8 %v1608
    %v1610 = vlaneseq
    %v1611 = vshrl.u32 %v1610, 7
    %v1612 = vsub.s32 %v1609, %v1611
    %v1613 = vrot.slane %v1452, %v1612
    %v1614 = vcombine.high %v1613, %v1613
    %v1616 = vunpack.c.l.s4 1983009808
    %v1617 = vunpack.c.0.s8 %v1616
    %v1618 = vlaneseq
    %v1619 = vshrl.u32 %v1618, 7
    %v1620 = vsub.s32 %v1617, %v1619
    %v1621 = vrot.slane %v1454, %v1620
    %v1622 = vcombine.high %v1621, %v1621
    %v1624 = vunpack.c.l.s4 1983009808
    %v1625 = vunpack.c.0.s8 %v1624
    %v1626 = vlaneseq
    %v1627 = vshrl.u32 %v1626, 7
    %v1628 = vsub.s32 %v1625, %v1627
    %v1629 = vrot.slane %v1463, %v1628
    %v1630 = vcombine.high %v1629, %v1629
    %v1632 = vunpack.c.l.s4 1983009808
    %v1633 = vunpack.c.0.s8 %v1632
    %v1634 = vlaneseq
    %v1635 = vshrl.u32 %v1634, 7
    %v1636 = vsub.s32 %v1633, %v1635
    %v1637 = vrot.slane %v1471, %v1636
    %v1638 = vcombine.high %v1637, %v1637
    %v1640 = vunpack.c.l.s4 1983009808
    %v1641 = vunpack.c.0.s8 %v1640
    %v1642 = vlaneseq
    %v1643 = vshrl.u32 %v1642, 7
    %v1644 = vsub.s32 %v1641, %v1643
    %v1645 = vrot.slane %v1470, %v1644
    %v1646 = vcombine.high %v1645, %v1645
    %v1648 = vunpack.c.l.s4 1983009808
    %v1649 = vunpack.c.0.s8 %v1648
    %v1650 = vlaneseq
    %v1651 = vshrl.u32 %v1650, 7
    %v1652 = vsub.s32 %v1649, %v1651
    %v1653 = vrot.slane %v1472, %v1652
    %v1654 = vcombine.high %v1653, %v1653
    %v1656 = vunpack.c.l.s4 1983009808
    %v1657 = vunpack.c.0.s8 %v1656
    %v1658 = vlaneseq
    %v1659 = vshrl.u32 %v1658, 7
    %v1660 = vsub.s32 %v1657, %v1659
    %v1661 = vrot.slane %v1481, %v1660
    %v1662 = vcombine.high %v1661, %v1661
    %v1664 = vunpack.c.l.s4 1983009808
    %v1665 = vunpack.c.0.s8 %v1664
    %v1666 = vlaneseq
    %v1667 = vshrl.u32 %v1666, 7
    %v1668 = vsub.s32 %v1665, %v1667
    %v1669 = vrot.slane %v1489, %v1668
    %v1670 = vcombine.high %v1669, %v1669
    %v1672 = vunpack.c.l.s4 1983009808
    %v1673 = vunpack.c.0.s8 %v1672
    %v1674 = vlaneseq
    %v1675 = vshrl.u32 %v1674, 7
    %v1676 = vsub.s32 %v1673, %v1675
    %v1677 = vrot.slane %v1488, %v1676
    %v1678 = vcombine.high %v1677, %v1677
    %v1680 = vunpack.c.l.s4 1983009808
    %v1681 = vunpack.c.0.s8 %v1680
    %v1682 = vlaneseq
    %v1683 = vshrl.u32 %v1682, 7
    %v1684 = vsub.s32 %v1681, %v1683
    %v1685 = vrot.slane %v1490, %v1684
    %v1686 = vcombine.high %v1685, %v1685
    %v1688 = vunpack.c.l.s4 1983009808
    %v1689 = vunpack.c.0.s8 %v1688
    %v1690 = vlaneseq
    %v1691 = vshrl.u32 %v1690, 7
    %v1692 = vsub.s32 %v1689, %v1691
    %v1693 = vrot.slane %v1499, %v1692
    %v1694 = vcombine.high %v1693, %v1693
    %v1696 = vunpack.c.l.s4 1983009808
    %v1697 = vunpack.c.0.s8 %v1696
    %v1698 = vlaneseq
    %v1699 = vshrl.u32 %v1698, 7
    %v1700 = vsub.s32 %v1697, %v1699
    %v1701 = vrot.slane %v1507, %v1700
    %v1702 = vcombine.high %v1701, %v1701
    %v1704 = vunpack.c.l.s4 1983009808
    %v1705 = vunpack.c.0.s8 %v1704
    %v1706 = vlaneseq
    %v1707 = vshrl.u32 %v1706, 7
    %v1708 = vsub.s32 %v1705, %v1707
    %v1709 = vrot.slane %v1506, %v1708
    %v1710 = vcombine.high %v1709, %v1709
    %v1712 = vunpack.c.l.s4 1983009808
    %v1713 = vunpack.c.0.s8 %v1712
    %v1714 = vlaneseq
    %v1715 = vshrl.u32 %v1714, 7
    %v1716 = vsub.s32 %v1713, %v1715
    %v1717 = vrot.slane %v1508, %v1716
    %v1718 = vcombine.high %v1717, %v1717
    %v1720 = vunpack.c.l.s4 1983009808
    %v1721 = vunpack.c.0.s8 %v1720
    %v1722 = vlaneseq
    %v1723 = vshrl.u32 %v1722, 7
    %v1724 = vsub.s32 %v1721, %v1723
    %v1725 = vrot.slane %v1517, %v1724
    %v1726 = vcombine.high %v1725, %v1725
    %v1728 = vunpack.c.l.s4 1983009808
    %v1729 = vunpack.c.0.s8 %v1728
    %v1730 = vlaneseq
    %v1731 = vshrl.u32 %v1730, 7
    %v1732 = vsub.s32 %v1729, %v1731
    %v1733 = vrot.slane %v1525, %v1732
    %v1734 = vcombine.high %v1733, %v1733
    %v1736 = vunpack.c.l.s4 1983009808
    %v1737 = vunpack.c.0.s8 %v1736
    %v1738 = vlaneseq
    %v1739 = vshrl.u32 %v1738, 7
    %v1740 = vsub.s32 %v1737, %v1739
    %v1741 = vrot.slane %v1524, %v1740
    %v1742 = vcombine.high %v1741, %v1741
    %v1744 = vunpack.c.l.s4 1983009808
    %v1745 = vunpack.c.0.s8 %v1744
    %v1746 = vlaneseq
    %v1747 = vshrl.u32 %v1746, 7
    %v1748 = vsub.s32 %v1745, %v1747
    %v1749 = vrot.slane %v1526, %v1748
    %v1750 = vcombine.high %v1749, %v1749
    %v1807 = vsel %vm44, %v1533, -inf
    %v1808 = vrot.slane %v1807, 4
    %v1809 = vmax.f32 %v1807, %v1808
    %v1810 = vrot.slane %v1809, 2
    %v1811 = vmax.f32 %v1809, %v1810
    %v1812 = vrot.slane %v1811, 1
    %v1813 = vmax.f32 %v1811, %v1812
    %vm1814 = vcmask 779264
    %v1815 = vsel %vm1814, %v1534, -inf
    %v1816 = vrot.slane %v1815, 4
    %v1817 = vmax.f32 %v1815, %v1816
    %v1818 = vrot.slane %v1817, 2
    %v1819 = vmax.f32 %v1817, %v1818
    %v1820 = vrot.slane %v1819, 1
    %v1821 = vmax.f32 %v1819, %v1820
    %v1822 = vsel %vm44, %v1541, -inf
    %v1823 = vrot.slane %v1822, 4
    %v1824 = vmax.f32 %v1822, %v1823
    %v1825 = vrot.slane %v1824, 2
    %v1826 = vmax.f32 %v1824, %v1825
    %v1827 = vrot.slane %v1826, 1
    %v1828 = vmax.f32 %v1826, %v1827
    %v1829 = vsel %vm1814, %v1542, -inf
    %v1830 = vrot.slane %v1829, 4
    %v1831 = vmax.f32 %v1829, %v1830
    %v1832 = vrot.slane %v1831, 2
    %v1833 = vmax.f32 %v1831, %v1832
    %v1834 = vrot.slane %v1833, 1
    %v1835 = vmax.f32 %v1833, %v1834
    %v1836 = vsel %vm44, %v1549, -inf
    %v1837 = vrot.slane %v1836, 4
    %v1838 = vmax.f32 %v1836, %v1837
    %v1839 = vrot.slane %v1838, 2
    %v1840 = vmax.f32 %v1838, %v1839
    %v1841 = vrot.slane %v1840, 1
    %v1842 = vmax.f32 %v1840, %v1841
    %v1843 = vsel %vm1814, %v1550, -inf
    %v1844 = vrot.slane %v1843, 4
    %v1845 = vmax.f32 %v1843, %v1844
    %v1846 = vrot.slane %v1845, 2
    %v1847 = vmax.f32 %v1845, %v1846
    %v1848 = vrot.slane %v1847, 1
    %v1849 = vmax.f32 %v1847, %v1848
    %v1850 = vsel %vm44, %v1557, -inf
    %v1851 = vrot.slane %v1850, 4
    %v1852 = vmax.f32 %v1850, %v1851
    %v1853 = vrot.slane %v1852, 2
    %v1854 = vmax.f32 %v1852, %v1853
    %v1855 = vrot.slane %v1854, 1
    %v1856 = vmax.f32 %v1854, %v1855
    %v1857 = vsel %vm1814, %v1558, -inf
    %v1858 = vrot.slane %v1857, 4
    %v1859 = vmax.f32 %v1857, %v1858
    %v1860 = vrot.slane %v1859, 2
    %v1861 = vmax.f32 %v1859, %v1860
    %v1862 = vrot.slane %v1861, 1
    %v1863 = vmax.f32 %v1861, %v1862
    %v1864 = vsel %vm44, %v1565, -inf
    %v1865 = vrot.slane %v1864, 4
    %v1866 = vmax.f32 %v1864, %v1865
    %v1867 = vrot.slane %v1866, 2
    %v1868 = vmax.f32 %v1866, %v1867
    %v1869 = vrot.slane %v1868, 1
    %v1870 = vmax.f32 %v1868, %v1869
    %v1871 = vsel %vm1814, %v1566, -inf
    %v1872 = vrot.slane %v1871, 4
    %v1873 = vmax.f32 %v1871, %v1872
    %v1874 = vrot.slane %v1873, 2
    %v1875 = vmax.f32 %v1873, %v1874
    %v1876 = vrot.slane %v1875, 1
    %v1877 = vmax.f32 %v1875, %v1876
    %v1878 = vsel %vm44, %v1573, -inf
    %v1879 = vrot.slane %v1878, 4
    %v1880 = vmax.f32 %v1878, %v1879
    %v1881 = vrot.slane %v1880, 2
    %v1882 = vmax.f32 %v1880, %v1881
    %v1883 = vrot.slane %v1882, 1
    %v1884 = vmax.f32 %v1882, %v1883
    %v1885 = vsel %vm1814, %v1574, -inf
    %v1886 = vrot.slane %v1885, 4
    %v1887 = vmax.f32 %v1885, %v1886
    %v1888 = vrot.slane %v1887, 2
    %v1889 = vmax.f32 %v1887, %v1888
    %v1890 = vrot.slane %v1889, 1
    %v1891 = vmax.f32 %v1889, %v1890
    %v1892 = vsel %vm44, %v1581, -inf
    %v1893 = vrot.slane %v1892, 4
    %v1894 = vmax.f32 %v1892, %v1893
    %v1895 = vrot.slane %v1894, 2
    %v1896 = vmax.f32 %v1894, %v1895
    %v1897 = vrot.slane %v1896, 1
    %v1898 = vmax.f32 %v1896, %v1897
    %v1899 = vsel %vm1814, %v1582, -inf
    %v1900 = vrot.slane %v1899, 4
    %v1901 = vmax.f32 %v1899, %v1900
    %v1902 = vrot.slane %v1901, 2
    %v1903 = vmax.f32 %v1901, %v1902
    %v1904 = vrot.slane %v1903, 1
    %v1905 = vmax.f32 %v1903, %v1904
    %v1906 = vsel %vm44, %v1589, -inf
    %v1907 = vrot.slane %v1906, 4
    %v1908 = vmax.f32 %v1906, %v1907
    %v1909 = vrot.slane %v1908, 2
    %v1910 = vmax.f32 %v1908, %v1909
    %v1911 = vrot.slane %v1910, 1
    %v1912 = vmax.f32 %v1910, %v1911
    %v1913 = vsel %vm1814, %v1590, -inf
    %v1914 = vrot.slane %v1913, 4
    %v1915 = vmax.f32 %v1913, %v1914
    %v1916 = vrot.slane %v1915, 2
    %v1917 = vmax.f32 %v1915, %v1916
    %v1918 = vrot.slane %v1917, 1
    %v1919 = vmax.f32 %v1917, %v1918
    %v1920 = vsel %vm44, %v1597, -inf
    %v1921 = vrot.slane %v1920, 4
    %v1922 = vmax.f32 %v1920, %v1921
    %v1923 = vrot.slane %v1922, 2
    %v1924 = vmax.f32 %v1922, %v1923
    %v1925 = vrot.slane %v1924, 1
    %v1926 = vmax.f32 %v1924, %v1925
    %v1927 = vsel %vm1814, %v1598, -inf
    %v1928 = vrot.slane %v1927, 4
    %v1929 = vmax.f32 %v1927, %v1928
    %v1930 = vrot.slane %v1929, 2
    %v1931 = vmax.f32 %v1929, %v1930
    %v1932 = vrot.slane %v1931, 1
    %v1933 = vmax.f32 %v1931, %v1932
    %v1934 = vsel %vm44, %v1605, -inf
    %v1935 = vrot.slane %v1934, 4
    %v1936 = vmax.f32 %v1934, %v1935
    %v1937 = vrot.slane %v1936, 2
    %v1938 = vmax.f32 %v1936, %v1937
    %v1939 = vrot.slane %v1938, 1
    %v1940 = vmax.f32 %v1938, %v1939
    %v1941 = vsel %vm1814, %v1606, -inf
    %v1942 = vrot.slane %v1941, 4
    %v1943 = vmax.f32 %v1941, %v1942
    %v1944 = vrot.slane %v1943, 2
    %v1945 = vmax.f32 %v1943, %v1944
    %v1946 = vrot.slane %v1945, 1
    %v1947 = vmax.f32 %v1945, %v1946
    %v1948 = vsel %vm44, %v1613, -inf
    %v1949 = vrot.slane %v1948, 4
    %v1950 = vmax.f32 %v1948, %v1949
    %v1951 = vrot.slane %v1950, 2
    %v1952 = vmax.f32 %v1950, %v1951
    %v1953 = vrot.slane %v1952, 1
    %v1954 = vmax.f32 %v1952, %v1953
    %v1955 = vsel %vm1814, %v1614, -inf
    %v1956 = vrot.slane %v1955, 4
    %v1957 = vmax.f32 %v1955, %v1956
    %v1958 = vrot.slane %v1957, 2
    %v1959 = vmax.f32 %v1957, %v1958
    %v1960 = vrot.slane %v1959, 1
    %v1961 = vmax.f32 %v1959, %v1960
    %v1962 = vsel %vm44, %v1621, -inf
    %v1963 = vrot.slane %v1962, 4
    %v1964 = vmax.f32 %v1962, %v1963
    %v1965 = vrot.slane %v1964, 2
    %v1966 = vmax.f32 %v1964, %v1965
    %v1967 = vrot.slane %v1966, 1
    %v1968 = vmax.f32 %v1966, %v1967
    %v1969 = vsel %vm1814, %v1622, -inf
    %v1970 = vrot.slane %v1969, 4
    %v1971 = vmax.f32 %v1969, %v1970
    %v1972 = vrot.slane %v1971, 2
    %v1973 = vmax.f32 %v1971, %v1972
    %v1974 = vrot.slane %v1973, 1
    %v1975 = vmax.f32 %v1973, %v1974
    %v1976 = vsel %vm44, %v1629, -inf
    %v1977 = vrot.slane %v1976, 4
    %v1978 = vmax.f32 %v1976, %v1977
    %v1979 = vrot.slane %v1978, 2
    %v1980 = vmax.f32 %v1978, %v1979
    %v1981 = vrot.slane %v1980, 1
    %v1982 = vmax.f32 %v1980, %v1981
    %v1983 = vsel %vm1814, %v1630, -inf
    %v1984 = vrot.slane %v1983, 4
    %v1985 = vmax.f32 %v1983, %v1984
    %v1986 = vrot.slane %v1985, 2
    %v1987 = vmax.f32 %v1985, %v1986
    %v1988 = vrot.slane %v1987, 1
    %v1989 = vmax.f32 %v1987, %v1988
    %v1990 = vsel %vm44, %v1637, -inf
    %v1991 = vrot.slane %v1990, 4
    %v1992 = vmax.f32 %v1990, %v1991
    %v1993 = vrot.slane %v1992, 2
    %v1994 = vmax.f32 %v1992, %v1993
    %v1995 = vrot.slane %v1994, 1
    %v1996 = vmax.f32 %v1994, %v1995
    %v1997 = vsel %vm1814, %v1638, -inf
    %v1998 = vrot.slane %v1997, 4
    %v1999 = vmax.f32 %v1997, %v1998
    %v2000 = vrot.slane %v1999, 2
    %v2001 = vmax.f32 %v1999, %v2000
    %v2002 = vrot.slane %v2001, 1
    %v2003 = vmax.f32 %v2001, %v2002
    %v2004 = vsel %vm44, %v1645, -inf
    %v2005 = vrot.slane %v2004, 4
    %v2006 = vmax.f32 %v2004, %v2005
    %v2007 = vrot.slane %v2006, 2
    %v2008 = vmax.f32 %v2006, %v2007
    %v2009 = vrot.slane %v2008, 1
    %v2010 = vmax.f32 %v2008, %v2009
    %v2011 = vsel %vm1814, %v1646, -inf
    %v2012 = vrot.slane %v2011, 4
    %v2013 = vmax.f32 %v2011, %v2012
    %v2014 = vrot.slane %v2013, 2
    %v2015 = vmax.f32 %v2013, %v2014
    %v2016 = vrot.slane %v2015, 1
    %v2017 = vmax.f32 %v2015, %v2016
    %v2018 = vsel %vm44, %v1653, -inf
    %v2019 = vrot.slane %v2018, 4
    %v2020 = vmax.f32 %v2018, %v2019
    %v2021 = vrot.slane %v2020, 2
    %v2022 = vmax.f32 %v2020, %v2021
    %v2023 = vrot.slane %v2022, 1
    %v2024 = vmax.f32 %v2022, %v2023
    %v2025 = vsel %vm1814, %v1654, -inf
    %v2026 = vrot.slane %v2025, 4
    %v2027 = vmax.f32 %v2025, %v2026
    %v2028 = vrot.slane %v2027, 2
    %v2029 = vmax.f32 %v2027, %v2028
    %v2030 = vrot.slane %v2029, 1
    %v2031 = vmax.f32 %v2029, %v2030
    %v2032 = vsel %vm44, %v1661, -inf
    %v2033 = vrot.slane %v2032, 4
    %v2034 = vmax.f32 %v2032, %v2033
    %v2035 = vrot.slane %v2034, 2
    %v2036 = vmax.f32 %v2034, %v2035
    %v2037 = vrot.slane %v2036, 1
    %v2038 = vmax.f32 %v2036, %v2037
    %v2039 = vsel %vm1814, %v1662, -inf
    %v2040 = vrot.slane %v2039, 4
    %v2041 = vmax.f32 %v2039, %v2040
    %v2042 = vrot.slane %v2041, 2
    %v2043 = vmax.f32 %v2041, %v2042
    %v2044 = vrot.slane %v2043, 1
    %v2045 = vmax.f32 %v2043, %v2044
    %v2046 = vsel %vm44, %v1669, -inf
    %v2047 = vrot.slane %v2046, 4
    %v2048 = vmax.f32 %v2046, %v2047
    %v2049 = vrot.slane %v2048, 2
    %v2050 = vmax.f32 %v2048, %v2049
    %v2051 = vrot.slane %v2050, 1
    %v2052 = vmax.f32 %v2050, %v2051
    %v2053 = vsel %vm1814, %v1670, -inf
    %v2054 = vrot.slane %v2053, 4
    %v2055 = vmax.f32 %v2053, %v2054
    %v2056 = vrot.slane %v2055, 2
    %v2057 = vmax.f32 %v2055, %v2056
    %v2058 = vrot.slane %v2057, 1
    %v2059 = vmax.f32 %v2057, %v2058
    %v2060 = vsel %vm44, %v1677, -inf
    %v2061 = vrot.slane %v2060, 4
    %v2062 = vmax.f32 %v2060, %v2061
    %v2063 = vrot.slane %v2062, 2
    %v2064 = vmax.f32 %v2062, %v2063
    %v2065 = vrot.slane %v2064, 1
    %v2066 = vmax.f32 %v2064, %v2065
    %v2067 = vsel %vm1814, %v1678, -inf
    %v2068 = vrot.slane %v2067, 4
    %v2069 = vmax.f32 %v2067, %v2068
    %v2070 = vrot.slane %v2069, 2
    %v2071 = vmax.f32 %v2069, %v2070
    %v2072 = vrot.slane %v2071, 1
    %v2073 = vmax.f32 %v2071, %v2072
    %v2074 = vsel %vm44, %v1685, -inf
    %v2075 = vrot.slane %v2074, 4
    %v2076 = vmax.f32 %v2074, %v2075
    %v2077 = vrot.slane %v2076, 2
    %v2078 = vmax.f32 %v2076, %v2077
    %v2079 = vrot.slane %v2078, 1
    %v2080 = vmax.f32 %v2078, %v2079
    %v2081 = vsel %vm1814, %v1686, -inf
    %v2082 = vrot.slane %v2081, 4
    %v2083 = vmax.f32 %v2081, %v2082
    %v2084 = vrot.slane %v2083, 2
    %v2085 = vmax.f32 %v2083, %v2084
    %v2086 = vrot.slane %v2085, 1
    %v2087 = vmax.f32 %v2085, %v2086
    %v2088 = vsel %vm44, %v1693, -inf
    %v2089 = vrot.slane %v2088, 4
    %v2090 = vmax.f32 %v2088, %v2089
    %v2091 = vrot.slane %v2090, 2
    %v2092 = vmax.f32 %v2090, %v2091
    %v2093 = vrot.slane %v2092, 1
    %v2094 = vmax.f32 %v2092, %v2093
    %v2095 = vsel %vm1814, %v1694, -inf
    %v2096 = vrot.slane %v2095, 4
    %v2097 = vmax.f32 %v2095, %v2096
    %v2098 = vrot.slane %v2097, 2
    %v2099 = vmax.f32 %v2097, %v2098
    %v2100 = vrot.slane %v2099, 1
    %v2101 = vmax.f32 %v2099, %v2100
    %v2102 = vsel %vm44, %v1701, -inf
    %v2103 = vrot.slane %v2102, 4
    %v2104 = vmax.f32 %v2102, %v2103
    %v2105 = vrot.slane %v2104, 2
    %v2106 = vmax.f32 %v2104, %v2105
    %v2107 = vrot.slane %v2106, 1
    %v2108 = vmax.f32 %v2106, %v2107
    %v2109 = vsel %vm1814, %v1702, -inf
    %v2110 = vrot.slane %v2109, 4
    %v2111 = vmax.f32 %v2109, %v2110
    %v2112 = vrot.slane %v2111, 2
    %v2113 = vmax.f32 %v2111, %v2112
    %v2114 = vrot.slane %v2113, 1
    %v2115 = vmax.f32 %v2113, %v2114
    %v2116 = vsel %vm44, %v1709, -inf
    %v2117 = vrot.slane %v2116, 4
    %v2118 = vmax.f32 %v2116, %v2117
    %v2119 = vrot.slane %v2118, 2
    %v2120 = vmax.f32 %v2118, %v2119
    %v2121 = vrot.slane %v2120, 1
    %v2122 = vmax.f32 %v2120, %v2121
    %v2123 = vsel %vm1814, %v1710, -inf
    %v2124 = vrot.slane %v2123, 4
    %v2125 = vmax.f32 %v2123, %v2124
    %v2126 = vrot.slane %v2125, 2
    %v2127 = vmax.f32 %v2125, %v2126
    %v2128 = vrot.slane %v2127, 1
    %v2129 = vmax.f32 %v2127, %v2128
    %v2130 = vsel %vm44, %v1717, -inf
    %v2131 = vrot.slane %v2130, 4
    %v2132 = vmax.f32 %v2130, %v2131
    %v2133 = vrot.slane %v2132, 2
    %v2134 = vmax.f32 %v2132, %v2133
    %v2135 = vrot.slane %v2134, 1
    %v2136 = vmax.f32 %v2134, %v2135
    %v2137 = vsel %vm1814, %v1718, -inf
    %v2138 = vrot.slane %v2137, 4
    %v2139 = vmax.f32 %v2137, %v2138
    %v2140 = vrot.slane %v2139, 2
    %v2141 = vmax.f32 %v2139, %v2140
    %v2142 = vrot.slane %v2141, 1
    %v2143 = vmax.f32 %v2141, %v2142
    %v2144 = vsel %vm44, %v1725, -inf
    %v2145 = vrot.slane %v2144, 4
    %v2146 = vmax.f32 %v2144, %v2145
    %v2147 = vrot.slane %v2146, 2
    %v2148 = vmax.f32 %v2146, %v2147
    %v2149 = vrot.slane %v2148, 1
    %v2150 = vmax.f32 %v2148, %v2149
    %v2151 = vsel %vm1814, %v1726, -inf
    %v2152 = vrot.slane %v2151, 4
    %v2153 = vmax.f32 %v2151, %v2152
    %v2154 = vrot.slane %v2153, 2
    %v2155 = vmax.f32 %v2153, %v2154
    %v2156 = vrot.slane %v2155, 1
    %v2157 = vmax.f32 %v2155, %v2156
    %v2158 = vsel %vm44, %v1733, -inf
    %v2159 = vrot.slane %v2158, 4
    %v2160 = vmax.f32 %v2158, %v2159
    %v2161 = vrot.slane %v2160, 2
    %v2162 = vmax.f32 %v2160, %v2161
    %v2163 = vrot.slane %v2162, 1
    %v2164 = vmax.f32 %v2162, %v2163
    %v2165 = vsel %vm1814, %v1734, -inf
    %v2166 = vrot.slane %v2165, 4
    %v2167 = vmax.f32 %v2165, %v2166
    %v2168 = vrot.slane %v2167, 2
    %v2169 = vmax.f32 %v2167, %v2168
    %v2170 = vrot.slane %v2169, 1
    %v2171 = vmax.f32 %v2169, %v2170
    %v2172 = vsel %vm44, %v1741, -inf
    %v2173 = vrot.slane %v2172, 4
    %v2174 = vmax.f32 %v2172, %v2173
    %v2175 = vrot.slane %v2174, 2
    %v2176 = vmax.f32 %v2174, %v2175
    %v2177 = vrot.slane %v2176, 1
    %v2178 = vmax.f32 %v2176, %v2177
    %v2179 = vsel %vm1814, %v1742, -inf
    %v2180 = vrot.slane %v2179, 4
    %v2181 = vmax.f32 %v2179, %v2180
    %v2182 = vrot.slane %v2181, 2
    %v2183 = vmax.f32 %v2181, %v2182
    %v2184 = vrot.slane %v2183, 1
    %v2185 = vmax.f32 %v2183, %v2184
    %v2186 = vsel %vm44, %v1749, -inf
    %v2187 = vrot.slane %v2186, 4
    %v2188 = vmax.f32 %v2186, %v2187
    %v2189 = vrot.slane %v2188, 2
    %v2190 = vmax.f32 %v2188, %v2189
    %v2191 = vrot.slane %v2190, 1
    %v2192 = vmax.f32 %v2190, %v2191
    %v2193 = vsel %vm1814, %v1750, -inf
    %v2194 = vrot.slane %v2193, 4
    %v2195 = vmax.f32 %v2193, %v2194
    %v2196 = vrot.slane %v2195, 2
    %v2197 = vmax.f32 %v2195, %v2196
    %v2198 = vrot.slane %v2197, 1
    %v2199 = vmax.f32 %v2197, %v2198
    %vm2256 = vcmask 1041409
    %v2257 = vsel %vm2256, %v1828, %v1813
    %vm2258 = vcmask 1042434
    %v2259 = vsel %vm2258, %v1842, %v2257
    %vm2260 = vcmask 1043459
    %v2261 = vsel %vm2260, %v1856, %v2259
    %v2262 = vsel %vm224, %v1870, %v2261
    %vm2263 = vcmask 1045509
    %v2264 = vsel %vm2263, %v1884, %v2262
    %vm2265 = vcmask 1046534
    %v2266 = vsel %vm2265, %v1898, %v2264
    %vm2267 = vcmask 1047559
    %v2268 = vsel %vm2267, %v1912, %v2266
    %v2269 = vsel %vm2256, %v1835, %v1821
    %v2270 = vsel %vm2258, %v1849, %v2269
    %v2271 = vsel %vm2260, %v1863, %v2270
    %v2272 = vsel %vm224, %v1877, %v2271
    %v2273 = vsel %vm2263, %v1891, %v2272
    %v2274 = vsel %vm2265, %v1905, %v2273
    %v2275 = vsel %vm2267, %v1919, %v2274
    %v2276 = vsel %vm2256, %v1940, %v1926
    %v2277 = vsel %vm2258, %v1954, %v2276
    %v2278 = vsel %vm2260, %v1968, %v2277
    %v2279 = vsel %vm224, %v1982, %v2278
    %v2280 = vsel %vm2263, %v1996, %v2279
    %v2281 = vsel %vm2256, %v1947, %v1933
    %v2282 = vsel %vm2258, %v1961, %v2281
    %v2283 = vsel %vm2260, %v1975, %v2282
    %v2284 = vsel %vm224, %v1989, %v2283
    %v2285 = vsel %vm2263, %v2003, %v2284
    %v2286 = vsel %vm2256, %v2024, %v2010
    %v2287 = vsel %vm2258, %v2038, %v2286
    %v2288 = vsel %vm2260, %v2052, %v2287
    %v2289 = vsel %vm224, %v2066, %v2288
    %v2290 = vsel %vm2263, %v2080, %v2289
    %v2291 = vsel %vm2265, %v2094, %v2290
    %v2292 = vsel %vm2267, %v2108, %v2291
    %v2293 = vsel %vm2256, %v2031, %v2017
    %v2294 = vsel %vm2258, %v2045, %v2293
    %v2295 = vsel %vm2260, %v2059, %v2294
    %v2296 = vsel %vm224, %v2073, %v2295
    %v2297 = vsel %vm2263, %v2087, %v2296
    %v2298 = vsel %vm2265, %v2101, %v2297
    %v2299 = vsel %vm2267, %v2115, %v2298
    %v2300 = vsel %vm2256, %v2136, %v2122
    %v2301 = vsel %vm2258, %v2150, %v2300
    %v2302 = vsel %vm2260, %v2164, %v2301
    %v2303 = vsel %vm224, %v2178, %v2302
    %v2304 = vsel %vm2263, %v2192, %v2303
    %v2305 = vsel %vm2256, %v2143, %v2129
    %v2306 = vsel %vm2258, %v2157, %v2305
    %v2307 = vsel %vm2260, %v2171, %v2306
    %v2308 = vsel %vm224, %v2185, %v2307
    %v2309 = vsel %vm2263, %v2199, %v2308
    %2310 = vrot.lane.b32.xlu0 %v2268, 32
    %v2311 = vpop.permute.xlu0 %2310
    %2312 = vrot.lane.b32.xlu0 %v2275, 32
    %v2313 = vpop.permute.xlu0 %2312
    %2314 = vrot.lane.b32.xlu0 %v2280, 32
    %v2315 = vpop.permute.xlu0 %2314
    %2316 = vrot.lane.b32.xlu0 %v2285, 32
    %v2317 = vpop.permute.xlu0 %2316
    %2318 = vrot.lane.b32.xlu0 %v2292, 32
    %v2319 = vpop.permute.xlu0 %2318
    %2320 = vrot.lane.b32.xlu0 %v2299, 32
    %v2321 = vpop.permute.xlu0 %2320
    %2322 = vrot.lane.b32.xlu0 %v2304, 32
    %v2323 = vpop.permute.xlu0 %2322
    %2324 = vrot.lane.b32.xlu0 %v2309, 32
    %v2325 = vpop.permute.xlu0 %2324
    %v2326 = vsel %vm382, %v2311, %v2313
    %v2327 = vsel %vm382, %v2315, %v2317
    %v2328 = vsel %vm382, %v2319, %v2321
    %v2329 = vsel %vm382, %v2323, %v2325
    %v2334 = vsel %vm382, 0.0, %v2311
    %v2335 = vsel %vm382, 0.0, %v2315
    %v2336 = vsel %vm382, 0.0, %v2319
    %v2337 = vsel %vm382, 0.0, %v2323
    %v2343 = vrot.slane %v2334, 6
    %v2344 = vrot.slane %v2326, 6
    %v2345 = vrot.slane 0.0, 6
    %v2346 = vrot.slane %v2335, 6
    %v2347 = vsel %vm44, %v2343, %v2346
    %v2348 = vrot.slane %v2327, 6
    %v2349 = vsel %vm44, %v2344, %v2348
    %v2350 = vsel %vm44, %v2345, %v2345
    %v2351 = vrot.slane %v2336, 6
    %v2352 = vrot.slane %v2328, 6
    %v2353 = vrot.slane %v2337, 6
    %v2354 = vsel %vm44, %v2351, %v2353
    %v2355 = vrot.slane %v2329, 6
    %v2356 = vsel %vm44, %v2352, %v2355
    %v2362 = vsel %vm44, 0.0, %v2343
    %v2363 = vsel %vm44, 0.0, %v2344
    %v2364 = vsel %vm44, 0.0, %v2345
    %v2365 = vsel %vm44, 0.0, %v2351
    %v2366 = vsel %vm44, 0.0, %v2352
    %v2372 = vcombine.low %v2362, %v2363
    %v2373 = vcombine.high %v2362, %v2363
    %v2374 = vcombine.high %v2364, %v2364
    %v2376 = vunpack.c.l.s4 1983009808
    %v2377 = vunpack.c.0.s8 %v2376
    %v2378 = vlaneseq
    %v2379 = vshrl.u32 %v2378, 7
    %v2380 = vsub.s32 %v2377, %v2379
    %v2381 = vrot.slane %v2372, %v2380
    %v2383 = vunpack.c.l.s4 1983009808
    %v2384 = vunpack.c.0.s8 %v2383
    %v2385 = vlaneseq
    %v2386 = vshrl.u32 %v2385, 7
    %v2387 = vsub.s32 %v2384, %v2386
    %v2388 = vrot.slane %v2373, %v2387
    %v2390 = vunpack.c.l.s4 1983009808
    %v2391 = vunpack.c.0.s8 %v2390
    %v2392 = vlaneseq
    %v2393 = vshrl.u32 %v2392, 7
    %v2394 = vsub.s32 %v2391, %v2393
    %v2395 = vrot.slane %v2364, %v2394
    %v2397 = vunpack.c.l.s4 1983009808
    %v2398 = vunpack.c.0.s8 %v2397
    %v2399 = vlaneseq
    %v2400 = vshrl.u32 %v2399, 7
    %v2401 = vsub.s32 %v2398, %v2400
    %v2402 = vrot.slane %v2374, %v2401
    %v2403 = vcombine.low %v2381, %v2395
    %v2404 = vcombine.high %v2381, %v2395
    %v2405 = vcombine.low %v2388, %v2402
    %v2406 = vcombine.high %v2388, %v2402
    %v2407 = vcombine.low %v2347, %v2349
    %v2408 = vcombine.high %v2347, %v2349
    %v2409 = vcombine.high %v2350, %v2350
    %v2411 = vunpack.c.l.s4 1983009808
    %v2412 = vunpack.c.0.s8 %v2411
    %v2413 = vlaneseq
    %v2414 = vshrl.u32 %v2413, 7
    %v2415 = vsub.s32 %v2412, %v2414
    %v2416 = vrot.slane %v2407, %v2415
    %v2418 = vunpack.c.l.s4 1983009808
    %v2419 = vunpack.c.0.s8 %v2418
    %v2420 = vlaneseq
    %v2421 = vshrl.u32 %v2420, 7
    %v2422 = vsub.s32 %v2419, %v2421
    %v2423 = vrot.slane %v2408, %v2422
    %v2425 = vunpack.c.l.s4 1983009808
    %v2426 = vunpack.c.0.s8 %v2425
    %v2427 = vlaneseq
    %v2428 = vshrl.u32 %v2427, 7
    %v2429 = vsub.s32 %v2426, %v2428
    %v2430 = vrot.slane %v2350, %v2429
    %v2432 = vunpack.c.l.s4 1983009808
    %v2433 = vunpack.c.0.s8 %v2432
    %v2434 = vlaneseq
    %v2435 = vshrl.u32 %v2434, 7
    %v2436 = vsub.s32 %v2433, %v2435
    %v2437 = vrot.slane %v2409, %v2436
    %v2438 = vcombine.low %v2416, %v2430
    %v2439 = vcombine.high %v2416, %v2430
    %v2440 = vcombine.low %v2423, %v2437
    %v2441 = vcombine.low %v2365, %v2366
    %v2442 = vcombine.high %v2365, %v2366
    %v2444 = vunpack.c.l.s4 1983009808
    %v2445 = vunpack.c.0.s8 %v2444
    %v2446 = vlaneseq
    %v2447 = vshrl.u32 %v2446, 7
    %v2448 = vsub.s32 %v2445, %v2447
    %v2449 = vrot.slane %v2441, %v2448
    %v2451 = vunpack.c.l.s4 1983009808
    %v2452 = vunpack.c.0.s8 %v2451
    %v2453 = vlaneseq
    %v2454 = vshrl.u32 %v2453, 7
    %v2455 = vsub.s32 %v2452, %v2454
    %v2456 = vrot.slane %v2442, %v2455
    %v2457 = vcombine.low %v2449, %v2395
    %v2458 = vcombine.high %v2449, %v2395
    %v2459 = vcombine.low %v2456, %v2402
    %v2460 = vcombine.high %v2456, %v2402
    %v2461 = vcombine.low %v2354, %v2356
    %v2462 = vcombine.high %v2354, %v2356
    %v2464 = vunpack.c.l.s4 1983009808
    %v2465 = vunpack.c.0.s8 %v2464
    %v2466 = vlaneseq
    %v2467 = vshrl.u32 %v2466, 7
    %v2468 = vsub.s32 %v2465, %v2467
    %v2469 = vrot.slane %v2461, %v2468
    %v2471 = vunpack.c.l.s4 1983009808
    %v2472 = vunpack.c.0.s8 %v2471
    %v2473 = vlaneseq
    %v2474 = vshrl.u32 %v2473, 7
    %v2475 = vsub.s32 %v2472, %v2474
    %v2476 = vrot.slane %v2462, %v2475
    %v2477 = vcombine.low %v2469, %v2430
    %v2478 = vcombine.high %v2469, %v2430
    %v2479 = vcombine.low %v2476, %v2437
    %v2480 = vcombine.high %v2423, %v2437
    %v2481 = vcombine.high %v2476, %v2437
    %vm2482 = vmor %vm223, %vm2258
    %vm2483 = vmor %vm2482, %vm224
    %vm2484 = vmor %vm2483, %vm2265
    %v2485 = vrot.slane %v2403, 7
    %v2486 = vrot.slane %v2485, 2
    %v2487 = vrot.slane %v2404, 7
    %v2488 = vsel %vm2484, %v2486, %v2487
    %v2489 = vrot.slane %v2487, 2
    %v2490 = vrot.slane %v2405, 7
    %v2491 = vsel %vm2484, %v2489, %v2490
    %v2492 = vrot.slane %v2490, 2
    %v2493 = vrot.slane %v2406, 7
    %v2494 = vsel %vm2484, %v2492, %v2493
    %v2495 = vrot.slane %v2493, 2
    %v2496 = vrot.slane %v2438, 7
    %v2497 = vsel %vm2484, %v2495, %v2496
    %v2498 = vrot.slane %v2496, 2
    %v2499 = vrot.slane %v2439, 7
    %v2500 = vsel %vm2484, %v2498, %v2499
    %v2501 = vrot.slane %v2499, 2
    %v2502 = vrot.slane %v2440, 7
    %v2503 = vsel %vm2484, %v2501, %v2502
    %v2504 = vrot.slane %v2502, 2
    %v2505 = vrot.slane %v2480, 7
    %v2506 = vsel %vm2484, %v2504, %v2505
    %v2507 = vrot.slane %v2457, 7
    %v2508 = vrot.slane %v2507, 2
    %v2509 = vrot.slane %v2458, 7
    %v2510 = vsel %vm2484, %v2508, %v2509
    %v2511 = vrot.slane %v2509, 2
    %v2512 = vrot.slane %v2459, 7
    %v2513 = vsel %vm2484, %v2511, %v2512
    %v2514 = vrot.slane %v2512, 2
    %v2515 = vrot.slane %v2460, 7
    %v2516 = vsel %vm2484, %v2514, %v2515
    %v2517 = vrot.slane %v2515, 2
    %v2518 = vrot.slane %v2477, 7
    %v2519 = vsel %vm2484, %v2517, %v2518
    %v2520 = vrot.slane %v2518, 2
    %v2521 = vrot.slane %v2478, 7
    %v2522 = vsel %vm2484, %v2520, %v2521
    %v2523 = vrot.slane %v2521, 2
    %v2524 = vrot.slane %v2479, 7
    %v2525 = vsel %vm2484, %v2523, %v2524
    %v2526 = vrot.slane %v2524, 2
    %v2527 = vrot.slane %v2481, 7
    %v2528 = vsel %vm2484, %v2526, %v2527
    %v2529 = vcombine.low 0.0, 0.0
    %v2531 = vunpack.c.l.s4 1983009808
    %v2532 = vunpack.c.0.s8 %v2531
    %v2533 = vlaneseq
    %v2534 = vshrl.u32 %v2533, 7
    %v2535 = vsub.s32 %v2532, %v2534
    %v2536 = vrot.slane %v2529, %v2535
    %v2538 = vunpack.c.l.s4 1983009808
    %v2539 = vunpack.c.0.s8 %v2538
    %v2540 = vlaneseq
    %v2541 = vshrl.u32 %v2540, 7
    %v2542 = vsub.s32 %v2539, %v2541
    %v2543 = vrot.slane 0.0, %v2542
    %v2544 = vcombine.low %v2536, %v2543
    %v2545 = vrot.slane %v2505, 2
    %v2546 = vrot.slane %v2544, 7
    %v2547 = vsel %vm2484, %v2545, %v2546
    %v2548 = vrot.slane %v2527, 2
    %v2549 = vsel %vm2484, %v2548, %v2546
    %v2550 = vcombine.low %v2403, %v2404
    %v2551 = vcombine.high %v2403, %v2404
    %v2552 = vcombine.low %v2405, %v2406
    %v2553 = vcombine.high %v2405, %v2406
    %v2555 = vunpack.c.l.s4 1983009808
    %v2556 = vunpack.c.0.s8 %v2555
    %v2557 = vlaneseq
    %v2558 = vshrl.u32 %v2557, 7
    %v2559 = vsub.s32 %v2556, %v2558
    %v2560 = vrot.slane %v2550, %v2559
    %v2562 = vunpack.c.l.s4 1983009808
    %v2563 = vunpack.c.0.s8 %v2562
    %v2564 = vlaneseq
    %v2565 = vshrl.u32 %v2564, 7
    %v2566 = vsub.s32 %v2563, %v2565
    %v2567 = vrot.slane %v2551, %v2566
    %v2569 = vunpack.c.l.s4 1983009808
    %v2570 = vunpack.c.0.s8 %v2569
    %v2571 = vlaneseq
    %v2572 = vshrl.u32 %v2571, 7
    %v2573 = vsub.s32 %v2570, %v2572
    %v2574 = vrot.slane %v2552, %v2573
    %v2576 = vunpack.c.l.s4 1983009808
    %v2577 = vunpack.c.0.s8 %v2576
    %v2578 = vlaneseq
    %v2579 = vshrl.u32 %v2578, 7
    %v2580 = vsub.s32 %v2577, %v2579
    %v2581 = vrot.slane %v2553, %v2580
    %v2582 = vcombine.low %v2560, %v2574
    %v2583 = vcombine.high %v2560, %v2574
    %v2584 = vcombine.low %v2567, %v2581
    %v2585 = vcombine.low %v2438, %v2439
    %v2586 = vcombine.high %v2438, %v2439
    %v2587 = vcombine.low %v2440, %v2457
    %v2588 = vcombine.high %v2440, %v2457
    %v2590 = vunpack.c.l.s4 1983009808
    %v2591 = vunpack.c.0.s8 %v2590
    %v2592 = vlaneseq
    %v2593 = vshrl.u32 %v2592, 7
    %v2594 = vsub.s32 %v2591, %v2593
    %v2595 = vrot.slane %v2585, %v2594
    %v2597 = vunpack.c.l.s4 1983009808
    %v2598 = vunpack.c.0.s8 %v2597
    %v2599 = vlaneseq
    %v2600 = vshrl.u32 %v2599, 7
    %v2601 = vsub.s32 %v2598, %v2600
    %v2602 = vrot.slane %v2586, %v2601
    %v2604 = vunpack.c.l.s4 1983009808
    %v2605 = vunpack.c.0.s8 %v2604
    %v2606 = vlaneseq
    %v2607 = vshrl.u32 %v2606, 7
    %v2608 = vsub.s32 %v2605, %v2607
    %v2609 = vrot.slane %v2587, %v2608
    %v2611 = vunpack.c.l.s4 1983009808
    %v2612 = vunpack.c.0.s8 %v2611
    %v2613 = vlaneseq
    %v2614 = vshrl.u32 %v2613, 7
    %v2615 = vsub.s32 %v2612, %v2614
    %v2616 = vrot.slane %v2588, %v2615
    %v2617 = vcombine.low %v2595, %v2609
    %v2618 = vcombine.high %v2595, %v2609
    %v2619 = vcombine.low %v2602, %v2616
    %v2620 = vcombine.low %v2458, %v2459
    %v2621 = vcombine.high %v2458, %v2459
    %v2622 = vcombine.low %v2460, %v2477
    %v2623 = vcombine.high %v2460, %v2477
    %v2625 = vunpack.c.l.s4 1983009808
    %v2626 = vunpack.c.0.s8 %v2625
    %v2627 = vlaneseq
    %v2628 = vshrl.u32 %v2627, 7
    %v2629 = vsub.s32 %v2626, %v2628
    %v2630 = vrot.slane %v2620, %v2629
    %v2632 = vunpack.c.l.s4 1983009808
    %v2633 = vunpack.c.0.s8 %v2632
    %v2634 = vlaneseq
    %v2635 = vshrl.u32 %v2634, 7
    %v2636 = vsub.s32 %v2633, %v2635
    %v2637 = vrot.slane %v2621, %v2636
    %v2639 = vunpack.c.l.s4 1983009808
    %v2640 = vunpack.c.0.s8 %v2639
    %v2641 = vlaneseq
    %v2642 = vshrl.u32 %v2641, 7
    %v2643 = vsub.s32 %v2640, %v2642
    %v2644 = vrot.slane %v2622, %v2643
    %v2646 = vunpack.c.l.s4 1983009808
    %v2647 = vunpack.c.0.s8 %v2646
    %v2648 = vlaneseq
    %v2649 = vshrl.u32 %v2648, 7
    %v2650 = vsub.s32 %v2647, %v2649
    %v2651 = vrot.slane %v2623, %v2650
    %v2652 = vcombine.low %v2630, %v2644
    %v2653 = vcombine.high %v2630, %v2644
    %v2654 = vcombine.low %v2637, %v2651
    %v2655 = vcombine.low %v2478, %v2479
    %v2656 = vcombine.high %v2478, %v2479
    %v2658 = vunpack.c.l.s4 1983009808
    %v2659 = vunpack.c.0.s8 %v2658
    %v2660 = vlaneseq
    %v2661 = vshrl.u32 %v2660, 7
    %v2662 = vsub.s32 %v2659, %v2661
    %v2663 = vrot.slane %v2655, %v2662
    %v2665 = vunpack.c.l.s4 1983009808
    %v2666 = vunpack.c.0.s8 %v2665
    %v2667 = vlaneseq
    %v2668 = vshrl.u32 %v2667, 7
    %v2669 = vsub.s32 %v2666, %v2668
    %v2670 = vrot.slane %v2656, %v2669
    %v2671 = vcombine.high %v2663, %v2663
    %v2684 = vcombine.low %v2488, %v2491
    %v2685 = vcombine.high %v2488, %v2491
    %v2686 = vcombine.low %v2494, %v2497
    %v2687 = vcombine.high %v2494, %v2497
    %v2689 = vunpack.c.l.s4 1983009808
    %v2690 = vunpack.c.0.s8 %v2689
    %v2691 = vlaneseq
    %v2692 = vshrl.u32 %v2691, 7
    %v2693 = vsub.s32 %v2690, %v2692
    %v2694 = vrot.slane %v2684, %v2693
    %v2696 = vunpack.c.l.s4 1983009808
    %v2697 = vunpack.c.0.s8 %v2696
    %v2698 = vlaneseq
    %v2699 = vshrl.u32 %v2698, 7
    %v2700 = vsub.s32 %v2697, %v2699
    %v2701 = vrot.slane %v2685, %v2700
    %v2703 = vunpack.c.l.s4 1983009808
    %v2704 = vunpack.c.0.s8 %v2703
    %v2705 = vlaneseq
    %v2706 = vshrl.u32 %v2705, 7
    %v2707 = vsub.s32 %v2704, %v2706
    %v2708 = vrot.slane %v2686, %v2707
    %v2710 = vunpack.c.l.s4 1983009808
    %v2711 = vunpack.c.0.s8 %v2710
    %v2712 = vlaneseq
    %v2713 = vshrl.u32 %v2712, 7
    %v2714 = vsub.s32 %v2711, %v2713
    %v2715 = vrot.slane %v2687, %v2714
    %v2716 = vcombine.low %v2694, %v2708
    %v2717 = vcombine.high %v2694, %v2708
    %v2718 = vcombine.low %v2701, %v2715
    %v2719 = vcombine.low %v2500, %v2503
    %v2720 = vcombine.high %v2500, %v2503
    %v2721 = vcombine.low %v2506, %v2510
    %v2722 = vcombine.high %v2506, %v2510
    %v2724 = vunpack.c.l.s4 1983009808
    %v2725 = vunpack.c.0.s8 %v2724
    %v2726 = vlaneseq
    %v2727 = vshrl.u32 %v2726, 7
    %v2728 = vsub.s32 %v2725, %v2727
    %v2729 = vrot.slane %v2719, %v2728
    %v2731 = vunpack.c.l.s4 1983009808
    %v2732 = vunpack.c.0.s8 %v2731
    %v2733 = vlaneseq
    %v2734 = vshrl.u32 %v2733, 7
    %v2735 = vsub.s32 %v2732, %v2734
    %v2736 = vrot.slane %v2720, %v2735
    %v2738 = vunpack.c.l.s4 1983009808
    %v2739 = vunpack.c.0.s8 %v2738
    %v2740 = vlaneseq
    %v2741 = vshrl.u32 %v2740, 7
    %v2742 = vsub.s32 %v2739, %v2741
    %v2743 = vrot.slane %v2721, %v2742
    %v2745 = vunpack.c.l.s4 1983009808
    %v2746 = vunpack.c.0.s8 %v2745
    %v2747 = vlaneseq
    %v2748 = vshrl.u32 %v2747, 7
    %v2749 = vsub.s32 %v2746, %v2748
    %v2750 = vrot.slane %v2722, %v2749
    %v2751 = vcombine.low %v2729, %v2743
    %v2752 = vcombine.high %v2729, %v2743
    %v2753 = vcombine.low %v2736, %v2750
    %v2754 = vcombine.low %v2513, %v2516
    %v2755 = vcombine.high %v2513, %v2516
    %v2756 = vcombine.low %v2519, %v2522
    %v2757 = vcombine.high %v2519, %v2522
    %v2759 = vunpack.c.l.s4 1983009808
    %v2760 = vunpack.c.0.s8 %v2759
    %v2761 = vlaneseq
    %v2762 = vshrl.u32 %v2761, 7
    %v2763 = vsub.s32 %v2760, %v2762
    %v2764 = vrot.slane %v2754, %v2763
    %v2766 = vunpack.c.l.s4 1983009808
    %v2767 = vunpack.c.0.s8 %v2766
    %v2768 = vlaneseq
    %v2769 = vshrl.u32 %v2768, 7
    %v2770 = vsub.s32 %v2767, %v2769
    %v2771 = vrot.slane %v2755, %v2770
    %v2773 = vunpack.c.l.s4 1983009808
    %v2774 = vunpack.c.0.s8 %v2773
    %v2775 = vlaneseq
    %v2776 = vshrl.u32 %v2775, 7
    %v2777 = vsub.s32 %v2774, %v2776
    %v2778 = vrot.slane %v2756, %v2777
    %v2780 = vunpack.c.l.s4 1983009808
    %v2781 = vunpack.c.0.s8 %v2780
    %v2782 = vlaneseq
    %v2783 = vshrl.u32 %v2782, 7
    %v2784 = vsub.s32 %v2781, %v2783
    %v2785 = vrot.slane %v2757, %v2784
    %v2786 = vcombine.low %v2764, %v2778
    %v2787 = vcombine.high %v2764, %v2778
    %v2788 = vcombine.low %v2771, %v2785
    %v2789 = vcombine.low %v2525, %v2528
    %v2790 = vcombine.high %v2525, %v2528
    %v2792 = vunpack.c.l.s4 1983009808
    %v2793 = vunpack.c.0.s8 %v2792
    %v2794 = vlaneseq
    %v2795 = vshrl.u32 %v2794, 7
    %v2796 = vsub.s32 %v2793, %v2795
    %v2797 = vrot.slane %v2789, %v2796
    %v2799 = vunpack.c.l.s4 1983009808
    %v2800 = vunpack.c.0.s8 %v2799
    %v2801 = vlaneseq
    %v2802 = vshrl.u32 %v2801, 7
    %v2803 = vsub.s32 %v2800, %v2802
    %v2804 = vrot.slane %v2790, %v2803
    %v2805 = vcombine.high %v2797, %v2797
    %2806 = vrot.lane.b32.xlu0 %v2716, 32
    %v2807 = vpop.permute.xlu0 %2806
    %2808 = vrot.lane.b32.xlu0 %v2717, 32
    %v2809 = vpop.permute.xlu0 %2808
    %2810 = vrot.lane.b32.xlu0 %v2718, 32
    %v2811 = vpop.permute.xlu0 %2810
    %2812 = vrot.lane.b32.xlu0 %v2751, 32
    %v2813 = vpop.permute.xlu0 %2812
    %2814 = vrot.lane.b32.xlu0 %v2752, 32
    %v2815 = vpop.permute.xlu0 %2814
    %2816 = vrot.lane.b32.xlu0 %v2753, 32
    %v2817 = vpop.permute.xlu0 %2816
    %2818 = vrot.lane.b32.xlu0 %v2786, 32
    %v2819 = vpop.permute.xlu0 %2818
    %2820 = vrot.lane.b32.xlu0 %v2787, 32
    %v2821 = vpop.permute.xlu0 %2820
    %2822 = vrot.lane.b32.xlu0 %v2788, 32
    %v2823 = vpop.permute.xlu0 %2822
    %2824 = vrot.lane.b32.xlu0 %v2797, 32
    %v2825 = vpop.permute.xlu0 %2824
    %2826 = vrot.lane.b32.xlu0 %v2805, 32
    %v2827 = vpop.permute.xlu0 %2826
    %2828 = vrot.lane.b32.xlu0 %v2804, 32
    %v2829 = vpop.permute.xlu0 %2828
    %v2830 = vsel %vm382, %v2807, %v2809
    %v2831 = vsel %vm382, %v2809, %v2811
    %v2832 = vsel %vm382, %v2813, %v2815
    %v2833 = vsel %vm382, %v2815, %v2817
    %v2834 = vsel %vm382, %v2819, %v2821
    %v2835 = vsel %vm382, %v2821, %v2823
    %v2836 = vsel %vm382, %v2825, %v2827
    %v2837 = vsel %vm382, %v2827, %v2829
    %v2850 = vcombine.low %v2404, %v2405
    %v2851 = vcombine.high %v2404, %v2405
    %v2852 = vcombine.low %v2406, %v2438
    %v2853 = vcombine.high %v2406, %v2438
    %v2855 = vunpack.c.l.s4 1983009808
    %v2856 = vunpack.c.0.s8 %v2855
    %v2857 = vlaneseq
    %v2858 = vshrl.u32 %v2857, 7
    %v2859 = vsub.s32 %v2856, %v2858
    %v2860 = vrot.slane %v2850, %v2859
    %v2862 = vunpack.c.l.s4 1983009808
    %v2863 = vunpack.c.0.s8 %v2862
    %v2864 = vlaneseq
    %v2865 = vshrl.u32 %v2864, 7
    %v2866 = vsub.s32 %v2863, %v2865
    %v2867 = vrot.slane %v2851, %v2866
    %v2869 = vunpack.c.l.s4 1983009808
    %v2870 = vunpack.c.0.s8 %v2869
    %v2871 = vlaneseq
    %v2872 = vshrl.u32 %v2871, 7
    %v2873 = vsub.s32 %v2870, %v2872
    %v2874 = vrot.slane %v2852, %v2873
    %v2876 = vunpack.c.l.s4 1983009808
    %v2877 = vunpack.c.0.s8 %v2876
    %v2878 = vlaneseq
    %v2879 = vshrl.u32 %v2878, 7
    %v2880 = vsub.s32 %v2877, %v2879
    %v2881 = vrot.slane %v2853, %v2880
    %v2882 = vcombine.low %v2860, %v2874
    %v2883 = vcombine.high %v2860, %v2874
    %v2884 = vcombine.low %v2867, %v2881
    %v2885 = vcombine.low %v2439, %v2440
    %v2886 = vcombine.high %v2439, %v2440
    %v2887 = vcombine.low %v2480, %v2458
    %v2888 = vcombine.high %v2480, %v2458
    %v2890 = vunpack.c.l.s4 1983009808
    %v2891 = vunpack.c.0.s8 %v2890
    %v2892 = vlaneseq
    %v2893 = vshrl.u32 %v2892, 7
    %v2894 = vsub.s32 %v2891, %v2893
    %v2895 = vrot.slane %v2885, %v2894
    %v2897 = vunpack.c.l.s4 1983009808
    %v2898 = vunpack.c.0.s8 %v2897
    %v2899 = vlaneseq
    %v2900 = vshrl.u32 %v2899, 7
    %v2901 = vsub.s32 %v2898, %v2900
    %v2902 = vrot.slane %v2886, %v2901
    %v2904 = vunpack.c.l.s4 1983009808
    %v2905 = vunpack.c.0.s8 %v2904
    %v2906 = vlaneseq
    %v2907 = vshrl.u32 %v2906, 7
    %v2908 = vsub.s32 %v2905, %v2907
    %v2909 = vrot.slane %v2887, %v2908
    %v2911 = vunpack.c.l.s4 1983009808
    %v2912 = vunpack.c.0.s8 %v2911
    %v2913 = vlaneseq
    %v2914 = vshrl.u32 %v2913, 7
    %v2915 = vsub.s32 %v2912, %v2914
    %v2916 = vrot.slane %v2888, %v2915
    %v2917 = vcombine.low %v2895, %v2909
    %v2918 = vcombine.high %v2895, %v2909
    %v2919 = vcombine.low %v2902, %v2916
    %v2920 = vcombine.low %v2459, %v2460
    %v2921 = vcombine.high %v2459, %v2460
    %v2922 = vcombine.low %v2477, %v2478
    %v2923 = vcombine.high %v2477, %v2478
    %v2925 = vunpack.c.l.s4 1983009808
    %v2926 = vunpack.c.0.s8 %v2925
    %v2927 = vlaneseq
    %v2928 = vshrl.u32 %v2927, 7
    %v2929 = vsub.s32 %v2926, %v2928
    %v2930 = vrot.slane %v2920, %v2929
    %v2932 = vunpack.c.l.s4 1983009808
    %v2933 = vunpack.c.0.s8 %v2932
    %v2934 = vlaneseq
    %v2935 = vshrl.u32 %v2934, 7
    %v2936 = vsub.s32 %v2933, %v2935
    %v2937 = vrot.slane %v2921, %v2936
    %v2939 = vunpack.c.l.s4 1983009808
    %v2940 = vunpack.c.0.s8 %v2939
    %v2941 = vlaneseq
    %v2942 = vshrl.u32 %v2941, 7
    %v2943 = vsub.s32 %v2940, %v2942
    %v2944 = vrot.slane %v2922, %v2943
    %v2946 = vunpack.c.l.s4 1983009808
    %v2947 = vunpack.c.0.s8 %v2946
    %v2948 = vlaneseq
    %v2949 = vshrl.u32 %v2948, 7
    %v2950 = vsub.s32 %v2947, %v2949
    %v2951 = vrot.slane %v2923, %v2950
    %v2952 = vcombine.low %v2930, %v2944
    %v2953 = vcombine.high %v2930, %v2944
    %v2954 = vcombine.low %v2937, %v2951
    %v2955 = vcombine.low %v2479, %v2481
    %v2956 = vcombine.high %v2479, %v2481
    %v2958 = vunpack.c.l.s4 1983009808
    %v2959 = vunpack.c.0.s8 %v2958
    %v2960 = vlaneseq
    %v2961 = vshrl.u32 %v2960, 7
    %v2962 = vsub.s32 %v2959, %v2961
    %v2963 = vrot.slane %v2955, %v2962
    %v2965 = vunpack.c.l.s4 1983009808
    %v2966 = vunpack.c.0.s8 %v2965
    %v2967 = vlaneseq
    %v2968 = vshrl.u32 %v2967, 7
    %v2969 = vsub.s32 %v2966, %v2968
    %v2970 = vrot.slane %v2956, %v2969
    %v2971 = vcombine.high %v2963, %v2963
    %2972 = vrot.lane.b32.xlu0 %v2882, 64
    %v2973 = vpop.permute.xlu0 %2972
    %2974 = vrot.lane.b32.xlu0 %v2883, 64
    %v2975 = vpop.permute.xlu0 %2974
    %2976 = vrot.lane.b32.xlu0 %v2884, 64
    %v2977 = vpop.permute.xlu0 %2976
    %2978 = vrot.lane.b32.xlu0 %v2917, 64
    %v2979 = vpop.permute.xlu0 %2978
    %2980 = vrot.lane.b32.xlu0 %v2918, 64
    %v2981 = vpop.permute.xlu0 %2980
    %2982 = vrot.lane.b32.xlu0 %v2919, 64
    %v2983 = vpop.permute.xlu0 %2982
    %2984 = vrot.lane.b32.xlu0 %v2952, 64
    %v2985 = vpop.permute.xlu0 %2984
    %2986 = vrot.lane.b32.xlu0 %v2953, 64
    %v2987 = vpop.permute.xlu0 %2986
    %2988 = vrot.lane.b32.xlu0 %v2954, 64
    %v2989 = vpop.permute.xlu0 %2988
    %2990 = vrot.lane.b32.xlu0 %v2963, 64
    %v2991 = vpop.permute.xlu0 %2990
    %2992 = vrot.lane.b32.xlu0 %v2971, 64
    %v2993 = vpop.permute.xlu0 %2992
    %2994 = vrot.lane.b32.xlu0 %v2970, 64
    %v2995 = vpop.permute.xlu0 %2994
    %v2996 = vsel %vm390, %v2973, %v2975
    %v2997 = vsel %vm390, %v2975, %v2977
    %v2998 = vsel %vm390, %v2979, %v2981
    %v2999 = vsel %vm390, %v2981, %v2983
    %v3000 = vsel %vm390, %v2985, %v2987
    %v3001 = vsel %vm390, %v2987, %v2989
    %v3002 = vsel %vm390, %v2991, %v2993
    %v3003 = vsel %vm390, %v2993, %v2995
    %v3016 = vcombine.low %v2491, %v2494
    %v3017 = vcombine.high %v2491, %v2494
    %v3018 = vcombine.low %v2497, %v2500
    %v3019 = vcombine.high %v2497, %v2500
    %v3021 = vunpack.c.l.s4 1983009808
    %v3022 = vunpack.c.0.s8 %v3021
    %v3023 = vlaneseq
    %v3024 = vshrl.u32 %v3023, 7
    %v3025 = vsub.s32 %v3022, %v3024
    %v3026 = vrot.slane %v3016, %v3025
    %v3028 = vunpack.c.l.s4 1983009808
    %v3029 = vunpack.c.0.s8 %v3028
    %v3030 = vlaneseq
    %v3031 = vshrl.u32 %v3030, 7
    %v3032 = vsub.s32 %v3029, %v3031
    %v3033 = vrot.slane %v3017, %v3032
    %v3035 = vunpack.c.l.s4 1983009808
    %v3036 = vunpack.c.0.s8 %v3035
    %v3037 = vlaneseq
    %v3038 = vshrl.u32 %v3037, 7
    %v3039 = vsub.s32 %v3036, %v3038
    %v3040 = vrot.slane %v3018, %v3039
    %v3042 = vunpack.c.l.s4 1983009808
    %v3043 = vunpack.c.0.s8 %v3042
    %v3044 = vlaneseq
    %v3045 = vshrl.u32 %v3044, 7
    %v3046 = vsub.s32 %v3043, %v3045
    %v3047 = vrot.slane %v3019, %v3046
    %v3048 = vcombine.low %v3026, %v3040
    %v3049 = vcombine.high %v3026, %v3040
    %v3050 = vcombine.low %v3033, %v3047
    %v3051 = vcombine.low %v2503, %v2506
    %v3052 = vcombine.high %v2503, %v2506
    %v3053 = vcombine.low %v2547, %v2513
    %v3054 = vcombine.high %v2547, %v2513
    %v3056 = vunpack.c.l.s4 1983009808
    %v3057 = vunpack.c.0.s8 %v3056
    %v3058 = vlaneseq
    %v3059 = vshrl.u32 %v3058, 7
    %v3060 = vsub.s32 %v3057, %v3059
    %v3061 = vrot.slane %v3051, %v3060
    %v3063 = vunpack.c.l.s4 1983009808
    %v3064 = vunpack.c.0.s8 %v3063
    %v3065 = vlaneseq
    %v3066 = vshrl.u32 %v3065, 7
    %v3067 = vsub.s32 %v3064, %v3066
    %v3068 = vrot.slane %v3052, %v3067
    %v3070 = vunpack.c.l.s4 1983009808
    %v3071 = vunpack.c.0.s8 %v3070
    %v3072 = vlaneseq
    %v3073 = vshrl.u32 %v3072, 7
    %v3074 = vsub.s32 %v3071, %v3073
    %v3075 = vrot.slane %v3053, %v3074
    %v3077 = vunpack.c.l.s4 1983009808
    %v3078 = vunpack.c.0.s8 %v3077
    %v3079 = vlaneseq
    %v3080 = vshrl.u32 %v3079, 7
    %v3081 = vsub.s32 %v3078, %v3080
    %v3082 = vrot.slane %v3054, %v3081
    %v3083 = vcombine.low %v3061, %v3075
    %v3084 = vcombine.high %v3061, %v3075
    %v3085 = vcombine.low %v3068, %v3082
    %v3086 = vcombine.low %v2516, %v2519
    %v3087 = vcombine.high %v2516, %v2519
    %v3088 = vcombine.low %v2522, %v2525
    %v3089 = vcombine.high %v2522, %v2525
    %v3091 = vunpack.c.l.s4 1983009808
    %v3092 = vunpack.c.0.s8 %v3091
    %v3093 = vlaneseq
    %v3094 = vshrl.u32 %v3093, 7
    %v3095 = vsub.s32 %v3092, %v3094
    %v3096 = vrot.slane %v3086, %v3095
    %v3098 = vunpack.c.l.s4 1983009808
    %v3099 = vunpack.c.0.s8 %v3098
    %v3100 = vlaneseq
    %v3101 = vshrl.u32 %v3100, 7
    %v3102 = vsub.s32 %v3099, %v3101
    %v3103 = vrot.slane %v3087, %v3102
    %v3105 = vunpack.c.l.s4 1983009808
    %v3106 = vunpack.c.0.s8 %v3105
    %v3107 = vlaneseq
    %v3108 = vshrl.u32 %v3107, 7
    %v3109 = vsub.s32 %v3106, %v3108
    %v3110 = vrot.slane %v3088, %v3109
    %v3112 = vunpack.c.l.s4 1983009808
    %v3113 = vunpack.c.0.s8 %v3112
    %v3114 = vlaneseq
    %v3115 = vshrl.u32 %v3114, 7
    %v3116 = vsub.s32 %v3113, %v3115
    %v3117 = vrot.slane %v3089, %v3116
    %v3118 = vcombine.low %v3096, %v3110
    %v3119 = vcombine.high %v3096, %v3110
    %v3120 = vcombine.low %v3103, %v3117
    %v3121 = vcombine.low %v2528, %v2549
    %v3122 = vcombine.high %v2528, %v2549
    %v3124 = vunpack.c.l.s4 1983009808
    %v3125 = vunpack.c.0.s8 %v3124
    %v3126 = vlaneseq
    %v3127 = vshrl.u32 %v3126, 7
    %v3128 = vsub.s32 %v3125, %v3127
    %v3129 = vrot.slane %v3121, %v3128
    %v3131 = vunpack.c.l.s4 1983009808
    %v3132 = vunpack.c.0.s8 %v3131
    %v3133 = vlaneseq
    %v3134 = vshrl.u32 %v3133, 7
    %v3135 = vsub.s32 %v3132, %v3134
    %v3136 = vrot.slane %v3122, %v3135
    %v3137 = vcombine.high %v3129, %v3129
    %3138 = vrot.lane.b32.xlu0 %v3048, 96
    %v3139 = vpop.permute.xlu0 %3138
    %3140 = vrot.lane.b32.xlu0 %v3049, 96
    %v3141 = vpop.permute.xlu0 %3140
    %3142 = vrot.lane.b32.xlu0 %v3050, 96
    %v3143 = vpop.permute.xlu0 %3142
    %3144 = vrot.lane.b32.xlu0 %v3083, 96
    %v3145 = vpop.permute.xlu0 %3144
    %3146 = vrot.lane.b32.xlu0 %v3084, 96
    %v3147 = vpop.permute.xlu0 %3146
    %3148 = vrot.lane.b32.xlu0 %v3085, 96
    %v3149 = vpop.permute.xlu0 %3148
    %3150 = vrot.lane.b32.xlu0 %v3118, 96
    %v3151 = vpop.permute.xlu0 %3150
    %3152 = vrot.lane.b32.xlu0 %v3119, 96
    %v3153 = vpop.permute.xlu0 %3152
    %3154 = vrot.lane.b32.xlu0 %v3120, 96
    %v3155 = vpop.permute.xlu0 %3154
    %3156 = vrot.lane.b32.xlu0 %v3129, 96
    %v3157 = vpop.permute.xlu0 %3156
    %3158 = vrot.lane.b32.xlu0 %v3137, 96
    %v3159 = vpop.permute.xlu0 %3158
    %3160 = vrot.lane.b32.xlu0 %v3136, 96
    %v3161 = vpop.permute.xlu0 %3160
    %v3162 = vsel %vm398, %v3139, %v3141
    %v3163 = vsel %vm398, %v3141, %v3143
    %v3164 = vsel %vm398, %v3145, %v3147
    %v3165 = vsel %vm398, %v3147, %v3149
    %v3166 = vsel %vm398, %v3151, %v3153
    %v3167 = vsel %vm398, %v3153, %v3155
    %v3168 = vsel %vm398, %v3157, %v3159
    %v3169 = vsel %vm398, %v3159, %v3161
    %v3182 = vcombine.low %v2574, %v2595
    %v3183 = vcombine.high %v2574, %v2595
    %v3184 = vcombine.low %v2581, %v2602
    %v3185 = vcombine.low %v2440, %v2480
    %v3186 = vcombine.high %v2440, %v2480
    %v3187 = vcombine.low %v2544, %v2459
    %v3188 = vcombine.high %v2544, %v2459
    %v3190 = vunpack.c.l.s4 1983009808
    %v3191 = vunpack.c.0.s8 %v3190
    %v3192 = vlaneseq
    %v3193 = vshrl.u32 %v3192, 7
    %v3194 = vsub.s32 %v3191, %v3193
    %v3195 = vrot.slane %v3185, %v3194
    %v3197 = vunpack.c.l.s4 1983009808
    %v3198 = vunpack.c.0.s8 %v3197
    %v3199 = vlaneseq
    %v3200 = vshrl.u32 %v3199, 7
    %v3201 = vsub.s32 %v3198, %v3200
    %v3202 = vrot.slane %v3186, %v3201
    %v3204 = vunpack.c.l.s4 1983009808
    %v3205 = vunpack.c.0.s8 %v3204
    %v3206 = vlaneseq
    %v3207 = vshrl.u32 %v3206, 7
    %v3208 = vsub.s32 %v3205, %v3207
    %v3209 = vrot.slane %v3187, %v3208
    %v3211 = vunpack.c.l.s4 1983009808
    %v3212 = vunpack.c.0.s8 %v3211
    %v3213 = vlaneseq
    %v3214 = vshrl.u32 %v3213, 7
    %v3215 = vsub.s32 %v3212, %v3214
    %v3216 = vrot.slane %v3188, %v3215
    %v3217 = vcombine.low %v3195, %v3209
    %v3218 = vcombine.high %v3195, %v3209
    %v3219 = vcombine.low %v3202, %v3216
    %v3220 = vcombine.low %v2644, %v2663
    %v3221 = vcombine.high %v2644, %v2663
    %v3222 = vcombine.low %v2651, %v2670
    %v3223 = vcombine.low %v2481, %v2544
    %v3224 = vcombine.high %v2481, %v2544
    %v3226 = vunpack.c.l.s4 1983009808
    %v3227 = vunpack.c.0.s8 %v3226
    %v3228 = vlaneseq
    %v3229 = vshrl.u32 %v3228, 7
    %v3230 = vsub.s32 %v3227, %v3229
    %v3231 = vrot.slane %v3223, %v3230
    %v3233 = vunpack.c.l.s4 1983009808
    %v3234 = vunpack.c.0.s8 %v3233
    %v3235 = vlaneseq
    %v3236 = vshrl.u32 %v3235, 7
    %v3237 = vsub.s32 %v3234, %v3236
    %v3238 = vrot.slane %v3224, %v3237
    %v3239 = vcombine.high %v3231, %v3231
    %v3252 = vsel %vm382, %v2584, %v2807
    %v3253 = vsel %vm382, %v2619, %v2813
    %v3254 = vsel %vm382, %v2654, %v2819
    %v3255 = vsel %vm382, %v2670, %v2825
    %v3256 = vsel %vm390, %v2831, %v2973
    %v3257 = vsel %vm390, %v2833, %v2979
    %v3258 = vsel %vm390, %v2835, %v2985
    %v3259 = vsel %vm390, %v2837, %v2991
    %v3260 = vsel %vm398, %v2997, %v3139
    %v3261 = vsel %vm398, %v2999, %v3145
    %v3262 = vsel %vm398, %v3001, %v3151
    %v3263 = vsel %vm398, %v3003, %v3157
    %v3264 = vpack.c.bf16 %v2617, %v2582
    %v3265 = vpack.c.bf16 %v2618, %v2583
    %v3266 = vpack.c.bf16 %v3253, %v3252
    %v3267 = vpack.c.bf16 %v2832, %v2830
    %v3268 = vpack.c.bf16 %v3257, %v3256
    %v3269 = vpack.c.bf16 %v2998, %v2996
    %v3270 = vpack.c.bf16 %v3261, %v3260
    %v3271 = vpack.c.bf16 %v3164, %v3162
    %v3272 = vpack.c.bf16 %v3165, %v3163
    %v3273 = vpack.c.bf16 %v3217, %v3182
    %v3274 = vpack.c.bf16 %v3218, %v3183
    %v3275 = vpack.c.bf16 %v3219, %v3184
    %v3276 = vpack.c.bf16 %v2663, %v2652
    %v3277 = vpack.c.bf16 %v2671, %v2653
    %v3278 = vpack.c.bf16 %v3255, %v3254
    %v3279 = vpack.c.bf16 %v2836, %v2834
    %v3280 = vpack.c.bf16 %v3259, %v3258
    %v3281 = vpack.c.bf16 %v3002, %v3000
    %v3282 = vpack.c.bf16 %v3263, %v3262
    %v3283 = vpack.c.bf16 %v3168, %v3166
    %v3284 = vpack.c.bf16 %v3169, %v3167
    %v3285 = vpack.c.bf16 %v3231, %v3220
    %v3286 = vpack.c.bf16 %v3239, %v3221
    %v3287 = vpack.c.bf16 %v3238, %v3222
    %v3288 = vld [vmem:[%s3] sm:$0xff]
    %v3289 = vld [vmem:[%s3 + $0x8] sm:$0xff]
    %v3290 = vld [vmem:[%s3 + $0x10] sm:$0xff]
    %v3291 = vld [vmem:[%s3 + $0x18] sm:$0xff]
    %v3292 = vld [vmem:[%s3 + $0x20] sm:$0xff]
    %v3293 = vld [vmem:[%s3 + $0x28] sm:$0xff]
    %v3294 = vld [vmem:[%s3 + $0x30] sm:$0xff]
    %v3295 = vld [vmem:[%s3 + $0x38] sm:$0xff]
    %v3296 = vld [vmem:[%s3 + $0x40] sm:$0xff]
    %v3297 = vld [vmem:[%s3 + $0x48] sm:$0xff]
    %v3298 = vld [vmem:[%s3 + $0x50] sm:$0xff]
    %v3299 = vld [vmem:[%s3 + $0x58] sm:$0xff]
    %v3300 = vld [vmem:[%s3 + $0x60] sm:$0xff]
    %v3301 = vld [vmem:[%s3 + $0x68] sm:$0xff]
    %v3302 = vld [vmem:[%s3 + $0x70] sm:$0xff]
    %v3303 = vld [vmem:[%s3 + $0x78] sm:$0xff]
    %v3304 = vld [vmem:[%s3 + $0x80] sm:$0xff]
    %v3305 = vld [vmem:[%s3 + $0x88] sm:$0xff]
    %v3306 = vld [vmem:[%s3 + $0x90] sm:$0xff]
    %v3307 = vld [vmem:[%s3 + $0x98] sm:$0xff]
    %v3308 = vld [vmem:[%s3 + $0xa0] sm:$0xff]
    %v3309 = vld [vmem:[%s3 + $0xa8] sm:$0xff]
    %v3310 = vld [vmem:[%s3 + $0xb0] sm:$0xff]
    %v3311 = vld [vmem:[%s3 + $0xb8] sm:$0xff]
    %v3312 = vld [vmem:[%s3 + $0xc0] sm:$0xff]
    %v3313 = vld [vmem:[%s3 + $0xc8] sm:$0xff]
    %v3314 = vld [vmem:[%s3 + $0xd0] sm:$0xff]
    %v3315 = vld [vmem:[%s3 + $0xd8] sm:$0xff]
    %v3316 = vld [vmem:[%s3 + $0xe0] sm:$0xff]
    %v3317 = vld [vmem:[%s3 + $0xe8] sm:$0xff]
    %v3318 = vld [vmem:[%s3 + $0xf0] sm:$0xff]
    %v3319 = vld [vmem:[%s3 + $0xf8] sm:$0xff]
    %v3320 = vld [vmem:[%s3 + $0x100] sm:$0xff]
    %v3321 = vld [vmem:[%s3 + $0x108] sm:$0xff]
    %v3322 = vld [vmem:[%s3 + $0x110] sm:$0xff]
    %v3323 = vld [vmem:[%s3 + $0x118] sm:$0xff]
    %v3324 = vld [vmem:[%s3 + $0x120] sm:$0xff]
    %v3325 = vld [vmem:[%s3 + $0x128] sm:$0xff]
    %v3326 = vld [vmem:[%s3 + $0x130] sm:$0xff]
    %v3327 = vld [vmem:[%s3 + $0x138] sm:$0xff]
    %v3328 = vld [vmem:[%s3 + $0x140] sm:$0xff]
    %v3329 = vld [vmem:[%s3 + $0x148] sm:$0xff]
    %v3330 = vld [vmem:[%s3 + $0x150] sm:$0xff]
    %v3331 = vld [vmem:[%s3 + $0x158] sm:$0xff]
    %v3332 = vld [vmem:[%s3 + $0x160] sm:$0xff]
    %v3333 = vld [vmem:[%s3 + $0x168] sm:$0xff]
    %v3334 = vld [vmem:[%s3 + $0x170] sm:$0xff]
    %v3335 = vld [vmem:[%s3 + $0x178] sm:$0xff]
    %v3336 = vld [vmem:[%s3 + $0x180] sm:$0xff]
    %v3337 = vld [vmem:[%s3 + $0x188] sm:$0xff]
    %v3338 = vld [vmem:[%s3 + $0x190] sm:$0xff]
    %v3339 = vld [vmem:[%s3 + $0x198] sm:$0xff]
    %v3340 = vld [vmem:[%s3 + $0x1a0] sm:$0xff]
    %v3341 = vld [vmem:[%s3 + $0x1a8] sm:$0xff]
    %v3342 = vld [vmem:[%s3 + $0x1b0] sm:$0xff]
    %v3343 = vld [vmem:[%s3 + $0x1b8] sm:$0xff]
    %v3344 = vld [vmem:[%s3 + $0x1c0] sm:$0xff]
    %v3345 = vld [vmem:[%s3 + $0x1c8] sm:$0xff]
    %v3346 = vld [vmem:[%s3 + $0x1d0] sm:$0xff]
    %v3347 = vld [vmem:[%s3 + $0x1d8] sm:$0xff]
    %v3348 = vld [vmem:[%s3 + $0x1e0] sm:$0xff]
    %v3349 = vld [vmem:[%s3 + $0x1e8] sm:$0xff]
    %v3350 = vld [vmem:[%s3 + $0x1f0] sm:$0xff]
    %v3351 = vld [vmem:[%s3 + $0x1f8] sm:$0xff]
    %v3352 = vld [vmem:[%s3 + $0x200] sm:$0xff]
    %v3353 = vld [vmem:[%s3 + $0x208] sm:$0xff]
    %v3354 = vld [vmem:[%s3 + $0x210] sm:$0xff]
    %v3355 = vld [vmem:[%s3 + $0x218] sm:$0xff]
    %v3356 = vld [vmem:[%s3 + $0x220] sm:$0xff]
    %v3357 = vld [vmem:[%s3 + $0x228] sm:$0xff]
    %v3358 = vld [vmem:[%s3 + $0x230] sm:$0xff]
    %v3359 = vld [vmem:[%s3 + $0x238] sm:$0xff]
    %v3360 = vld [vmem:[%s3 + $0x240] sm:$0xff]
    %v3361 = vld [vmem:[%s3 + $0x248] sm:$0xff]
    %v3362 = vld [vmem:[%s3 + $0x250] sm:$0xff]
    %v3363 = vld [vmem:[%s3 + $0x258] sm:$0xff]
    %v3364 = vld [vmem:[%s3 + $0x260] sm:$0xff]
    %v3365 = vld [vmem:[%s3 + $0x268] sm:$0xff]
    %v3366 = vld [vmem:[%s3 + $0x270] sm:$0xff]
    %v3367 = vld [vmem:[%s3 + $0x278] sm:$0xff]
    %v3368 = vld [vmem:[%s3 + $0x280] sm:$0xff]
    %v3369 = vld [vmem:[%s3 + $0x288] sm:$0xff]
    %v3370 = vld [vmem:[%s3 + $0x290] sm:$0xff]
    %v3371 = vld [vmem:[%s3 + $0x298] sm:$0xff]
    %v3372 = vld [vmem:[%s3 + $0x2a0] sm:$0xff]
    %v3373 = vld [vmem:[%s3 + $0x2a8] sm:$0xff]
    %v3374 = vld [vmem:[%s3 + $0x2b0] sm:$0xff]
    %v3375 = vld [vmem:[%s3 + $0x2b8] sm:$0xff]
    %v3376 = vld [vmem:[%s3 + $0x2c0] sm:$0xff]
    %v3377 = vld [vmem:[%s3 + $0x2c8] sm:$0xff]
    %v3378 = vld [vmem:[%s3 + $0x2d0] sm:$0xff]
    %v3379 = vld [vmem:[%s3 + $0x2d8] sm:$0xff]
    %v3380 = vld [vmem:[%s3 + $0x2e0] sm:$0xff]
    %v3381 = vld [vmem:[%s3 + $0x2e8] sm:$0xff]
    %v3382 = vld [vmem:[%s3 + $0x2f0] sm:$0xff]
    %v3383 = vld [vmem:[%s3 + $0x2f8] sm:$0xff]
    %v3384 = vld [vmem:[%s3 + $0x300] sm:$0xff]
    %v3385 = vld [vmem:[%s3 + $0x308] sm:$0xff]
    %v3386 = vld [vmem:[%s3 + $0x310] sm:$0xff]
    %v3387 = vld [vmem:[%s3 + $0x318] sm:$0xff]
    %v3388 = vld [vmem:[%s3 + $0x320] sm:$0xff]
    %v3389 = vld [vmem:[%s3 + $0x328] sm:$0xff]
    %v3390 = vld [vmem:[%s3 + $0x330] sm:$0xff]
    %v3391 = vld [vmem:[%s3 + $0x338] sm:$0xff]
    %v3392 = vld [vmem:[%s3 + $0x340] sm:$0xff]
    %v3393 = vld [vmem:[%s3 + $0x348] sm:$0xff]
    %v3394 = vld [vmem:[%s3 + $0x350] sm:$0xff]
    %v3395 = vld [vmem:[%s3 + $0x358] sm:$0xff]
    %v3396 = vld [vmem:[%s3 + $0x360] sm:$0xff]
    %v3397 = vld [vmem:[%s3 + $0x368] sm:$0xff]
    %v3398 = vld [vmem:[%s3 + $0x370] sm:$0xff]
    %v3399 = vld [vmem:[%s3 + $0x378] sm:$0xff]
    %v3400 = vld [vmem:[%s3 + $0x380] sm:$0xff]
    %v3401 = vld [vmem:[%s3 + $0x388] sm:$0xff]
    %v3402 = vld [vmem:[%s3 + $0x390] sm:$0xff]
    %v3403 = vld [vmem:[%s3 + $0x398] sm:$0xff]
    %v3404 = vld [vmem:[%s3 + $0x3a0] sm:$0xff]
    %v3405 = vld [vmem:[%s3 + $0x3a8] sm:$0xff]
    %v3406 = vld [vmem:[%s3 + $0x3b0] sm:$0xff]
    %v3407 = vld [vmem:[%s3 + $0x3b8] sm:$0xff]
    %v3408 = vld [vmem:[%s3 + $0x3c0] sm:$0xff]
    %v3409 = vld [vmem:[%s3 + $0x3c8] sm:$0xff]
    %v3410 = vld [vmem:[%s3 + $0x3d0] sm:$0xff]
    %v3411 = vld [vmem:[%s3 + $0x3d8] sm:$0xff]
    %v3412 = vld [vmem:[%s3 + $0x3e0] sm:$0xff]
    %v3413 = vld [vmem:[%s3 + $0x3e8] sm:$0xff]
    %v3414 = vld [vmem:[%s3 + $0x3f0] sm:$0xff]
    %v3415 = vld [vmem:[%s3 + $0x3f8] sm:$0xff]
    %v3416 = vld [vmem:[%s3 + $0x400] sm:$0xff]
    %v3417 = vld [vmem:[%s3 + $0x408] sm:$0xff]
    %v3418 = vld [vmem:[%s3 + $0x410] sm:$0xff]
    %v3419 = vld [vmem:[%s3 + $0x418] sm:$0xff]
    %v3420 = vld [vmem:[%s3 + $0x420] sm:$0xff]
    %v3421 = vld [vmem:[%s3 + $0x428] sm:$0xff]
    %v3422 = vld [vmem:[%s3 + $0x430] sm:$0xff]
    %v3423 = vld [vmem:[%s3 + $0x438] sm:$0xff]
    %v3424 = vld [vmem:[%s3 + $0x440] sm:$0xff]
    %v3425 = vld [vmem:[%s3 + $0x448] sm:$0xff]
    %v3426 = vld [vmem:[%s3 + $0x450] sm:$0xff]
    %v3427 = vld [vmem:[%s3 + $0x458] sm:$0xff]
    %v3428 = vld [vmem:[%s3 + $0x460] sm:$0xff]
    %v3429 = vld [vmem:[%s3 + $0x468] sm:$0xff]
    %v3430 = vld [vmem:[%s3 + $0x470] sm:$0xff]
    %v3431 = vld [vmem:[%s3 + $0x478] sm:$0xff]
    %v3432 = vld [vmem:[%s3 + $0x480] sm:$0xff]
    %v3433 = vld [vmem:[%s3 + $0x488] sm:$0xff]
    %v3434 = vld [vmem:[%s3 + $0x490] sm:$0xff]
    %v3435 = vld [vmem:[%s3 + $0x498] sm:$0xff]
    %v3436 = vld [vmem:[%s3 + $0x4a0] sm:$0xff]
    %v3437 = vld [vmem:[%s3 + $0x4a8] sm:$0xff]
    %v3438 = vld [vmem:[%s3 + $0x4b0] sm:$0xff]
    %v3439 = vld [vmem:[%s3 + $0x4b8] sm:$0xff]
    %v3440 = vld [vmem:[%s3 + $0x4c0] sm:$0xff]
    %v3441 = vld [vmem:[%s3 + $0x4c8] sm:$0xff]
    %v3442 = vld [vmem:[%s3 + $0x4d0] sm:$0xff]
    %v3443 = vld [vmem:[%s3 + $0x4d8] sm:$0xff]
    %v3444 = vld [vmem:[%s3 + $0x4e0] sm:$0xff]
    %v3445 = vld [vmem:[%s3 + $0x4e8] sm:$0xff]
    %v3446 = vld [vmem:[%s3 + $0x4f0] sm:$0xff]
    %v3447 = vld [vmem:[%s3 + $0x4f8] sm:$0xff]
    %v3448 = vld [vmem:[%s3 + $0x500] sm:$0xff]
    %v3449 = vld [vmem:[%s3 + $0x508] sm:$0xff]
    %v3450 = vld [vmem:[%s3 + $0x510] sm:$0xff]
    %v3451 = vld [vmem:[%s3 + $0x518] sm:$0xff]
    %v3452 = vld [vmem:[%s3 + $0x520] sm:$0xff]
    %v3453 = vld [vmem:[%s3 + $0x528] sm:$0xff]
    %v3454 = vld [vmem:[%s3 + $0x530] sm:$0xff]
    %v3455 = vld [vmem:[%s3 + $0x538] sm:$0xff]
    %v3456 = vld [vmem:[%s3 + $0x540] sm:$0xff]
    %v3457 = vld [vmem:[%s3 + $0x548] sm:$0xff]
    %v3458 = vld [vmem:[%s3 + $0x550] sm:$0xff]
    %v3459 = vld [vmem:[%s3 + $0x558] sm:$0xff]
    %v3460 = vld [vmem:[%s3 + $0x560] sm:$0xff]
    %v3461 = vld [vmem:[%s3 + $0x568] sm:$0xff]
    %v3462 = vld [vmem:[%s3 + $0x570] sm:$0xff]
    %v3463 = vld [vmem:[%s3 + $0x578] sm:$0xff]
    %v3464 = vld [vmem:[%s3 + $0x580] sm:$0xff]
    %v3465 = vld [vmem:[%s3 + $0x588] sm:$0xff]
    %v3466 = vld [vmem:[%s3 + $0x590] sm:$0xff]
    %v3467 = vld [vmem:[%s3 + $0x598] sm:$0xff]
    %v3468 = vld [vmem:[%s3 + $0x5a0] sm:$0xff]
    %v3469 = vld [vmem:[%s3 + $0x5a8] sm:$0xff]
    %v3470 = vld [vmem:[%s3 + $0x5b0] sm:$0xff]
    %v3471 = vld [vmem:[%s3 + $0x5b8] sm:$0xff]
    %v3472 = vld [vmem:[%s3 + $0x5c0] sm:$0xff]
    %v3473 = vld [vmem:[%s3 + $0x5c8] sm:$0xff]
    %v3474 = vld [vmem:[%s3 + $0x5d0] sm:$0xff]
    %v3475 = vld [vmem:[%s3 + $0x5d8] sm:$0xff]
    %v3476 = vld [vmem:[%s3 + $0x5e0] sm:$0xff]
    %v3477 = vld [vmem:[%s3 + $0x5e8] sm:$0xff]
    %v3478 = vld [vmem:[%s3 + $0x5f0] sm:$0xff]
    %v3479 = vld [vmem:[%s3 + $0x5f8] sm:$0xff]
    %v3480 = vld [vmem:[%s3 + $0x600] sm:$0xff]
    %v3481 = vld [vmem:[%s3 + $0x608] sm:$0xff]
    %v3482 = vld [vmem:[%s3 + $0x610] sm:$0xff]
    %v3483 = vld [vmem:[%s3 + $0x618] sm:$0xff]
    %v3484 = vld [vmem:[%s3 + $0x620] sm:$0xff]
    %v3485 = vld [vmem:[%s3 + $0x628] sm:$0xff]
    %v3486 = vld [vmem:[%s3 + $0x630] sm:$0xff]
    %v3487 = vld [vmem:[%s3 + $0x638] sm:$0xff]
    %v3488 = vld [vmem:[%s3 + $0x640] sm:$0xff]
    %v3489 = vld [vmem:[%s3 + $0x648] sm:$0xff]
    %v3490 = vld [vmem:[%s3 + $0x650] sm:$0xff]
    %v3491 = vld [vmem:[%s3 + $0x658] sm:$0xff]
    %v3492 = vld [vmem:[%s3 + $0x660] sm:$0xff]
    %v3493 = vld [vmem:[%s3 + $0x668] sm:$0xff]
    %v3494 = vld [vmem:[%s3 + $0x670] sm:$0xff]
    %v3495 = vld [vmem:[%s3 + $0x678] sm:$0xff]
    %v3496 = vld [vmem:[%s3 + $0x680] sm:$0xff]
    %v3497 = vld [vmem:[%s3 + $0x688] sm:$0xff]
    %v3498 = vld [vmem:[%s3 + $0x690] sm:$0xff]
    %v3499 = vld [vmem:[%s3 + $0x698] sm:$0xff]
    %v3500 = vld [vmem:[%s3 + $0x6a0] sm:$0xff]
    %v3501 = vld [vmem:[%s3 + $0x6a8] sm:$0xff]
    %v3502 = vld [vmem:[%s3 + $0x6b0] sm:$0xff]
    %v3503 = vld [vmem:[%s3 + $0x6b8] sm:$0xff]
    %v3504 = vld [vmem:[%s3 + $0x6c0] sm:$0xff]
    %v3505 = vld [vmem:[%s3 + $0x6c8] sm:$0xff]
    %v3506 = vld [vmem:[%s3 + $0x6d0] sm:$0xff]
    %v3507 = vld [vmem:[%s3 + $0x6d8] sm:$0xff]
    %v3508 = vld [vmem:[%s3 + $0x6e0] sm:$0xff]
    %v3509 = vld [vmem:[%s3 + $0x6e8] sm:$0xff]
    %v3510 = vld [vmem:[%s3 + $0x6f0] sm:$0xff]
    %v3511 = vld [vmem:[%s3 + $0x6f8] sm:$0xff]
    %v3512 = vld [vmem:[%s3 + $0x700] sm:$0xff]
    %v3513 = vld [vmem:[%s3 + $0x708] sm:$0xff]
    %v3514 = vld [vmem:[%s3 + $0x710] sm:$0xff]
    %v3515 = vld [vmem:[%s3 + $0x718] sm:$0xff]
    %v3516 = vld [vmem:[%s3 + $0x720] sm:$0xff]
    %v3517 = vld [vmem:[%s3 + $0x728] sm:$0xff]
    %v3518 = vld [vmem:[%s3 + $0x730] sm:$0xff]
    %v3519 = vld [vmem:[%s3 + $0x738] sm:$0xff]
    %v3520 = vld [vmem:[%s3 + $0x740] sm:$0xff]
    %v3521 = vld [vmem:[%s3 + $0x748] sm:$0xff]
    %v3522 = vld [vmem:[%s3 + $0x750] sm:$0xff]
    %v3523 = vld [vmem:[%s3 + $0x758] sm:$0xff]
    %v3524 = vld [vmem:[%s3 + $0x760] sm:$0xff]
    %v3525 = vld [vmem:[%s3 + $0x768] sm:$0xff]
    %v3526 = vld [vmem:[%s3 + $0x770] sm:$0xff]
    %v3527 = vld [vmem:[%s3 + $0x778] sm:$0xff]
    %v3528 = vld [vmem:[%s3 + $0x780] sm:$0xff]
    %v3529 = vld [vmem:[%s3 + $0x788] sm:$0xff]
    %v3530 = vld [vmem:[%s3 + $0x790] sm:$0xff]
    %v3531 = vld [vmem:[%s3 + $0x798] sm:$0xff]
    %v3532 = vld [vmem:[%s3 + $0x7a0] sm:$0xff]
    %v3533 = vld [vmem:[%s3 + $0x7a8] sm:$0xff]
    %v3534 = vld [vmem:[%s3 + $0x7b0] sm:$0xff]
    %v3535 = vld [vmem:[%s3 + $0x7b8] sm:$0xff]
    %v3536 = vld [vmem:[%s3 + $0x7c0] sm:$0xff]
    %v3537 = vld [vmem:[%s3 + $0x7c8] sm:$0xff]
    %v3538 = vld [vmem:[%s3 + $0x7d0] sm:$0xff]
    %v3539 = vld [vmem:[%s3 + $0x7d8] sm:$0xff]
    %v3540 = vld [vmem:[%s3 + $0x7e0] sm:$0xff]
    %v3541 = vld [vmem:[%s3 + $0x7e8] sm:$0xff]
    %v3542 = vld [vmem:[%s3 + $0x7f0] sm:$0xff]
    %v3543 = vld [vmem:[%s3 + $0x7f8] sm:$0xff]
    %v3544 = vld [vmem:[%s3 + $0x800] sm:$0xff]
    %v3545 = vld [vmem:[%s3 + $0x808] sm:$0xff]
    %v3546 = vld [vmem:[%s3 + $0x810] sm:$0xff]
    %v3547 = vld [vmem:[%s3 + $0x818] sm:$0xff]
    %v3548 = vld [vmem:[%s3 + $0x820] sm:$0xff]
    %v3549 = vld [vmem:[%s3 + $0x828] sm:$0xff]
    %v3550 = vld [vmem:[%s3 + $0x830] sm:$0xff]
    %v3551 = vld [vmem:[%s3 + $0x838] sm:$0xff]
    %v3552 = vld [vmem:[%s3 + $0x840] sm:$0xff]
    %v3553 = vld [vmem:[%s3 + $0x848] sm:$0xff]
    %v3554 = vld [vmem:[%s3 + $0x850] sm:$0xff]
    %v3555 = vld [vmem:[%s3 + $0x858] sm:$0xff]
    %v3556 = vld [vmem:[%s3 + $0x860] sm:$0xff]
    %v3557 = vld [vmem:[%s3 + $0x868] sm:$0xff]
    %v3558 = vld [vmem:[%s3 + $0x870] sm:$0xff]
    %v3559 = vld [vmem:[%s3 + $0x878] sm:$0xff]
    %v3560 = vld [vmem:[%s3 + $0x880] sm:$0xff]
    %v3561 = vld [vmem:[%s3 + $0x888] sm:$0xff]
    %v3562 = vld [vmem:[%s3 + $0x890] sm:$0xff]
    %v3563 = vld [vmem:[%s3 + $0x898] sm:$0xff]
    %v3564 = vld [vmem:[%s3 + $0x8a0] sm:$0xff]
    %v3565 = vld [vmem:[%s3 + $0x8a8] sm:$0xff]
    %v3566 = vld [vmem:[%s3 + $0x8b0] sm:$0xff]
    %v3567 = vld [vmem:[%s3 + $0x8b8] sm:$0xff]
    %v3568 = vld [vmem:[%s3 + $0x8c0] sm:$0xff]
    %v3569 = vld [vmem:[%s3 + $0x8c8] sm:$0xff]
    %v3570 = vld [vmem:[%s3 + $0x8d0] sm:$0xff]
    %v3571 = vld [vmem:[%s3 + $0x8d8] sm:$0xff]
    %v3572 = vld [vmem:[%s3 + $0x8e0] sm:$0xff]
    %v3573 = vld [vmem:[%s3 + $0x8e8] sm:$0xff]
    %v3574 = vld [vmem:[%s3 + $0x8f0] sm:$0xff]
    %v3575 = vld [vmem:[%s3 + $0x8f8] sm:$0xff]
    %v3576 = vld [vmem:[%s3 + $0x900] sm:$0xff]
    %v3577 = vld [vmem:[%s3 + $0x908] sm:$0xff]
    %v3578 = vld [vmem:[%s3 + $0x910] sm:$0xff]
    %v3579 = vld [vmem:[%s3 + $0x918] sm:$0xff]
    %v3580 = vld [vmem:[%s3 + $0x920] sm:$0xff]
    %v3581 = vld [vmem:[%s3 + $0x928] sm:$0xff]
    %v3582 = vld [vmem:[%s3 + $0x930] sm:$0xff]
    %v3583 = vld [vmem:[%s3 + $0x938] sm:$0xff]
    %v3584 = vld [vmem:[%s3 + $0x940] sm:$0xff]
    %v3585 = vld [vmem:[%s3 + $0x948] sm:$0xff]
    %v3586 = vld [vmem:[%s3 + $0x950] sm:$0xff]
    %v3587 = vld [vmem:[%s3 + $0x958] sm:$0xff]
    %v3588 = vld [vmem:[%s3 + $0x960] sm:$0xff]
    %v3589 = vld [vmem:[%s3 + $0x968] sm:$0xff]
    %v3590 = vld [vmem:[%s3 + $0x970] sm:$0xff]
    %v3591 = vld [vmem:[%s3 + $0x978] sm:$0xff]
    %v3592 = vld [vmem:[%s3 + $0x980] sm:$0xff]
    %v3593 = vld [vmem:[%s3 + $0x988] sm:$0xff]
    %v3594 = vld [vmem:[%s3 + $0x990] sm:$0xff]
    %v3595 = vld [vmem:[%s3 + $0x998] sm:$0xff]
    %v3596 = vld [vmem:[%s3 + $0x9a0] sm:$0xff]
    %v3597 = vld [vmem:[%s3 + $0x9a8] sm:$0xff]
    %v3598 = vld [vmem:[%s3 + $0x9b0] sm:$0xff]
    %v3599 = vld [vmem:[%s3 + $0x9b8] sm:$0xff]
    %v3600 = vld [vmem:[%s3 + $0x9c0] sm:$0xff]
    %v3601 = vld [vmem:[%s3 + $0x9c8] sm:$0xff]
    %v3602 = vld [vmem:[%s3 + $0x9d0] sm:$0xff]
    %v3603 = vld [vmem:[%s3 + $0x9d8] sm:$0xff]
    %v3604 = vld [vmem:[%s3 + $0x9e0] sm:$0xff]
    %v3605 = vld [vmem:[%s3 + $0x9e8] sm:$0xff]
    %v3606 = vld [vmem:[%s3 + $0x9f0] sm:$0xff]
    %v3607 = vld [vmem:[%s3 + $0x9f8] sm:$0xff]
    %v3608 = vld [vmem:[%s3 + $0xa00] sm:$0xff]
    %v3609 = vld [vmem:[%s3 + $0xa08] sm:$0xff]
    %v3610 = vld [vmem:[%s3 + $0xa10] sm:$0xff]
    %v3611 = vld [vmem:[%s3 + $0xa18] sm:$0xff]
    %v3612 = vld [vmem:[%s3 + $0xa20] sm:$0xff]
    %v3613 = vld [vmem:[%s3 + $0xa28] sm:$0xff]
    %v3614 = vld [vmem:[%s3 + $0xa30] sm:$0xff]
    %v3615 = vld [vmem:[%s3 + $0xa38] sm:$0xff]
    %v3616 = vld [vmem:[%s3 + $0xa40] sm:$0xff]
    %v3617 = vld [vmem:[%s3 + $0xa48] sm:$0xff]
    %v3618 = vld [vmem:[%s3 + $0xa50] sm:$0xff]
    %v3619 = vld [vmem:[%s3 + $0xa58] sm:$0xff]
    %v3620 = vld [vmem:[%s3 + $0xa60] sm:$0xff]
    %v3621 = vld [vmem:[%s3 + $0xa68] sm:$0xff]
    %v3622 = vld [vmem:[%s3 + $0xa70] sm:$0xff]
    %v3623 = vld [vmem:[%s3 + $0xa78] sm:$0xff]
    %v3624 = vld [vmem:[%s3 + $0xa80] sm:$0xff]
    %v3625 = vld [vmem:[%s3 + $0xa88] sm:$0xff]
    %v3626 = vld [vmem:[%s3 + $0xa90] sm:$0xff]
    %v3627 = vld [vmem:[%s3 + $0xa98] sm:$0xff]
    %v3628 = vld [vmem:[%s3 + $0xaa0] sm:$0xff]
    %v3629 = vld [vmem:[%s3 + $0xaa8] sm:$0xff]
    %v3630 = vld [vmem:[%s3 + $0xab0] sm:$0xff]
    %v3631 = vld [vmem:[%s3 + $0xab8] sm:$0xff]
    %v3632 = vld [vmem:[%s3 + $0xac0] sm:$0xff]
    %v3633 = vld [vmem:[%s3 + $0xac8] sm:$0xff]
    %v3634 = vld [vmem:[%s3 + $0xad0] sm:$0xff]
    %v3635 = vld [vmem:[%s3 + $0xad8] sm:$0xff]
    %v3636 = vld [vmem:[%s3 + $0xae0] sm:$0xff]
    %v3637 = vld [vmem:[%s3 + $0xae8] sm:$0xff]
    %v3638 = vld [vmem:[%s3 + $0xaf0] sm:$0xff]
    %v3639 = vld [vmem:[%s3 + $0xaf8] sm:$0xff]
    %v3640 = vld [vmem:[%s3 + $0xb00] sm:$0xff]
    %v3641 = vld [vmem:[%s3 + $0xb08] sm:$0xff]
    %v3642 = vld [vmem:[%s3 + $0xb10] sm:$0xff]
    %v3643 = vld [vmem:[%s3 + $0xb18] sm:$0xff]
    %v3644 = vld [vmem:[%s3 + $0xb20] sm:$0xff]
    %v3645 = vld [vmem:[%s3 + $0xb28] sm:$0xff]
    %v3646 = vld [vmem:[%s3 + $0xb30] sm:$0xff]
    %v3647 = vld [vmem:[%s3 + $0xb38] sm:$0xff]
    %v3648 = vld [vmem:[%s4] sm:$0xf]
    %v3650 = vlaneseq
    %v3651 = vshrl.u32 %v3650, 7
    %v3652 = vsub.s32 0, %v3651
    %v3653 = vrot.slane %v3648, %v3652
    %v3654 = vlaneseq
    %v3655 = vshrl.u32 %v3654, 7
    %v3656 = vsub.s32 1, %v3655
    %v3657 = vrot.slane %v3648, %v3656
    %v3658 = vlaneseq
    %v3659 = vshrl.u32 %v3658, 7
    %v3660 = vsub.s32 2, %v3659
    %v3661 = vrot.slane %v3648, %v3660
    %v3662 = vlaneseq
    %v3663 = vshrl.u32 %v3662, 7
    %v3664 = vsub.s32 3, %v3663
    %v3665 = vrot.slane %v3648, %v3664
    %v4030 = vunpack.c.l.b16 %v3288
    %v4031 = vunpack.c.h.b16 %v3288
    %v4032 = vunpack.c.l.b16 %v3289
    %v4033 = vunpack.c.h.b16 %v3289
    %v4034 = vunpack.c.l.b16 %v3290
    %v4035 = vunpack.c.h.b16 %v3290
    %v4036 = vunpack.c.l.b16 %v3291
    %v4037 = vunpack.c.h.b16 %v3291
    %v4038 = vunpack.c.l.b16 %v3292
    %v4039 = vunpack.c.h.b16 %v3292
    %v4040 = vunpack.c.l.b16 %v3293
    %v4041 = vunpack.c.h.b16 %v3293
    %v4042 = vunpack.c.l.b16 %v3294
    %v4043 = vunpack.c.h.b16 %v3294
    %v4044 = vunpack.c.l.b16 %v3295
    %v4045 = vunpack.c.h.b16 %v3295
    %v4046 = vunpack.c.l.b16 %v3296
    %v4047 = vunpack.c.h.b16 %v3296
    %v4048 = vunpack.c.l.b16 %v3297
    %v4049 = vunpack.c.h.b16 %v3297
    %v4050 = vunpack.c.l.b16 %v3298
    %v4051 = vunpack.c.h.b16 %v3298
    %v4052 = vunpack.c.l.b16 %v3299
    %v4053 = vunpack.c.h.b16 %v3299
    %v4054 = vunpack.c.l.b16 %v3300
    %v4055 = vunpack.c.h.b16 %v3300
    %v4056 = vunpack.c.l.b16 %v3301
    %v4057 = vunpack.c.h.b16 %v3301
    %v4058 = vunpack.c.l.b16 %v3302
    %v4059 = vunpack.c.h.b16 %v3302
    %v4060 = vunpack.c.l.b16 %v3303
    %v4061 = vunpack.c.h.b16 %v3303
    %v4062 = vunpack.c.l.b16 %v3304
    %v4063 = vunpack.c.h.b16 %v3304
    %v4064 = vunpack.c.l.b16 %v3305
    %v4065 = vunpack.c.h.b16 %v3305
    %v4066 = vunpack.c.l.b16 %v3306
    %v4067 = vunpack.c.h.b16 %v3306
    %v4068 = vunpack.c.l.b16 %v3307
    %v4069 = vunpack.c.h.b16 %v3307
    %v4070 = vunpack.c.l.b16 %v3308
    %v4071 = vunpack.c.h.b16 %v3308
    %v4072 = vunpack.c.l.b16 %v3309
    %v4073 = vunpack.c.h.b16 %v3309
    %v4074 = vunpack.c.l.b16 %v3310
    %v4075 = vunpack.c.h.b16 %v3310
    %v4076 = vunpack.c.l.b16 %v3311
    %v4077 = vunpack.c.h.b16 %v3311
    %v4078 = vunpack.c.l.b16 %v3312
    %v4079 = vunpack.c.h.b16 %v3312
    %v4080 = vunpack.c.l.b16 %v3313
    %v4081 = vunpack.c.h.b16 %v3313
    %v4082 = vunpack.c.l.b16 %v3314
    %v4083 = vunpack.c.h.b16 %v3314
    %v4084 = vunpack.c.l.b16 %v3315
    %v4085 = vunpack.c.h.b16 %v3315
    %v4086 = vunpack.c.l.b16 %v3316
    %v4087 = vunpack.c.h.b16 %v3316
    %v4088 = vunpack.c.l.b16 %v3317
    %v4089 = vunpack.c.h.b16 %v3317
    %v4090 = vunpack.c.l.b16 %v3318
    %v4091 = vunpack.c.h.b16 %v3318
    %v4092 = vunpack.c.l.b16 %v3319
    %v4093 = vunpack.c.h.b16 %v3319
    %v4094 = vunpack.c.l.b16 %v3320
    %v4095 = vunpack.c.h.b16 %v3320
    %v4096 = vunpack.c.l.b16 %v3321
    %v4097 = vunpack.c.h.b16 %v3321
    %v4098 = vunpack.c.l.b16 %v3322
    %v4099 = vunpack.c.h.b16 %v3322
    %v4100 = vunpack.c.l.b16 %v3323
    %v4101 = vunpack.c.h.b16 %v3323
    %v4102 = vunpack.c.l.b16 %v3324
    %v4103 = vunpack.c.h.b16 %v3324
    %v4104 = vunpack.c.l.b16 %v3325
    %v4105 = vunpack.c.h.b16 %v3325
    %v4106 = vunpack.c.l.b16 %v3326
    %v4107 = vunpack.c.h.b16 %v3326
    %v4108 = vunpack.c.l.b16 %v3327
    %v4109 = vunpack.c.h.b16 %v3327
    %v4110 = vunpack.c.l.b16 %v3328
    %v4111 = vunpack.c.h.b16 %v3328
    %v4112 = vunpack.c.l.b16 %v3329
    %v4113 = vunpack.c.h.b16 %v3329
    %v4114 = vunpack.c.l.b16 %v3330
    %v4115 = vunpack.c.h.b16 %v3330
    %v4116 = vunpack.c.l.b16 %v3331
    %v4117 = vunpack.c.h.b16 %v3331
    %v4118 = vunpack.c.l.b16 %v3332
    %v4119 = vunpack.c.h.b16 %v3332
    %v4120 = vunpack.c.l.b16 %v3333
    %v4121 = vunpack.c.h.b16 %v3333
    %v4122 = vunpack.c.l.b16 %v3334
    %v4123 = vunpack.c.h.b16 %v3334
    %v4124 = vunpack.c.l.b16 %v3335
    %v4125 = vunpack.c.h.b16 %v3335
    %v4126 = vunpack.c.l.b16 %v3336
    %v4127 = vunpack.c.h.b16 %v3336
    %v4128 = vunpack.c.l.b16 %v3337
    %v4129 = vunpack.c.h.b16 %v3337
    %v4130 = vunpack.c.l.b16 %v3338
    %v4131 = vunpack.c.h.b16 %v3338
    %v4132 = vunpack.c.l.b16 %v3339
    %v4133 = vunpack.c.h.b16 %v3339
    %v4134 = vunpack.c.l.b16 %v3340
    %v4135 = vunpack.c.h.b16 %v3340
    %v4136 = vunpack.c.l.b16 %v3341
    %v4137 = vunpack.c.h.b16 %v3341
    %v4138 = vunpack.c.l.b16 %v3342
    %v4139 = vunpack.c.h.b16 %v3342
    %v4140 = vunpack.c.l.b16 %v3343
    %v4141 = vunpack.c.h.b16 %v3343
    %v4142 = vunpack.c.l.b16 %v3344
    %v4143 = vunpack.c.h.b16 %v3344
    %v4144 = vunpack.c.l.b16 %v3345
    %v4145 = vunpack.c.h.b16 %v3345
    %v4146 = vunpack.c.l.b16 %v3346
    %v4147 = vunpack.c.h.b16 %v3346
    %v4148 = vunpack.c.l.b16 %v3347
    %v4149 = vunpack.c.h.b16 %v3347
    %v4150 = vunpack.c.l.b16 %v3348
    %v4151 = vunpack.c.h.b16 %v3348
    %v4152 = vunpack.c.l.b16 %v3349
    %v4153 = vunpack.c.h.b16 %v3349
    %v4154 = vunpack.c.l.b16 %v3350
    %v4155 = vunpack.c.h.b16 %v3350
    %v4156 = vunpack.c.l.b16 %v3351
    %v4157 = vunpack.c.h.b16 %v3351
    %v4158 = vunpack.c.l.b16 %v3352
    %v4159 = vunpack.c.h.b16 %v3352
    %v4160 = vunpack.c.l.b16 %v3353
    %v4161 = vunpack.c.h.b16 %v3353
    %v4162 = vunpack.c.l.b16 %v3354
    %v4163 = vunpack.c.h.b16 %v3354
    %v4164 = vunpack.c.l.b16 %v3355
    %v4165 = vunpack.c.h.b16 %v3355
    %v4166 = vunpack.c.l.b16 %v3356
    %v4167 = vunpack.c.h.b16 %v3356
    %v4168 = vunpack.c.l.b16 %v3357
    %v4169 = vunpack.c.h.b16 %v3357
    %v4170 = vunpack.c.l.b16 %v3358
    %v4171 = vunpack.c.h.b16 %v3358
    %v4172 = vunpack.c.l.b16 %v3359
    %v4173 = vunpack.c.h.b16 %v3359
    %v4174 = vunpack.c.l.b16 %v3360
    %v4175 = vunpack.c.h.b16 %v3360
    %v4176 = vunpack.c.l.b16 %v3361
    %v4177 = vunpack.c.h.b16 %v3361
    %v4178 = vunpack.c.l.b16 %v3362
    %v4179 = vunpack.c.h.b16 %v3362
    %v4180 = vunpack.c.l.b16 %v3363
    %v4181 = vunpack.c.h.b16 %v3363
    %v4182 = vunpack.c.l.b16 %v3364
    %v4183 = vunpack.c.h.b16 %v3364
    %v4184 = vunpack.c.l.b16 %v3365
    %v4185 = vunpack.c.h.b16 %v3365
    %v4186 = vunpack.c.l.b16 %v3366
    %v4187 = vunpack.c.h.b16 %v3366
    %v4188 = vunpack.c.l.b16 %v3367
    %v4189 = vunpack.c.h.b16 %v3367
    %v4190 = vunpack.c.l.b16 %v3368
    %v4191 = vunpack.c.h.b16 %v3368
    %v4192 = vunpack.c.l.b16 %v3369
    %v4193 = vunpack.c.h.b16 %v3369
    %v4194 = vunpack.c.l.b16 %v3370
    %v4195 = vunpack.c.h.b16 %v3370
    %v4196 = vunpack.c.l.b16 %v3371
    %v4197 = vunpack.c.h.b16 %v3371
    %v4198 = vunpack.c.l.b16 %v3372
    %v4199 = vunpack.c.h.b16 %v3372
    %v4200 = vunpack.c.l.b16 %v3373
    %v4201 = vunpack.c.h.b16 %v3373
    %v4202 = vunpack.c.l.b16 %v3374
    %v4203 = vunpack.c.h.b16 %v3374
    %v4204 = vunpack.c.l.b16 %v3375
    %v4205 = vunpack.c.h.b16 %v3375
    %v4206 = vunpack.c.l.b16 %v3376
    %v4207 = vunpack.c.h.b16 %v3376
    %v4208 = vunpack.c.l.b16 %v3377
    %v4209 = vunpack.c.h.b16 %v3377
    %v4210 = vunpack.c.l.b16 %v3378
    %v4211 = vunpack.c.h.b16 %v3378
    %v4212 = vunpack.c.l.b16 %v3379
    %v4213 = vunpack.c.h.b16 %v3379
    %v4214 = vunpack.c.l.b16 %v3380
    %v4215 = vunpack.c.h.b16 %v3380
    %v4216 = vunpack.c.l.b16 %v3381
    %v4217 = vunpack.c.h.b16 %v3381
    %v4218 = vunpack.c.l.b16 %v3382
    %v4219 = vunpack.c.h.b16 %v3382
    %v4220 = vunpack.c.l.b16 %v3383
    %v4221 = vunpack.c.h.b16 %v3383
    %v4222 = vunpack.c.l.b16 %v3384
    %v4223 = vunpack.c.h.b16 %v3384
    %v4224 = vunpack.c.l.b16 %v3385
    %v4225 = vunpack.c.h.b16 %v3385
    %v4226 = vunpack.c.l.b16 %v3386
    %v4227 = vunpack.c.h.b16 %v3386
    %v4228 = vunpack.c.l.b16 %v3387
    %v4229 = vunpack.c.h.b16 %v3387
    %v4230 = vunpack.c.l.b16 %v3388
    %v4231 = vunpack.c.h.b16 %v3388
    %v4232 = vunpack.c.l.b16 %v3389
    %v4233 = vunpack.c.h.b16 %v3389
    %v4234 = vunpack.c.l.b16 %v3390
    %v4235 = vunpack.c.h.b16 %v3390
    %v4236 = vunpack.c.l.b16 %v3391
    %v4237 = vunpack.c.h.b16 %v3391
    %v4238 = vunpack.c.l.b16 %v3392
    %v4239 = vunpack.c.h.b16 %v3392
    %v4240 = vunpack.c.l.b16 %v3393
    %v4241 = vunpack.c.h.b16 %v3393
    %v4242 = vunpack.c.l.b16 %v3394
    %v4243 = vunpack.c.h.b16 %v3394
    %v4244 = vunpack.c.l.b16 %v3395
    %v4245 = vunpack.c.h.b16 %v3395
    %v4246 = vunpack.c.l.b16 %v3396
    %v4247 = vunpack.c.h.b16 %v3396
    %v4248 = vunpack.c.l.b16 %v3397
    %v4249 = vunpack.c.h.b16 %v3397
    %v4250 = vunpack.c.l.b16 %v3398
    %v4251 = vunpack.c.h.b16 %v3398
    %v4252 = vunpack.c.l.b16 %v3399
    %v4253 = vunpack.c.h.b16 %v3399
    %v4254 = vunpack.c.l.b16 %v3400
    %v4255 = vunpack.c.h.b16 %v3400
    %v4256 = vunpack.c.l.b16 %v3401
    %v4257 = vunpack.c.h.b16 %v3401
    %v4258 = vunpack.c.l.b16 %v3402
    %v4259 = vunpack.c.h.b16 %v3402
    %v4260 = vunpack.c.l.b16 %v3403
    %v4261 = vunpack.c.h.b16 %v3403
    %v4262 = vunpack.c.l.b16 %v3404
    %v4263 = vunpack.c.h.b16 %v3404
    %v4264 = vunpack.c.l.b16 %v3405
    %v4265 = vunpack.c.h.b16 %v3405
    %v4266 = vunpack.c.l.b16 %v3406
    %v4267 = vunpack.c.h.b16 %v3406
    %v4268 = vunpack.c.l.b16 %v3407
    %v4269 = vunpack.c.h.b16 %v3407
    %v4270 = vunpack.c.l.b16 %v3408
    %v4271 = vunpack.c.h.b16 %v3408
    %v4272 = vunpack.c.l.b16 %v3409
    %v4273 = vunpack.c.h.b16 %v3409
    %v4274 = vunpack.c.l.b16 %v3410
    %v4275 = vunpack.c.h.b16 %v3410
    %v4276 = vunpack.c.l.b16 %v3411
    %v4277 = vunpack.c.h.b16 %v3411
    %v4278 = vunpack.c.l.b16 %v3412
    %v4279 = vunpack.c.h.b16 %v3412
    %v4280 = vunpack.c.l.b16 %v3413
    %v4281 = vunpack.c.h.b16 %v3413
    %v4282 = vunpack.c.l.b16 %v3414
    %v4283 = vunpack.c.h.b16 %v3414
    %v4284 = vunpack.c.l.b16 %v3415
    %v4285 = vunpack.c.h.b16 %v3415
    %v4286 = vunpack.c.l.b16 %v3416
    %v4287 = vunpack.c.h.b16 %v3416
    %v4288 = vunpack.c.l.b16 %v3417
    %v4289 = vunpack.c.h.b16 %v3417
    %v4290 = vunpack.c.l.b16 %v3418
    %v4291 = vunpack.c.h.b16 %v3418
    %v4292 = vunpack.c.l.b16 %v3419
    %v4293 = vunpack.c.h.b16 %v3419
    %v4294 = vunpack.c.l.b16 %v3420
    %v4295 = vunpack.c.h.b16 %v3420
    %v4296 = vunpack.c.l.b16 %v3421
    %v4297 = vunpack.c.h.b16 %v3421
    %v4298 = vunpack.c.l.b16 %v3422
    %v4299 = vunpack.c.h.b16 %v3422
    %v4300 = vunpack.c.l.b16 %v3423
    %v4301 = vunpack.c.h.b16 %v3423
    %v4302 = vunpack.c.l.b16 %v3424
    %v4303 = vunpack.c.h.b16 %v3424
    %v4304 = vunpack.c.l.b16 %v3425
    %v4305 = vunpack.c.h.b16 %v3425
    %v4306 = vunpack.c.l.b16 %v3426
    %v4307 = vunpack.c.h.b16 %v3426
    %v4308 = vunpack.c.l.b16 %v3427
    %v4309 = vunpack.c.h.b16 %v3427
    %v4310 = vunpack.c.l.b16 %v3428
    %v4311 = vunpack.c.h.b16 %v3428
    %v4312 = vunpack.c.l.b16 %v3429
    %v4313 = vunpack.c.h.b16 %v3429
    %v4314 = vunpack.c.l.b16 %v3430
    %v4315 = vunpack.c.h.b16 %v3430
    %v4316 = vunpack.c.l.b16 %v3431
    %v4317 = vunpack.c.h.b16 %v3431
    %v4318 = vunpack.c.l.b16 %v3432
    %v4319 = vunpack.c.h.b16 %v3432
    %v4320 = vunpack.c.l.b16 %v3433
    %v4321 = vunpack.c.h.b16 %v3433
    %v4322 = vunpack.c.l.b16 %v3434
    %v4323 = vunpack.c.h.b16 %v3434
    %v4324 = vunpack.c.l.b16 %v3435
    %v4325 = vunpack.c.h.b16 %v3435
    %v4326 = vunpack.c.l.b16 %v3436
    %v4327 = vunpack.c.h.b16 %v3436
    %v4328 = vunpack.c.l.b16 %v3437
    %v4329 = vunpack.c.h.b16 %v3437
    %v4330 = vunpack.c.l.b16 %v3438
    %v4331 = vunpack.c.h.b16 %v3438
    %v4332 = vunpack.c.l.b16 %v3439
    %v4333 = vunpack.c.h.b16 %v3439
    %v4334 = vunpack.c.l.b16 %v3440
    %v4335 = vunpack.c.h.b16 %v3440
    %v4336 = vunpack.c.l.b16 %v3441
    %v4337 = vunpack.c.h.b16 %v3441
    %v4338 = vunpack.c.l.b16 %v3442
    %v4339 = vunpack.c.h.b16 %v3442
    %v4340 = vunpack.c.l.b16 %v3443
    %v4341 = vunpack.c.h.b16 %v3443
    %v4342 = vunpack.c.l.b16 %v3444
    %v4343 = vunpack.c.h.b16 %v3444
    %v4344 = vunpack.c.l.b16 %v3445
    %v4345 = vunpack.c.h.b16 %v3445
    %v4346 = vunpack.c.l.b16 %v3446
    %v4347 = vunpack.c.h.b16 %v3446
    %v4348 = vunpack.c.l.b16 %v3447
    %v4349 = vunpack.c.h.b16 %v3447
    %v4350 = vunpack.c.l.b16 %v3448
    %v4351 = vunpack.c.h.b16 %v3448
    %v4352 = vunpack.c.l.b16 %v3449
    %v4353 = vunpack.c.h.b16 %v3449
    %v4354 = vunpack.c.l.b16 %v3450
    %v4355 = vunpack.c.h.b16 %v3450
    %v4356 = vunpack.c.l.b16 %v3451
    %v4357 = vunpack.c.h.b16 %v3451
    %v4358 = vunpack.c.l.b16 %v3452
    %v4359 = vunpack.c.h.b16 %v3452
    %v4360 = vunpack.c.l.b16 %v3453
    %v4361 = vunpack.c.h.b16 %v3453
    %v4362 = vunpack.c.l.b16 %v3454
    %v4363 = vunpack.c.h.b16 %v3454
    %v4364 = vunpack.c.l.b16 %v3455
    %v4365 = vunpack.c.h.b16 %v3455
    %v4366 = vunpack.c.l.b16 %v3456
    %v4367 = vunpack.c.h.b16 %v3456
    %v4368 = vunpack.c.l.b16 %v3457
    %v4369 = vunpack.c.h.b16 %v3457
    %v4370 = vunpack.c.l.b16 %v3458
    %v4371 = vunpack.c.h.b16 %v3458
    %v4372 = vunpack.c.l.b16 %v3459
    %v4373 = vunpack.c.h.b16 %v3459
    %v4374 = vunpack.c.l.b16 %v3460
    %v4375 = vunpack.c.h.b16 %v3460
    %v4376 = vunpack.c.l.b16 %v3461
    %v4377 = vunpack.c.h.b16 %v3461
    %v4378 = vunpack.c.l.b16 %v3462
    %v4379 = vunpack.c.h.b16 %v3462
    %v4380 = vunpack.c.l.b16 %v3463
    %v4381 = vunpack.c.h.b16 %v3463
    %v4382 = vunpack.c.l.b16 %v3464
    %v4383 = vunpack.c.h.b16 %v3464
    %v4384 = vunpack.c.l.b16 %v3465
    %v4385 = vunpack.c.h.b16 %v3465
    %v4386 = vunpack.c.l.b16 %v3466
    %v4387 = vunpack.c.h.b16 %v3466
    %v4388 = vunpack.c.l.b16 %v3467
    %v4389 = vunpack.c.h.b16 %v3467
    %v4390 = vunpack.c.l.b16 %v3468
    %v4391 = vunpack.c.h.b16 %v3468
    %v4392 = vunpack.c.l.b16 %v3469
    %v4393 = vunpack.c.h.b16 %v3469
    %v4394 = vunpack.c.l.b16 %v3470
    %v4395 = vunpack.c.h.b16 %v3470
    %v4396 = vunpack.c.l.b16 %v3471
    %v4397 = vunpack.c.h.b16 %v3471
    %v4398 = vunpack.c.l.b16 %v3472
    %v4399 = vunpack.c.h.b16 %v3472
    %v4400 = vunpack.c.l.b16 %v3473
    %v4401 = vunpack.c.h.b16 %v3473
    %v4402 = vunpack.c.l.b16 %v3474
    %v4403 = vunpack.c.h.b16 %v3474
    %v4404 = vunpack.c.l.b16 %v3475
    %v4405 = vunpack.c.h.b16 %v3475
    %v4406 = vunpack.c.l.b16 %v3476
    %v4407 = vunpack.c.h.b16 %v3476
    %v4408 = vunpack.c.l.b16 %v3477
    %v4409 = vunpack.c.h.b16 %v3477
    %v4410 = vunpack.c.l.b16 %v3478
    %v4411 = vunpack.c.h.b16 %v3478
    %v4412 = vunpack.c.l.b16 %v3479
    %v4413 = vunpack.c.h.b16 %v3479
    %v4414 = vunpack.c.l.b16 %v3480
    %v4415 = vunpack.c.h.b16 %v3480
    %v4416 = vunpack.c.l.b16 %v3481
    %v4417 = vunpack.c.h.b16 %v3481
    %v4418 = vunpack.c.l.b16 %v3482
    %v4419 = vunpack.c.h.b16 %v3482
    %v4420 = vunpack.c.l.b16 %v3483
    %v4421 = vunpack.c.h.b16 %v3483
    %v4422 = vunpack.c.l.b16 %v3484
    %v4423 = vunpack.c.h.b16 %v3484
    %v4424 = vunpack.c.l.b16 %v3485
    %v4425 = vunpack.c.h.b16 %v3485
    %v4426 = vunpack.c.l.b16 %v3486
    %v4427 = vunpack.c.h.b16 %v3486
    %v4428 = vunpack.c.l.b16 %v3487
    %v4429 = vunpack.c.h.b16 %v3487
    %v4430 = vunpack.c.l.b16 %v3488
    %v4431 = vunpack.c.h.b16 %v3488
    %v4432 = vunpack.c.l.b16 %v3489
    %v4433 = vunpack.c.h.b16 %v3489
    %v4434 = vunpack.c.l.b16 %v3490
    %v4435 = vunpack.c.h.b16 %v3490
    %v4436 = vunpack.c.l.b16 %v3491
    %v4437 = vunpack.c.h.b16 %v3491
    %v4438 = vunpack.c.l.b16 %v3492
    %v4439 = vunpack.c.h.b16 %v3492
    %v4440 = vunpack.c.l.b16 %v3493
    %v4441 = vunpack.c.h.b16 %v3493
    %v4442 = vunpack.c.l.b16 %v3494
    %v4443 = vunpack.c.h.b16 %v3494
    %v4444 = vunpack.c.l.b16 %v3495
    %v4445 = vunpack.c.h.b16 %v3495
    %v4446 = vunpack.c.l.b16 %v3496
    %v4447 = vunpack.c.h.b16 %v3496
    %v4448 = vunpack.c.l.b16 %v3497
    %v4449 = vunpack.c.h.b16 %v3497
    %v4450 = vunpack.c.l.b16 %v3498
    %v4451 = vunpack.c.h.b16 %v3498
    %v4452 = vunpack.c.l.b16 %v3499
    %v4453 = vunpack.c.h.b16 %v3499
    %v4454 = vunpack.c.l.b16 %v3500
    %v4455 = vunpack.c.h.b16 %v3500
    %v4456 = vunpack.c.l.b16 %v3501
    %v4457 = vunpack.c.h.b16 %v3501
    %v4458 = vunpack.c.l.b16 %v3502
    %v4459 = vunpack.c.h.b16 %v3502
    %v4460 = vunpack.c.l.b16 %v3503
    %v4461 = vunpack.c.h.b16 %v3503
    %v4462 = vunpack.c.l.b16 %v3504
    %v4463 = vunpack.c.h.b16 %v3504
    %v4464 = vunpack.c.l.b16 %v3505
    %v4465 = vunpack.c.h.b16 %v3505
    %v4466 = vunpack.c.l.b16 %v3506
    %v4467 = vunpack.c.h.b16 %v3506
    %v4468 = vunpack.c.l.b16 %v3507
    %v4469 = vunpack.c.h.b16 %v3507
    %v4470 = vunpack.c.l.b16 %v3508
    %v4471 = vunpack.c.h.b16 %v3508
    %v4472 = vunpack.c.l.b16 %v3509
    %v4473 = vunpack.c.h.b16 %v3509
    %v4474 = vunpack.c.l.b16 %v3510
    %v4475 = vunpack.c.h.b16 %v3510
    %v4476 = vunpack.c.l.b16 %v3511
    %v4477 = vunpack.c.h.b16 %v3511
    %v4478 = vunpack.c.l.b16 %v3512
    %v4479 = vunpack.c.h.b16 %v3512
    %v4480 = vunpack.c.l.b16 %v3513
    %v4481 = vunpack.c.h.b16 %v3513
    %v4482 = vunpack.c.l.b16 %v3514
    %v4483 = vunpack.c.h.b16 %v3514
    %v4484 = vunpack.c.l.b16 %v3515
    %v4485 = vunpack.c.h.b16 %v3515
    %v4486 = vunpack.c.l.b16 %v3516
    %v4487 = vunpack.c.h.b16 %v3516
    %v4488 = vunpack.c.l.b16 %v3517
    %v4489 = vunpack.c.h.b16 %v3517
    %v4490 = vunpack.c.l.b16 %v3518
    %v4491 = vunpack.c.h.b16 %v3518
    %v4492 = vunpack.c.l.b16 %v3519
    %v4493 = vunpack.c.h.b16 %v3519
    %v4494 = vunpack.c.l.b16 %v3520
    %v4495 = vunpack.c.h.b16 %v3520
    %v4496 = vunpack.c.l.b16 %v3521
    %v4497 = vunpack.c.h.b16 %v3521
    %v4498 = vunpack.c.l.b16 %v3522
    %v4499 = vunpack.c.h.b16 %v3522
    %v4500 = vunpack.c.l.b16 %v3523
    %v4501 = vunpack.c.h.b16 %v3523
    %v4502 = vunpack.c.l.b16 %v3524
    %v4503 = vunpack.c.h.b16 %v3524
    %v4504 = vunpack.c.l.b16 %v3525
    %v4505 = vunpack.c.h.b16 %v3525
    %v4506 = vunpack.c.l.b16 %v3526
    %v4507 = vunpack.c.h.b16 %v3526
    %v4508 = vunpack.c.l.b16 %v3527
    %v4509 = vunpack.c.h.b16 %v3527
    %v4510 = vunpack.c.l.b16 %v3528
    %v4511 = vunpack.c.h.b16 %v3528
    %v4512 = vunpack.c.l.b16 %v3529
    %v4513 = vunpack.c.h.b16 %v3529
    %v4514 = vunpack.c.l.b16 %v3530
    %v4515 = vunpack.c.h.b16 %v3530
    %v4516 = vunpack.c.l.b16 %v3531
    %v4517 = vunpack.c.h.b16 %v3531
    %v4518 = vunpack.c.l.b16 %v3532
    %v4519 = vunpack.c.h.b16 %v3532
    %v4520 = vunpack.c.l.b16 %v3533
    %v4521 = vunpack.c.h.b16 %v3533
    %v4522 = vunpack.c.l.b16 %v3534
    %v4523 = vunpack.c.h.b16 %v3534
    %v4524 = vunpack.c.l.b16 %v3535
    %v4525 = vunpack.c.h.b16 %v3535
    %v4526 = vunpack.c.l.b16 %v3536
    %v4527 = vunpack.c.h.b16 %v3536
    %v4528 = vunpack.c.l.b16 %v3537
    %v4529 = vunpack.c.h.b16 %v3537
    %v4530 = vunpack.c.l.b16 %v3538
    %v4531 = vunpack.c.h.b16 %v3538
    %v4532 = vunpack.c.l.b16 %v3539
    %v4533 = vunpack.c.h.b16 %v3539
    %v4534 = vunpack.c.l.b16 %v3540
    %v4535 = vunpack.c.h.b16 %v3540
    %v4536 = vunpack.c.l.b16 %v3541
    %v4537 = vunpack.c.h.b16 %v3541
    %v4538 = vunpack.c.l.b16 %v3542
    %v4539 = vunpack.c.h.b16 %v3542
    %v4540 = vunpack.c.l.b16 %v3543
    %v4541 = vunpack.c.h.b16 %v3543
    %v4542 = vunpack.c.l.b16 %v3544
    %v4543 = vunpack.c.h.b16 %v3544
    %v4544 = vunpack.c.l.b16 %v3545
    %v4545 = vunpack.c.h.b16 %v3545
    %v4546 = vunpack.c.l.b16 %v3546
    %v4547 = vunpack.c.h.b16 %v3546
    %v4548 = vunpack.c.l.b16 %v3547
    %v4549 = vunpack.c.h.b16 %v3547
    %v4550 = vunpack.c.l.b16 %v3548
    %v4551 = vunpack.c.h.b16 %v3548
    %v4552 = vunpack.c.l.b16 %v3549
    %v4553 = vunpack.c.h.b16 %v3549
    %v4554 = vunpack.c.l.b16 %v3550
    %v4555 = vunpack.c.h.b16 %v3550
    %v4556 = vunpack.c.l.b16 %v3551
    %v4557 = vunpack.c.h.b16 %v3551
    %v4558 = vunpack.c.l.b16 %v3552
    %v4559 = vunpack.c.h.b16 %v3552
    %v4560 = vunpack.c.l.b16 %v3553
    %v4561 = vunpack.c.h.b16 %v3553
    %v4562 = vunpack.c.l.b16 %v3554
    %v4563 = vunpack.c.h.b16 %v3554
    %v4564 = vunpack.c.l.b16 %v3555
    %v4565 = vunpack.c.h.b16 %v3555
    %v4566 = vunpack.c.l.b16 %v3556
    %v4567 = vunpack.c.h.b16 %v3556
    %v4568 = vunpack.c.l.b16 %v3557
    %v4569 = vunpack.c.h.b16 %v3557
    %v4570 = vunpack.c.l.b16 %v3558
    %v4571 = vunpack.c.h.b16 %v3558
    %v4572 = vunpack.c.l.b16 %v3559
    %v4573 = vunpack.c.h.b16 %v3559
    %v4574 = vunpack.c.l.b16 %v3560
    %v4575 = vunpack.c.h.b16 %v3560
    %v4576 = vunpack.c.l.b16 %v3561
    %v4577 = vunpack.c.h.b16 %v3561
    %v4578 = vunpack.c.l.b16 %v3562
    %v4579 = vunpack.c.h.b16 %v3562
    %v4580 = vunpack.c.l.b16 %v3563
    %v4581 = vunpack.c.h.b16 %v3563
    %v4582 = vunpack.c.l.b16 %v3564
    %v4583 = vunpack.c.h.b16 %v3564
    %v4584 = vunpack.c.l.b16 %v3565
    %v4585 = vunpack.c.h.b16 %v3565
    %v4586 = vunpack.c.l.b16 %v3566
    %v4587 = vunpack.c.h.b16 %v3566
    %v4588 = vunpack.c.l.b16 %v3567
    %v4589 = vunpack.c.h.b16 %v3567
    %v4590 = vunpack.c.l.b16 %v3568
    %v4591 = vunpack.c.h.b16 %v3568
    %v4592 = vunpack.c.l.b16 %v3569
    %v4593 = vunpack.c.h.b16 %v3569
    %v4594 = vunpack.c.l.b16 %v3570
    %v4595 = vunpack.c.h.b16 %v3570
    %v4596 = vunpack.c.l.b16 %v3571
    %v4597 = vunpack.c.h.b16 %v3571
    %v4598 = vunpack.c.l.b16 %v3572
    %v4599 = vunpack.c.h.b16 %v3572
    %v4600 = vunpack.c.l.b16 %v3573
    %v4601 = vunpack.c.h.b16 %v3573
    %v4602 = vunpack.c.l.b16 %v3574
    %v4603 = vunpack.c.h.b16 %v3574
    %v4604 = vunpack.c.l.b16 %v3575
    %v4605 = vunpack.c.h.b16 %v3575
    %v4606 = vunpack.c.l.b16 %v3576
    %v4607 = vunpack.c.h.b16 %v3576
    %v4608 = vunpack.c.l.b16 %v3577
    %v4609 = vunpack.c.h.b16 %v3577
    %v4610 = vunpack.c.l.b16 %v3578
    %v4611 = vunpack.c.h.b16 %v3578
    %v4612 = vunpack.c.l.b16 %v3579
    %v4613 = vunpack.c.h.b16 %v3579
    %v4614 = vunpack.c.l.b16 %v3580
    %v4615 = vunpack.c.h.b16 %v3580
    %v4616 = vunpack.c.l.b16 %v3581
    %v4617 = vunpack.c.h.b16 %v3581
    %v4618 = vunpack.c.l.b16 %v3582
    %v4619 = vunpack.c.h.b16 %v3582
    %v4620 = vunpack.c.l.b16 %v3583
    %v4621 = vunpack.c.h.b16 %v3583
    %v4622 = vunpack.c.l.b16 %v3584
    %v4623 = vunpack.c.h.b16 %v3584
    %v4624 = vunpack.c.l.b16 %v3585
    %v4625 = vunpack.c.h.b16 %v3585
    %v4626 = vunpack.c.l.b16 %v3586
    %v4627 = vunpack.c.h.b16 %v3586
    %v4628 = vunpack.c.l.b16 %v3587
    %v4629 = vunpack.c.h.b16 %v3587
    %v4630 = vunpack.c.l.b16 %v3588
    %v4631 = vunpack.c.h.b16 %v3588
    %v4632 = vunpack.c.l.b16 %v3589
    %v4633 = vunpack.c.h.b16 %v3589
    %v4634 = vunpack.c.l.b16 %v3590
    %v4635 = vunpack.c.h.b16 %v3590
    %v4636 = vunpack.c.l.b16 %v3591
    %v4637 = vunpack.c.h.b16 %v3591
    %v4638 = vunpack.c.l.b16 %v3592
    %v4639 = vunpack.c.h.b16 %v3592
    %v4640 = vunpack.c.l.b16 %v3593
    %v4641 = vunpack.c.h.b16 %v3593
    %v4642 = vunpack.c.l.b16 %v3594
    %v4643 = vunpack.c.h.b16 %v3594
    %v4644 = vunpack.c.l.b16 %v3595
    %v4645 = vunpack.c.h.b16 %v3595
    %v4646 = vunpack.c.l.b16 %v3596
    %v4647 = vunpack.c.h.b16 %v3596
    %v4648 = vunpack.c.l.b16 %v3597
    %v4649 = vunpack.c.h.b16 %v3597
    %v4650 = vunpack.c.l.b16 %v3598
    %v4651 = vunpack.c.h.b16 %v3598
    %v4652 = vunpack.c.l.b16 %v3599
    %v4653 = vunpack.c.h.b16 %v3599
    %v4654 = vunpack.c.l.b16 %v3600
    %v4655 = vunpack.c.h.b16 %v3600
    %v4656 = vunpack.c.l.b16 %v3601
    %v4657 = vunpack.c.h.b16 %v3601
    %v4658 = vunpack.c.l.b16 %v3602
    %v4659 = vunpack.c.h.b16 %v3602
    %v4660 = vunpack.c.l.b16 %v3603
    %v4661 = vunpack.c.h.b16 %v3603
    %v4662 = vunpack.c.l.b16 %v3604
    %v4663 = vunpack.c.h.b16 %v3604
    %v4664 = vunpack.c.l.b16 %v3605
    %v4665 = vunpack.c.h.b16 %v3605
    %v4666 = vunpack.c.l.b16 %v3606
    %v4667 = vunpack.c.h.b16 %v3606
    %v4668 = vunpack.c.l.b16 %v3607
    %v4669 = vunpack.c.h.b16 %v3607
    %v4670 = vunpack.c.l.b16 %v3608
    %v4671 = vunpack.c.h.b16 %v3608
    %v4672 = vunpack.c.l.b16 %v3609
    %v4673 = vunpack.c.h.b16 %v3609
    %v4674 = vunpack.c.l.b16 %v3610
    %v4675 = vunpack.c.h.b16 %v3610
    %v4676 = vunpack.c.l.b16 %v3611
    %v4677 = vunpack.c.h.b16 %v3611
    %v4678 = vunpack.c.l.b16 %v3612
    %v4679 = vunpack.c.h.b16 %v3612
    %v4680 = vunpack.c.l.b16 %v3613
    %v4681 = vunpack.c.h.b16 %v3613
    %v4682 = vunpack.c.l.b16 %v3614
    %v4683 = vunpack.c.h.b16 %v3614
    %v4684 = vunpack.c.l.b16 %v3615
    %v4685 = vunpack.c.h.b16 %v3615
    %v4686 = vunpack.c.l.b16 %v3616
    %v4687 = vunpack.c.h.b16 %v3616
    %v4688 = vunpack.c.l.b16 %v3617
    %v4689 = vunpack.c.h.b16 %v3617
    %v4690 = vunpack.c.l.b16 %v3618
    %v4691 = vunpack.c.h.b16 %v3618
    %v4692 = vunpack.c.l.b16 %v3619
    %v4693 = vunpack.c.h.b16 %v3619
    %v4694 = vunpack.c.l.b16 %v3620
    %v4695 = vunpack.c.h.b16 %v3620
    %v4696 = vunpack.c.l.b16 %v3621
    %v4697 = vunpack.c.h.b16 %v3621
    %v4698 = vunpack.c.l.b16 %v3622
    %v4699 = vunpack.c.h.b16 %v3622
    %v4700 = vunpack.c.l.b16 %v3623
    %v4701 = vunpack.c.h.b16 %v3623
    %v4702 = vunpack.c.l.b16 %v3624
    %v4703 = vunpack.c.h.b16 %v3624
    %v4704 = vunpack.c.l.b16 %v3625
    %v4705 = vunpack.c.h.b16 %v3625
    %v4706 = vunpack.c.l.b16 %v3626
    %v4707 = vunpack.c.h.b16 %v3626
    %v4708 = vunpack.c.l.b16 %v3627
    %v4709 = vunpack.c.h.b16 %v3627
    %v4710 = vunpack.c.l.b16 %v3628
    %v4711 = vunpack.c.h.b16 %v3628
    %v4712 = vunpack.c.l.b16 %v3629
    %v4713 = vunpack.c.h.b16 %v3629
    %v4714 = vunpack.c.l.b16 %v3630
    %v4715 = vunpack.c.h.b16 %v3630
    %v4716 = vunpack.c.l.b16 %v3631
    %v4717 = vunpack.c.h.b16 %v3631
    %v4718 = vunpack.c.l.b16 %v3632
    %v4719 = vunpack.c.h.b16 %v3632
    %v4720 = vunpack.c.l.b16 %v3633
    %v4721 = vunpack.c.h.b16 %v3633
    %v4722 = vunpack.c.l.b16 %v3634
    %v4723 = vunpack.c.h.b16 %v3634
    %v4724 = vunpack.c.l.b16 %v3635
    %v4725 = vunpack.c.h.b16 %v3635
    %v4726 = vunpack.c.l.b16 %v3636
    %v4727 = vunpack.c.h.b16 %v3636
    %v4728 = vunpack.c.l.b16 %v3637
    %v4729 = vunpack.c.h.b16 %v3637
    %v4730 = vunpack.c.l.b16 %v3638
    %v4731 = vunpack.c.h.b16 %v3638
    %v4732 = vunpack.c.l.b16 %v3639
    %v4733 = vunpack.c.h.b16 %v3639
    %v4734 = vunpack.c.l.b16 %v3640
    %v4735 = vunpack.c.h.b16 %v3640
    %v4736 = vunpack.c.l.b16 %v3641
    %v4737 = vunpack.c.h.b16 %v3641
    %v4738 = vunpack.c.l.b16 %v3642
    %v4739 = vunpack.c.h.b16 %v3642
    %v4740 = vunpack.c.l.b16 %v3643
    %v4741 = vunpack.c.h.b16 %v3643
    %v4742 = vunpack.c.l.b16 %v3644
    %v4743 = vunpack.c.h.b16 %v3644
    %v4744 = vunpack.c.l.b16 %v3645
    %v4745 = vunpack.c.h.b16 %v3645
    %v4746 = vunpack.c.l.b16 %v3646
    %v4747 = vunpack.c.h.b16 %v3646
    %v4748 = vunpack.c.l.b16 %v3647
    %v4749 = vunpack.c.h.b16 %v3647
    %v4750 = vpack.c.b16 %v4034, %v4030
    %v4751 = vpack.c.b16 %v4035, %v4031
    %v4752 = vpack.c.b16 %v4036, %v4032
    %v4753 = vpack.c.b16 %v4037, %v4033
    %v4754 = vpack.c.b16 %v4042, %v4038
    %v4755 = vpack.c.b16 %v4043, %v4039
    %v4756 = vpack.c.b16 %v4044, %v4040
    %v4757 = vpack.c.b16 %v4045, %v4041
    %v4758 = vpack.c.b16 %v4050, %v4046
    %v4759 = vpack.c.b16 %v4051, %v4047
    %v4760 = vpack.c.b16 %v4052, %v4048
    %v4761 = vpack.c.b16 %v4053, %v4049
    %v4762 = vpack.c.b16 %v4058, %v4054
    %v4763 = vpack.c.b16 %v4059, %v4055
    %v4764 = vpack.c.b16 %v4060, %v4056
    %v4765 = vpack.c.b16 %v4061, %v4057
    %v4766 = vpack.c.b16 %v4066, %v4062
    %v4767 = vpack.c.b16 %v4067, %v4063
    %v4768 = vpack.c.b16 %v4068, %v4064
    %v4769 = vpack.c.b16 %v4069, %v4065
    %v4770 = vpack.c.b16 %v4074, %v4070
    %v4771 = vpack.c.b16 %v4075, %v4071
    %v4772 = vpack.c.b16 %v4076, %v4072
    %v4773 = vpack.c.b16 %v4077, %v4073
    %v4774 = vpack.c.b16 %v4082, %v4078
    %v4775 = vpack.c.b16 %v4083, %v4079
    %v4776 = vpack.c.b16 %v4084, %v4080
    %v4777 = vpack.c.b16 %v4085, %v4081
    %v4778 = vpack.c.b16 %v4090, %v4086
    %v4779 = vpack.c.b16 %v4091, %v4087
    %v4780 = vpack.c.b16 %v4092, %v4088
    %v4781 = vpack.c.b16 %v4093, %v4089
    %v4782 = vpack.c.b16 %v4098, %v4094
    %v4783 = vpack.c.b16 %v4099, %v4095
    %v4784 = vpack.c.b16 %v4100, %v4096
    %v4785 = vpack.c.b16 %v4101, %v4097
    %v4786 = vpack.c.b16 %v4106, %v4102
    %v4787 = vpack.c.b16 %v4107, %v4103
    %v4788 = vpack.c.b16 %v4108, %v4104
    %v4789 = vpack.c.b16 %v4109, %v4105
    %v4790 = vpack.c.b16 %v4114, %v4110
    %v4791 = vpack.c.b16 %v4115, %v4111
    %v4792 = vpack.c.b16 %v4116, %v4112
    %v4793 = vpack.c.b16 %v4117, %v4113
    %v4794 = vpack.c.b16 %v4122, %v4118
    %v4795 = vpack.c.b16 %v4123, %v4119
    %v4796 = vpack.c.b16 %v4124, %v4120
    %v4797 = vpack.c.b16 %v4125, %v4121
    %v4798 = vpack.c.b16 %v4130, %v4126
    %v4799 = vpack.c.b16 %v4131, %v4127
    %v4800 = vpack.c.b16 %v4132, %v4128
    %v4801 = vpack.c.b16 %v4133, %v4129
    %v4802 = vpack.c.b16 %v4138, %v4134
    %v4803 = vpack.c.b16 %v4139, %v4135
    %v4804 = vpack.c.b16 %v4140, %v4136
    %v4805 = vpack.c.b16 %v4141, %v4137
    %v4806 = vpack.c.b16 %v4146, %v4142
    %v4807 = vpack.c.b16 %v4147, %v4143
    %v4808 = vpack.c.b16 %v4148, %v4144
    %v4809 = vpack.c.b16 %v4149, %v4145
    %v4810 = vpack.c.b16 %v4154, %v4150
    %v4811 = vpack.c.b16 %v4155, %v4151
    %v4812 = vpack.c.b16 %v4156, %v4152
    %v4813 = vpack.c.b16 %v4157, %v4153
    %v4814 = vpack.c.b16 %v4162, %v4158
    %v4815 = vpack.c.b16 %v4163, %v4159
    %v4816 = vpack.c.b16 %v4164, %v4160
    %v4817 = vpack.c.b16 %v4165, %v4161
    %v4818 = vpack.c.b16 %v4170, %v4166
    %v4819 = vpack.c.b16 %v4171, %v4167
    %v4820 = vpack.c.b16 %v4172, %v4168
    %v4821 = vpack.c.b16 %v4173, %v4169
    %v4822 = vpack.c.b16 %v4178, %v4174
    %v4823 = vpack.c.b16 %v4179, %v4175
    %v4824 = vpack.c.b16 %v4180, %v4176
    %v4825 = vpack.c.b16 %v4181, %v4177
    %v4826 = vpack.c.b16 %v4186, %v4182
    %v4827 = vpack.c.b16 %v4187, %v4183
    %v4828 = vpack.c.b16 %v4188, %v4184
    %v4829 = vpack.c.b16 %v4189, %v4185
    %v4830 = vpack.c.b16 %v4194, %v4190
    %v4831 = vpack.c.b16 %v4195, %v4191
    %v4832 = vpack.c.b16 %v4196, %v4192
    %v4833 = vpack.c.b16 %v4197, %v4193
    %v4834 = vpack.c.b16 %v4202, %v4198
    %v4835 = vpack.c.b16 %v4203, %v4199
    %v4836 = vpack.c.b16 %v4204, %v4200
    %v4837 = vpack.c.b16 %v4205, %v4201
    %v4838 = vpack.c.b16 %v4210, %v4206
    %v4839 = vpack.c.b16 %v4211, %v4207
    %v4840 = vpack.c.b16 %v4212, %v4208
    %v4841 = vpack.c.b16 %v4213, %v4209
    %v4842 = vpack.c.b16 %v4218, %v4214
    %v4843 = vpack.c.b16 %v4219, %v4215
    %v4844 = vpack.c.b16 %v4220, %v4216
    %v4845 = vpack.c.b16 %v4221, %v4217
    %v4846 = vpack.c.b16 %v4226, %v4222
    %v4847 = vpack.c.b16 %v4227, %v4223
    %v4848 = vpack.c.b16 %v4228, %v4224
    %v4849 = vpack.c.b16 %v4229, %v4225
    %v4850 = vpack.c.b16 %v4234, %v4230
    %v4851 = vpack.c.b16 %v4235, %v4231
    %v4852 = vpack.c.b16 %v4236, %v4232
    %v4853 = vpack.c.b16 %v4237, %v4233
    %v4854 = vpack.c.b16 %v4242, %v4238
    %v4855 = vpack.c.b16 %v4243, %v4239
    %v4856 = vpack.c.b16 %v4244, %v4240
    %v4857 = vpack.c.b16 %v4245, %v4241
    %v4858 = vpack.c.b16 %v4250, %v4246
    %v4859 = vpack.c.b16 %v4251, %v4247
    %v4860 = vpack.c.b16 %v4252, %v4248
    %v4861 = vpack.c.b16 %v4253, %v4249
    %v4862 = vpack.c.b16 %v4258, %v4254
    %v4863 = vpack.c.b16 %v4259, %v4255
    %v4864 = vpack.c.b16 %v4260, %v4256
    %v4865 = vpack.c.b16 %v4261, %v4257
    %v4866 = vpack.c.b16 %v4266, %v4262
    %v4867 = vpack.c.b16 %v4267, %v4263
    %v4868 = vpack.c.b16 %v4268, %v4264
    %v4869 = vpack.c.b16 %v4269, %v4265
    %v4870 = vpack.c.b16 %v4274, %v4270
    %v4871 = vpack.c.b16 %v4275, %v4271
    %v4872 = vpack.c.b16 %v4276, %v4272
    %v4873 = vpack.c.b16 %v4277, %v4273
    %v4874 = vpack.c.b16 %v4282, %v4278
    %v4875 = vpack.c.b16 %v4283, %v4279
    %v4876 = vpack.c.b16 %v4284, %v4280
    %v4877 = vpack.c.b16 %v4285, %v4281
    %v4878 = vpack.c.b16 %v4290, %v4286
    %v4879 = vpack.c.b16 %v4291, %v4287
    %v4880 = vpack.c.b16 %v4292, %v4288
    %v4881 = vpack.c.b16 %v4293, %v4289
    %v4882 = vpack.c.b16 %v4298, %v4294
    %v4883 = vpack.c.b16 %v4299, %v4295
    %v4884 = vpack.c.b16 %v4300, %v4296
    %v4885 = vpack.c.b16 %v4301, %v4297
    %v4886 = vpack.c.b16 %v4306, %v4302
    %v4887 = vpack.c.b16 %v4307, %v4303
    %v4888 = vpack.c.b16 %v4308, %v4304
    %v4889 = vpack.c.b16 %v4309, %v4305
    %v4890 = vpack.c.b16 %v4314, %v4310
    %v4891 = vpack.c.b16 %v4315, %v4311
    %v4892 = vpack.c.b16 %v4316, %v4312
    %v4893 = vpack.c.b16 %v4317, %v4313
    %v4894 = vpack.c.b16 %v4322, %v4318
    %v4895 = vpack.c.b16 %v4323, %v4319
    %v4896 = vpack.c.b16 %v4324, %v4320
    %v4897 = vpack.c.b16 %v4325, %v4321
    %v4898 = vpack.c.b16 %v4330, %v4326
    %v4899 = vpack.c.b16 %v4331, %v4327
    %v4900 = vpack.c.b16 %v4332, %v4328
    %v4901 = vpack.c.b16 %v4333, %v4329
    %v4902 = vpack.c.b16 %v4338, %v4334
    %v4903 = vpack.c.b16 %v4339, %v4335
    %v4904 = vpack.c.b16 %v4340, %v4336
    %v4905 = vpack.c.b16 %v4341, %v4337
    %v4906 = vpack.c.b16 %v4346, %v4342
    %v4907 = vpack.c.b16 %v4347, %v4343
    %v4908 = vpack.c.b16 %v4348, %v4344
    %v4909 = vpack.c.b16 %v4349, %v4345
    %v4910 = vpack.c.b16 %v4354, %v4350
    %v4911 = vpack.c.b16 %v4355, %v4351
    %v4912 = vpack.c.b16 %v4356, %v4352
    %v4913 = vpack.c.b16 %v4357, %v4353
    %v4914 = vpack.c.b16 %v4362, %v4358
    %v4915 = vpack.c.b16 %v4363, %v4359
    %v4916 = vpack.c.b16 %v4364, %v4360
    %v4917 = vpack.c.b16 %v4365, %v4361
    %v4918 = vpack.c.b16 %v4370, %v4366
    %v4919 = vpack.c.b16 %v4371, %v4367
    %v4920 = vpack.c.b16 %v4372, %v4368
    %v4921 = vpack.c.b16 %v4373, %v4369
    %v4922 = vpack.c.b16 %v4378, %v4374
    %v4923 = vpack.c.b16 %v4379, %v4375
    %v4924 = vpack.c.b16 %v4380, %v4376
    %v4925 = vpack.c.b16 %v4381, %v4377
    %v4926 = vpack.c.b16 %v4386, %v4382
    %v4927 = vpack.c.b16 %v4387, %v4383
    %v4928 = vpack.c.b16 %v4388, %v4384
    %v4929 = vpack.c.b16 %v4389, %v4385
    %v4930 = vpack.c.b16 %v4394, %v4390
    %v4931 = vpack.c.b16 %v4395, %v4391
    %v4932 = vpack.c.b16 %v4396, %v4392
    %v4933 = vpack.c.b16 %v4397, %v4393
    %v4934 = vpack.c.b16 %v4402, %v4398
    %v4935 = vpack.c.b16 %v4403, %v4399
    %v4936 = vpack.c.b16 %v4404, %v4400
    %v4937 = vpack.c.b16 %v4405, %v4401
    %v4938 = vpack.c.b16 %v4410, %v4406
    %v4939 = vpack.c.b16 %v4411, %v4407
    %v4940 = vpack.c.b16 %v4412, %v4408
    %v4941 = vpack.c.b16 %v4413, %v4409
    %v4942 = vpack.c.b16 %v4418, %v4414
    %v4943 = vpack.c.b16 %v4419, %v4415
    %v4944 = vpack.c.b16 %v4420, %v4416
    %v4945 = vpack.c.b16 %v4421, %v4417
    %v4946 = vpack.c.b16 %v4426, %v4422
    %v4947 = vpack.c.b16 %v4427, %v4423
    %v4948 = vpack.c.b16 %v4428, %v4424
    %v4949 = vpack.c.b16 %v4429, %v4425
    %v4950 = vpack.c.b16 %v4434, %v4430
    %v4951 = vpack.c.b16 %v4435, %v4431
    %v4952 = vpack.c.b16 %v4436, %v4432
    %v4953 = vpack.c.b16 %v4437, %v4433
    %v4954 = vpack.c.b16 %v4442, %v4438
    %v4955 = vpack.c.b16 %v4443, %v4439
    %v4956 = vpack.c.b16 %v4444, %v4440
    %v4957 = vpack.c.b16 %v4445, %v4441
    %v4958 = vpack.c.b16 %v4450, %v4446
    %v4959 = vpack.c.b16 %v4451, %v4447
    %v4960 = vpack.c.b16 %v4452, %v4448
    %v4961 = vpack.c.b16 %v4453, %v4449
    %v4962 = vpack.c.b16 %v4458, %v4454
    %v4963 = vpack.c.b16 %v4459, %v4455
    %v4964 = vpack.c.b16 %v4460, %v4456
    %v4965 = vpack.c.b16 %v4461, %v4457
    %v4966 = vpack.c.b16 %v4466, %v4462
    %v4967 = vpack.c.b16 %v4467, %v4463
    %v4968 = vpack.c.b16 %v4468, %v4464
    %v4969 = vpack.c.b16 %v4469, %v4465
    %v4970 = vpack.c.b16 %v4474, %v4470
    %v4971 = vpack.c.b16 %v4475, %v4471
    %v4972 = vpack.c.b16 %v4476, %v4472
    %v4973 = vpack.c.b16 %v4477, %v4473
    %v4974 = vpack.c.b16 %v4482, %v4478
    %v4975 = vpack.c.b16 %v4483, %v4479
    %v4976 = vpack.c.b16 %v4484, %v4480
    %v4977 = vpack.c.b16 %v4485, %v4481
    %v4978 = vpack.c.b16 %v4490, %v4486
    %v4979 = vpack.c.b16 %v4491, %v4487
    %v4980 = vpack.c.b16 %v4492, %v4488
    %v4981 = vpack.c.b16 %v4493, %v4489
    %v4982 = vpack.c.b16 %v4498, %v4494
    %v4983 = vpack.c.b16 %v4499, %v4495
    %v4984 = vpack.c.b16 %v4500, %v4496
    %v4985 = vpack.c.b16 %v4501, %v4497
    %v4986 = vpack.c.b16 %v4506, %v4502
    %v4987 = vpack.c.b16 %v4507, %v4503
    %v4988 = vpack.c.b16 %v4508, %v4504
    %v4989 = vpack.c.b16 %v4509, %v4505
    %v4990 = vpack.c.b16 %v4514, %v4510
    %v4991 = vpack.c.b16 %v4515, %v4511
    %v4992 = vpack.c.b16 %v4516, %v4512
    %v4993 = vpack.c.b16 %v4517, %v4513
    %v4994 = vpack.c.b16 %v4522, %v4518
    %v4995 = vpack.c.b16 %v4523, %v4519
    %v4996 = vpack.c.b16 %v4524, %v4520
    %v4997 = vpack.c.b16 %v4525, %v4521
    %v4998 = vpack.c.b16 %v4530, %v4526
    %v4999 = vpack.c.b16 %v4531, %v4527
    %v5000 = vpack.c.b16 %v4532, %v4528
    %v5001 = vpack.c.b16 %v4533, %v4529
    %v5002 = vpack.c.b16 %v4538, %v4534
    %v5003 = vpack.c.b16 %v4539, %v4535
    %v5004 = vpack.c.b16 %v4540, %v4536
    %v5005 = vpack.c.b16 %v4541, %v4537
    %v5006 = vpack.c.b16 %v4546, %v4542
    %v5007 = vpack.c.b16 %v4547, %v4543
    %v5008 = vpack.c.b16 %v4548, %v4544
    %v5009 = vpack.c.b16 %v4549, %v4545
    %v5010 = vpack.c.b16 %v4554, %v4550
    %v5011 = vpack.c.b16 %v4555, %v4551
    %v5012 = vpack.c.b16 %v4556, %v4552
    %v5013 = vpack.c.b16 %v4557, %v4553
    %v5014 = vpack.c.b16 %v4562, %v4558
    %v5015 = vpack.c.b16 %v4563, %v4559
    %v5016 = vpack.c.b16 %v4564, %v4560
    %v5017 = vpack.c.b16 %v4565, %v4561
    %v5018 = vpack.c.b16 %v4570, %v4566
    %v5019 = vpack.c.b16 %v4571, %v4567
    %v5020 = vpack.c.b16 %v4572, %v4568
    %v5021 = vpack.c.b16 %v4573, %v4569
    %v5022 = vpack.c.b16 %v4578, %v4574
    %v5023 = vpack.c.b16 %v4579, %v4575
    %v5024 = vpack.c.b16 %v4580, %v4576
    %v5025 = vpack.c.b16 %v4581, %v4577
    %v5026 = vpack.c.b16 %v4586, %v4582
    %v5027 = vpack.c.b16 %v4587, %v4583
    %v5028 = vpack.c.b16 %v4588, %v4584
    %v5029 = vpack.c.b16 %v4589, %v4585
    %v5030 = vpack.c.b16 %v4594, %v4590
    %v5031 = vpack.c.b16 %v4595, %v4591
    %v5032 = vpack.c.b16 %v4596, %v4592
    %v5033 = vpack.c.b16 %v4597, %v4593
    %v5034 = vpack.c.b16 %v4602, %v4598
    %v5035 = vpack.c.b16 %v4603, %v4599
    %v5036 = vpack.c.b16 %v4604, %v4600
    %v5037 = vpack.c.b16 %v4605, %v4601
    %v5038 = vpack.c.b16 %v4610, %v4606
    %v5039 = vpack.c.b16 %v4611, %v4607
    %v5040 = vpack.c.b16 %v4612, %v4608
    %v5041 = vpack.c.b16 %v4613, %v4609
    %v5042 = vpack.c.b16 %v4618, %v4614
    %v5043 = vpack.c.b16 %v4619, %v4615
    %v5044 = vpack.c.b16 %v4620, %v4616
    %v5045 = vpack.c.b16 %v4621, %v4617
    %v5046 = vpack.c.b16 %v4626, %v4622
    %v5047 = vpack.c.b16 %v4627, %v4623
    %v5048 = vpack.c.b16 %v4628, %v4624
    %v5049 = vpack.c.b16 %v4629, %v4625
    %v5050 = vpack.c.b16 %v4634, %v4630
    %v5051 = vpack.c.b16 %v4635, %v4631
    %v5052 = vpack.c.b16 %v4636, %v4632
    %v5053 = vpack.c.b16 %v4637, %v4633
    %v5054 = vpack.c.b16 %v4642, %v4638
    %v5055 = vpack.c.b16 %v4643, %v4639
    %v5056 = vpack.c.b16 %v4644, %v4640
    %v5057 = vpack.c.b16 %v4645, %v4641
    %v5058 = vpack.c.b16 %v4650, %v4646
    %v5059 = vpack.c.b16 %v4651, %v4647
    %v5060 = vpack.c.b16 %v4652, %v4648
    %v5061 = vpack.c.b16 %v4653, %v4649
    %v5062 = vpack.c.b16 %v4658, %v4654
    %v5063 = vpack.c.b16 %v4659, %v4655
    %v5064 = vpack.c.b16 %v4660, %v4656
    %v5065 = vpack.c.b16 %v4661, %v4657
    %v5066 = vpack.c.b16 %v4666, %v4662
    %v5067 = vpack.c.b16 %v4667, %v4663
    %v5068 = vpack.c.b16 %v4668, %v4664
    %v5069 = vpack.c.b16 %v4669, %v4665
    %v5070 = vpack.c.b16 %v4674, %v4670
    %v5071 = vpack.c.b16 %v4675, %v4671
    %v5072 = vpack.c.b16 %v4676, %v4672
    %v5073 = vpack.c.b16 %v4677, %v4673
    %v5074 = vpack.c.b16 %v4682, %v4678
    %v5075 = vpack.c.b16 %v4683, %v4679
    %v5076 = vpack.c.b16 %v4684, %v4680
    %v5077 = vpack.c.b16 %v4685, %v4681
    %v5078 = vpack.c.b16 %v4690, %v4686
    %v5079 = vpack.c.b16 %v4691, %v4687
    %v5080 = vpack.c.b16 %v4692, %v4688
    %v5081 = vpack.c.b16 %v4693, %v4689
    %v5082 = vpack.c.b16 %v4698, %v4694
    %v5083 = vpack.c.b16 %v4699, %v4695
    %v5084 = vpack.c.b16 %v4700, %v4696
    %v5085 = vpack.c.b16 %v4701, %v4697
    %v5086 = vpack.c.b16 %v4706, %v4702
    %v5087 = vpack.c.b16 %v4707, %v4703
    %v5088 = vpack.c.b16 %v4708, %v4704
    %v5089 = vpack.c.b16 %v4709, %v4705
    %v5090 = vpack.c.b16 %v4714, %v4710
    %v5091 = vpack.c.b16 %v4715, %v4711
    %v5092 = vpack.c.b16 %v4716, %v4712
    %v5093 = vpack.c.b16 %v4717, %v4713
    %v5094 = vpack.c.b16 %v4722, %v4718
    %v5095 = vpack.c.b16 %v4723, %v4719
    %v5096 = vpack.c.b16 %v4724, %v4720
    %v5097 = vpack.c.b16 %v4725, %v4721
    %v5098 = vpack.c.b16 %v4730, %v4726
    %v5099 = vpack.c.b16 %v4731, %v4727
    %v5100 = vpack.c.b16 %v4732, %v4728
    %v5101 = vpack.c.b16 %v4733, %v4729
    %v5102 = vpack.c.b16 %v4738, %v4734
    %v5103 = vpack.c.b16 %v4739, %v4735
    %v5104 = vpack.c.b16 %v4740, %v4736
    %v5105 = vpack.c.b16 %v4741, %v4737
    %v5106 = vpack.c.b16 %v4746, %v4742
    %v5107 = vpack.c.b16 %v4747, %v4743
    %v5108 = vpack.c.b16 %v4748, %v4744
    %v5109 = vpack.c.b16 %v4749, %v4745
    %v5471 = vsel %vm382, %v3275, 0
    %v5474 = vsel %vm382, %v3287, 0
    %5476 = vmatprep.subr.bf16.mxu0 %v4779
    %5477 = vmatpush1.bf16.msra.mxu0 %v4778
    %5478 = vmatprep.subr.bf16.mxu0 %v4775
    %5479 = vmatpush1.bf16.msra.mxu0 %v4774
    %5480 = vmatprep.subr.bf16.mxu0 %v4771
    %5481 = vmatpush1.bf16.msra.mxu0 %v4770
    %5482 = vmatprep.subr.bf16.mxu0 %v4767
    %5483 = vmatpush1.bf16.msra.mxu0 %v4766
    %5484 = vmatprep.subr.bf16.mxu0 %v4763
    %5485 = vmatpush1.bf16.msra.mxu0 %v4762
    %5486 = vmatprep.subr.bf16.mxu0 %v4759
    %5487 = vmatpush1.bf16.msra.mxu0 %v4758
    %5488 = vmatprep.subr.bf16.mxu0 %v4755
    %5489 = vmatpush1.bf16.msra.mxu0 %v4754
    %5490 = vmatprep.subr.bf16.mxu0 %v4751
    %5491 = vmatpush1.bf16.msra.mxu0 %v4750
    %5492 = vmatprep.subr.bf16.mxu0 %v4811
    %5493 = vmatpush2.bf16.msra.mxu0 %v4810
    %5494 = vmatprep.subr.bf16.mxu0 %v4807
    %5495 = vmatpush2.bf16.msra.mxu0 %v4806
    %5496 = vmatprep.subr.bf16.mxu0 %v4803
    %5497 = vmatpush2.bf16.msra.mxu0 %v4802
    %5498 = vmatprep.subr.bf16.mxu0 %v4799
    %5499 = vmatpush2.bf16.msra.mxu0 %v4798
    %5500 = vmatprep.subr.bf16.mxu0 %v4795
    %5501 = vmatpush2.bf16.msra.mxu0 %v4794
    %5502 = vmatprep.subr.bf16.mxu0 %v4791
    %5503 = vmatpush2.bf16.msra.mxu0 %v4790
    %5504 = vmatprep.subr.bf16.mxu0 %v4787
    %5505 = vmatpush2.bf16.msra.mxu0 %v4786
    %5506 = vmatprep.subr.bf16.mxu0 %v4783
    %5507 = vmatpush2.bf16.msra.mxu0 %v4782
    %5508 = vmatprep.mubr.bf16.mxu0 %v3265
    %5509 = vmatmul.mubr.bf16.gmra.mxu0 %v3264
    %v5510 = vpop.f32.mrf.mxu0
    %v5511 = vadd.f32 %v3653, %v5510
    %v5512 = vpop.f32.mrf.mxu0
    %v5513 = vadd.f32 %v3657, %v5512
    %v5514 = vpop.f32.mrf.mxu0
    %v5515 = vadd.f32 %v3653, %v5514
    %v5516 = vpop.f32.mrf.mxu0
    %v5517 = vadd.f32 %v3657, %v5516
    %5518 = vmatprep.mubr.bf16.mxu0 %v3277
    %5519 = vmatmul.mubr.bf16.gmra.mxu0 %v3276
    %v5520 = vpop.f32.mrf.mxu0
    %v5521 = vadd.f32 %v3653, %v5520
    %v5522 = vpop.f32.mrf.mxu0
    %v5523 = vadd.f32 %v3657, %v5522
    %v5524 = vpop.f32.mrf.mxu0
    %v5525 = vadd.f32 %v3653, %v5524
    %v5526 = vpop.f32.mrf.mxu0
    %v5527 = vadd.f32 %v3657, %v5526
    %5528 = vdwg.mxu0
    %5529 = vmatprep.subr.bf16.mxu0 %v4843
    %5530 = vmatpush1.bf16.msra.mxu0 %v4842
    %5531 = vmatprep.subr.bf16.mxu0 %v4839
    %5532 = vmatpush1.bf16.msra.mxu0 %v4838
    %5533 = vmatprep.subr.bf16.mxu0 %v4835
    %5534 = vmatpush1.bf16.msra.mxu0 %v4834
    %5535 = vmatprep.subr.bf16.mxu0 %v4831
    %5536 = vmatpush1.bf16.msra.mxu0 %v4830
    %5537 = vmatprep.subr.bf16.mxu0 %v4827
    %5538 = vmatpush1.bf16.msra.mxu0 %v4826
    %5539 = vmatprep.subr.bf16.mxu0 %v4823
    %5540 = vmatpush1.bf16.msra.mxu0 %v4822
    %5541 = vmatprep.subr.bf16.mxu0 %v4819
    %5542 = vmatpush1.bf16.msra.mxu0 %v4818
    %5543 = vmatprep.subr.bf16.mxu0 %v4815
    %5544 = vmatpush1.bf16.msra.mxu0 %v4814
    %5545 = vmatprep.subr.bf16.mxu0 %v4875
    %5546 = vmatpush2.bf16.msra.mxu0 %v4874
    %5547 = vmatprep.subr.bf16.mxu0 %v4871
    %5548 = vmatpush2.bf16.msra.mxu0 %v4870
    %5549 = vmatprep.subr.bf16.mxu0 %v4867
    %5550 = vmatpush2.bf16.msra.mxu0 %v4866
    %5551 = vmatprep.subr.bf16.mxu0 %v4863
    %5552 = vmatpush2.bf16.msra.mxu0 %v4862
    %5553 = vmatprep.subr.bf16.mxu0 %v4859
    %5554 = vmatpush2.bf16.msra.mxu0 %v4858
    %5555 = vmatprep.subr.bf16.mxu0 %v4855
    %5556 = vmatpush2.bf16.msra.mxu0 %v4854
    %5557 = vmatprep.subr.bf16.mxu0 %v4851
    %5558 = vmatpush2.bf16.msra.mxu0 %v4850
    %5559 = vmatprep.subr.bf16.mxu0 %v4847
    %5560 = vmatpush2.bf16.msra.mxu0 %v4846
    %5561 = vmatprep.mubr.bf16.mxu0 %v3267
    %5562 = vmatmul.mubr.bf16.gmra.mxu0 %v3266
    %v5563 = vpop.f32.mrf.mxu0
    %v5564 = vadd.f32 %v5511, %v5563
    %v5565 = vpop.f32.mrf.mxu0
    %v5566 = vadd.f32 %v5513, %v5565
    %v5567 = vpop.f32.mrf.mxu0
    %v5568 = vadd.f32 %v5515, %v5567
    %v5569 = vpop.f32.mrf.mxu0
    %v5570 = vadd.f32 %v5517, %v5569
    %5571 = vmatprep.mubr.bf16.mxu0 %v3279
    %5572 = vmatmul.mubr.bf16.gmra.mxu0 %v3278
    %v5573 = vpop.f32.mrf.mxu0
    %v5574 = vadd.f32 %v5521, %v5573
    %v5575 = vpop.f32.mrf.mxu0
    %v5576 = vadd.f32 %v5523, %v5575
    %v5577 = vpop.f32.mrf.mxu0
    %v5578 = vadd.f32 %v5525, %v5577
    %v5579 = vpop.f32.mrf.mxu0
    %v5580 = vadd.f32 %v5527, %v5579
    %5581 = vdwg.mxu0
    %5582 = vmatprep.subr.bf16.mxu0 %v4907
    %5583 = vmatpush1.bf16.msra.mxu0 %v4906
    %5584 = vmatprep.subr.bf16.mxu0 %v4903
    %5585 = vmatpush1.bf16.msra.mxu0 %v4902
    %5586 = vmatprep.subr.bf16.mxu0 %v4899
    %5587 = vmatpush1.bf16.msra.mxu0 %v4898
    %5588 = vmatprep.subr.bf16.mxu0 %v4895
    %5589 = vmatpush1.bf16.msra.mxu0 %v4894
    %5590 = vmatprep.subr.bf16.mxu0 %v4891
    %5591 = vmatpush1.bf16.msra.mxu0 %v4890
    %5592 = vmatprep.subr.bf16.mxu0 %v4887
    %5593 = vmatpush1.bf16.msra.mxu0 %v4886
    %5594 = vmatprep.subr.bf16.mxu0 %v4883
    %5595 = vmatpush1.bf16.msra.mxu0 %v4882
    %5596 = vmatprep.subr.bf16.mxu0 %v4879
    %5597 = vmatpush1.bf16.msra.mxu0 %v4878
    %5598 = vmatprep.subr.bf16.mxu0 %v4939
    %5599 = vmatpush2.bf16.msra.mxu0 %v4938
    %5600 = vmatprep.subr.bf16.mxu0 %v4935
    %5601 = vmatpush2.bf16.msra.mxu0 %v4934
    %5602 = vmatprep.subr.bf16.mxu0 %v4931
    %5603 = vmatpush2.bf16.msra.mxu0 %v4930
    %5604 = vmatprep.subr.bf16.mxu0 %v4927
    %5605 = vmatpush2.bf16.msra.mxu0 %v4926
    %5606 = vmatprep.subr.bf16.mxu0 %v4923
    %5607 = vmatpush2.bf16.msra.mxu0 %v4922
    %5608 = vmatprep.subr.bf16.mxu0 %v4919
    %5609 = vmatpush2.bf16.msra.mxu0 %v4918
    %5610 = vmatprep.subr.bf16.mxu0 %v4915
    %5611 = vmatpush2.bf16.msra.mxu0 %v4914
    %5612 = vmatprep.subr.bf16.mxu0 %v4911
    %5613 = vmatpush2.bf16.msra.mxu0 %v4910
    %5614 = vmatprep.mubr.bf16.mxu0 %v3269
    %5615 = vmatmul.mubr.bf16.gmra.mxu0 %v3268
    %v5616 = vpop.f32.mrf.mxu0
    %v5617 = vadd.f32 %v5564, %v5616
    %v5618 = vpop.f32.mrf.mxu0
    %v5619 = vadd.f32 %v5566, %v5618
    %v5620 = vpop.f32.mrf.mxu0
    %v5621 = vadd.f32 %v5568, %v5620
    %v5622 = vpop.f32.mrf.mxu0
    %v5623 = vadd.f32 %v5570, %v5622
    %5624 = vmatprep.mubr.bf16.mxu0 %v3281
    %5625 = vmatmul.mubr.bf16.gmra.mxu0 %v3280
    %v5626 = vpop.f32.mrf.mxu0
    %v5627 = vadd.f32 %v5574, %v5626
    %v5628 = vpop.f32.mrf.mxu0
    %v5629 = vadd.f32 %v5576, %v5628
    %v5630 = vpop.f32.mrf.mxu0
    %v5631 = vadd.f32 %v5578, %v5630
    %v5632 = vpop.f32.mrf.mxu0
    %v5633 = vadd.f32 %v5580, %v5632
    %5634 = vdwg.mxu0
    %5635 = vmatprep.subr.bf16.mxu0 %v4971
    %5636 = vmatpush1.bf16.msra.mxu0 %v4970
    %5637 = vmatprep.subr.bf16.mxu0 %v4967
    %5638 = vmatpush1.bf16.msra.mxu0 %v4966
    %5639 = vmatprep.subr.bf16.mxu0 %v4963
    %5640 = vmatpush1.bf16.msra.mxu0 %v4962
    %5641 = vmatprep.subr.bf16.mxu0 %v4959
    %5642 = vmatpush1.bf16.msra.mxu0 %v4958
    %5643 = vmatprep.subr.bf16.mxu0 %v4955
    %5644 = vmatpush1.bf16.msra.mxu0 %v4954
    %5645 = vmatprep.subr.bf16.mxu0 %v4951
    %5646 = vmatpush1.bf16.msra.mxu0 %v4950
    %5647 = vmatprep.subr.bf16.mxu0 %v4947
    %5648 = vmatpush1.bf16.msra.mxu0 %v4946
    %5649 = vmatprep.subr.bf16.mxu0 %v4943
    %5650 = vmatpush1.bf16.msra.mxu0 %v4942
    %5651 = vmatprep.subr.bf16.mxu0 %v5003
    %5652 = vmatpush2.bf16.msra.mxu0 %v5002
    %5653 = vmatprep.subr.bf16.mxu0 %v4999
    %5654 = vmatpush2.bf16.msra.mxu0 %v4998
    %5655 = vmatprep.subr.bf16.mxu0 %v4995
    %5656 = vmatpush2.bf16.msra.mxu0 %v4994
    %5657 = vmatprep.subr.bf16.mxu0 %v4991
    %5658 = vmatpush2.bf16.msra.mxu0 %v4990
    %5659 = vmatprep.subr.bf16.mxu0 %v4987
    %5660 = vmatpush2.bf16.msra.mxu0 %v4986
    %5661 = vmatprep.subr.bf16.mxu0 %v4983
    %5662 = vmatpush2.bf16.msra.mxu0 %v4982
    %5663 = vmatprep.subr.bf16.mxu0 %v4979
    %5664 = vmatpush2.bf16.msra.mxu0 %v4978
    %5665 = vmatprep.subr.bf16.mxu0 %v4975
    %5666 = vmatpush2.bf16.msra.mxu0 %v4974
    %5667 = vmatprep.mubr.bf16.mxu0 %v3271
    %5668 = vmatmul.mubr.bf16.gmra.mxu0 %v3270
    %v5669 = vpop.f32.mrf.mxu0
    %v5670 = vadd.f32 %v5617, %v5669
    %v5671 = vpop.f32.mrf.mxu0
    %v5672 = vadd.f32 %v5619, %v5671
    %v5673 = vpop.f32.mrf.mxu0
    %v5674 = vadd.f32 %v5621, %v5673
    %v5675 = vpop.f32.mrf.mxu0
    %v5676 = vadd.f32 %v5623, %v5675
    %5677 = vmatprep.mubr.bf16.mxu0 %v3283
    %5678 = vmatmul.mubr.bf16.gmra.mxu0 %v3282
    %v5679 = vpop.f32.mrf.mxu0
    %v5680 = vadd.f32 %v5627, %v5679
    %v5681 = vpop.f32.mrf.mxu0
    %v5682 = vadd.f32 %v5629, %v5681
    %v5683 = vpop.f32.mrf.mxu0
    %v5684 = vadd.f32 %v5631, %v5683
    %v5685 = vpop.f32.mrf.mxu0
    %v5686 = vadd.f32 %v5633, %v5685
    %5687 = vdwg.mxu0
    %5688 = vmatprep.subr.bf16.mxu0 %v5035
    %5689 = vmatpush1.bf16.msra.mxu0 %v5034
    %5690 = vmatprep.subr.bf16.mxu0 %v5031
    %5691 = vmatpush1.bf16.msra.mxu0 %v5030
    %5692 = vmatprep.subr.bf16.mxu0 %v5027
    %5693 = vmatpush1.bf16.msra.mxu0 %v5026
    %5694 = vmatprep.subr.bf16.mxu0 %v5023
    %5695 = vmatpush1.bf16.msra.mxu0 %v5022
    %5696 = vmatprep.subr.bf16.mxu0 %v5019
    %5697 = vmatpush1.bf16.msra.mxu0 %v5018
    %5698 = vmatprep.subr.bf16.mxu0 %v5015
    %5699 = vmatpush1.bf16.msra.mxu0 %v5014
    %5700 = vmatprep.subr.bf16.mxu0 %v5011
    %5701 = vmatpush1.bf16.msra.mxu0 %v5010
    %5702 = vmatprep.subr.bf16.mxu0 %v5007
    %5703 = vmatpush1.bf16.msra.mxu0 %v5006
    %5704 = vmatprep.subr.bf16.mxu0 %v5067
    %5705 = vmatpush2.bf16.msra.mxu0 %v5066
    %5706 = vmatprep.subr.bf16.mxu0 %v5063
    %5707 = vmatpush2.bf16.msra.mxu0 %v5062
    %5708 = vmatprep.subr.bf16.mxu0 %v5059
    %5709 = vmatpush2.bf16.msra.mxu0 %v5058
    %5710 = vmatprep.subr.bf16.mxu0 %v5055
    %5711 = vmatpush2.bf16.msra.mxu0 %v5054
    %5712 = vmatprep.subr.bf16.mxu0 %v5051
    %5713 = vmatpush2.bf16.msra.mxu0 %v5050
    %5714 = vmatprep.subr.bf16.mxu0 %v5047
    %5715 = vmatpush2.bf16.msra.mxu0 %v5046
    %5716 = vmatprep.subr.bf16.mxu0 %v5043
    %5717 = vmatpush2.bf16.msra.mxu0 %v5042
    %5718 = vmatprep.subr.bf16.mxu0 %v5039
    %5719 = vmatpush2.bf16.msra.mxu0 %v5038
    %5720 = vmatprep.mubr.bf16.mxu0 %v3273
    %5721 = vmatmul.mubr.bf16.gmra.mxu0 %v3272
    %v5722 = vpop.f32.mrf.mxu0
    %v5723 = vadd.f32 %v5670, %v5722
    %v5724 = vpop.f32.mrf.mxu0
    %v5725 = vadd.f32 %v5672, %v5724
    %v5726 = vpop.f32.mrf.mxu0
    %v5727 = vadd.f32 %v5674, %v5726
    %v5728 = vpop.f32.mrf.mxu0
    %v5729 = vadd.f32 %v5676, %v5728
    %5730 = vmatprep.mubr.bf16.mxu0 %v3285
    %5731 = vmatmul.mubr.bf16.gmra.mxu0 %v3284
    %v5732 = vpop.f32.mrf.mxu0
    %v5733 = vadd.f32 %v5680, %v5732
    %v5734 = vpop.f32.mrf.mxu0
    %v5735 = vadd.f32 %v5682, %v5734
    %v5736 = vpop.f32.mrf.mxu0
    %v5737 = vadd.f32 %v5684, %v5736
    %v5738 = vpop.f32.mrf.mxu0
    %v5739 = vadd.f32 %v5686, %v5738
    %5740 = vdwg.mxu0
    %5741 = vmatprep.subr.bf16.mxu0 %v5099
    %5742 = vmatpush1.bf16.msra.mxu0 %v5098
    %5743 = vmatprep.subr.bf16.mxu0 %v5095
    %5744 = vmatpush1.bf16.msra.mxu0 %v5094
    %5745 = vmatprep.subr.bf16.mxu0 %v5091
    %5746 = vmatpush1.bf16.msra.mxu0 %v5090
    %5747 = vmatprep.subr.bf16.mxu0 %v5087
    %5748 = vmatpush1.bf16.msra.mxu0 %v5086
    %5749 = vmatprep.subr.bf16.mxu0 %v5083
    %5750 = vmatpush1.bf16.msra.mxu0 %v5082
    %5751 = vmatprep.subr.bf16.mxu0 %v5079
    %5752 = vmatpush1.bf16.msra.mxu0 %v5078
    %5753 = vmatprep.subr.bf16.mxu0 %v5075
    %5754 = vmatpush1.bf16.msra.mxu0 %v5074
    %5755 = vmatprep.subr.bf16.mxu0 %v5071
    %5756 = vmatpush1.bf16.msra.mxu0 %v5070
    %5757 = vmatprep.subr.bf16.mxu0 0
    %5758 = vmatpush2.bf16.msra.mxu0 0
    %5759 = vmatprep.subr.bf16.mxu0 0
    %5760 = vmatpush2.bf16.msra.mxu0 0
    %5761 = vmatprep.subr.bf16.mxu0 0
    %5762 = vmatpush2.bf16.msra.mxu0 0
    %5763 = vmatprep.subr.bf16.mxu0 0
    %5764 = vmatpush2.bf16.msra.mxu0 0
    %5765 = vmatprep.subr.bf16.mxu0 0
    %5766 = vmatpush2.bf16.msra.mxu0 0
    %5767 = vmatprep.subr.bf16.mxu0 0
    %5768 = vmatpush2.bf16.msra.mxu0 0
    %5769 = vmatprep.subr.bf16.mxu0 %v5107
    %5770 = vmatpush2.bf16.msra.mxu0 %v5106
    %5771 = vmatprep.subr.bf16.mxu0 %v5103
    %5772 = vmatpush2.bf16.msra.mxu0 %v5102
    %5773 = vmatprep.mubr.bf16.mxu0 %v5471
    %5774 = vmatmul.mubr.bf16.gmra.mxu0 %v3274
    %v5775 = vpop.f32.mrf.mxu0
    %v5776 = vadd.f32 %v5723, %v5775
    %v5777 = vpop.f32.mrf.mxu0
    %v5778 = vadd.f32 %v5725, %v5777
    %v5779 = vpop.f32.mrf.mxu0
    %v5780 = vadd.f32 %v5727, %v5779
    %v5781 = vpop.f32.mrf.mxu0
    %v5782 = vadd.f32 %v5729, %v5781
    %5783 = vmatprep.mubr.bf16.mxu0 %v5474
    %5784 = vmatmul.mubr.bf16.gmra.mxu0 %v3286
    %v5785 = vpop.f32.mrf.mxu0
    %v5786 = vadd.f32 %v5733, %v5785
    %v5787 = vpop.f32.mrf.mxu0
    %v5788 = vadd.f32 %v5735, %v5787
    %v5789 = vpop.f32.mrf.mxu0
    %v5790 = vadd.f32 %v5737, %v5789
    %v5791 = vpop.f32.mrf.mxu0
    %v5792 = vadd.f32 %v5739, %v5791
    %5793 = vdwg.mxu0
    %5794 = vmatprep.subr.bf16.mxu0 %v4781
    %5795 = vmatpush1.bf16.msra.mxu0 %v4780
    %5796 = vmatprep.subr.bf16.mxu0 %v4777
    %5797 = vmatpush1.bf16.msra.mxu0 %v4776
    %5798 = vmatprep.subr.bf16.mxu0 %v4773
    %5799 = vmatpush1.bf16.msra.mxu0 %v4772
    %5800 = vmatprep.subr.bf16.mxu0 %v4769
    %5801 = vmatpush1.bf16.msra.mxu0 %v4768
    %5802 = vmatprep.subr.bf16.mxu0 %v4765
    %5803 = vmatpush1.bf16.msra.mxu0 %v4764
    %5804 = vmatprep.subr.bf16.mxu0 %v4761
    %5805 = vmatpush1.bf16.msra.mxu0 %v4760
    %5806 = vmatprep.subr.bf16.mxu0 %v4757
    %5807 = vmatpush1.bf16.msra.mxu0 %v4756
    %5808 = vmatprep.subr.bf16.mxu0 %v4753
    %5809 = vmatpush1.bf16.msra.mxu0 %v4752
    %5810 = vmatprep.subr.bf16.mxu0 %v4813
    %5811 = vmatpush2.bf16.msra.mxu0 %v4812
    %5812 = vmatprep.subr.bf16.mxu0 %v4809
    %5813 = vmatpush2.bf16.msra.mxu0 %v4808
    %5814 = vmatprep.subr.bf16.mxu0 %v4805
    %5815 = vmatpush2.bf16.msra.mxu0 %v4804
    %5816 = vmatprep.subr.bf16.mxu0 %v4801
    %5817 = vmatpush2.bf16.msra.mxu0 %v4800
    %5818 = vmatprep.subr.bf16.mxu0 %v4797
    %5819 = vmatpush2.bf16.msra.mxu0 %v4796
    %5820 = vmatprep.subr.bf16.mxu0 %v4793
    %5821 = vmatpush2.bf16.msra.mxu0 %v4792
    %5822 = vmatprep.subr.bf16.mxu0 %v4789
    %5823 = vmatpush2.bf16.msra.mxu0 %v4788
    %5824 = vmatprep.subr.bf16.mxu0 %v4785
    %5825 = vmatpush2.bf16.msra.mxu0 %v4784
    %5826 = vmatprep.mubr.bf16.mxu0 %v3265
    %5827 = vmatmul.mubr.bf16.gmra.mxu0 %v3264
    %v5828 = vpop.f32.mrf.mxu0
    %v5829 = vadd.f32 %v3661, %v5828
    %v5830 = vpop.f32.mrf.mxu0
    %v5831 = vadd.f32 %v3665, %v5830
    %v5832 = vpop.f32.mrf.mxu0
    %v5833 = vadd.f32 %v3661, %v5832
    %v5834 = vpop.f32.mrf.mxu0
    %v5835 = vadd.f32 %v3665, %v5834
    %5836 = vmatprep.mubr.bf16.mxu0 %v3277
    %5837 = vmatmul.mubr.bf16.gmra.mxu0 %v3276
    %v5838 = vpop.f32.mrf.mxu0
    %v5839 = vadd.f32 %v3661, %v5838
    %v5840 = vpop.f32.mrf.mxu0
    %v5841 = vadd.f32 %v3665, %v5840
    %v5842 = vpop.f32.mrf.mxu0
    %v5843 = vadd.f32 %v3661, %v5842
    %v5844 = vpop.f32.mrf.mxu0
    %v5845 = vadd.f32 %v3665, %v5844
    %5846 = vdwg.mxu0
    %5847 = vmatprep.subr.bf16.mxu0 %v4845
    %5848 = vmatpush1.bf16.msra.mxu0 %v4844
    %5849 = vmatprep.subr.bf16.mxu0 %v4841
    %5850 = vmatpush1.bf16.msra.mxu0 %v4840
    %5851 = vmatprep.subr.bf16.mxu0 %v4837
    %5852 = vmatpush1.bf16.msra.mxu0 %v4836
    %5853 = vmatprep.subr.bf16.mxu0 %v4833
    %5854 = vmatpush1.bf16.msra.mxu0 %v4832
    %5855 = vmatprep.subr.bf16.mxu0 %v4829
    %5856 = vmatpush1.bf16.msra.mxu0 %v4828
    %5857 = vmatprep.subr.bf16.mxu0 %v4825
    %5858 = vmatpush1.bf16.msra.mxu0 %v4824
    %5859 = vmatprep.subr.bf16.mxu0 %v4821
    %5860 = vmatpush1.bf16.msra.mxu0 %v4820
    %5861 = vmatprep.subr.bf16.mxu0 %v4817
    %5862 = vmatpush1.bf16.msra.mxu0 %v4816
    %5863 = vmatprep.subr.bf16.mxu0 %v4877
    %5864 = vmatpush2.bf16.msra.mxu0 %v4876
    %5865 = vmatprep.subr.bf16.mxu0 %v4873
    %5866 = vmatpush2.bf16.msra.mxu0 %v4872
    %5867 = vmatprep.subr.bf16.mxu0 %v4869
    %5868 = vmatpush2.bf16.msra.mxu0 %v4868
    %5869 = vmatprep.subr.bf16.mxu0 %v4865
    %5870 = vmatpush2.bf16.msra.mxu0 %v4864
    %5871 = vmatprep.subr.bf16.mxu0 %v4861
    %5872 = vmatpush2.bf16.msra.mxu0 %v4860
    %5873 = vmatprep.subr.bf16.mxu0 %v4857
    %5874 = vmatpush2.bf16.msra.mxu0 %v4856
    %5875 = vmatprep.subr.bf16.mxu0 %v4853
    %5876 = vmatpush2.bf16.msra.mxu0 %v4852
    %5877 = vmatprep.subr.bf16.mxu0 %v4849
    %5878 = vmatpush2.bf16.msra.mxu0 %v4848
    %5879 = vmatprep.mubr.bf16.mxu0 %v3267
    %5880 = vmatmul.mubr.bf16.gmra.mxu0 %v3266
    %v5881 = vpop.f32.mrf.mxu0
    %v5882 = vadd.f32 %v5829, %v5881
    %v5883 = vpop.f32.mrf.mxu0
    %v5884 = vadd.f32 %v5831, %v5883
    %v5885 = vpop.f32.mrf.mxu0
    %v5886 = vadd.f32 %v5833, %v5885
    %v5887 = vpop.f32.mrf.mxu0
    %v5888 = vadd.f32 %v5835, %v5887
    %5889 = vmatprep.mubr.bf16.mxu0 %v3279
    %5890 = vmatmul.mubr.bf16.gmra.mxu0 %v3278
    %v5891 = vpop.f32.mrf.mxu0
    %v5892 = vadd.f32 %v5839, %v5891
    %v5893 = vpop.f32.mrf.mxu0
    %v5894 = vadd.f32 %v5841, %v5893
    %v5895 = vpop.f32.mrf.mxu0
    %v5896 = vadd.f32 %v5843, %v5895
    %v5897 = vpop.f32.mrf.mxu0
    %v5898 = vadd.f32 %v5845, %v5897
    %5899 = vdwg.mxu0
    %5900 = vmatprep.subr.bf16.mxu0 %v4909
    %5901 = vmatpush1.bf16.msra.mxu0 %v4908
    %5902 = vmatprep.subr.bf16.mxu0 %v4905
    %5903 = vmatpush1.bf16.msra.mxu0 %v4904
    %5904 = vmatprep.subr.bf16.mxu0 %v4901
    %5905 = vmatpush1.bf16.msra.mxu0 %v4900
    %5906 = vmatprep.subr.bf16.mxu0 %v4897
    %5907 = vmatpush1.bf16.msra.mxu0 %v4896
    %5908 = vmatprep.subr.bf16.mxu0 %v4893
    %5909 = vmatpush1.bf16.msra.mxu0 %v4892
    %5910 = vmatprep.subr.bf16.mxu0 %v4889
    %5911 = vmatpush1.bf16.msra.mxu0 %v4888
    %5912 = vmatprep.subr.bf16.mxu0 %v4885
    %5913 = vmatpush1.bf16.msra.mxu0 %v4884
    %5914 = vmatprep.subr.bf16.mxu0 %v4881
    %5915 = vmatpush1.bf16.msra.mxu0 %v4880
    %5916 = vmatprep.subr.bf16.mxu0 %v4941
    %5917 = vmatpush2.bf16.msra.mxu0 %v4940
    %5918 = vmatprep.subr.bf16.mxu0 %v4937
    %5919 = vmatpush2.bf16.msra.mxu0 %v4936
    %5920 = vmatprep.subr.bf16.mxu0 %v4933
    %5921 = vmatpush2.bf16.msra.mxu0 %v4932
    %5922 = vmatprep.subr.bf16.mxu0 %v4929
    %5923 = vmatpush2.bf16.msra.mxu0 %v4928
    %5924 = vmatprep.subr.bf16.mxu0 %v4925
    %5925 = vmatpush2.bf16.msra.mxu0 %v4924
    %5926 = vmatprep.subr.bf16.mxu0 %v4921
    %5927 = vmatpush2.bf16.msra.mxu0 %v4920
    %5928 = vmatprep.subr.bf16.mxu0 %v4917
    %5929 = vmatpush2.bf16.msra.mxu0 %v4916
    %5930 = vmatprep.subr.bf16.mxu0 %v4913
    %5931 = vmatpush2.bf16.msra.mxu0 %v4912
    %5932 = vmatprep.mubr.bf16.mxu0 %v3269
    %5933 = vmatmul.mubr.bf16.gmra.mxu0 %v3268
    %v5934 = vpop.f32.mrf.mxu0
    %v5935 = vadd.f32 %v5882, %v5934
    %v5936 = vpop.f32.mrf.mxu0
    %v5937 = vadd.f32 %v5884, %v5936
    %v5938 = vpop.f32.mrf.mxu0
    %v5939 = vadd.f32 %v5886, %v5938
    %v5940 = vpop.f32.mrf.mxu0
    %v5941 = vadd.f32 %v5888, %v5940
    %5942 = vmatprep.mubr.bf16.mxu0 %v3281
    %5943 = vmatmul.mubr.bf16.gmra.mxu0 %v3280
    %v5944 = vpop.f32.mrf.mxu0
    %v5945 = vadd.f32 %v5892, %v5944
    %v5946 = vpop.f32.mrf.mxu0
    %v5947 = vadd.f32 %v5894, %v5946
    %v5948 = vpop.f32.mrf.mxu0
    %v5949 = vadd.f32 %v5896, %v5948
    %v5950 = vpop.f32.mrf.mxu0
    %v5951 = vadd.f32 %v5898, %v5950
    %5952 = vdwg.mxu0
    %5953 = vmatprep.subr.bf16.mxu0 %v4973
    %5954 = vmatpush1.bf16.msra.mxu0 %v4972
    %5955 = vmatprep.subr.bf16.mxu0 %v4969
    %5956 = vmatpush1.bf16.msra.mxu0 %v4968
    %5957 = vmatprep.subr.bf16.mxu0 %v4965
    %5958 = vmatpush1.bf16.msra.mxu0 %v4964
    %5959 = vmatprep.subr.bf16.mxu0 %v4961
    %5960 = vmatpush1.bf16.msra.mxu0 %v4960
    %5961 = vmatprep.subr.bf16.mxu0 %v4957
    %5962 = vmatpush1.bf16.msra.mxu0 %v4956
    %5963 = vmatprep.subr.bf16.mxu0 %v4953
    %5964 = vmatpush1.bf16.msra.mxu0 %v4952
    %5965 = vmatprep.subr.bf16.mxu0 %v4949
    %5966 = vmatpush1.bf16.msra.mxu0 %v4948
    %5967 = vmatprep.subr.bf16.mxu0 %v4945
    %5968 = vmatpush1.bf16.msra.mxu0 %v4944
    %5969 = vmatprep.subr.bf16.mxu0 %v5005
    %5970 = vmatpush2.bf16.msra.mxu0 %v5004
    %5971 = vmatprep.subr.bf16.mxu0 %v5001
    %5972 = vmatpush2.bf16.msra.mxu0 %v5000
    %5973 = vmatprep.subr.bf16.mxu0 %v4997
    %5974 = vmatpush2.bf16.msra.mxu0 %v4996
    %5975 = vmatprep.subr.bf16.mxu0 %v4993
    %5976 = vmatpush2.bf16.msra.mxu0 %v4992
    %5977 = vmatprep.subr.bf16.mxu0 %v4989
    %5978 = vmatpush2.bf16.msra.mxu0 %v4988
    %5979 = vmatprep.subr.bf16.mxu0 %v4985
    %5980 = vmatpush2.bf16.msra.mxu0 %v4984
    %5981 = vmatprep.subr.bf16.mxu0 %v4981
    %5982 = vmatpush2.bf16.msra.mxu0 %v4980
    %5983 = vmatprep.subr.bf16.mxu0 %v4977
    %5984 = vmatpush2.bf16.msra.mxu0 %v4976
    %5985 = vmatprep.mubr.bf16.mxu0 %v3271
    %5986 = vmatmul.mubr.bf16.gmra.mxu0 %v3270
    %v5987 = vpop.f32.mrf.mxu0
    %v5988 = vadd.f32 %v5935, %v5987
    %v5989 = vpop.f32.mrf.mxu0
    %v5990 = vadd.f32 %v5937, %v5989
    %v5991 = vpop.f32.mrf.mxu0
    %v5992 = vadd.f32 %v5939, %v5991
    %v5993 = vpop.f32.mrf.mxu0
    %v5994 = vadd.f32 %v5941, %v5993
    %5995 = vmatprep.mubr.bf16.mxu0 %v3283
    %5996 = vmatmul.mubr.bf16.gmra.mxu0 %v3282
    %v5997 = vpop.f32.mrf.mxu0
    %v5998 = vadd.f32 %v5945, %v5997
    %v5999 = vpop.f32.mrf.mxu0
    %v6000 = vadd.f32 %v5947, %v5999
    %v6001 = vpop.f32.mrf.mxu0
    %v6002 = vadd.f32 %v5949, %v6001
    %v6003 = vpop.f32.mrf.mxu0
    %v6004 = vadd.f32 %v5951, %v6003
    %6005 = vdwg.mxu0
    %6006 = vmatprep.subr.bf16.mxu0 %v5037
    %6007 = vmatpush1.bf16.msra.mxu0 %v5036
    %6008 = vmatprep.subr.bf16.mxu0 %v5033
    %6009 = vmatpush1.bf16.msra.mxu0 %v5032
    %6010 = vmatprep.subr.bf16.mxu0 %v5029
    %6011 = vmatpush1.bf16.msra.mxu0 %v5028
    %6012 = vmatprep.subr.bf16.mxu0 %v5025
    %6013 = vmatpush1.bf16.msra.mxu0 %v5024
    %6014 = vmatprep.subr.bf16.mxu0 %v5021
    %6015 = vmatpush1.bf16.msra.mxu0 %v5020
    %6016 = vmatprep.subr.bf16.mxu0 %v5017
    %6017 = vmatpush1.bf16.msra.mxu0 %v5016
    %6018 = vmatprep.subr.bf16.mxu0 %v5013
    %6019 = vmatpush1.bf16.msra.mxu0 %v5012
    %6020 = vmatprep.subr.bf16.mxu0 %v5009
    %6021 = vmatpush1.bf16.msra.mxu0 %v5008
    %6022 = vmatprep.subr.bf16.mxu0 %v5069
    %6023 = vmatpush2.bf16.msra.mxu0 %v5068
    %6024 = vmatprep.subr.bf16.mxu0 %v5065
    %6025 = vmatpush2.bf16.msra.mxu0 %v5064
    %6026 = vmatprep.subr.bf16.mxu0 %v5061
    %6027 = vmatpush2.bf16.msra.mxu0 %v5060
    %6028 = vmatprep.subr.bf16.mxu0 %v5057
    %6029 = vmatpush2.bf16.msra.mxu0 %v5056
    %6030 = vmatprep.subr.bf16.mxu0 %v5053
    %6031 = vmatpush2.bf16.msra.mxu0 %v5052
    %6032 = vmatprep.subr.bf16.mxu0 %v5049
    %6033 = vmatpush2.bf16.msra.mxu0 %v5048
    %6034 = vmatprep.subr.bf16.mxu0 %v5045
    %6035 = vmatpush2.bf16.msra.mxu0 %v5044
    %6036 = vmatprep.subr.bf16.mxu0 %v5041
    %6037 = vmatpush2.bf16.msra.mxu0 %v5040
    %6038 = vmatprep.mubr.bf16.mxu0 %v3273
    %6039 = vmatmul.mubr.bf16.gmra.mxu0 %v3272
    %v6040 = vpop.f32.mrf.mxu0
    %v6041 = vadd.f32 %v5988, %v6040
    %v6042 = vpop.f32.mrf.mxu0
    %v6043 = vadd.f32 %v5990, %v6042
    %v6044 = vpop.f32.mrf.mxu0
    %v6045 = vadd.f32 %v5992, %v6044
    %v6046 = vpop.f32.mrf.mxu0
    %v6047 = vadd.f32 %v5994, %v6046
    %6048 = vmatprep.mubr.bf16.mxu0 %v3285
    %6049 = vmatmul.mubr.bf16.gmra.mxu0 %v3284
    %v6050 = vpop.f32.mrf.mxu0
    %v6051 = vadd.f32 %v5998, %v6050
    %v6052 = vpop.f32.mrf.mxu0
    %v6053 = vadd.f32 %v6000, %v6052
    %v6054 = vpop.f32.mrf.mxu0
    %v6055 = vadd.f32 %v6002, %v6054
    %v6056 = vpop.f32.mrf.mxu0
    %v6057 = vadd.f32 %v6004, %v6056
    %6058 = vdwg.mxu0
    %6059 = vmatprep.subr.bf16.mxu0 %v5101
    %6060 = vmatpush1.bf16.msra.mxu0 %v5100
    %6061 = vmatprep.subr.bf16.mxu0 %v5097
    %6062 = vmatpush1.bf16.msra.mxu0 %v5096
    %6063 = vmatprep.subr.bf16.mxu0 %v5093
    %6064 = vmatpush1.bf16.msra.mxu0 %v5092
    %6065 = vmatprep.subr.bf16.mxu0 %v5089
    %6066 = vmatpush1.bf16.msra.mxu0 %v5088
    %6067 = vmatprep.subr.bf16.mxu0 %v5085
    %6068 = vmatpush1.bf16.msra.mxu0 %v5084
    %6069 = vmatprep.subr.bf16.mxu0 %v5081
    %6070 = vmatpush1.bf16.msra.mxu0 %v5080
    %6071 = vmatprep.subr.bf16.mxu0 %v5077
    %6072 = vmatpush1.bf16.msra.mxu0 %v5076
    %6073 = vmatprep.subr.bf16.mxu0 %v5073
    %6074 = vmatpush1.bf16.msra.mxu0 %v5072
    %6075 = vmatprep.subr.bf16.mxu0 0
    %6076 = vmatpush2.bf16.msra.mxu0 0
    %6077 = vmatprep.subr.bf16.mxu0 0
    %6078 = vmatpush2.bf16.msra.mxu0 0
    %6079 = vmatprep.subr.bf16.mxu0 0
    %6080 = vmatpush2.bf16.msra.mxu0 0
    %6081 = vmatprep.subr.bf16.mxu0 0
    %6082 = vmatpush2.bf16.msra.mxu0 0
    %6083 = vmatprep.subr.bf16.mxu0 0
    %6084 = vmatpush2.bf16.msra.mxu0 0
    %6085 = vmatprep.subr.bf16.mxu0 0
    %6086 = vmatpush2.bf16.msra.mxu0 0
    %6087 = vmatprep.subr.bf16.mxu0 %v5109
    %6088 = vmatpush2.bf16.msra.mxu0 %v5108
    %6089 = vmatprep.subr.bf16.mxu0 %v5105
    %6090 = vmatpush2.bf16.msra.mxu0 %v5104
    %6091 = vmatprep.mubr.bf16.mxu0 %v5471
    %6092 = vmatmul.mubr.bf16.gmra.mxu0 %v3274
    %v6093 = vpop.f32.mrf.mxu0
    %v6094 = vadd.f32 %v6041, %v6093
    %v6095 = vpop.f32.mrf.mxu0
    %v6096 = vadd.f32 %v6043, %v6095
    %v6097 = vpop.f32.mrf.mxu0
    %v6098 = vadd.f32 %v6045, %v6097
    %v6099 = vpop.f32.mrf.mxu0
    %v6100 = vadd.f32 %v6047, %v6099
    %6101 = vmatprep.mubr.bf16.mxu0 %v5474
    %6102 = vmatmul.mubr.bf16.gmra.mxu0 %v3286
    %v6103 = vpop.f32.mrf.mxu0
    %v6104 = vadd.f32 %v6051, %v6103
    %v6105 = vpop.f32.mrf.mxu0
    %v6106 = vadd.f32 %v6053, %v6105
    %v6107 = vpop.f32.mrf.mxu0
    %v6108 = vadd.f32 %v6055, %v6107
    %v6109 = vpop.f32.mrf.mxu0
    %v6110 = vadd.f32 %v6057, %v6109
    %6111 = vdwg.mxu0
    %v6112 = vmax.f32 %v5776, 0.0
    %v6113 = vmax.f32 %v5778, 0.0
    %v6114 = vmax.f32 %v6094, 0.0
    %v6115 = vmax.f32 %v6096, 0.0
    %v6116 = vmax.f32 %v5780, 0.0
    %v6117 = vmax.f32 %v5782, 0.0
    %v6118 = vmax.f32 %v6098, 0.0
    %v6119 = vmax.f32 %v6100, 0.0
    %v6120 = vmax.f32 %v5786, 0.0
    %v6121 = vmax.f32 %v5788, 0.0
    %v6122 = vmax.f32 %v6104, 0.0
    %v6123 = vmax.f32 %v6106, 0.0
    %v6124 = vmax.f32 %v5790, 0.0
    %v6125 = vmax.f32 %v5792, 0.0
    %v6126 = vmax.f32 %v6108, 0.0
    %v6127 = vmax.f32 %v6110, 0.0
    %6132 = vrot.lane.b32.xlu0 %v6112, 96
    %v6133 = vpop.permute.xlu0 %6132
    %6134 = vrot.lane.b32.xlu0 %v6116, 96
    %v6135 = vpop.permute.xlu0 %6134
    %6136 = vrot.lane.b32.xlu0 %v6120, 96
    %v6137 = vpop.permute.xlu0 %6136
    %6138 = vrot.lane.b32.xlu0 %v6124, 96
    %v6139 = vpop.permute.xlu0 %6138
    %6148 = vrot.lane.b32.xlu0 %v6113, 64
    %v6149 = vpop.permute.xlu0 %6148
    %6150 = vrot.lane.b32.xlu0 %v6117, 64
    %v6151 = vpop.permute.xlu0 %6150
    %6152 = vrot.lane.b32.xlu0 %v6121, 64
    %v6153 = vpop.permute.xlu0 %6152
    %6154 = vrot.lane.b32.xlu0 %v6125, 64
    %v6155 = vpop.permute.xlu0 %6154
    %6160 = vrot.lane.b32.xlu0 %v6113, 32
    %v6161 = vpop.permute.xlu0 %6160
    %6162 = vrot.lane.b32.xlu0 %v6117, 32
    %v6163 = vpop.permute.xlu0 %6162
    %6164 = vrot.lane.b32.xlu0 %v6121, 32
    %v6165 = vpop.permute.xlu0 %6164
    %6166 = vrot.lane.b32.xlu0 %v6125, 32
    %v6167 = vpop.permute.xlu0 %6166
    %6176 = vrot.lane.b32.xlu0 %v6114, 96
    %v6177 = vpop.permute.xlu0 %6176
    %6178 = vrot.lane.b32.xlu0 %v6118, 96
    %v6179 = vpop.permute.xlu0 %6178
    %6180 = vrot.lane.b32.xlu0 %v6122, 96
    %v6181 = vpop.permute.xlu0 %6180
    %6182 = vrot.lane.b32.xlu0 %v6126, 96
    %v6183 = vpop.permute.xlu0 %6182
    %6192 = vrot.lane.b32.xlu0 %v6115, 64
    %v6193 = vpop.permute.xlu0 %6192
    %6194 = vrot.lane.b32.xlu0 %v6119, 64
    %v6195 = vpop.permute.xlu0 %6194
    %6196 = vrot.lane.b32.xlu0 %v6123, 64
    %v6197 = vpop.permute.xlu0 %6196
    %6198 = vrot.lane.b32.xlu0 %v6127, 64
    %v6199 = vpop.permute.xlu0 %6198
    %v6204 = vsel %vm382, %v6112, %v6133
    %v6205 = vsel %vm382, %v6116, %v6135
    %v6206 = vsel %vm382, %v6120, %v6137
    %v6207 = vsel %vm382, %v6124, %v6139
    %v6208 = vsel %vm390, %v6204, %v6149
    %v6209 = vsel %vm390, %v6205, %v6151
    %v6210 = vsel %vm390, %v6206, %v6153
    %v6211 = vsel %vm390, %v6207, %v6155
    %v6212 = vsel %vm398, %v6208, %v6161
    %v6213 = vsel %vm398, %v6209, %v6163
    %v6214 = vsel %vm398, %v6210, %v6165
    %v6215 = vsel %vm398, %v6211, %v6167
    %v6216 = vsel %vm382, %v6114, %v6177
    %v6217 = vsel %vm382, %v6118, %v6179
    %v6218 = vsel %vm382, %v6122, %v6181
    %v6219 = vsel %vm382, %v6126, %v6183
    %v6220 = vsel %vm390, %v6216, %v6193
    %v6221 = vsel %vm390, %v6217, %v6195
    %v6222 = vsel %vm390, %v6218, %v6197
    %v6223 = vsel %vm390, %v6219, %v6199
    %6224 = vrot.lane.b32.xlu0 %v6112, 64
    %v6225 = vpop.permute.xlu0 %6224
    %6226 = vrot.lane.b32.xlu0 %v6116, 64
    %v6227 = vpop.permute.xlu0 %6226
    %6228 = vrot.lane.b32.xlu0 %v6120, 64
    %v6229 = vpop.permute.xlu0 %6228
    %6230 = vrot.lane.b32.xlu0 %v6124, 64
    %v6231 = vpop.permute.xlu0 %6230
    %6236 = vrot.lane.b32.xlu0 %v6114, 64
    %v6237 = vpop.permute.xlu0 %6236
    %6238 = vrot.lane.b32.xlu0 %v6118, 64
    %v6239 = vpop.permute.xlu0 %6238
    %6240 = vrot.lane.b32.xlu0 %v6122, 64
    %v6241 = vpop.permute.xlu0 %6240
    %6242 = vrot.lane.b32.xlu0 %v6126, 64
    %v6243 = vpop.permute.xlu0 %6242
    %6248 = vrot.lane.b32.xlu0 %v6115, 32
    %v6249 = vpop.permute.xlu0 %6248
    %6250 = vrot.lane.b32.xlu0 %v6119, 32
    %v6251 = vpop.permute.xlu0 %6250
    %6252 = vrot.lane.b32.xlu0 %v6123, 32
    %v6253 = vpop.permute.xlu0 %6252
    %6254 = vrot.lane.b32.xlu0 %v6127, 32
    %v6255 = vpop.permute.xlu0 %6254
    %v6260 = vsel %vm382, %v6133, %v6225
    %v6261 = vsel %vm382, %v6135, %v6227
    %v6262 = vsel %vm382, %v6137, %v6229
    %v6263 = vsel %vm382, %v6139, %v6231
    %v6264 = vsel %vm390, %v6260, %v6161
    %v6265 = vsel %vm390, %v6261, %v6163
    %v6266 = vsel %vm390, %v6262, %v6165
    %v6267 = vsel %vm390, %v6263, %v6167
    %v6268 = vsel %vm398, %v6264, %v6113
    %v6269 = vsel %vm398, %v6265, %v6117
    %v6270 = vsel %vm398, %v6266, %v6121
    %v6271 = vsel %vm398, %v6267, %v6125
    %v6272 = vsel %vm382, %v6177, %v6237
    %v6273 = vsel %vm382, %v6179, %v6239
    %v6274 = vsel %vm382, %v6181, %v6241
    %v6275 = vsel %vm382, %v6183, %v6243
    %v6276 = vsel %vm390, %v6272, %v6249
    %v6277 = vsel %vm390, %v6273, %v6251
    %v6278 = vsel %vm390, %v6274, %v6253
    %v6279 = vsel %vm390, %v6275, %v6255
    %v6280 = vmax.f32 %v6212, %v6268
    %v6281 = vmax.f32 %v6220, %v6276
    %v6282 = vmax.f32 %v6213, %v6269
    %v6283 = vmax.f32 %v6221, %v6277
    %v6284 = vmax.f32 %v6214, %v6270
    %v6285 = vmax.f32 %v6222, %v6278
    %v6286 = vmax.f32 %v6215, %v6271
    %v6287 = vmax.f32 %v6223, %v6279
    %v6296 = vcombine.low %v6280, %v6281
    %v6297 = vcombine.high %v6280, %v6281
    %v6299 = vunpack.c.l.s4 1983009808
    %v6300 = vunpack.c.0.s8 %v6299
    %v6301 = vlaneseq
    %v6302 = vshrl.u32 %v6301, 7
    %v6303 = vsub.s32 %v6300, %v6302
    %v6304 = vrot.slane %v6296, %v6303
    %v6306 = vunpack.c.l.s4 1983009808
    %v6307 = vunpack.c.0.s8 %v6306
    %v6308 = vlaneseq
    %v6309 = vshrl.u32 %v6308, 7
    %v6310 = vsub.s32 %v6307, %v6309
    %v6311 = vrot.slane %v6297, %v6310
    %v6312 = vcombine.high %v6304, %v6304
    %v6313 = vcombine.high %v6311, %v6311
    %v6314 = vcombine.low %v6282, %v6283
    %v6315 = vcombine.high %v6282, %v6283
    %v6317 = vunpack.c.l.s4 1983009808
    %v6318 = vunpack.c.0.s8 %v6317
    %v6319 = vlaneseq
    %v6320 = vshrl.u32 %v6319, 7
    %v6321 = vsub.s32 %v6318, %v6320
    %v6322 = vrot.slane %v6314, %v6321
    %v6324 = vunpack.c.l.s4 1983009808
    %v6325 = vunpack.c.0.s8 %v6324
    %v6326 = vlaneseq
    %v6327 = vshrl.u32 %v6326, 7
    %v6328 = vsub.s32 %v6325, %v6327
    %v6329 = vrot.slane %v6315, %v6328
    %v6330 = vcombine.high %v6322, %v6322
    %v6331 = vcombine.high %v6329, %v6329
    %v6332 = vcombine.low %v6284, %v6285
    %v6333 = vcombine.high %v6284, %v6285
    %v6335 = vunpack.c.l.s4 1983009808
    %v6336 = vunpack.c.0.s8 %v6335
    %v6337 = vlaneseq
    %v6338 = vshrl.u32 %v6337, 7
    %v6339 = vsub.s32 %v6336, %v6338
    %v6340 = vrot.slane %v6332, %v6339
    %v6342 = vunpack.c.l.s4 1983009808
    %v6343 = vunpack.c.0.s8 %v6342
    %v6344 = vlaneseq
    %v6345 = vshrl.u32 %v6344, 7
    %v6346 = vsub.s32 %v6343, %v6345
    %v6347 = vrot.slane %v6333, %v6346
    %v6348 = vcombine.high %v6340, %v6340
    %v6349 = vcombine.high %v6347, %v6347
    %v6350 = vcombine.low %v6286, %v6287
    %v6352 = vunpack.c.l.s4 1983009808
    %v6353 = vunpack.c.0.s8 %v6352
    %v6354 = vlaneseq
    %v6355 = vshrl.u32 %v6354, 7
    %v6356 = vsub.s32 %v6353, %v6355
    %v6357 = vrot.slane %v6350, %v6356
    %v6358 = vcombine.high %v6357, %v6357
    %v6360 = vunpack.c.l.s4 1983009808
    %v6361 = vunpack.c.0.s8 %v6360
    %v6362 = vlaneseq
    %v6363 = vshrl.u32 %v6362, 7
    %v6364 = vsub.s32 %v6361, %v6363
    %v6365 = vrot.slane %v6304, %v6364
    %v6366 = vcombine.high %v6365, %v6365
    %v6368 = vunpack.c.l.s4 1983009808
    %v6369 = vunpack.c.0.s8 %v6368
    %v6370 = vlaneseq
    %v6371 = vshrl.u32 %v6370, 7
    %v6372 = vsub.s32 %v6369, %v6371
    %v6373 = vrot.slane %v6312, %v6372
    %v6374 = vcombine.high %v6373, %v6373
    %v6376 = vunpack.c.l.s4 1983009808
    %v6377 = vunpack.c.0.s8 %v6376
    %v6378 = vlaneseq
    %v6379 = vshrl.u32 %v6378, 7
    %v6380 = vsub.s32 %v6377, %v6379
    %v6381 = vrot.slane %v6311, %v6380
    %v6382 = vcombine.high %v6381, %v6381
    %v6384 = vunpack.c.l.s4 1983009808
    %v6385 = vunpack.c.0.s8 %v6384
    %v6386 = vlaneseq
    %v6387 = vshrl.u32 %v6386, 7
    %v6388 = vsub.s32 %v6385, %v6387
    %v6389 = vrot.slane %v6313, %v6388
    %v6390 = vcombine.high %v6389, %v6389
    %v6392 = vunpack.c.l.s4 1983009808
    %v6393 = vunpack.c.0.s8 %v6392
    %v6394 = vlaneseq
    %v6395 = vshrl.u32 %v6394, 7
    %v6396 = vsub.s32 %v6393, %v6395
    %v6397 = vrot.slane %v6322, %v6396
    %v6398 = vcombine.high %v6397, %v6397
    %v6400 = vunpack.c.l.s4 1983009808
    %v6401 = vunpack.c.0.s8 %v6400
    %v6402 = vlaneseq
    %v6403 = vshrl.u32 %v6402, 7
    %v6404 = vsub.s32 %v6401, %v6403
    %v6405 = vrot.slane %v6330, %v6404
    %v6406 = vcombine.high %v6405, %v6405
    %v6408 = vunpack.c.l.s4 1983009808
    %v6409 = vunpack.c.0.s8 %v6408
    %v6410 = vlaneseq
    %v6411 = vshrl.u32 %v6410, 7
    %v6412 = vsub.s32 %v6409, %v6411
    %v6413 = vrot.slane %v6329, %v6412
    %v6414 = vcombine.high %v6413, %v6413
    %v6416 = vunpack.c.l.s4 1983009808
    %v6417 = vunpack.c.0.s8 %v6416
    %v6418 = vlaneseq
    %v6419 = vshrl.u32 %v6418, 7
    %v6420 = vsub.s32 %v6417, %v6419
    %v6421 = vrot.slane %v6331, %v6420
    %v6422 = vcombine.high %v6421, %v6421
    %v6424 = vunpack.c.l.s4 1983009808
    %v6425 = vunpack.c.0.s8 %v6424
    %v6426 = vlaneseq
    %v6427 = vshrl.u32 %v6426, 7
    %v6428 = vsub.s32 %v6425, %v6427
    %v6429 = vrot.slane %v6340, %v6428
    %v6430 = vcombine.high %v6429, %v6429
    %v6432 = vunpack.c.l.s4 1983009808
    %v6433 = vunpack.c.0.s8 %v6432
    %v6434 = vlaneseq
    %v6435 = vshrl.u32 %v6434, 7
    %v6436 = vsub.s32 %v6433, %v6435
    %v6437 = vrot.slane %v6348, %v6436
    %v6438 = vcombine.high %v6437, %v6437
    %v6440 = vunpack.c.l.s4 1983009808
    %v6441 = vunpack.c.0.s8 %v6440
    %v6442 = vlaneseq
    %v6443 = vshrl.u32 %v6442, 7
    %v6444 = vsub.s32 %v6441, %v6443
    %v6445 = vrot.slane %v6347, %v6444
    %v6446 = vcombine.high %v6445, %v6445
    %v6448 = vunpack.c.l.s4 1983009808
    %v6449 = vunpack.c.0.s8 %v6448
    %v6450 = vlaneseq
    %v6451 = vshrl.u32 %v6450, 7
    %v6452 = vsub.s32 %v6449, %v6451
    %v6453 = vrot.slane %v6349, %v6452
    %v6454 = vcombine.high %v6453, %v6453
    %v6456 = vunpack.c.l.s4 1983009808
    %v6457 = vunpack.c.0.s8 %v6456
    %v6458 = vlaneseq
    %v6459 = vshrl.u32 %v6458, 7
    %v6460 = vsub.s32 %v6457, %v6459
    %v6461 = vrot.slane %v6357, %v6460
    %v6462 = vcombine.high %v6461, %v6461
    %v6464 = vunpack.c.l.s4 1983009808
    %v6465 = vunpack.c.0.s8 %v6464
    %v6466 = vlaneseq
    %v6467 = vshrl.u32 %v6466, 7
    %v6468 = vsub.s32 %v6465, %v6467
    %v6469 = vrot.slane %v6358, %v6468
    %v6470 = vcombine.high %v6469, %v6469
    %v6499 = vsel %vm44, %v6365, -inf
    %v6500 = vrot.slane %v6499, 4
    %v6501 = vmax.f32 %v6499, %v6500
    %v6502 = vrot.slane %v6501, 2
    %v6503 = vmax.f32 %v6501, %v6502
    %v6504 = vrot.slane %v6503, 1
    %v6505 = vmax.f32 %v6503, %v6504
    %v6506 = vsel %vm1814, %v6366, -inf
    %v6507 = vrot.slane %v6506, 4
    %v6508 = vmax.f32 %v6506, %v6507
    %v6509 = vrot.slane %v6508, 2
    %v6510 = vmax.f32 %v6508, %v6509
    %v6511 = vrot.slane %v6510, 1
    %v6512 = vmax.f32 %v6510, %v6511
    %v6513 = vsel %vm44, %v6373, -inf
    %v6514 = vrot.slane %v6513, 4
    %v6515 = vmax.f32 %v6513, %v6514
    %v6516 = vrot.slane %v6515, 2
    %v6517 = vmax.f32 %v6515, %v6516
    %v6518 = vrot.slane %v6517, 1
    %v6519 = vmax.f32 %v6517, %v6518
    %v6520 = vsel %vm1814, %v6374, -inf
    %v6521 = vrot.slane %v6520, 4
    %v6522 = vmax.f32 %v6520, %v6521
    %v6523 = vrot.slane %v6522, 2
    %v6524 = vmax.f32 %v6522, %v6523
    %v6525 = vrot.slane %v6524, 1
    %v6526 = vmax.f32 %v6524, %v6525
    %v6527 = vsel %vm44, %v6381, -inf
    %v6528 = vrot.slane %v6527, 4
    %v6529 = vmax.f32 %v6527, %v6528
    %v6530 = vrot.slane %v6529, 2
    %v6531 = vmax.f32 %v6529, %v6530
    %v6532 = vrot.slane %v6531, 1
    %v6533 = vmax.f32 %v6531, %v6532
    %v6534 = vsel %vm1814, %v6382, -inf
    %v6535 = vrot.slane %v6534, 4
    %v6536 = vmax.f32 %v6534, %v6535
    %v6537 = vrot.slane %v6536, 2
    %v6538 = vmax.f32 %v6536, %v6537
    %v6539 = vrot.slane %v6538, 1
    %v6540 = vmax.f32 %v6538, %v6539
    %v6541 = vsel %vm44, %v6389, -inf
    %v6542 = vrot.slane %v6541, 4
    %v6543 = vmax.f32 %v6541, %v6542
    %v6544 = vrot.slane %v6543, 2
    %v6545 = vmax.f32 %v6543, %v6544
    %v6546 = vrot.slane %v6545, 1
    %v6547 = vmax.f32 %v6545, %v6546
    %v6548 = vsel %vm1814, %v6390, -inf
    %v6549 = vrot.slane %v6548, 4
    %v6550 = vmax.f32 %v6548, %v6549
    %v6551 = vrot.slane %v6550, 2
    %v6552 = vmax.f32 %v6550, %v6551
    %v6553 = vrot.slane %v6552, 1
    %v6554 = vmax.f32 %v6552, %v6553
    %v6555 = vsel %vm44, %v6397, -inf
    %v6556 = vrot.slane %v6555, 4
    %v6557 = vmax.f32 %v6555, %v6556
    %v6558 = vrot.slane %v6557, 2
    %v6559 = vmax.f32 %v6557, %v6558
    %v6560 = vrot.slane %v6559, 1
    %v6561 = vmax.f32 %v6559, %v6560
    %v6562 = vsel %vm1814, %v6398, -inf
    %v6563 = vrot.slane %v6562, 4
    %v6564 = vmax.f32 %v6562, %v6563
    %v6565 = vrot.slane %v6564, 2
    %v6566 = vmax.f32 %v6564, %v6565
    %v6567 = vrot.slane %v6566, 1
    %v6568 = vmax.f32 %v6566, %v6567
    %v6569 = vsel %vm44, %v6405, -inf
    %v6570 = vrot.slane %v6569, 4
    %v6571 = vmax.f32 %v6569, %v6570
    %v6572 = vrot.slane %v6571, 2
    %v6573 = vmax.f32 %v6571, %v6572
    %v6574 = vrot.slane %v6573, 1
    %v6575 = vmax.f32 %v6573, %v6574
    %v6576 = vsel %vm1814, %v6406, -inf
    %v6577 = vrot.slane %v6576, 4
    %v6578 = vmax.f32 %v6576, %v6577
    %v6579 = vrot.slane %v6578, 2
    %v6580 = vmax.f32 %v6578, %v6579
    %v6581 = vrot.slane %v6580, 1
    %v6582 = vmax.f32 %v6580, %v6581
    %v6583 = vsel %vm44, %v6413, -inf
    %v6584 = vrot.slane %v6583, 4
    %v6585 = vmax.f32 %v6583, %v6584
    %v6586 = vrot.slane %v6585, 2
    %v6587 = vmax.f32 %v6585, %v6586
    %v6588 = vrot.slane %v6587, 1
    %v6589 = vmax.f32 %v6587, %v6588
    %v6590 = vsel %vm1814, %v6414, -inf
    %v6591 = vrot.slane %v6590, 4
    %v6592 = vmax.f32 %v6590, %v6591
    %v6593 = vrot.slane %v6592, 2
    %v6594 = vmax.f32 %v6592, %v6593
    %v6595 = vrot.slane %v6594, 1
    %v6596 = vmax.f32 %v6594, %v6595
    %v6597 = vsel %vm44, %v6421, -inf
    %v6598 = vrot.slane %v6597, 4
    %v6599 = vmax.f32 %v6597, %v6598
    %v6600 = vrot.slane %v6599, 2
    %v6601 = vmax.f32 %v6599, %v6600
    %v6602 = vrot.slane %v6601, 1
    %v6603 = vmax.f32 %v6601, %v6602
    %v6604 = vsel %vm1814, %v6422, -inf
    %v6605 = vrot.slane %v6604, 4
    %v6606 = vmax.f32 %v6604, %v6605
    %v6607 = vrot.slane %v6606, 2
    %v6608 = vmax.f32 %v6606, %v6607
    %v6609 = vrot.slane %v6608, 1
    %v6610 = vmax.f32 %v6608, %v6609
    %v6611 = vsel %vm44, %v6429, -inf
    %v6612 = vrot.slane %v6611, 4
    %v6613 = vmax.f32 %v6611, %v6612
    %v6614 = vrot.slane %v6613, 2
    %v6615 = vmax.f32 %v6613, %v6614
    %v6616 = vrot.slane %v6615, 1
    %v6617 = vmax.f32 %v6615, %v6616
    %v6618 = vsel %vm1814, %v6430, -inf
    %v6619 = vrot.slane %v6618, 4
    %v6620 = vmax.f32 %v6618, %v6619
    %v6621 = vrot.slane %v6620, 2
    %v6622 = vmax.f32 %v6620, %v6621
    %v6623 = vrot.slane %v6622, 1
    %v6624 = vmax.f32 %v6622, %v6623
    %v6625 = vsel %vm44, %v6437, -inf
    %v6626 = vrot.slane %v6625, 4
    %v6627 = vmax.f32 %v6625, %v6626
    %v6628 = vrot.slane %v6627, 2
    %v6629 = vmax.f32 %v6627, %v6628
    %v6630 = vrot.slane %v6629, 1
    %v6631 = vmax.f32 %v6629, %v6630
    %v6632 = vsel %vm1814, %v6438, -inf
    %v6633 = vrot.slane %v6632, 4
    %v6634 = vmax.f32 %v6632, %v6633
    %v6635 = vrot.slane %v6634, 2
    %v6636 = vmax.f32 %v6634, %v6635
    %v6637 = vrot.slane %v6636, 1
    %v6638 = vmax.f32 %v6636, %v6637
    %v6639 = vsel %vm44, %v6445, -inf
    %v6640 = vrot.slane %v6639, 4
    %v6641 = vmax.f32 %v6639, %v6640
    %v6642 = vrot.slane %v6641, 2
    %v6643 = vmax.f32 %v6641, %v6642
    %v6644 = vrot.slane %v6643, 1
    %v6645 = vmax.f32 %v6643, %v6644
    %v6646 = vsel %vm1814, %v6446, -inf
    %v6647 = vrot.slane %v6646, 4
    %v6648 = vmax.f32 %v6646, %v6647
    %v6649 = vrot.slane %v6648, 2
    %v6650 = vmax.f32 %v6648, %v6649
    %v6651 = vrot.slane %v6650, 1
    %v6652 = vmax.f32 %v6650, %v6651
    %v6653 = vsel %vm44, %v6453, -inf
    %v6654 = vrot.slane %v6653, 4
    %v6655 = vmax.f32 %v6653, %v6654
    %v6656 = vrot.slane %v6655, 2
    %v6657 = vmax.f32 %v6655, %v6656
    %v6658 = vrot.slane %v6657, 1
    %v6659 = vmax.f32 %v6657, %v6658
    %v6660 = vsel %vm1814, %v6454, -inf
    %v6661 = vrot.slane %v6660, 4
    %v6662 = vmax.f32 %v6660, %v6661
    %v6663 = vrot.slane %v6662, 2
    %v6664 = vmax.f32 %v6662, %v6663
    %v6665 = vrot.slane %v6664, 1
    %v6666 = vmax.f32 %v6664, %v6665
    %v6667 = vsel %vm44, %v6461, -inf
    %v6668 = vrot.slane %v6667, 4
    %v6669 = vmax.f32 %v6667, %v6668
    %v6670 = vrot.slane %v6669, 2
    %v6671 = vmax.f32 %v6669, %v6670
    %v6672 = vrot.slane %v6671, 1
    %v6673 = vmax.f32 %v6671, %v6672
    %v6674 = vsel %vm1814, %v6462, -inf
    %v6675 = vrot.slane %v6674, 4
    %v6676 = vmax.f32 %v6674, %v6675
    %v6677 = vrot.slane %v6676, 2
    %v6678 = vmax.f32 %v6676, %v6677
    %v6679 = vrot.slane %v6678, 1
    %v6680 = vmax.f32 %v6678, %v6679
    %v6681 = vsel %vm44, %v6469, -inf
    %v6682 = vrot.slane %v6681, 4
    %v6683 = vmax.f32 %v6681, %v6682
    %v6684 = vrot.slane %v6683, 2
    %v6685 = vmax.f32 %v6683, %v6684
    %v6686 = vrot.slane %v6685, 1
    %v6687 = vmax.f32 %v6685, %v6686
    %v6688 = vsel %vm1814, %v6470, -inf
    %v6689 = vrot.slane %v6688, 4
    %v6690 = vmax.f32 %v6688, %v6689
    %v6691 = vrot.slane %v6690, 2
    %v6692 = vmax.f32 %v6690, %v6691
    %v6693 = vrot.slane %v6692, 1
    %v6694 = vmax.f32 %v6692, %v6693
    %v6699 = vsel %vm2256, %v6603, %v6505
    %v6700 = vsel %vm2256, %v6610, %v6512
    %v6707 = vsel %vm2256, %v6617, %v6519
    %v6708 = vsel %vm2256, %v6624, %v6526
    %6709 = vrot.lane.b32.xlu0 %v6707, 96
    %v6710 = vpop.permute.xlu0 %6709
    %6711 = vrot.lane.b32.xlu0 %v6708, 96
    %v6712 = vpop.permute.xlu0 %6711
    %v6713 = vsel %vm398, %v6710, %v6712
    %v6721 = vsel %vm2256, %v6631, %v6533
    %v6722 = vsel %vm2256, %v6638, %v6540
    %6723 = vrot.lane.b32.xlu0 %v6721, 64
    %v6724 = vpop.permute.xlu0 %6723
    %6725 = vrot.lane.b32.xlu0 %v6722, 64
    %v6726 = vpop.permute.xlu0 %6725
    %v6727 = vsel %vm390, %v6724, %v6726
    %v6735 = vsel %vm2256, %v6645, %v6547
    %v6736 = vsel %vm2256, %v6652, %v6554
    %6737 = vrot.lane.b32.xlu0 %v6735, 32
    %v6738 = vpop.permute.xlu0 %6737
    %6739 = vrot.lane.b32.xlu0 %v6736, 32
    %v6740 = vpop.permute.xlu0 %6739
    %v6741 = vsel %vm382, %v6738, %v6740
    %v6748 = vsel %vm2256, %v6659, %v6561
    %v6749 = vsel %vm2256, %v6666, %v6568
    %v6756 = vsel %vm2256, %v6673, %v6575
    %v6757 = vsel %vm2256, %v6680, %v6582
    %6758 = vrot.lane.b32.xlu0 %v6756, 96
    %v6759 = vpop.permute.xlu0 %6758
    %6760 = vrot.lane.b32.xlu0 %v6757, 96
    %v6761 = vpop.permute.xlu0 %6760
    %v6762 = vsel %vm398, %v6759, %v6761
    %v6770 = vsel %vm2256, %v6687, %v6589
    %v6771 = vsel %vm2256, %v6694, %v6596
    %6772 = vrot.lane.b32.xlu0 %v6770, 64
    %v6773 = vpop.permute.xlu0 %6772
    %6774 = vrot.lane.b32.xlu0 %v6771, 64
    %v6775 = vpop.permute.xlu0 %6774
    %v6776 = vsel %vm390, %v6773, %v6775
    %v6780 = vsel %vm398, %v6700, %v6710
    %v6781 = vsel %vm390, %v6712, %v6724
    %v6782 = vsel %vm382, %v6726, %v6738
    %v6783 = vsel %vm398, %v6749, %v6759
    %v6784 = vsel %vm390, %v6761, %v6773
    %v6785 = vpack.c.bf16 %v6699, %v6699
    %v6786 = vpack.c.bf16 %v6780, %v6780
    %v6787 = vpack.c.bf16 %v6713, %v6713
    %v6788 = vpack.c.bf16 %v6781, %v6781
    %v6789 = vpack.c.bf16 %v6727, %v6727
    %v6790 = vpack.c.bf16 %v6782, %v6782
    %v6791 = vpack.c.bf16 %v6741, %v6741
    %v6792 = vpack.c.bf16 %v6748, %v6748
    %v6793 = vpack.c.bf16 %v6783, %v6783
    %v6794 = vpack.c.bf16 %v6762, %v6762
    %v6795 = vpack.c.bf16 %v6784, %v6784
    %v6796 = vpack.c.bf16 %v6776, %v6776
    %v6797 = vpack.c.bf16 %v6775, %v6775
    %v6798 = vld [vmem:[%s5] sm:$0xf]
    %v6799 = vld [vmem:[%s5 + $0x4] sm:$0xf]
    %v6800 = vld [vmem:[%s5 + $0x8] sm:$0xf]
    %v6801 = vld [vmem:[%s5 + $0xc] sm:$0xf]
    %v6802 = vld [vmem:[%s5 + $0x10] sm:$0xf]
    %v6803 = vld [vmem:[%s5 + $0x14] sm:$0xf]
    %v6804 = vld [vmem:[%s5 + $0x18] sm:$0xf]
    %v6805 = vld [vmem:[%s5 + $0x1c] sm:$0xf]
    %v6806 = vld [vmem:[%s5 + $0x20] sm:$0xf]
    %v6807 = vld [vmem:[%s5 + $0x24] sm:$0xf]
    %v6808 = vld [vmem:[%s5 + $0x28] sm:$0xf]
    %v6809 = vld [vmem:[%s5 + $0x2c] sm:$0xf]
    %v6810 = vld [vmem:[%s5 + $0x30] sm:$0xf]
    %v6811 = vld [vmem:[%s5 + $0x34] sm:$0xf]
    %v6812 = vld [vmem:[%s5 + $0x38] sm:$0xf]
    %v6813 = vld [vmem:[%s5 + $0x3c] sm:$0xf]
    %v6814 = vld [vmem:[%s5 + $0x40] sm:$0xf]
    %v6815 = vld [vmem:[%s5 + $0x44] sm:$0xf]
    %v6816 = vld [vmem:[%s5 + $0x48] sm:$0xf]
    %v6817 = vld [vmem:[%s5 + $0x4c] sm:$0xf]
    %v6818 = vld [vmem:[%s5 + $0x50] sm:$0xf]
    %v6819 = vld [vmem:[%s5 + $0x54] sm:$0xf]
    %v6820 = vld [vmem:[%s5 + $0x58] sm:$0xf]
    %v6821 = vld [vmem:[%s5 + $0x5c] sm:$0xf]
    %v6822 = vld [vmem:[%s5 + $0x60] sm:$0xf]
    %v6823 = vld [vmem:[%s5 + $0x64] sm:$0xf]
    %v6824 = vld [vmem:[%s5 + $0x68] sm:$0xf]
    %v6825 = vld [vmem:[%s5 + $0x6c] sm:$0xf]
    %v6826 = vld [vmem:[%s5 + $0x70] sm:$0xf]
    %v6827 = vld [vmem:[%s5 + $0x74] sm:$0xf]
    %v6828 = vld [vmem:[%s5 + $0x78] sm:$0xf]
    %v6829 = vld [vmem:[%s5 + $0x7c] sm:$0xf]
    %v6830 = vld [vmem:[%s5 + $0x80] sm:$0xf]
    %v6831 = vld [vmem:[%s5 + $0x84] sm:$0xf]
    %v6832 = vld [vmem:[%s5 + $0x88] sm:$0xf]
    %v6833 = vld [vmem:[%s5 + $0x8c] sm:$0xf]
    %v6834 = vld [vmem:[%s5 + $0x90] sm:$0xf]
    %v6835 = vld [vmem:[%s5 + $0x94] sm:$0xf]
    %v6836 = vld [vmem:[%s5 + $0x98] sm:$0xf]
    %v6837 = vld [vmem:[%s5 + $0x9c] sm:$0xf]
    %v6838 = vld [vmem:[%s5 + $0xa0] sm:$0xf]
    %v6839 = vld [vmem:[%s5 + $0xa4] sm:$0xf]
    %v6840 = vld [vmem:[%s5 + $0xa8] sm:$0xf]
    %v6841 = vld [vmem:[%s5 + $0xac] sm:$0xf]
    %v6842 = vld [vmem:[%s5 + $0xb0] sm:$0xf]
    %v6843 = vld [vmem:[%s5 + $0xb4] sm:$0xf]
    %v6844 = vld [vmem:[%s5 + $0xb8] sm:$0xf]
    %v6845 = vld [vmem:[%s5 + $0xbc] sm:$0xf]
    %v6846 = vld [vmem:[%s5 + $0xc0] sm:$0xf]
    %v6847 = vld [vmem:[%s5 + $0xc4] sm:$0xf]
    %v6848 = vld [vmem:[%s5 + $0xc8] sm:$0xf]
    %v6849 = vld [vmem:[%s5 + $0xcc] sm:$0xf]
    %v6850 = vld [vmem:[%s5 + $0xd0] sm:$0xf]
    %v6851 = vld [vmem:[%s5 + $0xd4] sm:$0xf]
    %v6852 = vld [vmem:[%s5 + $0xd8] sm:$0xf]
    %v6853 = vld [vmem:[%s5 + $0xdc] sm:$0xf]
    %v6854 = vld [vmem:[%s5 + $0xe0] sm:$0xf]
    %v6855 = vld [vmem:[%s5 + $0xe4] sm:$0xf]
    %v6856 = vld [vmem:[%s5 + $0xe8] sm:$0xf]
    %v6857 = vld [vmem:[%s5 + $0xec] sm:$0xf]
    %v6858 = vld [vmem:[%s5 + $0xf0] sm:$0xf]
    %v6859 = vld [vmem:[%s5 + $0xf4] sm:$0xf]
    %v6860 = vld [vmem:[%s5 + $0xf8] sm:$0xf]
    %v6861 = vld [vmem:[%s5 + $0xfc] sm:$0xf]
    %v6862 = vld [vmem:[%s5 + $0x100] sm:$0xf]
    %v6863 = vld [vmem:[%s5 + $0x104] sm:$0xf]
    %v6864 = vld [vmem:[%s5 + $0x108] sm:$0xf]
    %v6865 = vld [vmem:[%s5 + $0x10c] sm:$0xf]
    %v6866 = vld [vmem:[%s5 + $0x110] sm:$0xf]
    %v6867 = vld [vmem:[%s5 + $0x114] sm:$0xf]
    %v6868 = vld [vmem:[%s5 + $0x118] sm:$0xf]
    %v6869 = vld [vmem:[%s5 + $0x11c] sm:$0xf]
    %v6870 = vld [vmem:[%s5 + $0x120] sm:$0xf]
    %v6871 = vld [vmem:[%s5 + $0x124] sm:$0xf]
    %v6872 = vld [vmem:[%s5 + $0x128] sm:$0xf]
    %v6873 = vld [vmem:[%s5 + $0x12c] sm:$0xf]
    %v6874 = vld [vmem:[%s5 + $0x130] sm:$0xf]
    %v6875 = vld [vmem:[%s5 + $0x134] sm:$0xf]
    %v6876 = vld [vmem:[%s5 + $0x138] sm:$0xf]
    %v6877 = vld [vmem:[%s5 + $0x13c] sm:$0xf]
    %v6878 = vld [vmem:[%s5 + $0x140] sm:$0xf]
    %v6879 = vld [vmem:[%s5 + $0x144] sm:$0xf]
    %v6880 = vld [vmem:[%s5 + $0x148] sm:$0xf]
    %v6881 = vld [vmem:[%s5 + $0x14c] sm:$0xf]
    %v6882 = vld [vmem:[%s5 + $0x150] sm:$0xf]
    %v6883 = vld [vmem:[%s5 + $0x154] sm:$0xf]
    %v6884 = vld [vmem:[%s5 + $0x158] sm:$0xf]
    %v6885 = vld [vmem:[%s5 + $0x15c] sm:$0xf]
    %v6886 = vld [vmem:[%s5 + $0x160] sm:$0xf]
    %v6887 = vld [vmem:[%s5 + $0x164] sm:$0xf]
    %v6888 = vld [vmem:[%s5 + $0x168] sm:$0xf]
    %v6889 = vld [vmem:[%s5 + $0x16c] sm:$0xf]
    %v6890 = vld [vmem:[%s5 + $0x170] sm:$0xf]
    %v6891 = vld [vmem:[%s5 + $0x174] sm:$0xf]
    %v6892 = vld [vmem:[%s5 + $0x178] sm:$0xf]
    %v6893 = vld [vmem:[%s5 + $0x17c] sm:$0xf]
    %v6894 = vld [vmem:[%s5 + $0x180] sm:$0xf]
    %v6895 = vld [vmem:[%s5 + $0x184] sm:$0xf]
    %v6896 = vld [vmem:[%s5 + $0x188] sm:$0xf]
    %v6897 = vld [vmem:[%s5 + $0x18c] sm:$0xf]
    %v6898 = vld [vmem:[%s5 + $0x190] sm:$0xf]
    %v6899 = vld [vmem:[%s5 + $0x194] sm:$0xf]
    %v6900 = vld [vmem:[%s5 + $0x198] sm:$0xf]
    %v6901 = vld [vmem:[%s5 + $0x19c] sm:$0xf]
    %v6902 = vld [vmem:[%s5 + $0x1a0] sm:$0xf]
    %v6903 = vld [vmem:[%s5 + $0x1a4] sm:$0xf]
    %v6904 = vld [vmem:[%s5 + $0x1a8] sm:$0xf]
    %v6905 = vld [vmem:[%s5 + $0x1ac] sm:$0xf]
    %v6906 = vld [vmem:[%s5 + $0x1b0] sm:$0xf]
    %v6907 = vld [vmem:[%s5 + $0x1b4] sm:$0xf]
    %v6908 = vld [vmem:[%s5 + $0x1b8] sm:$0xf]
    %v6909 = vld [vmem:[%s5 + $0x1bc] sm:$0xf]
    %v6910 = vld [vmem:[%s5 + $0x1c0] sm:$0xf]
    %v6911 = vld [vmem:[%s5 + $0x1c4] sm:$0xf]
    %v6912 = vld [vmem:[%s5 + $0x1c8] sm:$0xf]
    %v6913 = vld [vmem:[%s5 + $0x1cc] sm:$0xf]
    %v6914 = vld [vmem:[%s5 + $0x1d0] sm:$0xf]
    %v6915 = vld [vmem:[%s5 + $0x1d4] sm:$0xf]
    %v6916 = vld [vmem:[%s5 + $0x1d8] sm:$0xf]
    %v6917 = vld [vmem:[%s5 + $0x1dc] sm:$0xf]
    %v6918 = vld [vmem:[%s5 + $0x1e0] sm:$0xf]
    %v6919 = vld [vmem:[%s5 + $0x1e4] sm:$0xf]
    %v6920 = vld [vmem:[%s5 + $0x1e8] sm:$0xf]
    %v6921 = vld [vmem:[%s5 + $0x1ec] sm:$0xf]
    %v6922 = vld [vmem:[%s5 + $0x1f0] sm:$0xf]
    %v6923 = vld [vmem:[%s5 + $0x1f4] sm:$0xf]
    %v6924 = vld [vmem:[%s5 + $0x1f8] sm:$0xf]
    %v6925 = vld [vmem:[%s5 + $0x1fc] sm:$0xf]
    %v6926 = vld [vmem:[%s5 + $0x200] sm:$0xf]
    %v6927 = vld [vmem:[%s5 + $0x204] sm:$0xf]
    %v6928 = vld [vmem:[%s5 + $0x208] sm:$0xf]
    %v6929 = vld [vmem:[%s5 + $0x20c] sm:$0xf]
    %v6930 = vld [vmem:[%s5 + $0x210] sm:$0xf]
    %v6931 = vld [vmem:[%s5 + $0x214] sm:$0xf]
    %v6932 = vld [vmem:[%s5 + $0x218] sm:$0xf]
    %v6933 = vld [vmem:[%s5 + $0x21c] sm:$0xf]
    %v6934 = vld [vmem:[%s5 + $0x220] sm:$0xf]
    %v6935 = vld [vmem:[%s5 + $0x224] sm:$0xf]
    %v6936 = vld [vmem:[%s5 + $0x228] sm:$0xf]
    %v6937 = vld [vmem:[%s5 + $0x22c] sm:$0xf]
    %v6938 = vld [vmem:[%s5 + $0x230] sm:$0xf]
    %v6939 = vld [vmem:[%s5 + $0x234] sm:$0xf]
    %v6940 = vld [vmem:[%s5 + $0x238] sm:$0xf]
    %v6941 = vld [vmem:[%s5 + $0x23c] sm:$0xf]
    %v6942 = vld [vmem:[%s5 + $0x240] sm:$0xf]
    %v6943 = vld [vmem:[%s5 + $0x244] sm:$0xf]
    %v6944 = vld [vmem:[%s5 + $0x248] sm:$0xf]
    %v6945 = vld [vmem:[%s5 + $0x24c] sm:$0xf]
    %v6946 = vld [vmem:[%s5 + $0x250] sm:$0xf]
    %v6947 = vld [vmem:[%s5 + $0x254] sm:$0xf]
    %v6948 = vld [vmem:[%s5 + $0x258] sm:$0xf]
    %v6949 = vld [vmem:[%s5 + $0x25c] sm:$0xf]
    %v6950 = vld [vmem:[%s5 + $0x260] sm:$0xf]
    %v6951 = vld [vmem:[%s5 + $0x264] sm:$0xf]
    %v6952 = vld [vmem:[%s5 + $0x268] sm:$0xf]
    %v6953 = vld [vmem:[%s5 + $0x26c] sm:$0xf]
    %v6954 = vld [vmem:[%s5 + $0x270] sm:$0xf]
    %v6955 = vld [vmem:[%s5 + $0x274] sm:$0xf]
    %v6956 = vld [vmem:[%s5 + $0x278] sm:$0xf]
    %v6957 = vld [vmem:[%s5 + $0x27c] sm:$0xf]
    %v6958 = vld [vmem:[%s5 + $0x280] sm:$0xf]
    %v6959 = vld [vmem:[%s5 + $0x284] sm:$0xf]
    %v6960 = vld [vmem:[%s5 + $0x288] sm:$0xf]
    %v6961 = vld [vmem:[%s5 + $0x28c] sm:$0xf]
    %v6962 = vld [vmem:[%s5 + $0x290] sm:$0xf]
    %v6963 = vld [vmem:[%s5 + $0x294] sm:$0xf]
    %v6964 = vld [vmem:[%s5 + $0x298] sm:$0xf]
    %v6965 = vld [vmem:[%s5 + $0x29c] sm:$0xf]
    %v6966 = vld [vmem:[%s5 + $0x2a0] sm:$0xf]
    %v6967 = vld [vmem:[%s5 + $0x2a4] sm:$0xf]
    %v6968 = vld [vmem:[%s5 + $0x2a8] sm:$0xf]
    %v6969 = vld [vmem:[%s5 + $0x2ac] sm:$0xf]
    %v6970 = vld [vmem:[%s5 + $0x2b0] sm:$0xf]
    %v6971 = vld [vmem:[%s5 + $0x2b4] sm:$0xf]
    %v6972 = vld [vmem:[%s5 + $0x2b8] sm:$0xf]
    %v6973 = vld [vmem:[%s5 + $0x2bc] sm:$0xf]
    %v6974 = vld [vmem:[%s5 + $0x2c0] sm:$0xf]
    %v6975 = vld [vmem:[%s5 + $0x2c4] sm:$0xf]
    %v6976 = vld [vmem:[%s5 + $0x2c8] sm:$0xf]
    %v6977 = vld [vmem:[%s5 + $0x2cc] sm:$0xf]
    %v6978 = vld [vmem:[%s5 + $0x2d0] sm:$0xf]
    %v6979 = vld [vmem:[%s5 + $0x2d4] sm:$0xf]
    %v6980 = vld [vmem:[%s5 + $0x2d8] sm:$0xf]
    %v6981 = vld [vmem:[%s5 + $0x2dc] sm:$0xf]
    %v6982 = vld [vmem:[%s5 + $0x2e0] sm:$0xf]
    %v6983 = vld [vmem:[%s5 + $0x2e4] sm:$0xf]
    %v6984 = vld [vmem:[%s5 + $0x2e8] sm:$0xf]
    %v6985 = vld [vmem:[%s5 + $0x2ec] sm:$0xf]
    %v6986 = vld [vmem:[%s5 + $0x2f0] sm:$0xf]
    %v6987 = vld [vmem:[%s5 + $0x2f4] sm:$0xf]
    %v6988 = vld [vmem:[%s5 + $0x2f8] sm:$0xf]
    %v6989 = vld [vmem:[%s5 + $0x2fc] sm:$0xf]
    %v6990 = vld [vmem:[%s5 + $0x300] sm:$0xf]
    %v6991 = vld [vmem:[%s5 + $0x304] sm:$0xf]
    %v6992 = vld [vmem:[%s5 + $0x308] sm:$0xf]
    %v6993 = vld [vmem:[%s5 + $0x30c] sm:$0xf]
    %v6994 = vld [vmem:[%s6] sm:$0x1]
    %v6996 = vlaneseq
    %v6997 = vshrl.u32 %v6996, 7
    %v6998 = vsub.s32 0, %v6997
    %v6999 = vrot.slane %v6994, %v6998
    %v7197 = vunpack.c.l.b16 %v6798
    %v7198 = vunpack.c.l.b16 %v6799
    %v7199 = vunpack.c.l.b16 %v6800
    %v7200 = vunpack.c.l.b16 %v6801
    %v7201 = vunpack.c.l.b16 %v6802
    %v7202 = vunpack.c.l.b16 %v6803
    %v7203 = vunpack.c.l.b16 %v6804
    %v7204 = vunpack.c.l.b16 %v6805
    %v7205 = vunpack.c.l.b16 %v6806
    %v7206 = vunpack.c.l.b16 %v6807
    %v7207 = vunpack.c.l.b16 %v6808
    %v7208 = vunpack.c.l.b16 %v6809
    %v7209 = vunpack.c.l.b16 %v6810
    %v7210 = vunpack.c.l.b16 %v6811
    %v7211 = vunpack.c.l.b16 %v6812
    %v7212 = vunpack.c.l.b16 %v6813
    %v7213 = vunpack.c.l.b16 %v6814
    %v7214 = vunpack.c.l.b16 %v6815
    %v7215 = vunpack.c.l.b16 %v6816
    %v7216 = vunpack.c.l.b16 %v6817
    %v7217 = vunpack.c.l.b16 %v6818
    %v7218 = vunpack.c.l.b16 %v6819
    %v7219 = vunpack.c.l.b16 %v6820
    %v7220 = vunpack.c.l.b16 %v6821
    %v7221 = vunpack.c.l.b16 %v6822
    %v7222 = vunpack.c.l.b16 %v6823
    %v7223 = vunpack.c.l.b16 %v6824
    %v7224 = vunpack.c.l.b16 %v6825
    %v7225 = vunpack.c.l.b16 %v6826
    %v7226 = vunpack.c.l.b16 %v6827
    %v7227 = vunpack.c.l.b16 %v6828
    %v7228 = vunpack.c.l.b16 %v6829
    %v7229 = vunpack.c.l.b16 %v6830
    %v7230 = vunpack.c.l.b16 %v6831
    %v7231 = vunpack.c.l.b16 %v6832
    %v7232 = vunpack.c.l.b16 %v6833
    %v7233 = vunpack.c.l.b16 %v6834
    %v7234 = vunpack.c.l.b16 %v6835
    %v7235 = vunpack.c.l.b16 %v6836
    %v7236 = vunpack.c.l.b16 %v6837
    %v7237 = vunpack.c.l.b16 %v6838
    %v7238 = vunpack.c.l.b16 %v6839
    %v7239 = vunpack.c.l.b16 %v6840
    %v7240 = vunpack.c.l.b16 %v6841
    %v7241 = vunpack.c.l.b16 %v6842
    %v7242 = vunpack.c.l.b16 %v6843
    %v7243 = vunpack.c.l.b16 %v6844
    %v7244 = vunpack.c.l.b16 %v6845
    %v7245 = vunpack.c.l.b16 %v6846
    %v7246 = vunpack.c.l.b16 %v6847
    %v7247 = vunpack.c.l.b16 %v6848
    %v7248 = vunpack.c.l.b16 %v6849
    %v7249 = vunpack.c.l.b16 %v6850
    %v7250 = vunpack.c.l.b16 %v6851
    %v7251 = vunpack.c.l.b16 %v6852
    %v7252 = vunpack.c.l.b16 %v6853
    %v7253 = vunpack.c.l.b16 %v6854
    %v7254 = vunpack.c.l.b16 %v6855
    %v7255 = vunpack.c.l.b16 %v6856
    %v7256 = vunpack.c.l.b16 %v6857
    %v7257 = vunpack.c.l.b16 %v6858
    %v7258 = vunpack.c.l.b16 %v6859
    %v7259 = vunpack.c.l.b16 %v6860
    %v7260 = vunpack.c.l.b16 %v6861
    %v7261 = vunpack.c.l.b16 %v6862
    %v7262 = vunpack.c.l.b16 %v6863
    %v7263 = vunpack.c.l.b16 %v6864
    %v7264 = vunpack.c.l.b16 %v6865
    %v7265 = vunpack.c.l.b16 %v6866
    %v7266 = vunpack.c.l.b16 %v6867
    %v7267 = vunpack.c.l.b16 %v6868
    %v7268 = vunpack.c.l.b16 %v6869
    %v7269 = vunpack.c.l.b16 %v6870
    %v7270 = vunpack.c.l.b16 %v6871
    %v7271 = vunpack.c.l.b16 %v6872
    %v7272 = vunpack.c.l.b16 %v6873
    %v7273 = vunpack.c.l.b16 %v6874
    %v7274 = vunpack.c.l.b16 %v6875
    %v7275 = vunpack.c.l.b16 %v6876
    %v7276 = vunpack.c.l.b16 %v6877
    %v7277 = vunpack.c.l.b16 %v6878
    %v7278 = vunpack.c.l.b16 %v6879
    %v7279 = vunpack.c.l.b16 %v6880
    %v7280 = vunpack.c.l.b16 %v6881
    %v7281 = vunpack.c.l.b16 %v6882
    %v7282 = vunpack.c.l.b16 %v6883
    %v7283 = vunpack.c.l.b16 %v6884
    %v7284 = vunpack.c.l.b16 %v6885
    %v7285 = vunpack.c.l.b16 %v6886
    %v7286 = vunpack.c.l.b16 %v6887
    %v7287 = vunpack.c.l.b16 %v6888
    %v7288 = vunpack.c.l.b16 %v6889
    %v7289 = vunpack.c.l.b16 %v6890
    %v7290 = vunpack.c.l.b16 %v6891
    %v7291 = vunpack.c.l.b16 %v6892
    %v7292 = vunpack.c.l.b16 %v6893
    %v7293 = vunpack.c.l.b16 %v6894
    %v7294 = vunpack.c.l.b16 %v6895
    %v7295 = vunpack.c.l.b16 %v6896
    %v7296 = vunpack.c.l.b16 %v6897
    %v7297 = vunpack.c.l.b16 %v6898
    %v7298 = vunpack.c.l.b16 %v6899
    %v7299 = vunpack.c.l.b16 %v6900
    %v7300 = vunpack.c.l.b16 %v6901
    %v7301 = vunpack.c.l.b16 %v6902
    %v7302 = vunpack.c.l.b16 %v6903
    %v7303 = vunpack.c.l.b16 %v6904
    %v7304 = vunpack.c.l.b16 %v6905
    %v7305 = vunpack.c.l.b16 %v6906
    %v7306 = vunpack.c.l.b16 %v6907
    %v7307 = vunpack.c.l.b16 %v6908
    %v7308 = vunpack.c.l.b16 %v6909
    %v7309 = vunpack.c.l.b16 %v6910
    %v7310 = vunpack.c.l.b16 %v6911
    %v7311 = vunpack.c.l.b16 %v6912
    %v7312 = vunpack.c.l.b16 %v6913
    %v7313 = vunpack.c.l.b16 %v6914
    %v7314 = vunpack.c.l.b16 %v6915
    %v7315 = vunpack.c.l.b16 %v6916
    %v7316 = vunpack.c.l.b16 %v6917
    %v7317 = vunpack.c.l.b16 %v6918
    %v7318 = vunpack.c.l.b16 %v6919
    %v7319 = vunpack.c.l.b16 %v6920
    %v7320 = vunpack.c.l.b16 %v6921
    %v7321 = vunpack.c.l.b16 %v6922
    %v7322 = vunpack.c.l.b16 %v6923
    %v7323 = vunpack.c.l.b16 %v6924
    %v7324 = vunpack.c.l.b16 %v6925
    %v7325 = vunpack.c.l.b16 %v6926
    %v7326 = vunpack.c.l.b16 %v6927
    %v7327 = vunpack.c.l.b16 %v6928
    %v7328 = vunpack.c.l.b16 %v6929
    %v7329 = vunpack.c.l.b16 %v6930
    %v7330 = vunpack.c.l.b16 %v6931
    %v7331 = vunpack.c.l.b16 %v6932
    %v7332 = vunpack.c.l.b16 %v6933
    %v7333 = vunpack.c.l.b16 %v6934
    %v7334 = vunpack.c.l.b16 %v6935
    %v7335 = vunpack.c.l.b16 %v6936
    %v7336 = vunpack.c.l.b16 %v6937
    %v7337 = vunpack.c.l.b16 %v6938
    %v7338 = vunpack.c.l.b16 %v6939
    %v7339 = vunpack.c.l.b16 %v6940
    %v7340 = vunpack.c.l.b16 %v6941
    %v7341 = vunpack.c.l.b16 %v6942
    %v7342 = vunpack.c.l.b16 %v6943
    %v7343 = vunpack.c.l.b16 %v6944
    %v7344 = vunpack.c.l.b16 %v6945
    %v7345 = vunpack.c.l.b16 %v6946
    %v7346 = vunpack.c.l.b16 %v6947
    %v7347 = vunpack.c.l.b16 %v6948
    %v7348 = vunpack.c.l.b16 %v6949
    %v7349 = vunpack.c.l.b16 %v6950
    %v7350 = vunpack.c.l.b16 %v6951
    %v7351 = vunpack.c.l.b16 %v6952
    %v7352 = vunpack.c.l.b16 %v6953
    %v7353 = vunpack.c.l.b16 %v6954
    %v7354 = vunpack.c.l.b16 %v6955
    %v7355 = vunpack.c.l.b16 %v6956
    %v7356 = vunpack.c.l.b16 %v6957
    %v7357 = vunpack.c.l.b16 %v6958
    %v7358 = vunpack.c.l.b16 %v6959
    %v7359 = vunpack.c.l.b16 %v6960
    %v7360 = vunpack.c.l.b16 %v6961
    %v7361 = vunpack.c.l.b16 %v6962
    %v7362 = vunpack.c.l.b16 %v6963
    %v7363 = vunpack.c.l.b16 %v6964
    %v7364 = vunpack.c.l.b16 %v6965
    %v7365 = vunpack.c.l.b16 %v6966
    %v7366 = vunpack.c.l.b16 %v6967
    %v7367 = vunpack.c.l.b16 %v6968
    %v7368 = vunpack.c.l.b16 %v6969
    %v7369 = vunpack.c.l.b16 %v6970
    %v7370 = vunpack.c.l.b16 %v6971
    %v7371 = vunpack.c.l.b16 %v6972
    %v7372 = vunpack.c.l.b16 %v6973
    %v7373 = vunpack.c.l.b16 %v6974
    %v7374 = vunpack.c.l.b16 %v6975
    %v7375 = vunpack.c.l.b16 %v6976
    %v7376 = vunpack.c.l.b16 %v6977
    %v7377 = vunpack.c.l.b16 %v6978
    %v7378 = vunpack.c.l.b16 %v6979
    %v7379 = vunpack.c.l.b16 %v6980
    %v7380 = vunpack.c.l.b16 %v6981
    %v7381 = vunpack.c.l.b16 %v6982
    %v7382 = vunpack.c.l.b16 %v6983
    %v7383 = vunpack.c.l.b16 %v6984
    %v7384 = vunpack.c.l.b16 %v6985
    %v7385 = vunpack.c.l.b16 %v6986
    %v7386 = vunpack.c.l.b16 %v6987
    %v7387 = vunpack.c.l.b16 %v6988
    %v7388 = vunpack.c.l.b16 %v6989
    %v7389 = vunpack.c.l.b16 %v6990
    %v7390 = vunpack.c.l.b16 %v6991
    %v7391 = vunpack.c.l.b16 %v6992
    %v7392 = vunpack.c.l.b16 %v6993
    %v7393 = vpack.c.b16 %v7198, %v7197
    %v7394 = vpack.c.b16 %v7200, %v7199
    %v7395 = vpack.c.b16 %v7202, %v7201
    %v7396 = vpack.c.b16 %v7204, %v7203
    %v7397 = vpack.c.b16 %v7206, %v7205
    %v7398 = vpack.c.b16 %v7208, %v7207
    %v7399 = vpack.c.b16 %v7210, %v7209
    %v7400 = vpack.c.b16 %v7212, %v7211
    %v7401 = vpack.c.b16 %v7214, %v7213
    %v7402 = vpack.c.b16 %v7216, %v7215
    %v7403 = vpack.c.b16 %v7218, %v7217
    %v7404 = vpack.c.b16 %v7220, %v7219
    %v7405 = vpack.c.b16 %v7222, %v7221
    %v7406 = vpack.c.b16 %v7224, %v7223
    %v7407 = vpack.c.b16 %v7226, %v7225
    %v7408 = vpack.c.b16 %v7228, %v7227
    %v7409 = vpack.c.b16 %v7230, %v7229
    %v7410 = vpack.c.b16 %v7232, %v7231
    %v7411 = vpack.c.b16 %v7234, %v7233
    %v7412 = vpack.c.b16 %v7236, %v7235
    %v7413 = vpack.c.b16 %v7238, %v7237
    %v7414 = vpack.c.b16 %v7240, %v7239
    %v7415 = vpack.c.b16 %v7242, %v7241
    %v7416 = vpack.c.b16 %v7244, %v7243
    %v7417 = vpack.c.b16 %v7246, %v7245
    %v7418 = vpack.c.b16 %v7248, %v7247
    %v7419 = vpack.c.b16 %v7250, %v7249
    %v7420 = vpack.c.b16 %v7252, %v7251
    %v7421 = vpack.c.b16 %v7254, %v7253
    %v7422 = vpack.c.b16 %v7256, %v7255
    %v7423 = vpack.c.b16 %v7258, %v7257
    %v7424 = vpack.c.b16 %v7260, %v7259
    %v7425 = vpack.c.b16 %v7262, %v7261
    %v7426 = vpack.c.b16 %v7264, %v7263
    %v7427 = vpack.c.b16 %v7266, %v7265
    %v7428 = vpack.c.b16 %v7268, %v7267
    %v7429 = vpack.c.b16 %v7270, %v7269
    %v7430 = vpack.c.b16 %v7272, %v7271
    %v7431 = vpack.c.b16 %v7274, %v7273
    %v7432 = vpack.c.b16 %v7276, %v7275
    %v7433 = vpack.c.b16 %v7278, %v7277
    %v7434 = vpack.c.b16 %v7280, %v7279
    %v7435 = vpack.c.b16 %v7282, %v7281
    %v7436 = vpack.c.b16 %v7284, %v7283
    %v7437 = vpack.c.b16 %v7286, %v7285
    %v7438 = vpack.c.b16 %v7288, %v7287
    %v7439 = vpack.c.b16 %v7290, %v7289
    %v7440 = vpack.c.b16 %v7292, %v7291
    %v7441 = vpack.c.b16 %v7294, %v7293
    %v7442 = vpack.c.b16 %v7296, %v7295
    %v7443 = vpack.c.b16 %v7298, %v7297
    %v7444 = vpack.c.b16 %v7300, %v7299
    %v7445 = vpack.c.b16 %v7302, %v7301
    %v7446 = vpack.c.b16 %v7304, %v7303
    %v7447 = vpack.c.b16 %v7306, %v7305
    %v7448 = vpack.c.b16 %v7308, %v7307
    %v7449 = vpack.c.b16 %v7310, %v7309
    %v7450 = vpack.c.b16 %v7312, %v7311
    %v7451 = vpack.c.b16 %v7314, %v7313
    %v7452 = vpack.c.b16 %v7316, %v7315
    %v7453 = vpack.c.b16 %v7318, %v7317
    %v7454 = vpack.c.b16 %v7320, %v7319
    %v7455 = vpack.c.b16 %v7322, %v7321
    %v7456 = vpack.c.b16 %v7324, %v7323
    %v7457 = vpack.c.b16 %v7326, %v7325
    %v7458 = vpack.c.b16 %v7328, %v7327
    %v7459 = vpack.c.b16 %v7330, %v7329
    %v7460 = vpack.c.b16 %v7332, %v7331
    %v7461 = vpack.c.b16 %v7334, %v7333
    %v7462 = vpack.c.b16 %v7336, %v7335
    %v7463 = vpack.c.b16 %v7338, %v7337
    %v7464 = vpack.c.b16 %v7340, %v7339
    %v7465 = vpack.c.b16 %v7342, %v7341
    %v7466 = vpack.c.b16 %v7344, %v7343
    %v7467 = vpack.c.b16 %v7346, %v7345
    %v7468 = vpack.c.b16 %v7348, %v7347
    %v7469 = vpack.c.b16 %v7350, %v7349
    %v7470 = vpack.c.b16 %v7352, %v7351
    %v7471 = vpack.c.b16 %v7354, %v7353
    %v7472 = vpack.c.b16 %v7356, %v7355
    %v7473 = vpack.c.b16 %v7358, %v7357
    %v7474 = vpack.c.b16 %v7360, %v7359
    %v7475 = vpack.c.b16 %v7362, %v7361
    %v7476 = vpack.c.b16 %v7364, %v7363
    %v7477 = vpack.c.b16 %v7366, %v7365
    %v7478 = vpack.c.b16 %v7368, %v7367
    %v7479 = vpack.c.b16 %v7370, %v7369
    %v7480 = vpack.c.b16 %v7372, %v7371
    %v7481 = vpack.c.b16 %v7374, %v7373
    %v7482 = vpack.c.b16 %v7376, %v7375
    %v7483 = vpack.c.b16 %v7378, %v7377
    %v7484 = vpack.c.b16 %v7380, %v7379
    %v7485 = vpack.c.b16 %v7382, %v7381
    %v7486 = vpack.c.b16 %v7384, %v7383
    %v7487 = vpack.c.b16 %v7386, %v7385
    %v7488 = vpack.c.b16 %v7388, %v7387
    %v7489 = vpack.c.b16 %v7390, %v7389
    %v7490 = vpack.c.b16 %v7392, %v7391
    %v7590 = vsel %vm382, %v6797, 0
    %7592 = vmatprep.subr.bf16.mxu0 0
    %7593 = vmatpush1.bf16.msra.mxu0 %v7400
    %7594 = vmatprep.subr.bf16.mxu0 0
    %7595 = vmatpush1.bf16.msra.mxu0 %v7399
    %7596 = vmatprep.subr.bf16.mxu0 0
    %7597 = vmatpush1.bf16.msra.mxu0 %v7398
    %7598 = vmatprep.subr.bf16.mxu0 0
    %7599 = vmatpush1.bf16.msra.mxu0 %v7397
    %7600 = vmatprep.subr.bf16.mxu0 0
    %7601 = vmatpush1.bf16.msra.mxu0 %v7396
    %7602 = vmatprep.subr.bf16.mxu0 0
    %7603 = vmatpush1.bf16.msra.mxu0 %v7395
    %7604 = vmatprep.subr.bf16.mxu0 0
    %7605 = vmatpush1.bf16.msra.mxu0 %v7394
    %7606 = vmatprep.subr.bf16.mxu0 0
    %7607 = vmatpush1.bf16.msra.mxu0 %v7393
    %7608 = vmatprep.subr.bf16.mxu0 0
    %7609 = vmatpush2.bf16.msra.mxu0 %v7408
    %7610 = vmatprep.subr.bf16.mxu0 0
    %7611 = vmatpush2.bf16.msra.mxu0 %v7407
    %7612 = vmatprep.subr.bf16.mxu0 0
    %7613 = vmatpush2.bf16.msra.mxu0 %v7406
    %7614 = vmatprep.subr.bf16.mxu0 0
    %7615 = vmatpush2.bf16.msra.mxu0 %v7405
    %7616 = vmatprep.subr.bf16.mxu0 0
    %7617 = vmatpush2.bf16.msra.mxu0 %v7404
    %7618 = vmatprep.subr.bf16.mxu0 0
    %7619 = vmatpush2.bf16.msra.mxu0 %v7403
    %7620 = vmatprep.subr.bf16.mxu0 0
    %7621 = vmatpush2.bf16.msra.mxu0 %v7402
    %7622 = vmatprep.subr.bf16.mxu0 0
    %7623 = vmatpush2.bf16.msra.mxu0 %v7401
    %7624 = vmatprep.mubr.bf16.mxu0 %v6786
    %7625 = vmatmul.mubr.bf16.gmra.mxu0 %v6785
    %v7626 = vpop.f32.mrf.mxu0
    %v7627 = vadd.f32 %v6999, %v7626
    %v7628 = vpop.f32.mrf.mxu0
    %v7629 = vpop.f32.mrf.mxu0
    %v7630 = vpop.f32.mrf.mxu0
    %7631 = vdwg.mxu0
    %7632 = vmatprep.subr.bf16.mxu0 0
    %7633 = vmatpush1.bf16.msra.mxu0 %v7416
    %7634 = vmatprep.subr.bf16.mxu0 0
    %7635 = vmatpush1.bf16.msra.mxu0 %v7415
    %7636 = vmatprep.subr.bf16.mxu0 0
    %7637 = vmatpush1.bf16.msra.mxu0 %v7414
    %7638 = vmatprep.subr.bf16.mxu0 0
    %7639 = vmatpush1.bf16.msra.mxu0 %v7413
    %7640 = vmatprep.subr.bf16.mxu0 0
    %7641 = vmatpush1.bf16.msra.mxu0 %v7412
    %7642 = vmatprep.subr.bf16.mxu0 0
    %7643 = vmatpush1.bf16.msra.mxu0 %v7411
    %7644 = vmatprep.subr.bf16.mxu0 0
    %7645 = vmatpush1.bf16.msra.mxu0 %v7410
    %7646 = vmatprep.subr.bf16.mxu0 0
    %7647 = vmatpush1.bf16.msra.mxu0 %v7409
    %7648 = vmatprep.subr.bf16.mxu0 0
    %7649 = vmatpush2.bf16.msra.mxu0 %v7424
    %7650 = vmatprep.subr.bf16.mxu0 0
    %7651 = vmatpush2.bf16.msra.mxu0 %v7423
    %7652 = vmatprep.subr.bf16.mxu0 0
    %7653 = vmatpush2.bf16.msra.mxu0 %v7422
    %7654 = vmatprep.subr.bf16.mxu0 0
    %7655 = vmatpush2.bf16.msra.mxu0 %v7421
    %7656 = vmatprep.subr.bf16.mxu0 0
    %7657 = vmatpush2.bf16.msra.mxu0 %v7420
    %7658 = vmatprep.subr.bf16.mxu0 0
    %7659 = vmatpush2.bf16.msra.mxu0 %v7419
    %7660 = vmatprep.subr.bf16.mxu0 0
    %7661 = vmatpush2.bf16.msra.mxu0 %v7418
    %7662 = vmatprep.subr.bf16.mxu0 0
    %7663 = vmatpush2.bf16.msra.mxu0 %v7417
    %7664 = vmatprep.mubr.bf16.mxu0 %v6788
    %7665 = vmatmul.mubr.bf16.gmra.mxu0 %v6787
    %v7666 = vpop.f32.mrf.mxu0
    %v7667 = vadd.f32 %v7627, %v7666
    %v7668 = vpop.f32.mrf.mxu0
    %v7669 = vpop.f32.mrf.mxu0
    %v7670 = vpop.f32.mrf.mxu0
    %7671 = vdwg.mxu0
    %7672 = vmatprep.subr.bf16.mxu0 0
    %7673 = vmatpush1.bf16.msra.mxu0 %v7432
    %7674 = vmatprep.subr.bf16.mxu0 0
    %7675 = vmatpush1.bf16.msra.mxu0 %v7431
    %7676 = vmatprep.subr.bf16.mxu0 0
    %7677 = vmatpush1.bf16.msra.mxu0 %v7430
    %7678 = vmatprep.subr.bf16.mxu0 0
    %7679 = vmatpush1.bf16.msra.mxu0 %v7429
    %7680 = vmatprep.subr.bf16.mxu0 0
    %7681 = vmatpush1.bf16.msra.mxu0 %v7428
    %7682 = vmatprep.subr.bf16.mxu0 0
    %7683 = vmatpush1.bf16.msra.mxu0 %v7427
    %7684 = vmatprep.subr.bf16.mxu0 0
    %7685 = vmatpush1.bf16.msra.mxu0 %v7426
    %7686 = vmatprep.subr.bf16.mxu0 0
    %7687 = vmatpush1.bf16.msra.mxu0 %v7425
    %7688 = vmatprep.subr.bf16.mxu0 0
    %7689 = vmatpush2.bf16.msra.mxu0 %v7440
    %7690 = vmatprep.subr.bf16.mxu0 0
    %7691 = vmatpush2.bf16.msra.mxu0 %v7439
    %7692 = vmatprep.subr.bf16.mxu0 0
    %7693 = vmatpush2.bf16.msra.mxu0 %v7438
    %7694 = vmatprep.subr.bf16.mxu0 0
    %7695 = vmatpush2.bf16.msra.mxu0 %v7437
    %7696 = vmatprep.subr.bf16.mxu0 0
    %7697 = vmatpush2.bf16.msra.mxu0 %v7436
    %7698 = vmatprep.subr.bf16.mxu0 0
    %7699 = vmatpush2.bf16.msra.mxu0 %v7435
    %7700 = vmatprep.subr.bf16.mxu0 0
    %7701 = vmatpush2.bf16.msra.mxu0 %v7434
    %7702 = vmatprep.subr.bf16.mxu0 0
    %7703 = vmatpush2.bf16.msra.mxu0 %v7433
    %7704 = vmatprep.mubr.bf16.mxu0 %v6790
    %7705 = vmatmul.mubr.bf16.gmra.mxu0 %v6789
    %v7706 = vpop.f32.mrf.mxu0
    %v7707 = vadd.f32 %v7667, %v7706
    %v7708 = vpop.f32.mrf.mxu0
    %v7709 = vpop.f32.mrf.mxu0
    %v7710 = vpop.f32.mrf.mxu0
    %7711 = vdwg.mxu0
    %7712 = vmatprep.subr.bf16.mxu0 0
    %7713 = vmatpush1.bf16.msra.mxu0 %v7448
    %7714 = vmatprep.subr.bf16.mxu0 0
    %7715 = vmatpush1.bf16.msra.mxu0 %v7447
    %7716 = vmatprep.subr.bf16.mxu0 0
    %7717 = vmatpush1.bf16.msra.mxu0 %v7446
    %7718 = vmatprep.subr.bf16.mxu0 0
    %7719 = vmatpush1.bf16.msra.mxu0 %v7445
    %7720 = vmatprep.subr.bf16.mxu0 0
    %7721 = vmatpush1.bf16.msra.mxu0 %v7444
    %7722 = vmatprep.subr.bf16.mxu0 0
    %7723 = vmatpush1.bf16.msra.mxu0 %v7443
    %7724 = vmatprep.subr.bf16.mxu0 0
    %7725 = vmatpush1.bf16.msra.mxu0 %v7442
    %7726 = vmatprep.subr.bf16.mxu0 0
    %7727 = vmatpush1.bf16.msra.mxu0 %v7441
    %7728 = vmatprep.subr.bf16.mxu0 0
    %7729 = vmatpush2.bf16.msra.mxu0 %v7456
    %7730 = vmatprep.subr.bf16.mxu0 0
    %7731 = vmatpush2.bf16.msra.mxu0 %v7455
    %7732 = vmatprep.subr.bf16.mxu0 0
    %7733 = vmatpush2.bf16.msra.mxu0 %v7454
    %7734 = vmatprep.subr.bf16.mxu0 0
    %7735 = vmatpush2.bf16.msra.mxu0 %v7453
    %7736 = vmatprep.subr.bf16.mxu0 0
    %7737 = vmatpush2.bf16.msra.mxu0 %v7452
    %7738 = vmatprep.subr.bf16.mxu0 0
    %7739 = vmatpush2.bf16.msra.mxu0 %v7451
    %7740 = vmatprep.subr.bf16.mxu0 0
    %7741 = vmatpush2.bf16.msra.mxu0 %v7450
    %7742 = vmatprep.subr.bf16.mxu0 0
    %7743 = vmatpush2.bf16.msra.mxu0 %v7449
    %7744 = vmatprep.mubr.bf16.mxu0 %v6792
    %7745 = vmatmul.mubr.bf16.gmra.mxu0 %v6791
    %v7746 = vpop.f32.mrf.mxu0
    %v7747 = vadd.f32 %v7707, %v7746
    %v7748 = vpop.f32.mrf.mxu0
    %v7749 = vpop.f32.mrf.mxu0
    %v7750 = vpop.f32.mrf.mxu0
    %7751 = vdwg.mxu0
    %7752 = vmatprep.subr.bf16.mxu0 0
    %7753 = vmatpush1.bf16.msra.mxu0 %v7464
    %7754 = vmatprep.subr.bf16.mxu0 0
    %7755 = vmatpush1.bf16.msra.mxu0 %v7463
    %7756 = vmatprep.subr.bf16.mxu0 0
    %7757 = vmatpush1.bf16.msra.mxu0 %v7462
    %7758 = vmatprep.subr.bf16.mxu0 0
    %7759 = vmatpush1.bf16.msra.mxu0 %v7461
    %7760 = vmatprep.subr.bf16.mxu0 0
    %7761 = vmatpush1.bf16.msra.mxu0 %v7460
    %7762 = vmatprep.subr.bf16.mxu0 0
    %7763 = vmatpush1.bf16.msra.mxu0 %v7459
    %7764 = vmatprep.subr.bf16.mxu0 0
    %7765 = vmatpush1.bf16.msra.mxu0 %v7458
    %7766 = vmatprep.subr.bf16.mxu0 0
    %7767 = vmatpush1.bf16.msra.mxu0 %v7457
    %7768 = vmatprep.subr.bf16.mxu0 0
    %7769 = vmatpush2.bf16.msra.mxu0 %v7472
    %7770 = vmatprep.subr.bf16.mxu0 0
    %7771 = vmatpush2.bf16.msra.mxu0 %v7471
    %7772 = vmatprep.subr.bf16.mxu0 0
    %7773 = vmatpush2.bf16.msra.mxu0 %v7470
    %7774 = vmatprep.subr.bf16.mxu0 0
    %7775 = vmatpush2.bf16.msra.mxu0 %v7469
    %7776 = vmatprep.subr.bf16.mxu0 0
    %7777 = vmatpush2.bf16.msra.mxu0 %v7468
    %7778 = vmatprep.subr.bf16.mxu0 0
    %7779 = vmatpush2.bf16.msra.mxu0 %v7467
    %7780 = vmatprep.subr.bf16.mxu0 0
    %7781 = vmatpush2.bf16.msra.mxu0 %v7466
    %7782 = vmatprep.subr.bf16.mxu0 0
    %7783 = vmatpush2.bf16.msra.mxu0 %v7465
    %7784 = vmatprep.mubr.bf16.mxu0 %v6794
    %7785 = vmatmul.mubr.bf16.gmra.mxu0 %v6793
    %v7786 = vpop.f32.mrf.mxu0
    %v7787 = vadd.f32 %v7747, %v7786
    %v7788 = vpop.f32.mrf.mxu0
    %v7789 = vpop.f32.mrf.mxu0
    %v7790 = vpop.f32.mrf.mxu0
    %7791 = vdwg.mxu0
    %7792 = vmatprep.subr.bf16.mxu0 0
    %7793 = vmatpush1.bf16.msra.mxu0 %v7480
    %7794 = vmatprep.subr.bf16.mxu0 0
    %7795 = vmatpush1.bf16.msra.mxu0 %v7479
    %7796 = vmatprep.subr.bf16.mxu0 0
    %7797 = vmatpush1.bf16.msra.mxu0 %v7478
    %7798 = vmatprep.subr.bf16.mxu0 0
    %7799 = vmatpush1.bf16.msra.mxu0 %v7477
    %7800 = vmatprep.subr.bf16.mxu0 0
    %7801 = vmatpush1.bf16.msra.mxu0 %v7476
    %7802 = vmatprep.subr.bf16.mxu0 0
    %7803 = vmatpush1.bf16.msra.mxu0 %v7475
    %7804 = vmatprep.subr.bf16.mxu0 0
    %7805 = vmatpush1.bf16.msra.mxu0 %v7474
    %7806 = vmatprep.subr.bf16.mxu0 0
    %7807 = vmatpush1.bf16.msra.mxu0 %v7473
    %7808 = vmatprep.subr.bf16.mxu0 0
    %7809 = vmatpush2.bf16.msra.mxu0 %v7488
    %7810 = vmatprep.subr.bf16.mxu0 0
    %7811 = vmatpush2.bf16.msra.mxu0 %v7487
    %7812 = vmatprep.subr.bf16.mxu0 0
    %7813 = vmatpush2.bf16.msra.mxu0 %v7486
    %7814 = vmatprep.subr.bf16.mxu0 0
    %7815 = vmatpush2.bf16.msra.mxu0 %v7485
    %7816 = vmatprep.subr.bf16.mxu0 0
    %7817 = vmatpush2.bf16.msra.mxu0 %v7484
    %7818 = vmatprep.subr.bf16.mxu0 0
    %7819 = vmatpush2.bf16.msra.mxu0 %v7483
    %7820 = vmatprep.subr.bf16.mxu0 0
    %7821 = vmatpush2.bf16.msra.mxu0 %v7482
    %7822 = vmatprep.subr.bf16.mxu0 0
    %7823 = vmatpush2.bf16.msra.mxu0 %v7481
    %7824 = vmatprep.mubr.bf16.mxu0 %v6796
    %7825 = vmatmul.mubr.bf16.gmra.mxu0 %v6795
    %v7826 = vpop.f32.mrf.mxu0
    %v7827 = vadd.f32 %v7787, %v7826
    %v7828 = vpop.f32.mrf.mxu0
    %v7829 = vpop.f32.mrf.mxu0
    %v7830 = vpop.f32.mrf.mxu0
    %7831 = vdwg.mxu0
    %7832 = vmatprep.subr.bf16.mxu0 0
    %7833 = vmatpush1.bf16.msra.mxu0 0
    %7834 = vmatprep.subr.bf16.mxu0 0
    %7835 = vmatpush1.bf16.msra.mxu0 0
    %7836 = vmatprep.subr.bf16.mxu0 0
    %7837 = vmatpush1.bf16.msra.mxu0 0
    %7838 = vmatprep.subr.bf16.mxu0 0
    %7839 = vmatpush1.bf16.msra.mxu0 0
    %7840 = vmatprep.subr.bf16.mxu0 0
    %7841 = vmatpush1.bf16.msra.mxu0 0
    %7842 = vmatprep.subr.bf16.mxu0 0
    %7843 = vmatpush1.bf16.msra.mxu0 0
    %7844 = vmatprep.subr.bf16.mxu0 0
    %7845 = vmatpush1.bf16.msra.mxu0 %v7490
    %7846 = vmatprep.subr.bf16.mxu0 0
    %7847 = vmatpush1.bf16.msra.mxu0 %v7489
    %7848 = vmatprep.subr.bf16.mxu0 0
    %7849 = vmatpush2.bf16.msra.mxu0 0
    %7850 = vmatprep.subr.bf16.mxu0 0
    %7851 = vmatpush2.bf16.msra.mxu0 0
    %7852 = vmatprep.subr.bf16.mxu0 0
    %7853 = vmatpush2.bf16.msra.mxu0 0
    %7854 = vmatprep.subr.bf16.mxu0 0
    %7855 = vmatpush2.bf16.msra.mxu0 0
    %7856 = vmatprep.subr.bf16.mxu0 0
    %7857 = vmatpush2.bf16.msra.mxu0 0
    %7858 = vmatprep.subr.bf16.mxu0 0
    %7859 = vmatpush2.bf16.msra.mxu0 0
    %7860 = vmatprep.subr.bf16.mxu0 0
    %7861 = vmatpush2.bf16.msra.mxu0 0
    %7862 = vmatprep.subr.bf16.mxu0 0
    %7863 = vmatpush2.bf16.msra.mxu0 0
    %7864 = vmatprep.mubr.bf16.mxu0 0
    %7865 = vmatmul.mubr.bf16.gmra.mxu0 %v7590
    %v7866 = vpop.f32.mrf.mxu0
    %v7867 = vadd.f32 %v7827, %v7866
    %v7868 = vpop.f32.mrf.mxu0
    %v7869 = vpop.f32.mrf.mxu0
    %v7870 = vpop.f32.mrf.mxu0
    %7871 = vdwg.mxu0
    %vm7872 = vcmask 74752
    %7873 = vst.msk [vmem:[#allocation2] sm:$0x3] %vm7872, %v7867
    // Predicated region
    $region30: #{cnn_forward.1} parent=1 // pred_check
      _
    $region31: #{cnn_forward.1} parent=1 // pred_check_branch
      %7875 = sbr.rel (0) target = $region33
    $region32: #{cnn_forward.1} parent=1 // pred_region
      %s7877 = ssub.s32 32, 32
      %7878 = vsyncadd [#allocation3], %s7877
      %s7880 = sshll.u32 [#allocation2], 4
      %s7881 = int_to_ptr.vmem [resolvable:$true] %s7880
      %7883 = dma.vmem_to_hbm [thread:$0]  %s7881, 32, %s7, [#allocation3]
    $region33: #{cnn_forward.1} parent=1 // pred_fallthru
      _
    // Predicated region
    $region34: #{cnn_forward.1} parent=1 // pred_check
      _
    $region35: #{cnn_forward.1} parent=1 // pred_check_branch
      %7885 = sbr.rel (0) target = $region37
    $region36: #{cnn_forward.1} parent=1 // pred_region
      %7886 = dma.done [#allocation3], 32
    $region37: #{cnn_forward.1} parent=1 // pred_fallthru
      _
    %7887 = vsyncpa [#allocation3], 1

</llo_original>
